<compile_context>
chip_gen: v6e
topology: v6e:2x2x1
jax: 0.10.0
libtpu: 0.0.40
codegen_flags: <defaults>
</compile_context>

<pallas_src>
import functools

import jax
import jax.numpy as jnp
from jax.experimental import pallas as pl
from jax.experimental.pallas import tpu as pltpu

HIDDEN = 256
STATE_SIZE = 64
INPUT_SIZE = 20
MESSAGE_SIZE = 64
NUM_MP_ITERS = 6
LN_EPS = 1e-5
OUT_PAD = 128  # lane-dense padded width of the 2-column output head


# ------------------------------------------------------------------ kernel --

_ARG_NAMES = (
    # per-chunk streamed inputs
    "node_in", "mb1f",
    # chunk-level (batch-block-diagonal) gather / mean-aggregation operators
    "s_src", "a_agg",
    # input network
    "iw1", "ib1", "ig1", "ibe1", "iw2", "ib2", "ig2", "ibe2", "iw3", "ib3",
    # message network (first layer: state part only; invariant part folded into mb1f)
    "mw1s", "mg1", "mbe1", "mw2", "mb2", "mg2", "mbe2", "mw3", "mb3",
    # update network (first layer split: m_hat part / h part)
    "uw1m", "uw1h", "ub1", "ug1", "ube1", "uw2", "ub2", "ug2", "ube2", "uw3", "ub3",
    # output network (layer-3 padded to OUT_PAD lanes: col0=tanh head, col1=sigmoid)
    "ow1", "ob1", "og1", "obe1", "ow2", "ob2", "og2", "obe2", "ow3", "ob3",
)


def _fused_gnn_kernel(*refs):
    """One grid step = one independent batch chunk.  Whole forward inside."""
    out_ref = refs[-1]
    r = dict(zip(_ARG_NAMES, refs[:-1]))
    f32, bf16 = jnp.float32, jnp.bfloat16

    def ln_relu(h, g, be):
        mu = jnp.mean(h, axis=-1, keepdims=True)
        var = jnp.mean(jnp.square(h - mu), axis=-1, keepdims=True)
        hn = (h - mu) * jax.lax.rsqrt(var + LN_EPS)
        return jnp.maximum(hn * r[g][...] + r[be][...], 0.0)

    def mlp_tail(h1, g1, be1, w2, b2, g2, be2, w3, b3):
        # h1 is the f32 pre-activation of layer 1 (bias already included).
        h = ln_relu(h1, g1, be1).astype(bf16)
        h = jnp.dot(h, r[w2][...], preferred_element_type=f32) + r[b2][...]
        h = ln_relu(h, g2, be2).astype(bf16)
        return jnp.dot(h, r[w3][...], preferred_element_type=f32) + r[b3][...]

    # --- prologue: input network -> initial node state for this chunk -------
    x = r["node_in"][...].astype(bf16)
    h1 = jnp.dot(x, r["iw1"][...], preferred_element_type=f32) + r["ib1"][...]
    h0 = mlp_tail(h1, "ig1", "ibe1", "iw2", "ib2", "ig2", "ibe2", "iw3", "ib3")

    # loop-invariant VMEM residents, hoisted out of the unrolled loop
    s_src = r["s_src"][...]
    a_agg = r["a_agg"][...]
    mb1f = r["mb1f"][...]

    def mp_iter(_, h):
        hb = h.astype(bf16)
        # edge gather h[src] as a block-diagonal one-hot matmul (exact select)
        src_state = jnp.dot(s_src, hb, preferred_element_type=f32).astype(bf16)
        m1 = jnp.dot(src_state, r["mw1s"][...], preferred_element_type=f32) + mb1f
        m = jnp.tanh(mlp_tail(m1, "mg1", "mbe1", "mw2", "mb2", "mg2", "mbe2",
                              "mw3", "mb3"))
        # DGL mean-aggregation as a block-diagonal (1/in-degree) weighted matmul
        m_hat = jnp.dot(a_agg, m.astype(bf16), preferred_element_type=f32)
        u1 = (jnp.dot(m_hat.astype(bf16), r["uw1m"][...], preferred_element_type=f32)
              + jnp.dot(hb, r["uw1h"][...], preferred_element_type=f32)
              + r["ub1"][...])
        return mlp_tail(u1, "ug1", "ube1", "uw2", "ub2", "ug2", "ube2",
                        "uw3", "ub3")

    h = jax.lax.fori_loop(0, NUM_MP_ITERS, mp_iter, h0, unroll=True)

    # --- epilogue: output network (tanh -> col 0, sigmoid -> col 1) ---------
    o1 = (jnp.dot(h.astype(bf16), r["ow1"][...], preferred_element_type=f32)
          + r["ob1"][...])
    o = mlp_tail(o1, "og1", "obe1", "ow2", "ob2", "og2", "obe2", "ow3", "ob3")
    act = jnp.tanh(o[:, 0:1])                 # transcendentals on live cols only
    sig = jax.nn.sigmoid(o[:, 1:2])
    col = jax.lax.broadcasted_iota(jnp.int32, o.shape, 1)
    out_ref[...] = jnp.where(col == 0, act, jnp.where(col == 1, sig, 0.0))


def _const_spec(shape):
    zeros = (0,) * len(shape)
    return pl.BlockSpec(shape, lambda c, _z=zeros: _z)


# ------------------------------------------------------------- param setup --

def _linear_params(key, fan_in, fan_out):
    kw, kb = jax.random.split(key)
    bound = float(fan_in) ** -0.5
    w = jax.random.uniform(kw, (fan_in, fan_out), jnp.float32, -bound, bound)
    b = jax.random.uniform(kb, (1, fan_out), jnp.float32, -bound, bound)
    return w, b


def init_subnet(key, in_dim, out_dim, with_sigmoid=False):
    k1, k2, k3, k4 = jax.random.split(key, 4)
    w1, b1 = _linear_params(k1, in_dim, HIDDEN)
    w2, b2 = _linear_params(k2, HIDDEN, HIDDEN)
    w3, b3 = _linear_params(k3, HIDDEN, out_dim)
    p = dict(
        w1=w1, b1=b1,
        g1=jnp.ones((1, HIDDEN), jnp.float32), be1=jnp.zeros((1, HIDDEN), jnp.float32),
        w2=w2, b2=b2,
        g2=jnp.ones((1, HIDDEN), jnp.float32), be2=jnp.zeros((1, HIDDEN), jnp.float32),
        w3=w3, b3=b3,
    )
    if with_sigmoid:
        ws, bs = _linear_params(k4, HIDDEN, 1)
        p["ws"], p["bs"] = ws, bs
    return p


# -------------------------------------------------------------- GNN forward --

def _build_node_input(node_feat, state):
    """Replicates update_states_in_graph: (numNodes, batch, 20)."""
    if state.ndim == 1:
        state = state[None, :]
    batch = state.shape[0]
    nsv = state.shape[1] // 2
    n = (nsv - 5) // 2
    global_info = jnp.concatenate(
        [state[:, 0:5], state[:, nsv:nsv + 5]], axis=-1)              # (B, 10)
    feat_part = jnp.broadcast_to(node_feat[:, None, :], (n, batch, 6))
    glob_part = jnp.broadcast_to(global_info[None, :, :], (n, batch, 10))
    local = jnp.stack(
        [
            state[:, 5:5 + n],                       # feature dim 16
            state[:, 5 + n:5 + 2 * n],               # feature dim 17
            state[:, nsv + 5:nsv + 5 + n],           # feature dim 18
            state[:, nsv + 5 + n:nsv + 5 + 2 * n],   # feature dim 19
        ],
        axis=-1,
    )
    local = jnp.transpose(local, (1, 0, 2))          # (n, B, 4)
    node_input = jnp.concatenate([feat_part, glob_part, local], axis=-1)
    return node_input, state


@functools.partial(jax.jit, static_argnames=("batch_chunk",))
def gnn_forward(params, node_feat, edge_feat, edge_src, edge_dst, state, *,
                batch_chunk=None):
    """Replicates InverseDynamicsGNN.forward (withInputNetwork=True)."""
    hp = jax.lax.Precision.HIGHEST
    bf16 = jnp.bfloat16
    node_input, state = _build_node_input(node_feat, state)
    n, batch, _ = node_input.shape
    e = edge_src.shape[0]

    bc = batch if batch_chunk is None else int(batch_chunk)
    assert batch % bc == 0, "batch must be divisible by batch_chunk"
    num_chunks = batch // bc
    if num_chunks > 1:
        assert (bc * n) % 8 == 0 and (bc * e) % 8 == 0, \
            "per-chunk row counts must be sublane-aligned (multiples of 8)"

    rows_n, rows_e = batch * n, batch * e            # batch-major rows
    rows_n_c, rows_e_c = bc * n, bc * e              # rows per chunk

    # ---- chunk-level gather / mean-aggregation operators (block-diagonal) ----
    row_e = jnp.arange(rows_e_c)
    b_idx, e_idx = row_e // e, row_e % e
    s_src = jnp.zeros((rows_e_c, rows_n_c), jnp.float32).at[
        row_e, b_idx * n + edge_src[e_idx]].set(1.0)

    indeg = jnp.zeros((n,), jnp.float32).at[edge_dst].add(1.0)
    inv_deg = jnp.where(indeg > 0, 1.0 / jnp.maximum(indeg, 1.0), 0.0)
    a_agg = jnp.zeros((rows_n_c, rows_e_c), jnp.float32).at[
        b_idx * n + edge_dst[e_idx], row_e].set(inv_deg[edge_dst[e_idx]])

    # ---- batch-major node inputs (row = b*numNodes + node) ----
    node_in = jnp.transpose(node_input, (1, 0, 2)).reshape(rows_n, INPUT_SIZE)

    # ---- loop-invariant first-layer contribution of the message network ----
    mp = params["message"]
    mw1 = mp["w1"]                                   # (64 + 1 + 20, 256)
    mw1_state = mw1[:STATE_SIZE]
    mw1_edge = mw1[STATE_SIZE:STATE_SIZE + 1]
    mw1_input = mw1[STATE_SIZE + 1:]
    src_input = jnp.transpose(node_input[edge_src], (1, 0, 2)).reshape(
        rows_e, INPUT_SIZE)                          # row = b*E + e
    edge_rep = jnp.tile(edge_feat.astype(jnp.float32), (batch,))[:, None]
    mb1f = (jnp.dot(src_input, mw1_input, precision=hp)
            + jnp.dot(edge_rep, mw1_edge, precision=hp)
            + mp["b1"])                              # (rows_e, 256), f32

    # ---- update network first-layer split (concat([m_hat, h]) @ W1) ----
    up = params["update"]
    uw1m, uw1h = up["w1"][:MESSAGE_SIZE], up["w1"][MESSAGE_SIZE:]

    # ---- output head padded to a lane-dense 128-column block ----
    op = params["output"]
    ow3 = (jnp.zeros((HIDDEN, OUT_PAD), jnp.float32)
           .at[:, 0:1].set(op["w3"]).at[:, 1:2].set(op["ws"]))
    ob3 = (jnp.zeros((1, OUT_PAD), jnp.float32)
           .at[:, 0:1].set(op["b3"]).at[:, 1:2].set(op["bs"]))

    ip = params["input"]
    args = dict(
        node_in=node_in, mb1f=mb1f,
        s_src=s_src.astype(bf16), a_agg=a_agg.astype(bf16),
        iw1=ip["w1"].astype(bf16), ib1=ip["b1"], ig1=ip["g1"], ibe1=ip["be1"],
        iw2=ip["w2"].astype(bf16), ib2=ip["b2"], ig2=ip["g2"], ibe2=ip["be2"],
        iw3=ip["w3"].astype(bf16), ib3=ip["b3"],
        mw1s=mw1_state.astype(bf16), mg1=mp["g1"], mbe1=mp["be1"],
        mw2=mp["w2"].astype(bf16), mb2=mp["b2"], mg2=mp["g2"], mbe2=mp["be2"],
        mw3=mp["w3"].astype(bf16), mb3=mp["b3"],
        uw1m=uw1m.astype(bf16), uw1h=uw1h.astype(bf16), ub1=up["b1"],
        ug1=up["g1"], ube1=up["be1"],
        uw2=up["w2"].astype(bf16), ub2=up["b2"], ug2=up["g2"], ube2=up["be2"],
        uw3=up["w3"].astype(bf16), ub3=up["b3"],
        ow1=op["w1"].astype(bf16), ob1=op["b1"], og1=op["g1"], obe1=op["obe1"] if "obe1" in op else op["be1"],
        ow2=op["w2"].astype(bf16), ob2=op["b2"], og2=op["g2"], obe2=op["be2"],
        ow3=ow3.astype(bf16), ob3=ob3,
    )
    flat = [args[k] for k in _ARG_NAMES]

    in_specs = [
        pl.BlockSpec((rows_n_c, INPUT_SIZE), lambda c: (c, 0)),   # node_in (chunked)
        pl.BlockSpec((rows_e_c, HIDDEN), lambda c: (c, 0)),       # mb1f (chunked)
    ] + [_const_spec(args[k].shape) for k in _ARG_NAMES[2:]]

    # advisory cost estimate for XLA scheduling of the single fused custom call
    flops_iter = (2 * rows_e * rows_n_c * STATE_SIZE
                  + 2 * rows_e * (STATE_SIZE * HIDDEN + HIDDEN * HIDDEN
                                  + HIDDEN * MESSAGE_SIZE)
                  + 2 * rows_n * rows_e_c * MESSAGE_SIZE
                  + 2 * rows_n * ((MESSAGE_SIZE + STATE_SIZE) * HIDDEN
                                  + HIDDEN * HIDDEN + HIDDEN * STATE_SIZE))
    flops = (NUM_MP_ITERS * flops_iter
             + 2 * rows_n * (INPUT_SIZE * HIDDEN + HIDDEN * HIDDEN + HIDDEN * STATE_SIZE)
             + 2 * rows_n * (STATE_SIZE * HIDDEN + HIDDEN * HIDDEN + HIDDEN * OUT_PAD))
    transcend = NUM_MP_ITERS * rows_e * MESSAGE_SIZE + 2 * rows_n
    bytes_accessed = (sum(int(a.size) * a.dtype.itemsize for a in flat)
                      + rows_n * OUT_PAD * 4)

    out = pl.pallas_call(
        _fused_gnn_kernel,
        grid=(num_chunks,),
        in_specs=in_specs,
        out_specs=pl.BlockSpec((rows_n_c, OUT_PAD), lambda c: (c, 0)),
        out_shape=jax.ShapeDtypeStruct((rows_n, OUT_PAD), jnp.float32),
        compiler_params=pltpu.CompilerParams(
            # independent batch chunks -> shard across v7x TensorCores
            dimension_semantics=("parallel",),
            # plenty at these sizes; retune per generation (<=~56MB on v7x) at scale
            vmem_limit_bytes=32 * 1024 * 1024),
        cost_estimate=pl.CostEstimate(
            flops=int(flops), transcendentals=int(transcend),
            bytes_accessed=int(bytes_accessed)),
    )(*flat)

    out = out[:, :2].reshape(batch, n, 2)            # batch-major rows
    actions = out[:, :, 0]                           # (batch, numNodes)
    sigmoids = out[:, :, 1].mean(axis=-1)            # (batch,)
    return actions, sigmoids


# ------------------------------------------------------ pure-JAX reference --

def _subnet_ref(p, x, tanh_out=False, with_sigmoid=False):
    hp = jax.lax.Precision.HIGHEST

    def ln_relu(h, g, b):
        mu = h.mean(-1, keepdims=True)
        var = jnp.square(h - mu).mean(-1, keepdims=True)
        return jnp.maximum((h - mu) / jnp.sqrt(var + LN_EPS) * g + b, 0.0)

    h = ln_relu(jnp.dot(x, p["w1"], precision=hp) + p["b1"], p["g1"], p["be1"])
    h = ln_relu(jnp.dot(h, p["w2"], precision=hp) + p["b2"], p["g2"], p["be2"])
    o = jnp.dot(h, p["w3"], precision=hp) + p["b3"]
    if tanh_out:
        o = jnp.tanh(o)
    if with_sigmoid:
        s = jax.nn.sigmoid(jnp.dot(h, p["ws"], precision=hp) + p["bs"])
        o = jnp.concatenate([o, s], axis=-1)
    return o


def gnn_forward_reference(params, node_feat, edge_feat, edge_src, edge_dst, state):
    node_input, state = _build_node_input(node_feat, state)
    n, batch, _ = node_input.shape
    e = edge_src.shape[0]
    h = _subnet_ref(params["input"], node_input)
    indeg = jnp.zeros((n,), jnp.float32).at[edge_dst].add(1.0)
    inv_deg = jnp.where(indeg > 0, 1.0 / jnp.maximum(indeg, 1.0), 0.0)
    for _ in range(NUM_MP_ITERS):
        src_state = h[edge_src]
        src_input = node_input[edge_src]
        edge_data = jnp.broadcast_to(
            edge_feat.astype(jnp.float32)[:, None, None], (e, batch, 1))
        m = _subnet_ref(params["message"],
                        jnp.concatenate([src_state, edge_data, src_input], -1),
                        tanh_out=True)
        m_hat = jnp.zeros((n, batch, MESSAGE_SIZE), jnp.float32).at[edge_dst].add(m)
        m_hat = m_hat * inv_deg[:, None, None]
        h = _subnet_ref(params["update"], jnp.concatenate([m_hat, h], -1))
    out = _subnet_ref(params["output"], h, tanh_out=True, with_sigmoid=True)
    out = jnp.transpose(out, (1, 0, 2))
    return out[:, :, 0], out[:, :, 1].mean(-1)


# --------------------------------------------------------------------- main --

if __name__ == "__main__":
    key = jax.random.PRNGKey(0)
    ks = jax.random.split(key, 8)

    num_nodes, batch = 4, 8
    num_state_var = 5 + 2 * num_nodes          # 13
    num_edges = 2 * num_nodes                  # bidirectional ring

    params = {
        "input": init_subnet(ks[0], INPUT_SIZE, STATE_SIZE),
        "message": init_subnet(ks[1], STATE_SIZE + INPUT_SIZE + 1, MESSAGE_SIZE),
        "update": init_subnet(ks[2], STATE_SIZE + MESSAGE_SIZE, STATE_SIZE),
        "output": init_subnet(ks[3], STATE_SIZE, 1, with_sigmoid=True),
    }

    node_feat = jax.random.normal(ks[4], (num_nodes, 6), jnp.float32)
    edge_feat = jax.random.normal(ks[5], (num_edges,), jnp.float32)
    edge_src = jnp.array([0, 1, 2, 3, 1, 2, 3, 0], dtype=jnp.int32)
    edge_dst = jnp.array([1, 2, 3, 0, 0, 1, 2, 3], dtype=jnp.int32)
    state = jax.random.normal(ks[6], (batch, 2 * num_state_var), jnp.float32)

    # two batch chunks of 4 -> exercises the "parallel" chunk grid axis
    actions, sigmoids = gnn_forward(params, node_feat, edge_feat,
                                    edge_src, edge_dst, state, batch_chunk=4)
    jax.block_until_ready((actions, sigmoids))

    assert actions.shape == (batch, num_nodes)
    assert sigmoids.shape == (batch,)
    assert bool(jnp.all(jnp.isfinite(actions)))
    assert bool(jnp.all((sigmoids >= 0.0) & (sigmoids <= 1.0)))

    ref_a, ref_s = gnn_forward_reference(params, node_feat, edge_feat,
                                         edge_src, edge_dst, state)
    # kernel uses bf16 MXU operands (review item) vs. f32-HIGHEST reference
    assert float(jnp.max(jnp.abs(actions - ref_a))) < 5e-2
    assert float(jnp.max(jnp.abs(sigmoids - ref_s))) < 5e-2

    print("KERNEL_OK")
</pallas_src>

<mosaic_0001>
module attributes {stable_mosaic.version = 11 : i64} {
  func.func private @main(%arg0: i32) attributes {dimension_semantics = [#tpu.dimension_semantics<core_parallel>], iteration_bounds = array<i64: 2>, tpu.core_type = #tpu.core_type<sc_scalar_subcore>, window_params = []} {
    return
  }
}

module attributes {stable_mosaic.version = 11 : i64} {
  func.func private @main(%arg0: i32) attributes {dimension_semantics = [#tpu.dimension_semantics<core_parallel>], iteration_bounds = array<i64: 2>, tpu.core_type = #tpu.core_type<sc_scalar_subcore>, window_params = []} {
    return
  }
}

module attributes {stable_mosaic.version = 11 : i64} {
  func.func @_fused_gnn_kernel(%arg0: i32, %arg1: memref<16x20xf32, #tpu.memory_space<vmem>>, %arg2: memref<32x256xf32, #tpu.memory_space<vmem>>, %arg3: memref<32x16xbf16, #tpu.memory_space<vmem>>, %arg4: memref<16x32xbf16, #tpu.memory_space<vmem>>, %arg5: memref<20x256xbf16, #tpu.memory_space<vmem>>, %arg6: memref<1x256xf32, #tpu.memory_space<vmem>>, %arg7: memref<1x256xf32, #tpu.memory_space<vmem>>, %arg8: memref<1x256xf32, #tpu.memory_space<vmem>>, %arg9: memref<256x256xbf16, #tpu.memory_space<vmem>>, %arg10: memref<1x256xf32, #tpu.memory_space<vmem>>, %arg11: memref<1x256xf32, #tpu.memory_space<vmem>>, %arg12: memref<1x256xf32, #tpu.memory_space<vmem>>, %arg13: memref<256x64xbf16, #tpu.memory_space<vmem>>, %arg14: memref<1x64xf32, #tpu.memory_space<vmem>>, %arg15: memref<64x256xbf16, #tpu.memory_space<vmem>>, %arg16: memref<1x256xf32, #tpu.memory_space<vmem>>, %arg17: memref<1x256xf32, #tpu.memory_space<vmem>>, %arg18: memref<256x256xbf16, #tpu.memory_space<vmem>>, %arg19: memref<1x256xf32, #tpu.memory_space<vmem>>, %arg20: memref<1x256xf32, #tpu.memory_space<vmem>>, %arg21: memref<1x256xf32, #tpu.memory_space<vmem>>, %arg22: memref<256x64xbf16, #tpu.memory_space<vmem>>, %arg23: memref<1x64xf32, #tpu.memory_space<vmem>>, %arg24: memref<64x256xbf16, #tpu.memory_space<vmem>>, %arg25: memref<64x256xbf16, #tpu.memory_space<vmem>>, %arg26: memref<1x256xf32, #tpu.memory_space<vmem>>, %arg27: memref<1x256xf32, #tpu.memory_space<vmem>>, %arg28: memref<1x256xf32, #tpu.memory_space<vmem>>, %arg29: memref<256x256xbf16, #tpu.memory_space<vmem>>, %arg30: memref<1x256xf32, #tpu.memory_space<vmem>>, %arg31: memref<1x256xf32, #tpu.memory_space<vmem>>, %arg32: memref<1x256xf32, #tpu.memory_space<vmem>>, %arg33: memref<256x64xbf16, #tpu.memory_space<vmem>>, %arg34: memref<1x64xf32, #tpu.memory_space<vmem>>, %arg35: memref<64x256xbf16, #tpu.memory_space<vmem>>, %arg36: memref<1x256xf32, #tpu.memory_space<vmem>>, %arg37: memref<1x256xf32, #tpu.memory_space<vmem>>, %arg38: memref<1x256xf32, #tpu.memory_space<vmem>>, %arg39: memref<256x256xbf16, #tpu.memory_space<vmem>>, %arg40: memref<1x256xf32, #tpu.memory_space<vmem>>, %arg41: memref<1x256xf32, #tpu.memory_space<vmem>>, %arg42: memref<1x256xf32, #tpu.memory_space<vmem>>, %arg43: memref<256x128xbf16, #tpu.memory_space<vmem>>, %arg44: memref<1x128xf32, #tpu.memory_space<vmem>>, %arg45: memref<16x128xf32, #tpu.memory_space<vmem>>) attributes {dimension_semantics = [#tpu.dimension_semantics<parallel>], iteration_bounds = array<i64: 2>, scalar_prefetch = 0 : i64, scratch_operands = 0 : i64, tpu.core_type = #tpu.core_type<tc>, window_params = [{transform_indices = @transform_0, window_bounds = array<i64: 16, 20>}, {transform_indices = @transform_1, window_bounds = array<i64: 32, 256>}, {pipeline_mode = #tpu.pipeline_mode<synchronous>, transform_indices = @transform_2, window_bounds = array<i64: 32, 16>}, {pipeline_mode = #tpu.pipeline_mode<synchronous>, transform_indices = @transform_3, window_bounds = array<i64: 16, 32>}, {pipeline_mode = #tpu.pipeline_mode<synchronous>, transform_indices = @transform_4, window_bounds = array<i64: 20, 256>}, {pipeline_mode = #tpu.pipeline_mode<synchronous>, transform_indices = @transform_5, window_bounds = array<i64: 1, 256>}, {pipeline_mode = #tpu.pipeline_mode<synchronous>, transform_indices = @transform_6, window_bounds = array<i64: 1, 256>}, {pipeline_mode = #tpu.pipeline_mode<synchronous>, transform_indices = @transform_7, window_bounds = array<i64: 1, 256>}, {pipeline_mode = #tpu.pipeline_mode<synchronous>, transform_indices = @transform_8, window_bounds = array<i64: 256, 256>}, {pipeline_mode = #tpu.pipeline_mode<synchronous>, transform_indices = @transform_9, window_bounds = array<i64: 1, 256>}, {pipeline_mode = #tpu.pipeline_mode<synchronous>, transform_indices = @transform_10, window_bounds = array<i64: 1, 256>}, {pipeline_mode = #tpu.pipeline_mode<synchronous>, transform_indices = @transform_11, window_bounds = array<i64: 1, 256>}, {pipeline_mode = #tpu.pipeline_mode<synchronous>, transform_indices = @transform_12, window_bounds = array<i64: 256, 64>}, {pipeline_mode = #tpu.pipeline_mode<synchronous>, transform_indices = @transform_13, window_bounds = array<i64: 1, 64>}, {pipeline_mode = #tpu.pipeline_mode<synchronous>, transform_indices = @transform_14, window_bounds = array<i64: 64, 256>}, {pipeline_mode = #tpu.pipeline_mode<synchronous>, transform_indices = @transform_15, window_bounds = array<i64: 1, 256>}, {pipeline_mode = #tpu.pipeline_mode<synchronous>, transform_indices = @transform_16, window_bounds = array<i64: 1, 256>}, {pipeline_mode = #tpu.pipeline_mode<synchronous>, transform_indices = @transform_17, window_bounds = array<i64: 256, 256>}, {pipeline_mode = #tpu.pipeline_mode<synchronous>, transform_indices = @transform_18, window_bounds = array<i64: 1, 256>}, {pipeline_mode = #tpu.pipeline_mode<synchronous>, transform_indices = @transform_19, window_bounds = array<i64: 1, 256>}, {pipeline_mode = #tpu.pipeline_mode<synchronous>, transform_indices = @transform_20, window_bounds = array<i64: 1, 256>}, {pipeline_mode = #tpu.pipeline_mode<synchronous>, transform_indices = @transform_21, window_bounds = array<i64: 256, 64>}, {pipeline_mode = #tpu.pipeline_mode<synchronous>, transform_indices = @transform_22, window_bounds = array<i64: 1, 64>}, {pipeline_mode = #tpu.pipeline_mode<synchronous>, transform_indices = @transform_23, window_bounds = array<i64: 64, 256>}, {pipeline_mode = #tpu.pipeline_mode<synchronous>, transform_indices = @transform_24, window_bounds = array<i64: 64, 256>}, {pipeline_mode = #tpu.pipeline_mode<synchronous>, transform_indices = @transform_25, window_bounds = array<i64: 1, 256>}, {pipeline_mode = #tpu.pipeline_mode<synchronous>, transform_indices = @transform_26, window_bounds = array<i64: 1, 256>}, {pipeline_mode = #tpu.pipeline_mode<synchronous>, transform_indices = @transform_27, window_bounds = array<i64: 1, 256>}, {pipeline_mode = #tpu.pipeline_mode<synchronous>, transform_indices = @transform_28, window_bounds = array<i64: 256, 256>}, {pipeline_mode = #tpu.pipeline_mode<synchronous>, transform_indices = @transform_29, window_bounds = array<i64: 1, 256>}, {pipeline_mode = #tpu.pipeline_mode<synchronous>, transform_indices = @transform_30, window_bounds = array<i64: 1, 256>}, {pipeline_mode = #tpu.pipeline_mode<synchronous>, transform_indices = @transform_31, window_bounds = array<i64: 1, 256>}, {pipeline_mode = #tpu.pipeline_mode<synchronous>, transform_indices = @transform_32, window_bounds = array<i64: 256, 64>}, {pipeline_mode = #tpu.pipeline_mode<synchronous>, transform_indices = @transform_33, window_bounds = array<i64: 1, 64>}, {pipeline_mode = #tpu.pipeline_mode<synchronous>, transform_indices = @transform_34, window_bounds = array<i64: 64, 256>}, {pipeline_mode = #tpu.pipeline_mode<synchronous>, transform_indices = @transform_35, window_bounds = array<i64: 1, 256>}, {pipeline_mode = #tpu.pipeline_mode<synchronous>, transform_indices = @transform_36, window_bounds = array<i64: 1, 256>}, {pipeline_mode = #tpu.pipeline_mode<synchronous>, transform_indices = @transform_37, window_bounds = array<i64: 1, 256>}, {pipeline_mode = #tpu.pipeline_mode<synchronous>, transform_indices = @transform_38, window_bounds = array<i64: 256, 256>}, {pipeline_mode = #tpu.pipeline_mode<synchronous>, transform_indices = @transform_39, window_bounds = array<i64: 1, 256>}, {pipeline_mode = #tpu.pipeline_mode<synchronous>, transform_indices = @transform_40, window_bounds = array<i64: 1, 256>}, {pipeline_mode = #tpu.pipeline_mode<synchronous>, transform_indices = @transform_41, window_bounds = array<i64: 1, 256>}, {pipeline_mode = #tpu.pipeline_mode<synchronous>, transform_indices = @transform_42, window_bounds = array<i64: 256, 128>}, {pipeline_mode = #tpu.pipeline_mode<synchronous>, transform_indices = @transform_43, window_bounds = array<i64: 1, 128>}, {transform_indices = @transform_44, window_bounds = array<i64: 16, 128>}]} {
    %c0 = arith.constant 0 : index
    %c0_0 = arith.constant 0 : index
    %0 = vector.load %arg1[%c0, %c0_0] : memref<16x20xf32, #tpu.memory_space<vmem>>, vector<16x20xf32>
    %1 = arith.truncf %0 : vector<16x20xf32> to vector<16x20xbf16>
    %c0_1 = arith.constant 0 : index
    %c0_2 = arith.constant 0 : index
    %2 = vector.load %arg5[%c0_1, %c0_2] : memref<20x256xbf16, #tpu.memory_space<vmem>>, vector<20x256xbf16>
    %cst = arith.constant dense<0.000000e+00> : vector<16x256xf32>
    %3 = tpu.matmul %1, %2, %cst {dimension_numbers = #tpu.dot_dimension_numbers<[1], [0], [0], [1], [0, 0, 1, 1], [], []>} : vector<16x20xbf16>, vector<20x256xbf16>, vector<16x256xf32> -> vector<16x256xf32>
    %c0_3 = arith.constant 0 : index
    %c0_4 = arith.constant 0 : index
    %4 = vector.load %arg6[%c0_3, %c0_4] : memref<1x256xf32, #tpu.memory_space<vmem>>, vector<1x256xf32>
    %5 = vector.broadcast %4 : vector<1x256xf32> to vector<16x256xf32>
    %6 = arith.addf %3, %5 : vector<16x256xf32>
    %cst_5 = arith.constant dense<0.000000e+00> : vector<16xf32>
    %7 = vector.multi_reduction <add>, %6, %cst_5 [1] : vector<16x256xf32> to vector<16xf32>
    %8 = vector.shape_cast %7 : vector<16xf32> to vector<16x1xf32>
    %cst_6 = arith.constant 2.560000e+02 : f32
    %9 = vector.broadcast %cst_6 : f32 to vector<16x1xf32>
    %10 = arith.divf %8, %9 : vector<16x1xf32>
    %11 = vector.broadcast %10 : vector<16x1xf32> to vector<16x256xf32>
    %12 = arith.subf %6, %11 : vector<16x256xf32>
    %13 = arith.mulf %12, %12 : vector<16x256xf32>
    %cst_7 = arith.constant dense<0.000000e+00> : vector<16xf32>
    %14 = vector.multi_reduction <add>, %13, %cst_7 [1] : vector<16x256xf32> to vector<16xf32>
    %15 = vector.shape_cast %14 : vector<16xf32> to vector<16x1xf32>
    %cst_8 = arith.constant 2.560000e+02 : f32
    %16 = vector.broadcast %cst_8 : f32 to vector<16x1xf32>
    %17 = arith.divf %15, %16 : vector<16x1xf32>
    %18 = vector.broadcast %10 : vector<16x1xf32> to vector<16x256xf32>
    %19 = arith.subf %6, %18 : vector<16x256xf32>
    %cst_9 = arith.constant 9.99999974E-6 : f32
    %20 = vector.broadcast %cst_9 : f32 to vector<16x1xf32>
    %21 = arith.addf %17, %20 : vector<16x1xf32>
    %22 = math.rsqrt %21 : vector<16x1xf32>
    %23 = vector.broadcast %22 : vector<16x1xf32> to vector<16x256xf32>
    %24 = arith.mulf %19, %23 : vector<16x256xf32>
    %c0_10 = arith.constant 0 : index
    %c0_11 = arith.constant 0 : index
    %25 = vector.load %arg7[%c0_10, %c0_11] : memref<1x256xf32, #tpu.memory_space<vmem>>, vector<1x256xf32>
    %26 = vector.broadcast %25 : vector<1x256xf32> to vector<16x256xf32>
    %27 = arith.mulf %24, %26 : vector<16x256xf32>
    %c0_12 = arith.constant 0 : index
    %c0_13 = arith.constant 0 : index
    %28 = vector.load %arg8[%c0_12, %c0_13] : memref<1x256xf32, #tpu.memory_space<vmem>>, vector<1x256xf32>
    %29 = vector.broadcast %28 : vector<1x256xf32> to vector<16x256xf32>
    %30 = arith.addf %27, %29 : vector<16x256xf32>
    %cst_14 = arith.constant 0.000000e+00 : f32
    %31 = vector.broadcast %cst_14 : f32 to vector<16x256xf32>
    %32 = arith.maximumf %30, %31 : vector<16x256xf32>
    %33 = arith.truncf %32 : vector<16x256xf32> to vector<16x256xbf16>
    %c0_15 = arith.constant 0 : index
    %c0_16 = arith.constant 0 : index
    %34 = vector.load %arg9[%c0_15, %c0_16] : memref<256x256xbf16, #tpu.memory_space<vmem>>, vector<256x256xbf16>
    %cst_17 = arith.constant dense<0.000000e+00> : vector<16x256xf32>
    %35 = tpu.matmul %33, %34, %cst_17 {dimension_numbers = #tpu.dot_dimension_numbers<[1], [0], [0], [1], [0, 0, 1, 1], [], []>} : vector<16x256xbf16>, vector<256x256xbf16>, vector<16x256xf32> -> vector<16x256xf32>
    %c0_18 = arith.constant 0 : index
    %c0_19 = arith.constant 0 : index
    %36 = vector.load %arg10[%c0_18, %c0_19] : memref<1x256xf32, #tpu.memory_space<vmem>>, vector<1x256xf32>
    %37 = vector.broadcast %36 : vector<1x256xf32> to vector<16x256xf32>
    %38 = arith.addf %35, %37 : vector<16x256xf32>
    %cst_20 = arith.constant dense<0.000000e+00> : vector<16xf32>
    %39 = vector.multi_reduction <add>, %38, %cst_20 [1] : vector<16x256xf32> to vector<16xf32>
    %40 = vector.shape_cast %39 : vector<16xf32> to vector<16x1xf32>
    %cst_21 = arith.constant 2.560000e+02 : f32
    %41 = vector.broadcast %cst_21 : f32 to vector<16x1xf32>
    %42 = arith.divf %40, %41 : vector<16x1xf32>
    %43 = vector.broadcast %42 : vector<16x1xf32> to vector<16x256xf32>
    %44 = arith.subf %38, %43 : vector<16x256xf32>
    %45 = arith.mulf %44, %44 : vector<16x256xf32>
    %cst_22 = arith.constant dense<0.000000e+00> : vector<16xf32>
    %46 = vector.multi_reduction <add>, %45, %cst_22 [1] : vector<16x256xf32> to vector<16xf32>
    %47 = vector.shape_cast %46 : vector<16xf32> to vector<16x1xf32>
    %cst_23 = arith.constant 2.560000e+02 : f32
    %48 = vector.broadcast %cst_23 : f32 to vector<16x1xf32>
    %49 = arith.divf %47, %48 : vector<16x1xf32>
    %50 = vector.broadcast %42 : vector<16x1xf32> to vector<16x256xf32>
    %51 = arith.subf %38, %50 : vector<16x256xf32>
    %cst_24 = arith.constant 9.99999974E-6 : f32
    %52 = vector.broadcast %cst_24 : f32 to vector<16x1xf32>
    %53 = arith.addf %49, %52 : vector<16x1xf32>
    %54 = math.rsqrt %53 : vector<16x1xf32>
    %55 = vector.broadcast %54 : vector<16x1xf32> to vector<16x256xf32>
    %56 = arith.mulf %51, %55 : vector<16x256xf32>
    %c0_25 = arith.constant 0 : index
    %c0_26 = arith.constant 0 : index
    %57 = vector.load %arg11[%c0_25, %c0_26] : memref<1x256xf32, #tpu.memory_space<vmem>>, vector<1x256xf32>
    %58 = vector.broadcast %57 : vector<1x256xf32> to vector<16x256xf32>
    %59 = arith.mulf %56, %58 : vector<16x256xf32>
    %c0_27 = arith.constant 0 : index
    %c0_28 = arith.constant 0 : index
    %60 = vector.load %arg12[%c0_27, %c0_28] : memref<1x256xf32, #tpu.memory_space<vmem>>, vector<1x256xf32>
    %61 = vector.broadcast %60 : vector<1x256xf32> to vector<16x256xf32>
    %62 = arith.addf %59, %61 : vector<16x256xf32>
    %cst_29 = arith.constant 0.000000e+00 : f32
    %63 = vector.broadcast %cst_29 : f32 to vector<16x256xf32>
    %64 = arith.maximumf %62, %63 : vector<16x256xf32>
    %65 = arith.truncf %64 : vector<16x256xf32> to vector<16x256xbf16>
    %c0_30 = arith.constant 0 : index
    %c0_31 = arith.constant 0 : index
    %66 = vector.load %arg13[%c0_30, %c0_31] : memref<256x64xbf16, #tpu.memory_space<vmem>>, vector<256x64xbf16>
    %cst_32 = arith.constant dense<0.000000e+00> : vector<16x64xf32>
    %67 = tpu.matmul %65, %66, %cst_32 {dimension_numbers = #tpu.dot_dimension_numbers<[1], [0], [0], [1], [0, 0, 1, 1], [], []>} : vector<16x256xbf16>, vector<256x64xbf16>, vector<16x64xf32> -> vector<16x64xf32>
    %c0_33 = arith.constant 0 : index
    %c0_34 = arith.constant 0 : index
    %68 = vector.load %arg14[%c0_33, %c0_34] : memref<1x64xf32, #tpu.memory_space<vmem>>, vector<1x64xf32>
    %69 = vector.broadcast %68 : vector<1x64xf32> to vector<16x64xf32>
    %70 = arith.addf %67, %69 : vector<16x64xf32>
    %c0_35 = arith.constant 0 : index
    %c0_36 = arith.constant 0 : index
    %71 = vector.load %arg3[%c0_35, %c0_36] : memref<32x16xbf16, #tpu.memory_space<vmem>>, vector<32x16xbf16>
    %c0_37 = arith.constant 0 : index
    %c0_38 = arith.constant 0 : index
    %72 = vector.load %arg4[%c0_37, %c0_38] : memref<16x32xbf16, #tpu.memory_space<vmem>>, vector<16x32xbf16>
    %c0_39 = arith.constant 0 : index
    %c0_40 = arith.constant 0 : index
    %73 = vector.load %arg2[%c0_39, %c0_40] : memref<32x256xf32, #tpu.memory_space<vmem>>, vector<32x256xf32>
    %c0_i32 = arith.constant 0 : i32
    %74 = arith.truncf %70 : vector<16x64xf32> to vector<16x64xbf16>
    %cst_41 = arith.constant dense<0.000000e+00> : vector<32x64xf32>
    %75 = tpu.matmul %71, %74, %cst_41 {dimension_numbers = #tpu.dot_dimension_numbers<[1], [0], [0], [1], [0, 0, 1, 1], [], []>} : vector<32x16xbf16>, vector<16x64xbf16>, vector<32x64xf32> -> vector<32x64xf32>
    %76 = arith.truncf %75 : vector<32x64xf32> to vector<32x64xbf16>
    %c0_42 = arith.constant 0 : index
    %c0_43 = arith.constant 0 : index
    %77 = vector.load %arg15[%c0_42, %c0_43] : memref<64x256xbf16, #tpu.memory_space<vmem>>, vector<64x256xbf16>
    %cst_44 = arith.constant dense<0.000000e+00> : vector<32x256xf32>
    %78 = tpu.matmul %76, %77, %cst_44 {dimension_numbers = #tpu.dot_dimension_numbers<[1], [0], [0], [1], [0, 0, 1, 1], [], []>} : vector<32x64xbf16>, vector<64x256xbf16>, vector<32x256xf32> -> vector<32x256xf32>
    %79 = arith.addf %78, %73 : vector<32x256xf32>
    %cst_45 = arith.constant dense<0.000000e+00> : vector<32xf32>
    %80 = vector.multi_reduction <add>, %79, %cst_45 [1] : vector<32x256xf32> to vector<32xf32>
    %81 = vector.shape_cast %80 : vector<32xf32> to vector<32x1xf32>
    %cst_46 = arith.constant 2.560000e+02 : f32
    %82 = vector.broadcast %cst_46 : f32 to vector<32x1xf32>
    %83 = arith.divf %81, %82 : vector<32x1xf32>
    %84 = vector.broadcast %83 : vector<32x1xf32> to vector<32x256xf32>
    %85 = arith.subf %79, %84 : vector<32x256xf32>
    %86 = arith.mulf %85, %85 : vector<32x256xf32>
    %cst_47 = arith.constant dense<0.000000e+00> : vector<32xf32>
    %87 = vector.multi_reduction <add>, %86, %cst_47 [1] : vector<32x256xf32> to vector<32xf32>
    %88 = vector.shape_cast %87 : vector<32xf32> to vector<32x1xf32>
    %cst_48 = arith.constant 2.560000e+02 : f32
    %89 = vector.broadcast %cst_48 : f32 to vector<32x1xf32>
    %90 = arith.divf %88, %89 : vector<32x1xf32>
    %91 = vector.broadcast %83 : vector<32x1xf32> to vector<32x256xf32>
    %92 = arith.subf %79, %91 : vector<32x256xf32>
    %cst_49 = arith.constant 9.99999974E-6 : f32
    %93 = vector.broadcast %cst_49 : f32 to vector<32x1xf32>
    %94 = arith.addf %90, %93 : vector<32x1xf32>
    %95 = math.rsqrt %94 : vector<32x1xf32>
    %96 = vector.broadcast %95 : vector<32x1xf32> to vector<32x256xf32>
    %97 = arith.mulf %92, %96 : vector<32x256xf32>
    %c0_50 = arith.constant 0 : index
    %c0_51 = arith.constant 0 : index
    %98 = vector.load %arg16[%c0_50, %c0_51] : memref<1x256xf32, #tpu.memory_space<vmem>>, vector<1x256xf32>
    %99 = vector.broadcast %98 : vector<1x256xf32> to vector<32x256xf32>
    %100 = arith.mulf %97, %99 : vector<32x256xf32>
    %c0_52 = arith.constant 0 : index
    %c0_53 = arith.constant 0 : index
    %101 = vector.load %arg17[%c0_52, %c0_53] : memref<1x256xf32, #tpu.memory_space<vmem>>, vector<1x256xf32>
    %102 = vector.broadcast %101 : vector<1x256xf32> to vector<32x256xf32>
    %103 = arith.addf %100, %102 : vector<32x256xf32>
    %cst_54 = arith.constant 0.000000e+00 : f32
    %104 = vector.broadcast %cst_54 : f32 to vector<32x256xf32>
    %105 = arith.maximumf %103, %104 : vector<32x256xf32>
    %106 = arith.truncf %105 : vector<32x256xf32> to vector<32x256xbf16>
    %c0_55 = arith.constant 0 : index
    %c0_56 = arith.constant 0 : index
    %107 = vector.load %arg18[%c0_55, %c0_56] : memref<256x256xbf16, #tpu.memory_space<vmem>>, vector<256x256xbf16>
    %cst_57 = arith.constant dense<0.000000e+00> : vector<32x256xf32>
    %108 = tpu.matmul %106, %107, %cst_57 {dimension_numbers = #tpu.dot_dimension_numbers<[1], [0], [0], [1], [0, 0, 1, 1], [], []>} : vector<32x256xbf16>, vector<256x256xbf16>, vector<32x256xf32> -> vector<32x256xf32>
    %c0_58 = arith.constant 0 : index
    %c0_59 = arith.constant 0 : index
    %109 = vector.load %arg19[%c0_58, %c0_59] : memref<1x256xf32, #tpu.memory_space<vmem>>, vector<1x256xf32>
    %110 = vector.broadcast %109 : vector<1x256xf32> to vector<32x256xf32>
    %111 = arith.addf %108, %110 : vector<32x256xf32>
    %cst_60 = arith.constant dense<0.000000e+00> : vector<32xf32>
    %112 = vector.multi_reduction <add>, %111, %cst_60 [1] : vector<32x256xf32> to vector<32xf32>
    %113 = vector.shape_cast %112 : vector<32xf32> to vector<32x1xf32>
    %cst_61 = arith.constant 2.560000e+02 : f32
    %114 = vector.broadcast %cst_61 : f32 to vector<32x1xf32>
    %115 = arith.divf %113, %114 : vector<32x1xf32>
    %116 = vector.broadcast %115 : vector<32x1xf32> to vector<32x256xf32>
    %117 = arith.subf %111, %116 : vector<32x256xf32>
    %118 = arith.mulf %117, %117 : vector<32x256xf32>
    %cst_62 = arith.constant dense<0.000000e+00> : vector<32xf32>
    %119 = vector.multi_reduction <add>, %118, %cst_62 [1] : vector<32x256xf32> to vector<32xf32>
    %120 = vector.shape_cast %119 : vector<32xf32> to vector<32x1xf32>
    %cst_63 = arith.constant 2.560000e+02 : f32
    %121 = vector.broadcast %cst_63 : f32 to vector<32x1xf32>
    %122 = arith.divf %120, %121 : vector<32x1xf32>
    %123 = vector.broadcast %115 : vector<32x1xf32> to vector<32x256xf32>
    %124 = arith.subf %111, %123 : vector<32x256xf32>
    %cst_64 = arith.constant 9.99999974E-6 : f32
    %125 = vector.broadcast %cst_64 : f32 to vector<32x1xf32>
    %126 = arith.addf %122, %125 : vector<32x1xf32>
    %127 = math.rsqrt %126 : vector<32x1xf32>
    %128 = vector.broadcast %127 : vector<32x1xf32> to vector<32x256xf32>
    %129 = arith.mulf %124, %128 : vector<32x256xf32>
    %c0_65 = arith.constant 0 : index
    %c0_66 = arith.constant 0 : index
    %130 = vector.load %arg20[%c0_65, %c0_66] : memref<1x256xf32, #tpu.memory_space<vmem>>, vector<1x256xf32>
    %131 = vector.broadcast %130 : vector<1x256xf32> to vector<32x256xf32>
    %132 = arith.mulf %129, %131 : vector<32x256xf32>
    %c0_67 = arith.constant 0 : index
    %c0_68 = arith.constant 0 : index
    %133 = vector.load %arg21[%c0_67, %c0_68] : memref<1x256xf32, #tpu.memory_space<vmem>>, vector<1x256xf32>
    %134 = vector.broadcast %133 : vector<1x256xf32> to vector<32x256xf32>
    %135 = arith.addf %132, %134 : vector<32x256xf32>
    %cst_69 = arith.constant 0.000000e+00 : f32
    %136 = vector.broadcast %cst_69 : f32 to vector<32x256xf32>
    %137 = arith.maximumf %135, %136 : vector<32x256xf32>
    %138 = arith.truncf %137 : vector<32x256xf32> to vector<32x256xbf16>
    %c0_70 = arith.constant 0 : index
    %c0_71 = arith.constant 0 : index
    %139 = vector.load %arg22[%c0_70, %c0_71] : memref<256x64xbf16, #tpu.memory_space<vmem>>, vector<256x64xbf16>
    %cst_72 = arith.constant dense<0.000000e+00> : vector<32x64xf32>
    %140 = tpu.matmul %138, %139, %cst_72 {dimension_numbers = #tpu.dot_dimension_numbers<[1], [0], [0], [1], [0, 0, 1, 1], [], []>} : vector<32x256xbf16>, vector<256x64xbf16>, vector<32x64xf32> -> vector<32x64xf32>
    %c0_73 = arith.constant 0 : index
    %c0_74 = arith.constant 0 : index
    %141 = vector.load %arg23[%c0_73, %c0_74] : memref<1x64xf32, #tpu.memory_space<vmem>>, vector<1x64xf32>
    %142 = vector.broadcast %141 : vector<1x64xf32> to vector<32x64xf32>
    %143 = arith.addf %140, %142 : vector<32x64xf32>
    %144 = math.tanh %143 : vector<32x64xf32>
    %145 = arith.truncf %144 : vector<32x64xf32> to vector<32x64xbf16>
    %cst_75 = arith.constant dense<0.000000e+00> : vector<16x64xf32>
    %146 = tpu.matmul %72, %145, %cst_75 {dimension_numbers = #tpu.dot_dimension_numbers<[1], [0], [0], [1], [0, 0, 1, 1], [], []>} : vector<16x32xbf16>, vector<32x64xbf16>, vector<16x64xf32> -> vector<16x64xf32>
    %147 = arith.truncf %146 : vector<16x64xf32> to vector<16x64xbf16>
    %c0_76 = arith.constant 0 : index
    %c0_77 = arith.constant 0 : index
    %148 = vector.load %arg24[%c0_76, %c0_77] : memref<64x256xbf16, #tpu.memory_space<vmem>>, vector<64x256xbf16>
    %cst_78 = arith.constant dense<0.000000e+00> : vector<16x256xf32>
    %149 = tpu.matmul %147, %148, %cst_78 {dimension_numbers = #tpu.dot_dimension_numbers<[1], [0], [0], [1], [0, 0, 1, 1], [], []>} : vector<16x64xbf16>, vector<64x256xbf16>, vector<16x256xf32> -> vector<16x256xf32>
    %c0_79 = arith.constant 0 : index
    %c0_80 = arith.constant 0 : index
    %150 = vector.load %arg25[%c0_79, %c0_80] : memref<64x256xbf16, #tpu.memory_space<vmem>>, vector<64x256xbf16>
    %cst_81 = arith.constant dense<0.000000e+00> : vector<16x256xf32>
    %151 = tpu.matmul %74, %150, %cst_81 {dimension_numbers = #tpu.dot_dimension_numbers<[1], [0], [0], [1], [0, 0, 1, 1], [], []>} : vector<16x64xbf16>, vector<64x256xbf16>, vector<16x256xf32> -> vector<16x256xf32>
    %152 = arith.addf %149, %151 : vector<16x256xf32>
    %c0_82 = arith.constant 0 : index
    %c0_83 = arith.constant 0 : index
    %153 = vector.load %arg26[%c0_82, %c0_83] : memref<1x256xf32, #tpu.memory_space<vmem>>, vector<1x256xf32>
    %154 = vector.broadcast %153 : vector<1x256xf32> to vector<16x256xf32>
    %155 = arith.addf %152, %154 : vector<16x256xf32>
    %cst_84 = arith.constant dense<0.000000e+00> : vector<16xf32>
    %156 = vector.multi_reduction <add>, %155, %cst_84 [1] : vector<16x256xf32> to vector<16xf32>
    %157 = vector.shape_cast %156 : vector<16xf32> to vector<16x1xf32>
    %cst_85 = arith.constant 2.560000e+02 : f32
    %158 = vector.broadcast %cst_85 : f32 to vector<16x1xf32>
    %159 = arith.divf %157, %158 : vector<16x1xf32>
    %160 = vector.broadcast %159 : vector<16x1xf32> to vector<16x256xf32>
    %161 = arith.subf %155, %160 : vector<16x256xf32>
    %162 = arith.mulf %161, %161 : vector<16x256xf32>
    %cst_86 = arith.constant dense<0.000000e+00> : vector<16xf32>
    %163 = vector.multi_reduction <add>, %162, %cst_86 [1] : vector<16x256xf32> to vector<16xf32>
    %164 = vector.shape_cast %163 : vector<16xf32> to vector<16x1xf32>
    %cst_87 = arith.constant 2.560000e+02 : f32
    %165 = vector.broadcast %cst_87 : f32 to vector<16x1xf32>
    %166 = arith.divf %164, %165 : vector<16x1xf32>
    %167 = vector.broadcast %159 : vector<16x1xf32> to vector<16x256xf32>
    %168 = arith.subf %155, %167 : vector<16x256xf32>
    %cst_88 = arith.constant 9.99999974E-6 : f32
    %169 = vector.broadcast %cst_88 : f32 to vector<16x1xf32>
    %170 = arith.addf %166, %169 : vector<16x1xf32>
    %171 = math.rsqrt %170 : vector<16x1xf32>
    %172 = vector.broadcast %171 : vector<16x1xf32> to vector<16x256xf32>
    %173 = arith.mulf %168, %172 : vector<16x256xf32>
    %c0_89 = arith.constant 0 : index
    %c0_90 = arith.constant 0 : index
    %174 = vector.load %arg27[%c0_89, %c0_90] : memref<1x256xf32, #tpu.memory_space<vmem>>, vector<1x256xf32>
    %175 = vector.broadcast %174 : vector<1x256xf32> to vector<16x256xf32>
    %176 = arith.mulf %173, %175 : vector<16x256xf32>
    %c0_91 = arith.constant 0 : index
    %c0_92 = arith.constant 0 : index
    %177 = vector.load %arg28[%c0_91, %c0_92] : memref<1x256xf32, #tpu.memory_space<vmem>>, vector<1x256xf32>
    %178 = vector.broadcast %177 : vector<1x256xf32> to vector<16x256xf32>
    %179 = arith.addf %176, %178 : vector<16x256xf32>
    %cst_93 = arith.constant 0.000000e+00 : f32
    %180 = vector.broadcast %cst_93 : f32 to vector<16x256xf32>
    %181 = arith.maximumf %179, %180 : vector<16x256xf32>
    %182 = arith.truncf %181 : vector<16x256xf32> to vector<16x256xbf16>
    %c0_94 = arith.constant 0 : index
    %c0_95 = arith.constant 0 : index
    %183 = vector.load %arg29[%c0_94, %c0_95] : memref<256x256xbf16, #tpu.memory_space<vmem>>, vector<256x256xbf16>
    %cst_96 = arith.constant dense<0.000000e+00> : vector<16x256xf32>
    %184 = tpu.matmul %182, %183, %cst_96 {dimension_numbers = #tpu.dot_dimension_numbers<[1], [0], [0], [1], [0, 0, 1, 1], [], []>} : vector<16x256xbf16>, vector<256x256xbf16>, vector<16x256xf32> -> vector<16x256xf32>
    %c0_97 = arith.constant 0 : index
    %c0_98 = arith.constant 0 : index
    %185 = vector.load %arg30[%c0_97, %c0_98] : memref<1x256xf32, #tpu.memory_space<vmem>>, vector<1x256xf32>
    %186 = vector.broadcast %185 : vector<1x256xf32> to vector<16x256xf32>
    %187 = arith.addf %184, %186 : vector<16x256xf32>
    %cst_99 = arith.constant dense<0.000000e+00> : vector<16xf32>
    %188 = vector.multi_reduction <add>, %187, %cst_99 [1] : vector<16x256xf32> to vector<16xf32>
    %189 = vector.shape_cast %188 : vector<16xf32> to vector<16x1xf32>
    %cst_100 = arith.constant 2.560000e+02 : f32
    %190 = vector.broadcast %cst_100 : f32 to vector<16x1xf32>
    %191 = arith.divf %189, %190 : vector<16x1xf32>
    %192 = vector.broadcast %191 : vector<16x1xf32> to vector<16x256xf32>
    %193 = arith.subf %187, %192 : vector<16x256xf32>
    %194 = arith.mulf %193, %193 : vector<16x256xf32>
    %cst_101 = arith.constant dense<0.000000e+00> : vector<16xf32>
    %195 = vector.multi_reduction <add>, %194, %cst_101 [1] : vector<16x256xf32> to vector<16xf32>
    %196 = vector.shape_cast %195 : vector<16xf32> to vector<16x1xf32>
    %cst_102 = arith.constant 2.560000e+02 : f32
    %197 = vector.broadcast %cst_102 : f32 to vector<16x1xf32>
    %198 = arith.divf %196, %197 : vector<16x1xf32>
    %199 = vector.broadcast %191 : vector<16x1xf32> to vector<16x256xf32>
    %200 = arith.subf %187, %199 : vector<16x256xf32>
    %cst_103 = arith.constant 9.99999974E-6 : f32
    %201 = vector.broadcast %cst_103 : f32 to vector<16x1xf32>
    %202 = arith.addf %198, %201 : vector<16x1xf32>
    %203 = math.rsqrt %202 : vector<16x1xf32>
    %204 = vector.broadcast %203 : vector<16x1xf32> to vector<16x256xf32>
    %205 = arith.mulf %200, %204 : vector<16x256xf32>
    %c0_104 = arith.constant 0 : index
    %c0_105 = arith.constant 0 : index
    %206 = vector.load %arg31[%c0_104, %c0_105] : memref<1x256xf32, #tpu.memory_space<vmem>>, vector<1x256xf32>
    %207 = vector.broadcast %206 : vector<1x256xf32> to vector<16x256xf32>
    %208 = arith.mulf %205, %207 : vector<16x256xf32>
    %c0_106 = arith.constant 0 : index
    %c0_107 = arith.constant 0 : index
    %209 = vector.load %arg32[%c0_106, %c0_107] : memref<1x256xf32, #tpu.memory_space<vmem>>, vector<1x256xf32>
    %210 = vector.broadcast %209 : vector<1x256xf32> to vector<16x256xf32>
    %211 = arith.addf %208, %210 : vector<16x256xf32>
    %cst_108 = arith.constant 0.000000e+00 : f32
    %212 = vector.broadcast %cst_108 : f32 to vector<16x256xf32>
    %213 = arith.maximumf %211, %212 : vector<16x256xf32>
    %214 = arith.truncf %213 : vector<16x256xf32> to vector<16x256xbf16>
    %c0_109 = arith.constant 0 : index
    %c0_110 = arith.constant 0 : index
    %215 = vector.load %arg33[%c0_109, %c0_110] : memref<256x64xbf16, #tpu.memory_space<vmem>>, vector<256x64xbf16>
    %cst_111 = arith.constant dense<0.000000e+00> : vector<16x64xf32>
    %216 = tpu.matmul %214, %215, %cst_111 {dimension_numbers = #tpu.dot_dimension_numbers<[1], [0], [0], [1], [0, 0, 1, 1], [], []>} : vector<16x256xbf16>, vector<256x64xbf16>, vector<16x64xf32> -> vector<16x64xf32>
    %c0_112 = arith.constant 0 : index
    %c0_113 = arith.constant 0 : index
    %217 = vector.load %arg34[%c0_112, %c0_113] : memref<1x64xf32, #tpu.memory_space<vmem>>, vector<1x64xf32>
    %218 = vector.broadcast %217 : vector<1x64xf32> to vector<16x64xf32>
    %219 = arith.addf %216, %218 : vector<16x64xf32>
    %c1_i32 = arith.constant 1 : i32
    %220 = arith.truncf %219 : vector<16x64xf32> to vector<16x64xbf16>
    %cst_114 = arith.constant dense<0.000000e+00> : vector<32x64xf32>
    %221 = tpu.matmul %71, %220, %cst_114 {dimension_numbers = #tpu.dot_dimension_numbers<[1], [0], [0], [1], [0, 0, 1, 1], [], []>} : vector<32x16xbf16>, vector<16x64xbf16>, vector<32x64xf32> -> vector<32x64xf32>
    %222 = arith.truncf %221 : vector<32x64xf32> to vector<32x64xbf16>
    %c0_115 = arith.constant 0 : index
    %c0_116 = arith.constant 0 : index
    %223 = vector.load %arg15[%c0_115, %c0_116] : memref<64x256xbf16, #tpu.memory_space<vmem>>, vector<64x256xbf16>
    %cst_117 = arith.constant dense<0.000000e+00> : vector<32x256xf32>
    %224 = tpu.matmul %222, %223, %cst_117 {dimension_numbers = #tpu.dot_dimension_numbers<[1], [0], [0], [1], [0, 0, 1, 1], [], []>} : vector<32x64xbf16>, vector<64x256xbf16>, vector<32x256xf32> -> vector<32x256xf32>
    %225 = arith.addf %224, %73 : vector<32x256xf32>
    %cst_118 = arith.constant dense<0.000000e+00> : vector<32xf32>
    %226 = vector.multi_reduction <add>, %225, %cst_118 [1] : vector<32x256xf32> to vector<32xf32>
    %227 = vector.shape_cast %226 : vector<32xf32> to vector<32x1xf32>
    %cst_119 = arith.constant 2.560000e+02 : f32
    %228 = vector.broadcast %cst_119 : f32 to vector<32x1xf32>
    %229 = arith.divf %227, %228 : vector<32x1xf32>
    %230 = vector.broadcast %229 : vector<32x1xf32> to vector<32x256xf32>
    %231 = arith.subf %225, %230 : vector<32x256xf32>
    %232 = arith.mulf %231, %231 : vector<32x256xf32>
    %cst_120 = arith.constant dense<0.000000e+00> : vector<32xf32>
    %233 = vector.multi_reduction <add>, %232, %cst_120 [1] : vector<32x256xf32> to vector<32xf32>
    %234 = vector.shape_cast %233 : vector<32xf32> to vector<32x1xf32>
    %cst_121 = arith.constant 2.560000e+02 : f32
    %235 = vector.broadcast %cst_121 : f32 to vector<32x1xf32>
    %236 = arith.divf %234, %235 : vector<32x1xf32>
    %237 = vector.broadcast %229 : vector<32x1xf32> to vector<32x256xf32>
    %238 = arith.subf %225, %237 : vector<32x256xf32>
    %cst_122 = arith.constant 9.99999974E-6 : f32
    %239 = vector.broadcast %cst_122 : f32 to vector<32x1xf32>
    %240 = arith.addf %236, %239 : vector<32x1xf32>
    %241 = math.rsqrt %240 : vector<32x1xf32>
    %242 = vector.broadcast %241 : vector<32x1xf32> to vector<32x256xf32>
    %243 = arith.mulf %238, %242 : vector<32x256xf32>
    %c0_123 = arith.constant 0 : index
    %c0_124 = arith.constant 0 : index
    %244 = vector.load %arg16[%c0_123, %c0_124] : memref<1x256xf32, #tpu.memory_space<vmem>>, vector<1x256xf32>
    %245 = vector.broadcast %244 : vector<1x256xf32> to vector<32x256xf32>
    %246 = arith.mulf %243, %245 : vector<32x256xf32>
    %c0_125 = arith.constant 0 : index
    %c0_126 = arith.constant 0 : index
    %247 = vector.load %arg17[%c0_125, %c0_126] : memref<1x256xf32, #tpu.memory_space<vmem>>, vector<1x256xf32>
    %248 = vector.broadcast %247 : vector<1x256xf32> to vector<32x256xf32>
    %249 = arith.addf %246, %248 : vector<32x256xf32>
    %cst_127 = arith.constant 0.000000e+00 : f32
    %250 = vector.broadcast %cst_127 : f32 to vector<32x256xf32>
    %251 = arith.maximumf %249, %250 : vector<32x256xf32>
    %252 = arith.truncf %251 : vector<32x256xf32> to vector<32x256xbf16>
    %c0_128 = arith.constant 0 : index
    %c0_129 = arith.constant 0 : index
    %253 = vector.load %arg18[%c0_128, %c0_129] : memref<256x256xbf16, #tpu.memory_space<vmem>>, vector<256x256xbf16>
    %cst_130 = arith.constant dense<0.000000e+00> : vector<32x256xf32>
    %254 = tpu.matmul %252, %253, %cst_130 {dimension_numbers = #tpu.dot_dimension_numbers<[1], [0], [0], [1], [0, 0, 1, 1], [], []>} : vector<32x256xbf16>, vector<256x256xbf16>, vector<32x256xf32> -> vector<32x256xf32>
    %c0_131 = arith.constant 0 : index
    %c0_132 = arith.constant 0 : index
    %255 = vector.load %arg19[%c0_131, %c0_132] : memref<1x256xf32, #tpu.memory_space<vmem>>, vector<1x256xf32>
    %256 = vector.broadcast %255 : vector<1x256xf32> to vector<32x256xf32>
    %257 = arith.addf %254, %256 : vector<32x256xf32>
    %cst_133 = arith.constant dense<0.000000e+00> : vector<32xf32>
    %258 = vector.multi_reduction <add>, %257, %cst_133 [1] : vector<32x256xf32> to vector<32xf32>
    %259 = vector.shape_cast %258 : vector<32xf32> to vector<32x1xf32>
    %cst_134 = arith.constant 2.560000e+02 : f32
    %260 = vector.broadcast %cst_134 : f32 to vector<32x1xf32>
    %261 = arith.divf %259, %260 : vector<32x1xf32>
    %262 = vector.broadcast %261 : vector<32x1xf32> to vector<32x256xf32>
    %263 = arith.subf %257, %262 : vector<32x256xf32>
    %264 = arith.mulf %263, %263 : vector<32x256xf32>
    %cst_135 = arith.constant dense<0.000000e+00> : vector<32xf32>
    %265 = vector.multi_reduction <add>, %264, %cst_135 [1] : vector<32x256xf32> to vector<32xf32>
    %266 = vector.shape_cast %265 : vector<32xf32> to vector<32x1xf32>
    %cst_136 = arith.constant 2.560000e+02 : f32
    %267 = vector.broadcast %cst_136 : f32 to vector<32x1xf32>
    %268 = arith.divf %266, %267 : vector<32x1xf32>
    %269 = vector.broadcast %261 : vector<32x1xf32> to vector<32x256xf32>
    %270 = arith.subf %257, %269 : vector<32x256xf32>
    %cst_137 = arith.constant 9.99999974E-6 : f32
    %271 = vector.broadcast %cst_137 : f32 to vector<32x1xf32>
    %272 = arith.addf %268, %271 : vector<32x1xf32>
    %273 = math.rsqrt %272 : vector<32x1xf32>
    %274 = vector.broadcast %273 : vector<32x1xf32> to vector<32x256xf32>
    %275 = arith.mulf %270, %274 : vector<32x256xf32>
    %c0_138 = arith.constant 0 : index
    %c0_139 = arith.constant 0 : index
    %276 = vector.load %arg20[%c0_138, %c0_139] : memref<1x256xf32, #tpu.memory_space<vmem>>, vector<1x256xf32>
    %277 = vector.broadcast %276 : vector<1x256xf32> to vector<32x256xf32>
    %278 = arith.mulf %275, %277 : vector<32x256xf32>
    %c0_140 = arith.constant 0 : index
    %c0_141 = arith.constant 0 : index
    %279 = vector.load %arg21[%c0_140, %c0_141] : memref<1x256xf32, #tpu.memory_space<vmem>>, vector<1x256xf32>
    %280 = vector.broadcast %279 : vector<1x256xf32> to vector<32x256xf32>
    %281 = arith.addf %278, %280 : vector<32x256xf32>
    %cst_142 = arith.constant 0.000000e+00 : f32
    %282 = vector.broadcast %cst_142 : f32 to vector<32x256xf32>
    %283 = arith.maximumf %281, %282 : vector<32x256xf32>
    %284 = arith.truncf %283 : vector<32x256xf32> to vector<32x256xbf16>
    %c0_143 = arith.constant 0 : index
    %c0_144 = arith.constant 0 : index
    %285 = vector.load %arg22[%c0_143, %c0_144] : memref<256x64xbf16, #tpu.memory_space<vmem>>, vector<256x64xbf16>
    %cst_145 = arith.constant dense<0.000000e+00> : vector<32x64xf32>
    %286 = tpu.matmul %284, %285, %cst_145 {dimension_numbers = #tpu.dot_dimension_numbers<[1], [0], [0], [1], [0, 0, 1, 1], [], []>} : vector<32x256xbf16>, vector<256x64xbf16>, vector<32x64xf32> -> vector<32x64xf32>
    %c0_146 = arith.constant 0 : index
    %c0_147 = arith.constant 0 : index
    %287 = vector.load %arg23[%c0_146, %c0_147] : memref<1x64xf32, #tpu.memory_space<vmem>>, vector<1x64xf32>
    %288 = vector.broadcast %287 : vector<1x64xf32> to vector<32x64xf32>
    %289 = arith.addf %286, %288 : vector<32x64xf32>
    %290 = math.tanh %289 : vector<32x64xf32>
    %291 = arith.truncf %290 : vector<32x64xf32> to vector<32x64xbf16>
    %cst_148 = arith.constant dense<0.000000e+00> : vector<16x64xf32>
    %292 = tpu.matmul %72, %291, %cst_148 {dimension_numbers = #tpu.dot_dimension_numbers<[1], [0], [0], [1], [0, 0, 1, 1], [], []>} : vector<16x32xbf16>, vector<32x64xbf16>, vector<16x64xf32> -> vector<16x64xf32>
    %293 = arith.truncf %292 : vector<16x64xf32> to vector<16x64xbf16>
    %c0_149 = arith.constant 0 : index
    %c0_150 = arith.constant 0 : index
    %294 = vector.load %arg24[%c0_149, %c0_150] : memref<64x256xbf16, #tpu.memory_space<vmem>>, vector<64x256xbf16>
    %cst_151 = arith.constant dense<0.000000e+00> : vector<16x256xf32>
    %295 = tpu.matmul %293, %294, %cst_151 {dimension_numbers = #tpu.dot_dimension_numbers<[1], [0], [0], [1], [0, 0, 1, 1], [], []>} : vector<16x64xbf16>, vector<64x256xbf16>, vector<16x256xf32> -> vector<16x256xf32>
    %c0_152 = arith.constant 0 : index
    %c0_153 = arith.constant 0 : index
    %296 = vector.load %arg25[%c0_152, %c0_153] : memref<64x256xbf16, #tpu.memory_space<vmem>>, vector<64x256xbf16>
    %cst_154 = arith.constant dense<0.000000e+00> : vector<16x256xf32>
    %297 = tpu.matmul %220, %296, %cst_154 {dimension_numbers = #tpu.dot_dimension_numbers<[1], [0], [0], [1], [0, 0, 1, 1], [], []>} : vector<16x64xbf16>, vector<64x256xbf16>, vector<16x256xf32> -> vector<16x256xf32>
    %298 = arith.addf %295, %297 : vector<16x256xf32>
    %c0_155 = arith.constant 0 : index
    %c0_156 = arith.constant 0 : index
    %299 = vector.load %arg26[%c0_155, %c0_156] : memref<1x256xf32, #tpu.memory_space<vmem>>, vector<1x256xf32>
    %300 = vector.broadcast %299 : vector<1x256xf32> to vector<16x256xf32>
    %301 = arith.addf %298, %300 : vector<16x256xf32>
    %cst_157 = arith.constant dense<0.000000e+00> : vector<16xf32>
    %302 = vector.multi_reduction <add>, %301, %cst_157 [1] : vector<16x256xf32> to vector<16xf32>
    %303 = vector.shape_cast %302 : vector<16xf32> to vector<16x1xf32>
    %cst_158 = arith.constant 2.560000e+02 : f32
    %304 = vector.broadcast %cst_158 : f32 to vector<16x1xf32>
    %305 = arith.divf %303, %304 : vector<16x1xf32>
    %306 = vector.broadcast %305 : vector<16x1xf32> to vector<16x256xf32>
    %307 = arith.subf %301, %306 : vector<16x256xf32>
    %308 = arith.mulf %307, %307 : vector<16x256xf32>
    %cst_159 = arith.constant dense<0.000000e+00> : vector<16xf32>
    %309 = vector.multi_reduction <add>, %308, %cst_159 [1] : vector<16x256xf32> to vector<16xf32>
    %310 = vector.shape_cast %309 : vector<16xf32> to vector<16x1xf32>
    %cst_160 = arith.constant 2.560000e+02 : f32
    %311 = vector.broadcast %cst_160 : f32 to vector<16x1xf32>
    %312 = arith.divf %310, %311 : vector<16x1xf32>
    %313 = vector.broadcast %305 : vector<16x1xf32> to vector<16x256xf32>
    %314 = arith.subf %301, %313 : vector<16x256xf32>
    %cst_161 = arith.constant 9.99999974E-6 : f32
    %315 = vector.broadcast %cst_161 : f32 to vector<16x1xf32>
    %316 = arith.addf %312, %315 : vector<16x1xf32>
    %317 = math.rsqrt %316 : vector<16x1xf32>
    %318 = vector.broadcast %317 : vector<16x1xf32> to vector<16x256xf32>
    %319 = arith.mulf %314, %318 : vector<16x256xf32>
    %c0_162 = arith.constant 0 : index
    %c0_163 = arith.constant 0 : index
    %320 = vector.load %arg27[%c0_162, %c0_163] : memref<1x256xf32, #tpu.memory_space<vmem>>, vector<1x256xf32>
    %321 = vector.broadcast %320 : vector<1x256xf32> to vector<16x256xf32>
    %322 = arith.mulf %319, %321 : vector<16x256xf32>
    %c0_164 = arith.constant 0 : index
    %c0_165 = arith.constant 0 : index
    %323 = vector.load %arg28[%c0_164, %c0_165] : memref<1x256xf32, #tpu.memory_space<vmem>>, vector<1x256xf32>
    %324 = vector.broadcast %323 : vector<1x256xf32> to vector<16x256xf32>
    %325 = arith.addf %322, %324 : vector<16x256xf32>
    %cst_166 = arith.constant 0.000000e+00 : f32
    %326 = vector.broadcast %cst_166 : f32 to vector<16x256xf32>
    %327 = arith.maximumf %325, %326 : vector<16x256xf32>
    %328 = arith.truncf %327 : vector<16x256xf32> to vector<16x256xbf16>
    %c0_167 = arith.constant 0 : index
    %c0_168 = arith.constant 0 : index
    %329 = vector.load %arg29[%c0_167, %c0_168] : memref<256x256xbf16, #tpu.memory_space<vmem>>, vector<256x256xbf16>
    %cst_169 = arith.constant dense<0.000000e+00> : vector<16x256xf32>
    %330 = tpu.matmul %328, %329, %cst_169 {dimension_numbers = #tpu.dot_dimension_numbers<[1], [0], [0], [1], [0, 0, 1, 1], [], []>} : vector<16x256xbf16>, vector<256x256xbf16>, vector<16x256xf32> -> vector<16x256xf32>
    %c0_170 = arith.constant 0 : index
    %c0_171 = arith.constant 0 : index
    %331 = vector.load %arg30[%c0_170, %c0_171] : memref<1x256xf32, #tpu.memory_space<vmem>>, vector<1x256xf32>
    %332 = vector.broadcast %331 : vector<1x256xf32> to vector<16x256xf32>
    %333 = arith.addf %330, %332 : vector<16x256xf32>
    %cst_172 = arith.constant dense<0.000000e+00> : vector<16xf32>
    %334 = vector.multi_reduction <add>, %333, %cst_172 [1] : vector<16x256xf32> to vector<16xf32>
    %335 = vector.shape_cast %334 : vector<16xf32> to vector<16x1xf32>
    %cst_173 = arith.constant 2.560000e+02 : f32
    %336 = vector.broadcast %cst_173 : f32 to vector<16x1xf32>
    %337 = arith.divf %335, %336 : vector<16x1xf32>
    %338 = vector.broadcast %337 : vector<16x1xf32> to vector<16x256xf32>
    %339 = arith.subf %333, %338 : vector<16x256xf32>
    %340 = arith.mulf %339, %339 : vector<16x256xf32>
    %cst_174 = arith.constant dense<0.000000e+00> : vector<16xf32>
    %341 = vector.multi_reduction <add>, %340, %cst_174 [1] : vector<16x256xf32> to vector<16xf32>
    %342 = vector.shape_cast %341 : vector<16xf32> to vector<16x1xf32>
    %cst_175 = arith.constant 2.560000e+02 : f32
    %343 = vector.broadcast %cst_175 : f32 to vector<16x1xf32>
    %344 = arith.divf %342, %343 : vector<16x1xf32>
    %345 = vector.broadcast %337 : vector<16x1xf32> to vector<16x256xf32>
    %346 = arith.subf %333, %345 : vector<16x256xf32>
    %cst_176 = arith.constant 9.99999974E-6 : f32
    %347 = vector.broadcast %cst_176 : f32 to vector<16x1xf32>
    %348 = arith.addf %344, %347 : vector<16x1xf32>
    %349 = math.rsqrt %348 : vector<16x1xf32>
    %350 = vector.broadcast %349 : vector<16x1xf32> to vector<16x256xf32>
    %351 = arith.mulf %346, %350 : vector<16x256xf32>
    %c0_177 = arith.constant 0 : index
    %c0_178 = arith.constant 0 : index
    %352 = vector.load %arg31[%c0_177, %c0_178] : memref<1x256xf32, #tpu.memory_space<vmem>>, vector<1x256xf32>
    %353 = vector.broadcast %352 : vector<1x256xf32> to vector<16x256xf32>
    %354 = arith.mulf %351, %353 : vector<16x256xf32>
    %c0_179 = arith.constant 0 : index
    %c0_180 = arith.constant 0 : index
    %355 = vector.load %arg32[%c0_179, %c0_180] : memref<1x256xf32, #tpu.memory_space<vmem>>, vector<1x256xf32>
    %356 = vector.broadcast %355 : vector<1x256xf32> to vector<16x256xf32>
    %357 = arith.addf %354, %356 : vector<16x256xf32>
    %cst_181 = arith.constant 0.000000e+00 : f32
    %358 = vector.broadcast %cst_181 : f32 to vector<16x256xf32>
    %359 = arith.maximumf %357, %358 : vector<16x256xf32>
    %360 = arith.truncf %359 : vector<16x256xf32> to vector<16x256xbf16>
    %c0_182 = arith.constant 0 : index
    %c0_183 = arith.constant 0 : index
    %361 = vector.load %arg33[%c0_182, %c0_183] : memref<256x64xbf16, #tpu.memory_space<vmem>>, vector<256x64xbf16>
    %cst_184 = arith.constant dense<0.000000e+00> : vector<16x64xf32>
    %362 = tpu.matmul %360, %361, %cst_184 {dimension_numbers = #tpu.dot_dimension_numbers<[1], [0], [0], [1], [0, 0, 1, 1], [], []>} : vector<16x256xbf16>, vector<256x64xbf16>, vector<16x64xf32> -> vector<16x64xf32>
    %c0_185 = arith.constant 0 : index
    %c0_186 = arith.constant 0 : index
    %363 = vector.load %arg34[%c0_185, %c0_186] : memref<1x64xf32, #tpu.memory_space<vmem>>, vector<1x64xf32>
    %364 = vector.broadcast %363 : vector<1x64xf32> to vector<16x64xf32>
    %365 = arith.addf %362, %364 : vector<16x64xf32>
    %c2_i32 = arith.constant 2 : i32
    %366 = arith.truncf %365 : vector<16x64xf32> to vector<16x64xbf16>
    %cst_187 = arith.constant dense<0.000000e+00> : vector<32x64xf32>
    %367 = tpu.matmul %71, %366, %cst_187 {dimension_numbers = #tpu.dot_dimension_numbers<[1], [0], [0], [1], [0, 0, 1, 1], [], []>} : vector<32x16xbf16>, vector<16x64xbf16>, vector<32x64xf32> -> vector<32x64xf32>
    %368 = arith.truncf %367 : vector<32x64xf32> to vector<32x64xbf16>
    %c0_188 = arith.constant 0 : index
    %c0_189 = arith.constant 0 : index
    %369 = vector.load %arg15[%c0_188, %c0_189] : memref<64x256xbf16, #tpu.memory_space<vmem>>, vector<64x256xbf16>
    %cst_190 = arith.constant dense<0.000000e+00> : vector<32x256xf32>
    %370 = tpu.matmul %368, %369, %cst_190 {dimension_numbers = #tpu.dot_dimension_numbers<[1], [0], [0], [1], [0, 0, 1, 1], [], []>} : vector<32x64xbf16>, vector<64x256xbf16>, vector<32x256xf32> -> vector<32x256xf32>
    %371 = arith.addf %370, %73 : vector<32x256xf32>
    %cst_191 = arith.constant dense<0.000000e+00> : vector<32xf32>
    %372 = vector.multi_reduction <add>, %371, %cst_191 [1] : vector<32x256xf32> to vector<32xf32>
    %373 = vector.shape_cast %372 : vector<32xf32> to vector<32x1xf32>
    %cst_192 = arith.constant 2.560000e+02 : f32
    %374 = vector.broadcast %cst_192 : f32 to vector<32x1xf32>
    %375 = arith.divf %373, %374 : vector<32x1xf32>
    %376 = vector.broadcast %375 : vector<32x1xf32> to vector<32x256xf32>
    %377 = arith.subf %371, %376 : vector<32x256xf32>
    %378 = arith.mulf %377, %377 : vector<32x256xf32>
    %cst_193 = arith.constant dense<0.000000e+00> : vector<32xf32>
    %379 = vector.multi_reduction <add>, %378, %cst_193 [1] : vector<32x256xf32> to vector<32xf32>
    %380 = vector.shape_cast %379 : vector<32xf32> to vector<32x1xf32>
    %cst_194 = arith.constant 2.560000e+02 : f32
    %381 = vector.broadcast %cst_194 : f32 to vector<32x1xf32>
    %382 = arith.divf %380, %381 : vector<32x1xf32>
    %383 = vector.broadcast %375 : vector<32x1xf32> to vector<32x256xf32>
    %384 = arith.subf %371, %383 : vector<32x256xf32>
    %cst_195 = arith.constant 9.99999974E-6 : f32
    %385 = vector.broadcast %cst_195 : f32 to vector<32x1xf32>
    %386 = arith.addf %382, %385 : vector<32x1xf32>
    %387 = math.rsqrt %386 : vector<32x1xf32>
    %388 = vector.broadcast %387 : vector<32x1xf32> to vector<32x256xf32>
    %389 = arith.mulf %384, %388 : vector<32x256xf32>
    %c0_196 = arith.constant 0 : index
    %c0_197 = arith.constant 0 : index
    %390 = vector.load %arg16[%c0_196, %c0_197] : memref<1x256xf32, #tpu.memory_space<vmem>>, vector<1x256xf32>
    %391 = vector.broadcast %390 : vector<1x256xf32> to vector<32x256xf32>
    %392 = arith.mulf %389, %391 : vector<32x256xf32>
    %c0_198 = arith.constant 0 : index
    %c0_199 = arith.constant 0 : index
    %393 = vector.load %arg17[%c0_198, %c0_199] : memref<1x256xf32, #tpu.memory_space<vmem>>, vector<1x256xf32>
    %394 = vector.broadcast %393 : vector<1x256xf32> to vector<32x256xf32>
    %395 = arith.addf %392, %394 : vector<32x256xf32>
    %cst_200 = arith.constant 0.000000e+00 : f32
    %396 = vector.broadcast %cst_200 : f32 to vector<32x256xf32>
    %397 = arith.maximumf %395, %396 : vector<32x256xf32>
    %398 = arith.truncf %397 : vector<32x256xf32> to vector<32x256xbf16>
    %c0_201 = arith.constant 0 : index
    %c0_202 = arith.constant 0 : index
    %399 = vector.load %arg18[%c0_201, %c0_202] : memref<256x256xbf16, #tpu.memory_space<vmem>>, vector<256x256xbf16>
    %cst_203 = arith.constant dense<0.000000e+00> : vector<32x256xf32>
    %400 = tpu.matmul %398, %399, %cst_203 {dimension_numbers = #tpu.dot_dimension_numbers<[1], [0], [0], [1], [0, 0, 1, 1], [], []>} : vector<32x256xbf16>, vector<256x256xbf16>, vector<32x256xf32> -> vector<32x256xf32>
    %c0_204 = arith.constant 0 : index
    %c0_205 = arith.constant 0 : index
    %401 = vector.load %arg19[%c0_204, %c0_205] : memref<1x256xf32, #tpu.memory_space<vmem>>, vector<1x256xf32>
    %402 = vector.broadcast %401 : vector<1x256xf32> to vector<32x256xf32>
    %403 = arith.addf %400, %402 : vector<32x256xf32>
    %cst_206 = arith.constant dense<0.000000e+00> : vector<32xf32>
    %404 = vector.multi_reduction <add>, %403, %cst_206 [1] : vector<32x256xf32> to vector<32xf32>
    %405 = vector.shape_cast %404 : vector<32xf32> to vector<32x1xf32>
    %cst_207 = arith.constant 2.560000e+02 : f32
    %406 = vector.broadcast %cst_207 : f32 to vector<32x1xf32>
    %407 = arith.divf %405, %406 : vector<32x1xf32>
    %408 = vector.broadcast %407 : vector<32x1xf32> to vector<32x256xf32>
    %409 = arith.subf %403, %408 : vector<32x256xf32>
    %410 = arith.mulf %409, %409 : vector<32x256xf32>
    %cst_208 = arith.constant dense<0.000000e+00> : vector<32xf32>
    %411 = vector.multi_reduction <add>, %410, %cst_208 [1] : vector<32x256xf32> to vector<32xf32>
    %412 = vector.shape_cast %411 : vector<32xf32> to vector<32x1xf32>
    %cst_209 = arith.constant 2.560000e+02 : f32
    %413 = vector.broadcast %cst_209 : f32 to vector<32x1xf32>
    %414 = arith.divf %412, %413 : vector<32x1xf32>
    %415 = vector.broadcast %407 : vector<32x1xf32> to vector<32x256xf32>
    %416 = arith.subf %403, %415 : vector<32x256xf32>
    %cst_210 = arith.constant 9.99999974E-6 : f32
    %417 = vector.broadcast %cst_210 : f32 to vector<32x1xf32>
    %418 = arith.addf %414, %417 : vector<32x1xf32>
    %419 = math.rsqrt %418 : vector<32x1xf32>
    %420 = vector.broadcast %419 : vector<32x1xf32> to vector<32x256xf32>
    %421 = arith.mulf %416, %420 : vector<32x256xf32>
    %c0_211 = arith.constant 0 : index
    %c0_212 = arith.constant 0 : index
    %422 = vector.load %arg20[%c0_211, %c0_212] : memref<1x256xf32, #tpu.memory_space<vmem>>, vector<1x256xf32>
    %423 = vector.broadcast %422 : vector<1x256xf32> to vector<32x256xf32>
    %424 = arith.mulf %421, %423 : vector<32x256xf32>
    %c0_213 = arith.constant 0 : index
    %c0_214 = arith.constant 0 : index
    %425 = vector.load %arg21[%c0_213, %c0_214] : memref<1x256xf32, #tpu.memory_space<vmem>>, vector<1x256xf32>
    %426 = vector.broadcast %425 : vector<1x256xf32> to vector<32x256xf32>
    %427 = arith.addf %424, %426 : vector<32x256xf32>
    %cst_215 = arith.constant 0.000000e+00 : f32
    %428 = vector.broadcast %cst_215 : f32 to vector<32x256xf32>
    %429 = arith.maximumf %427, %428 : vector<32x256xf32>
    %430 = arith.truncf %429 : vector<32x256xf32> to vector<32x256xbf16>
    %c0_216 = arith.constant 0 : index
    %c0_217 = arith.constant 0 : index
    %431 = vector.load %arg22[%c0_216, %c0_217] : memref<256x64xbf16, #tpu.memory_space<vmem>>, vector<256x64xbf16>
    %cst_218 = arith.constant dense<0.000000e+00> : vector<32x64xf32>
    %432 = tpu.matmul %430, %431, %cst_218 {dimension_numbers = #tpu.dot_dimension_numbers<[1], [0], [0], [1], [0, 0, 1, 1], [], []>} : vector<32x256xbf16>, vector<256x64xbf16>, vector<32x64xf32> -> vector<32x64xf32>
    %c0_219 = arith.constant 0 : index
    %c0_220 = arith.constant 0 : index
    %433 = vector.load %arg23[%c0_219, %c0_220] : memref<1x64xf32, #tpu.memory_space<vmem>>, vector<1x64xf32>
    %434 = vector.broadcast %433 : vector<1x64xf32> to vector<32x64xf32>
    %435 = arith.addf %432, %434 : vector<32x64xf32>
    %436 = math.tanh %435 : vector<32x64xf32>
    %437 = arith.truncf %436 : vector<32x64xf32> to vector<32x64xbf16>
    %cst_221 = arith.constant dense<0.000000e+00> : vector<16x64xf32>
    %438 = tpu.matmul %72, %437, %cst_221 {dimension_numbers = #tpu.dot_dimension_numbers<[1], [0], [0], [1], [0, 0, 1, 1], [], []>} : vector<16x32xbf16>, vector<32x64xbf16>, vector<16x64xf32> -> vector<16x64xf32>
    %439 = arith.truncf %438 : vector<16x64xf32> to vector<16x64xbf16>
    %c0_222 = arith.constant 0 : index
    %c0_223 = arith.constant 0 : index
    %440 = vector.load %arg24[%c0_222, %c0_223] : memref<64x256xbf16, #tpu.memory_space<vmem>>, vector<64x256xbf16>
    %cst_224 = arith.constant dense<0.000000e+00> : vector<16x256xf32>
    %441 = tpu.matmul %439, %440, %cst_224 {dimension_numbers = #tpu.dot_dimension_numbers<[1], [0], [0], [1], [0, 0, 1, 1], [], []>} : vector<16x64xbf16>, vector<64x256xbf16>, vector<16x256xf32> -> vector<16x256xf32>
    %c0_225 = arith.constant 0 : index
    %c0_226 = arith.constant 0 : index
    %442 = vector.load %arg25[%c0_225, %c0_226] : memref<64x256xbf16, #tpu.memory_space<vmem>>, vector<64x256xbf16>
    %cst_227 = arith.constant dense<0.000000e+00> : vector<16x256xf32>
    %443 = tpu.matmul %366, %442, %cst_227 {dimension_numbers = #tpu.dot_dimension_numbers<[1], [0], [0], [1], [0, 0, 1, 1], [], []>} : vector<16x64xbf16>, vector<64x256xbf16>, vector<16x256xf32> -> vector<16x256xf32>
    %444 = arith.addf %441, %443 : vector<16x256xf32>
    %c0_228 = arith.constant 0 : index
    %c0_229 = arith.constant 0 : index
    %445 = vector.load %arg26[%c0_228, %c0_229] : memref<1x256xf32, #tpu.memory_space<vmem>>, vector<1x256xf32>
    %446 = vector.broadcast %445 : vector<1x256xf32> to vector<16x256xf32>
    %447 = arith.addf %444, %446 : vector<16x256xf32>
    %cst_230 = arith.constant dense<0.000000e+00> : vector<16xf32>
    %448 = vector.multi_reduction <add>, %447, %cst_230 [1] : vector<16x256xf32> to vector<16xf32>
    %449 = vector.shape_cast %448 : vector<16xf32> to vector<16x1xf32>
    %cst_231 = arith.constant 2.560000e+02 : f32
    %450 = vector.broadcast %cst_231 : f32 to vector<16x1xf32>
    %451 = arith.divf %449, %450 : vector<16x1xf32>
    %452 = vector.broadcast %451 : vector<16x1xf32> to vector<16x256xf32>
    %453 = arith.subf %447, %452 : vector<16x256xf32>
    %454 = arith.mulf %453, %453 : vector<16x256xf32>
    %cst_232 = arith.constant dense<0.000000e+00> : vector<16xf32>
    %455 = vector.multi_reduction <add>, %454, %cst_232 [1] : vector<16x256xf32> to vector<16xf32>
    %456 = vector.shape_cast %455 : vector<16xf32> to vector<16x1xf32>
    %cst_233 = arith.constant 2.560000e+02 : f32
    %457 = vector.broadcast %cst_233 : f32 to vector<16x1xf32>
    %458 = arith.divf %456, %457 : vector<16x1xf32>
    %459 = vector.broadcast %451 : vector<16x1xf32> to vector<16x256xf32>
    %460 = arith.subf %447, %459 : vector<16x256xf32>
    %cst_234 = arith.constant 9.99999974E-6 : f32
    %461 = vector.broadcast %cst_234 : f32 to vector<16x1xf32>
    %462 = arith.addf %458, %461 : vector<16x1xf32>
    %463 = math.rsqrt %462 : vector<16x1xf32>
    %464 = vector.broadcast %463 : vector<16x1xf32> to vector<16x256xf32>
    %465 = arith.mulf %460, %464 : vector<16x256xf32>
    %c0_235 = arith.constant 0 : index
    %c0_236 = arith.constant 0 : index
    %466 = vector.load %arg27[%c0_235, %c0_236] : memref<1x256xf32, #tpu.memory_space<vmem>>, vector<1x256xf32>
    %467 = vector.broadcast %466 : vector<1x256xf32> to vector<16x256xf32>
    %468 = arith.mulf %465, %467 : vector<16x256xf32>
    %c0_237 = arith.constant 0 : index
    %c0_238 = arith.constant 0 : index
    %469 = vector.load %arg28[%c0_237, %c0_238] : memref<1x256xf32, #tpu.memory_space<vmem>>, vector<1x256xf32>
    %470 = vector.broadcast %469 : vector<1x256xf32> to vector<16x256xf32>
    %471 = arith.addf %468, %470 : vector<16x256xf32>
    %cst_239 = arith.constant 0.000000e+00 : f32
    %472 = vector.broadcast %cst_239 : f32 to vector<16x256xf32>
    %473 = arith.maximumf %471, %472 : vector<16x256xf32>
    %474 = arith.truncf %473 : vector<16x256xf32> to vector<16x256xbf16>
    %c0_240 = arith.constant 0 : index
    %c0_241 = arith.constant 0 : index
    %475 = vector.load %arg29[%c0_240, %c0_241] : memref<256x256xbf16, #tpu.memory_space<vmem>>, vector<256x256xbf16>
    %cst_242 = arith.constant dense<0.000000e+00> : vector<16x256xf32>
    %476 = tpu.matmul %474, %475, %cst_242 {dimension_numbers = #tpu.dot_dimension_numbers<[1], [0], [0], [1], [0, 0, 1, 1], [], []>} : vector<16x256xbf16>, vector<256x256xbf16>, vector<16x256xf32> -> vector<16x256xf32>
    %c0_243 = arith.constant 0 : index
    %c0_244 = arith.constant 0 : index
    %477 = vector.load %arg30[%c0_243, %c0_244] : memref<1x256xf32, #tpu.memory_space<vmem>>, vector<1x256xf32>
    %478 = vector.broadcast %477 : vector<1x256xf32> to vector<16x256xf32>
    %479 = arith.addf %476, %478 : vector<16x256xf32>
    %cst_245 = arith.constant dense<0.000000e+00> : vector<16xf32>
    %480 = vector.multi_reduction <add>, %479, %cst_245 [1] : vector<16x256xf32> to vector<16xf32>
    %481 = vector.shape_cast %480 : vector<16xf32> to vector<16x1xf32>
    %cst_246 = arith.constant 2.560000e+02 : f32
    %482 = vector.broadcast %cst_246 : f32 to vector<16x1xf32>
    %483 = arith.divf %481, %482 : vector<16x1xf32>
    %484 = vector.broadcast %483 : vector<16x1xf32> to vector<16x256xf32>
    %485 = arith.subf %479, %484 : vector<16x256xf32>
    %486 = arith.mulf %485, %485 : vector<16x256xf32>
    %cst_247 = arith.constant dense<0.000000e+00> : vector<16xf32>
    %487 = vector.multi_reduction <add>, %486, %cst_247 [1] : vector<16x256xf32> to vector<16xf32>
    %488 = vector.shape_cast %487 : vector<16xf32> to vector<16x1xf32>
    %cst_248 = arith.constant 2.560000e+02 : f32
    %489 = vector.broadcast %cst_248 : f32 to vector<16x1xf32>
    %490 = arith.divf %488, %489 : vector<16x1xf32>
    %491 = vector.broadcast %483 : vector<16x1xf32> to vector<16x256xf32>
    %492 = arith.subf %479, %491 : vector<16x256xf32>
    %cst_249 = arith.constant 9.99999974E-6 : f32
    %493 = vector.broadcast %cst_249 : f32 to vector<16x1xf32>
    %494 = arith.addf %490, %493 : vector<16x1xf32>
    %495 = math.rsqrt %494 : vector<16x1xf32>
    %496 = vector.broadcast %495 : vector<16x1xf32> to vector<16x256xf32>
    %497 = arith.mulf %492, %496 : vector<16x256xf32>
    %c0_250 = arith.constant 0 : index
    %c0_251 = arith.constant 0 : index
    %498 = vector.load %arg31[%c0_250, %c0_251] : memref<1x256xf32, #tpu.memory_space<vmem>>, vector<1x256xf32>
    %499 = vector.broadcast %498 : vector<1x256xf32> to vector<16x256xf32>
    %500 = arith.mulf %497, %499 : vector<16x256xf32>
    %c0_252 = arith.constant 0 : index
    %c0_253 = arith.constant 0 : index
    %501 = vector.load %arg32[%c0_252, %c0_253] : memref<1x256xf32, #tpu.memory_space<vmem>>, vector<1x256xf32>
    %502 = vector.broadcast %501 : vector<1x256xf32> to vector<16x256xf32>
    %503 = arith.addf %500, %502 : vector<16x256xf32>
    %cst_254 = arith.constant 0.000000e+00 : f32
    %504 = vector.broadcast %cst_254 : f32 to vector<16x256xf32>
    %505 = arith.maximumf %503, %504 : vector<16x256xf32>
    %506 = arith.truncf %505 : vector<16x256xf32> to vector<16x256xbf16>
    %c0_255 = arith.constant 0 : index
    %c0_256 = arith.constant 0 : index
    %507 = vector.load %arg33[%c0_255, %c0_256] : memref<256x64xbf16, #tpu.memory_space<vmem>>, vector<256x64xbf16>
    %cst_257 = arith.constant dense<0.000000e+00> : vector<16x64xf32>
    %508 = tpu.matmul %506, %507, %cst_257 {dimension_numbers = #tpu.dot_dimension_numbers<[1], [0], [0], [1], [0, 0, 1, 1], [], []>} : vector<16x256xbf16>, vector<256x64xbf16>, vector<16x64xf32> -> vector<16x64xf32>
    %c0_258 = arith.constant 0 : index
    %c0_259 = arith.constant 0 : index
    %509 = vector.load %arg34[%c0_258, %c0_259] : memref<1x64xf32, #tpu.memory_space<vmem>>, vector<1x64xf32>
    %510 = vector.broadcast %509 : vector<1x64xf32> to vector<16x64xf32>
    %511 = arith.addf %508, %510 : vector<16x64xf32>
    %c3_i32 = arith.constant 3 : i32
    %512 = arith.truncf %511 : vector<16x64xf32> to vector<16x64xbf16>
    %cst_260 = arith.constant dense<0.000000e+00> : vector<32x64xf32>
    %513 = tpu.matmul %71, %512, %cst_260 {dimension_numbers = #tpu.dot_dimension_numbers<[1], [0], [0], [1], [0, 0, 1, 1], [], []>} : vector<32x16xbf16>, vector<16x64xbf16>, vector<32x64xf32> -> vector<32x64xf32>
    %514 = arith.truncf %513 : vector<32x64xf32> to vector<32x64xbf16>
    %c0_261 = arith.constant 0 : index
    %c0_262 = arith.constant 0 : index
    %515 = vector.load %arg15[%c0_261, %c0_262] : memref<64x256xbf16, #tpu.memory_space<vmem>>, vector<64x256xbf16>
    %cst_263 = arith.constant dense<0.000000e+00> : vector<32x256xf32>
    %516 = tpu.matmul %514, %515, %cst_263 {dimension_numbers = #tpu.dot_dimension_numbers<[1], [0], [0], [1], [0, 0, 1, 1], [], []>} : vector<32x64xbf16>, vector<64x256xbf16>, vector<32x256xf32> -> vector<32x256xf32>
    %517 = arith.addf %516, %73 : vector<32x256xf32>
    %cst_264 = arith.constant dense<0.000000e+00> : vector<32xf32>
    %518 = vector.multi_reduction <add>, %517, %cst_264 [1] : vector<32x256xf32> to vector<32xf32>
    %519 = vector.shape_cast %518 : vector<32xf32> to vector<32x1xf32>
    %cst_265 = arith.constant 2.560000e+02 : f32
    %520 = vector.broadcast %cst_265 : f32 to vector<32x1xf32>
    %521 = arith.divf %519, %520 : vector<32x1xf32>
    %522 = vector.broadcast %521 : vector<32x1xf32> to vector<32x256xf32>
    %523 = arith.subf %517, %522 : vector<32x256xf32>
    %524 = arith.mulf %523, %523 : vector<32x256xf32>
    %cst_266 = arith.constant dense<0.000000e+00> : vector<32xf32>
    %525 = vector.multi_reduction <add>, %524, %cst_266 [1] : vector<32x256xf32> to vector<32xf32>
    %526 = vector.shape_cast %525 : vector<32xf32> to vector<32x1xf32>
    %cst_267 = arith.constant 2.560000e+02 : f32
    %527 = vector.broadcast %cst_267 : f32 to vector<32x1xf32>
    %528 = arith.divf %526, %527 : vector<32x1xf32>
    %529 = vector.broadcast %521 : vector<32x1xf32> to vector<32x256xf32>
    %530 = arith.subf %517, %529 : vector<32x256xf32>
    %cst_268 = arith.constant 9.99999974E-6 : f32
    %531 = vector.broadcast %cst_268 : f32 to vector<32x1xf32>
    %532 = arith.addf %528, %531 : vector<32x1xf32>
    %533 = math.rsqrt %532 : vector<32x1xf32>
    %534 = vector.broadcast %533 : vector<32x1xf32> to vector<32x256xf32>
    %535 = arith.mulf %530, %534 : vector<32x256xf32>
    %c0_269 = arith.constant 0 : index
    %c0_270 = arith.constant 0 : index
    %536 = vector.load %arg16[%c0_269, %c0_270] : memref<1x256xf32, #tpu.memory_space<vmem>>, vector<1x256xf32>
    %537 = vector.broadcast %536 : vector<1x256xf32> to vector<32x256xf32>
    %538 = arith.mulf %535, %537 : vector<32x256xf32>
    %c0_271 = arith.constant 0 : index
    %c0_272 = arith.constant 0 : index
    %539 = vector.load %arg17[%c0_271, %c0_272] : memref<1x256xf32, #tpu.memory_space<vmem>>, vector<1x256xf32>
    %540 = vector.broadcast %539 : vector<1x256xf32> to vector<32x256xf32>
    %541 = arith.addf %538, %540 : vector<32x256xf32>
    %cst_273 = arith.constant 0.000000e+00 : f32
    %542 = vector.broadcast %cst_273 : f32 to vector<32x256xf32>
    %543 = arith.maximumf %541, %542 : vector<32x256xf32>
    %544 = arith.truncf %543 : vector<32x256xf32> to vector<32x256xbf16>
    %c0_274 = arith.constant 0 : index
    %c0_275 = arith.constant 0 : index
    %545 = vector.load %arg18[%c0_274, %c0_275] : memref<256x256xbf16, #tpu.memory_space<vmem>>, vector<256x256xbf16>
    %cst_276 = arith.constant dense<0.000000e+00> : vector<32x256xf32>
    %546 = tpu.matmul %544, %545, %cst_276 {dimension_numbers = #tpu.dot_dimension_numbers<[1], [0], [0], [1], [0, 0, 1, 1], [], []>} : vector<32x256xbf16>, vector<256x256xbf16>, vector<32x256xf32> -> vector<32x256xf32>
    %c0_277 = arith.constant 0 : index
    %c0_278 = arith.constant 0 : index
    %547 = vector.load %arg19[%c0_277, %c0_278] : memref<1x256xf32, #tpu.memory_space<vmem>>, vector<1x256xf32>
    %548 = vector.broadcast %547 : vector<1x256xf32> to vector<32x256xf32>
    %549 = arith.addf %546, %548 : vector<32x256xf32>
    %cst_279 = arith.constant dense<0.000000e+00> : vector<32xf32>
    %550 = vector.multi_reduction <add>, %549, %cst_279 [1] : vector<32x256xf32> to vector<32xf32>
    %551 = vector.shape_cast %550 : vector<32xf32> to vector<32x1xf32>
    %cst_280 = arith.constant 2.560000e+02 : f32
    %552 = vector.broadcast %cst_280 : f32 to vector<32x1xf32>
    %553 = arith.divf %551, %552 : vector<32x1xf32>
    %554 = vector.broadcast %553 : vector<32x1xf32> to vector<32x256xf32>
    %555 = arith.subf %549, %554 : vector<32x256xf32>
    %556 = arith.mulf %555, %555 : vector<32x256xf32>
    %cst_281 = arith.constant dense<0.000000e+00> : vector<32xf32>
    %557 = vector.multi_reduction <add>, %556, %cst_281 [1] : vector<32x256xf32> to vector<32xf32>
    %558 = vector.shape_cast %557 : vector<32xf32> to vector<32x1xf32>
    %cst_282 = arith.constant 2.560000e+02 : f32
    %559 = vector.broadcast %cst_282 : f32 to vector<32x1xf32>
    %560 = arith.divf %558, %559 : vector<32x1xf32>
    %561 = vector.broadcast %553 : vector<32x1xf32> to vector<32x256xf32>
    %562 = arith.subf %549, %561 : vector<32x256xf32>
    %cst_283 = arith.constant 9.99999974E-6 : f32
    %563 = vector.broadcast %cst_283 : f32 to vector<32x1xf32>
    %564 = arith.addf %560, %563 : vector<32x1xf32>
    %565 = math.rsqrt %564 : vector<32x1xf32>
    %566 = vector.broadcast %565 : vector<32x1xf32> to vector<32x256xf32>
    %567 = arith.mulf %562, %566 : vector<32x256xf32>
    %c0_284 = arith.constant 0 : index
    %c0_285 = arith.constant 0 : index
    %568 = vector.load %arg20[%c0_284, %c0_285] : memref<1x256xf32, #tpu.memory_space<vmem>>, vector<1x256xf32>
    %569 = vector.broadcast %568 : vector<1x256xf32> to vector<32x256xf32>
    %570 = arith.mulf %567, %569 : vector<32x256xf32>
    %c0_286 = arith.constant 0 : index
    %c0_287 = arith.constant 0 : index
    %571 = vector.load %arg21[%c0_286, %c0_287] : memref<1x256xf32, #tpu.memory_space<vmem>>, vector<1x256xf32>
    %572 = vector.broadcast %571 : vector<1x256xf32> to vector<32x256xf32>
    %573 = arith.addf %570, %572 : vector<32x256xf32>
    %cst_288 = arith.constant 0.000000e+00 : f32
    %574 = vector.broadcast %cst_288 : f32 to vector<32x256xf32>
    %575 = arith.maximumf %573, %574 : vector<32x256xf32>
    %576 = arith.truncf %575 : vector<32x256xf32> to vector<32x256xbf16>
    %c0_289 = arith.constant 0 : index
    %c0_290 = arith.constant 0 : index
    %577 = vector.load %arg22[%c0_289, %c0_290] : memref<256x64xbf16, #tpu.memory_space<vmem>>, vector<256x64xbf16>
    %cst_291 = arith.constant dense<0.000000e+00> : vector<32x64xf32>
    %578 = tpu.matmul %576, %577, %cst_291 {dimension_numbers = #tpu.dot_dimension_numbers<[1], [0], [0], [1], [0, 0, 1, 1], [], []>} : vector<32x256xbf16>, vector<256x64xbf16>, vector<32x64xf32> -> vector<32x64xf32>
    %c0_292 = arith.constant 0 : index
    %c0_293 = arith.constant 0 : index
    %579 = vector.load %arg23[%c0_292, %c0_293] : memref<1x64xf32, #tpu.memory_space<vmem>>, vector<1x64xf32>
    %580 = vector.broadcast %579 : vector<1x64xf32> to vector<32x64xf32>
    %581 = arith.addf %578, %580 : vector<32x64xf32>
    %582 = math.tanh %581 : vector<32x64xf32>
    %583 = arith.truncf %582 : vector<32x64xf32> to vector<32x64xbf16>
    %cst_294 = arith.constant dense<0.000000e+00> : vector<16x64xf32>
    %584 = tpu.matmul %72, %583, %cst_294 {dimension_numbers = #tpu.dot_dimension_numbers<[1], [0], [0], [1], [0, 0, 1, 1], [], []>} : vector<16x32xbf16>, vector<32x64xbf16>, vector<16x64xf32> -> vector<16x64xf32>
    %585 = arith.truncf %584 : vector<16x64xf32> to vector<16x64xbf16>
    %c0_295 = arith.constant 0 : index
    %c0_296 = arith.constant 0 : index
    %586 = vector.load %arg24[%c0_295, %c0_296] : memref<64x256xbf16, #tpu.memory_space<vmem>>, vector<64x256xbf16>
    %cst_297 = arith.constant dense<0.000000e+00> : vector<16x256xf32>
    %587 = tpu.matmul %585, %586, %cst_297 {dimension_numbers = #tpu.dot_dimension_numbers<[1], [0], [0], [1], [0, 0, 1, 1], [], []>} : vector<16x64xbf16>, vector<64x256xbf16>, vector<16x256xf32> -> vector<16x256xf32>
    %c0_298 = arith.constant 0 : index
    %c0_299 = arith.constant 0 : index
    %588 = vector.load %arg25[%c0_298, %c0_299] : memref<64x256xbf16, #tpu.memory_space<vmem>>, vector<64x256xbf16>
    %cst_300 = arith.constant dense<0.000000e+00> : vector<16x256xf32>
    %589 = tpu.matmul %512, %588, %cst_300 {dimension_numbers = #tpu.dot_dimension_numbers<[1], [0], [0], [1], [0, 0, 1, 1], [], []>} : vector<16x64xbf16>, vector<64x256xbf16>, vector<16x256xf32> -> vector<16x256xf32>
    %590 = arith.addf %587, %589 : vector<16x256xf32>
    %c0_301 = arith.constant 0 : index
    %c0_302 = arith.constant 0 : index
    %591 = vector.load %arg26[%c0_301, %c0_302] : memref<1x256xf32, #tpu.memory_space<vmem>>, vector<1x256xf32>
    %592 = vector.broadcast %591 : vector<1x256xf32> to vector<16x256xf32>
    %593 = arith.addf %590, %592 : vector<16x256xf32>
    %cst_303 = arith.constant dense<0.000000e+00> : vector<16xf32>
    %594 = vector.multi_reduction <add>, %593, %cst_303 [1] : vector<16x256xf32> to vector<16xf32>
    %595 = vector.shape_cast %594 : vector<16xf32> to vector<16x1xf32>
    %cst_304 = arith.constant 2.560000e+02 : f32
    %596 = vector.broadcast %cst_304 : f32 to vector<16x1xf32>
    %597 = arith.divf %595, %596 : vector<16x1xf32>
    %598 = vector.broadcast %597 : vector<16x1xf32> to vector<16x256xf32>
    %599 = arith.subf %593, %598 : vector<16x256xf32>
    %600 = arith.mulf %599, %599 : vector<16x256xf32>
    %cst_305 = arith.constant dense<0.000000e+00> : vector<16xf32>
    %601 = vector.multi_reduction <add>, %600, %cst_305 [1] : vector<16x256xf32> to vector<16xf32>
    %602 = vector.shape_cast %601 : vector<16xf32> to vector<16x1xf32>
    %cst_306 = arith.constant 2.560000e+02 : f32
    %603 = vector.broadcast %cst_306 : f32 to vector<16x1xf32>
    %604 = arith.divf %602, %603 : vector<16x1xf32>
    %605 = vector.broadcast %597 : vector<16x1xf32> to vector<16x256xf32>
    %606 = arith.subf %593, %605 : vector<16x256xf32>
    %cst_307 = arith.constant 9.99999974E-6 : f32
    %607 = vector.broadcast %cst_307 : f32 to vector<16x1xf32>
    %608 = arith.addf %604, %607 : vector<16x1xf32>
    %609 = math.rsqrt %608 : vector<16x1xf32>
    %610 = vector.broadcast %609 : vector<16x1xf32> to vector<16x256xf32>
    %611 = arith.mulf %606, %610 : vector<16x256xf32>
    %c0_308 = arith.constant 0 : index
    %c0_309 = arith.constant 0 : index
    %612 = vector.load %arg27[%c0_308, %c0_309] : memref<1x256xf32, #tpu.memory_space<vmem>>, vector<1x256xf32>
    %613 = vector.broadcast %612 : vector<1x256xf32> to vector<16x256xf32>
    %614 = arith.mulf %611, %613 : vector<16x256xf32>
    %c0_310 = arith.constant 0 : index
    %c0_311 = arith.constant 0 : index
    %615 = vector.load %arg28[%c0_310, %c0_311] : memref<1x256xf32, #tpu.memory_space<vmem>>, vector<1x256xf32>
    %616 = vector.broadcast %615 : vector<1x256xf32> to vector<16x256xf32>
    %617 = arith.addf %614, %616 : vector<16x256xf32>
    %cst_312 = arith.constant 0.000000e+00 : f32
    %618 = vector.broadcast %cst_312 : f32 to vector<16x256xf32>
    %619 = arith.maximumf %617, %618 : vector<16x256xf32>
    %620 = arith.truncf %619 : vector<16x256xf32> to vector<16x256xbf16>
    %c0_313 = arith.constant 0 : index
    %c0_314 = arith.constant 0 : index
    %621 = vector.load %arg29[%c0_313, %c0_314] : memref<256x256xbf16, #tpu.memory_space<vmem>>, vector<256x256xbf16>
    %cst_315 = arith.constant dense<0.000000e+00> : vector<16x256xf32>
    %622 = tpu.matmul %620, %621, %cst_315 {dimension_numbers = #tpu.dot_dimension_numbers<[1], [0], [0], [1], [0, 0, 1, 1], [], []>} : vector<16x256xbf16>, vector<256x256xbf16>, vector<16x256xf32> -> vector<16x256xf32>
    %c0_316 = arith.constant 0 : index
    %c0_317 = arith.constant 0 : index
    %623 = vector.load %arg30[%c0_316, %c0_317] : memref<1x256xf32, #tpu.memory_space<vmem>>, vector<1x256xf32>
    %624 = vector.broadcast %623 : vector<1x256xf32> to vector<16x256xf32>
    %625 = arith.addf %622, %624 : vector<16x256xf32>
    %cst_318 = arith.constant dense<0.000000e+00> : vector<16xf32>
    %626 = vector.multi_reduction <add>, %625, %cst_318 [1] : vector<16x256xf32> to vector<16xf32>
    %627 = vector.shape_cast %626 : vector<16xf32> to vector<16x1xf32>
    %cst_319 = arith.constant 2.560000e+02 : f32
    %628 = vector.broadcast %cst_319 : f32 to vector<16x1xf32>
    %629 = arith.divf %627, %628 : vector<16x1xf32>
    %630 = vector.broadcast %629 : vector<16x1xf32> to vector<16x256xf32>
    %631 = arith.subf %625, %630 : vector<16x256xf32>
    %632 = arith.mulf %631, %631 : vector<16x256xf32>
    %cst_320 = arith.constant dense<0.000000e+00> : vector<16xf32>
    %633 = vector.multi_reduction <add>, %632, %cst_320 [1] : vector<16x256xf32> to vector<16xf32>
    %634 = vector.shape_cast %633 : vector<16xf32> to vector<16x1xf32>
    %cst_321 = arith.constant 2.560000e+02 : f32
    %635 = vector.broadcast %cst_321 : f32 to vector<16x1xf32>
    %636 = arith.divf %634, %635 : vector<16x1xf32>
    %637 = vector.broadcast %629 : vector<16x1xf32> to vector<16x256xf32>
    %638 = arith.subf %625, %637 : vector<16x256xf32>
    %cst_322 = arith.constant 9.99999974E-6 : f32
    %639 = vector.broadcast %cst_322 : f32 to vector<16x1xf32>
    %640 = arith.addf %636, %639 : vector<16x1xf32>
    %641 = math.rsqrt %640 : vector<16x1xf32>
    %642 = vector.broadcast %641 : vector<16x1xf32> to vector<16x256xf32>
    %643 = arith.mulf %638, %642 : vector<16x256xf32>
    %c0_323 = arith.constant 0 : index
    %c0_324 = arith.constant 0 : index
    %644 = vector.load %arg31[%c0_323, %c0_324] : memref<1x256xf32, #tpu.memory_space<vmem>>, vector<1x256xf32>
    %645 = vector.broadcast %644 : vector<1x256xf32> to vector<16x256xf32>
    %646 = arith.mulf %643, %645 : vector<16x256xf32>
    %c0_325 = arith.constant 0 : index
    %c0_326 = arith.constant 0 : index
    %647 = vector.load %arg32[%c0_325, %c0_326] : memref<1x256xf32, #tpu.memory_space<vmem>>, vector<1x256xf32>
    %648 = vector.broadcast %647 : vector<1x256xf32> to vector<16x256xf32>
    %649 = arith.addf %646, %648 : vector<16x256xf32>
    %cst_327 = arith.constant 0.000000e+00 : f32
    %650 = vector.broadcast %cst_327 : f32 to vector<16x256xf32>
    %651 = arith.maximumf %649, %650 : vector<16x256xf32>
    %652 = arith.truncf %651 : vector<16x256xf32> to vector<16x256xbf16>
    %c0_328 = arith.constant 0 : index
    %c0_329 = arith.constant 0 : index
    %653 = vector.load %arg33[%c0_328, %c0_329] : memref<256x64xbf16, #tpu.memory_space<vmem>>, vector<256x64xbf16>
    %cst_330 = arith.constant dense<0.000000e+00> : vector<16x64xf32>
    %654 = tpu.matmul %652, %653, %cst_330 {dimension_numbers = #tpu.dot_dimension_numbers<[1], [0], [0], [1], [0, 0, 1, 1], [], []>} : vector<16x256xbf16>, vector<256x64xbf16>, vector<16x64xf32> -> vector<16x64xf32>
    %c0_331 = arith.constant 0 : index
    %c0_332 = arith.constant 0 : index
    %655 = vector.load %arg34[%c0_331, %c0_332] : memref<1x64xf32, #tpu.memory_space<vmem>>, vector<1x64xf32>
    %656 = vector.broadcast %655 : vector<1x64xf32> to vector<16x64xf32>
    %657 = arith.addf %654, %656 : vector<16x64xf32>
    %c4_i32 = arith.constant 4 : i32
    %658 = arith.truncf %657 : vector<16x64xf32> to vector<16x64xbf16>
    %cst_333 = arith.constant dense<0.000000e+00> : vector<32x64xf32>
    %659 = tpu.matmul %71, %658, %cst_333 {dimension_numbers = #tpu.dot_dimension_numbers<[1], [0], [0], [1], [0, 0, 1, 1], [], []>} : vector<32x16xbf16>, vector<16x64xbf16>, vector<32x64xf32> -> vector<32x64xf32>
    %660 = arith.truncf %659 : vector<32x64xf32> to vector<32x64xbf16>
    %c0_334 = arith.constant 0 : index
    %c0_335 = arith.constant 0 : index
    %661 = vector.load %arg15[%c0_334, %c0_335] : memref<64x256xbf16, #tpu.memory_space<vmem>>, vector<64x256xbf16>
    %cst_336 = arith.constant dense<0.000000e+00> : vector<32x256xf32>
    %662 = tpu.matmul %660, %661, %cst_336 {dimension_numbers = #tpu.dot_dimension_numbers<[1], [0], [0], [1], [0, 0, 1, 1], [], []>} : vector<32x64xbf16>, vector<64x256xbf16>, vector<32x256xf32> -> vector<32x256xf32>
    %663 = arith.addf %662, %73 : vector<32x256xf32>
    %cst_337 = arith.constant dense<0.000000e+00> : vector<32xf32>
    %664 = vector.multi_reduction <add>, %663, %cst_337 [1] : vector<32x256xf32> to vector<32xf32>
    %665 = vector.shape_cast %664 : vector<32xf32> to vector<32x1xf32>
    %cst_338 = arith.constant 2.560000e+02 : f32
    %666 = vector.broadcast %cst_338 : f32 to vector<32x1xf32>
    %667 = arith.divf %665, %666 : vector<32x1xf32>
    %668 = vector.broadcast %667 : vector<32x1xf32> to vector<32x256xf32>
    %669 = arith.subf %663, %668 : vector<32x256xf32>
    %670 = arith.mulf %669, %669 : vector<32x256xf32>
    %cst_339 = arith.constant dense<0.000000e+00> : vector<32xf32>
    %671 = vector.multi_reduction <add>, %670, %cst_339 [1] : vector<32x256xf32> to vector<32xf32>
    %672 = vector.shape_cast %671 : vector<32xf32> to vector<32x1xf32>
    %cst_340 = arith.constant 2.560000e+02 : f32
    %673 = vector.broadcast %cst_340 : f32 to vector<32x1xf32>
    %674 = arith.divf %672, %673 : vector<32x1xf32>
    %675 = vector.broadcast %667 : vector<32x1xf32> to vector<32x256xf32>
    %676 = arith.subf %663, %675 : vector<32x256xf32>
    %cst_341 = arith.constant 9.99999974E-6 : f32
    %677 = vector.broadcast %cst_341 : f32 to vector<32x1xf32>
    %678 = arith.addf %674, %677 : vector<32x1xf32>
    %679 = math.rsqrt %678 : vector<32x1xf32>
    %680 = vector.broadcast %679 : vector<32x1xf32> to vector<32x256xf32>
    %681 = arith.mulf %676, %680 : vector<32x256xf32>
    %c0_342 = arith.constant 0 : index
    %c0_343 = arith.constant 0 : index
    %682 = vector.load %arg16[%c0_342, %c0_343] : memref<1x256xf32, #tpu.memory_space<vmem>>, vector<1x256xf32>
    %683 = vector.broadcast %682 : vector<1x256xf32> to vector<32x256xf32>
    %684 = arith.mulf %681, %683 : vector<32x256xf32>
    %c0_344 = arith.constant 0 : index
    %c0_345 = arith.constant 0 : index
    %685 = vector.load %arg17[%c0_344, %c0_345] : memref<1x256xf32, #tpu.memory_space<vmem>>, vector<1x256xf32>
    %686 = vector.broadcast %685 : vector<1x256xf32> to vector<32x256xf32>
    %687 = arith.addf %684, %686 : vector<32x256xf32>
    %cst_346 = arith.constant 0.000000e+00 : f32
    %688 = vector.broadcast %cst_346 : f32 to vector<32x256xf32>
    %689 = arith.maximumf %687, %688 : vector<32x256xf32>
    %690 = arith.truncf %689 : vector<32x256xf32> to vector<32x256xbf16>
    %c0_347 = arith.constant 0 : index
    %c0_348 = arith.constant 0 : index
    %691 = vector.load %arg18[%c0_347, %c0_348] : memref<256x256xbf16, #tpu.memory_space<vmem>>, vector<256x256xbf16>
    %cst_349 = arith.constant dense<0.000000e+00> : vector<32x256xf32>
    %692 = tpu.matmul %690, %691, %cst_349 {dimension_numbers = #tpu.dot_dimension_numbers<[1], [0], [0], [1], [0, 0, 1, 1], [], []>} : vector<32x256xbf16>, vector<256x256xbf16>, vector<32x256xf32> -> vector<32x256xf32>
    %c0_350 = arith.constant 0 : index
    %c0_351 = arith.constant 0 : index
    %693 = vector.load %arg19[%c0_350, %c0_351] : memref<1x256xf32, #tpu.memory_space<vmem>>, vector<1x256xf32>
    %694 = vector.broadcast %693 : vector<1x256xf32> to vector<32x256xf32>
    %695 = arith.addf %692, %694 : vector<32x256xf32>
    %cst_352 = arith.constant dense<0.000000e+00> : vector<32xf32>
    %696 = vector.multi_reduction <add>, %695, %cst_352 [1] : vector<32x256xf32> to vector<32xf32>
    %697 = vector.shape_cast %696 : vector<32xf32> to vector<32x1xf32>
    %cst_353 = arith.constant 2.560000e+02 : f32
    %698 = vector.broadcast %cst_353 : f32 to vector<32x1xf32>
    %699 = arith.divf %697, %698 : vector<32x1xf32>
    %700 = vector.broadcast %699 : vector<32x1xf32> to vector<32x256xf32>
    %701 = arith.subf %695, %700 : vector<32x256xf32>
    %702 = arith.mulf %701, %701 : vector<32x256xf32>
    %cst_354 = arith.constant dense<0.000000e+00> : vector<32xf32>
    %703 = vector.multi_reduction <add>, %702, %cst_354 [1] : vector<32x256xf32> to vector<32xf32>
    %704 = vector.shape_cast %703 : vector<32xf32> to vector<32x1xf32>
    %cst_355 = arith.constant 2.560000e+02 : f32
    %705 = vector.broadcast %cst_355 : f32 to vector<32x1xf32>
    %706 = arith.divf %704, %705 : vector<32x1xf32>
    %707 = vector.broadcast %699 : vector<32x1xf32> to vector<32x256xf32>
    %708 = arith.subf %695, %707 : vector<32x256xf32>
    %cst_356 = arith.constant 9.99999974E-6 : f32
    %709 = vector.broadcast %cst_356 : f32 to vector<32x1xf32>
    %710 = arith.addf %706, %709 : vector<32x1xf32>
    %711 = math.rsqrt %710 : vector<32x1xf32>
    %712 = vector.broadcast %711 : vector<32x1xf32> to vector<32x256xf32>
    %713 = arith.mulf %708, %712 : vector<32x256xf32>
    %c0_357 = arith.constant 0 : index
    %c0_358 = arith.constant 0 : index
    %714 = vector.load %arg20[%c0_357, %c0_358] : memref<1x256xf32, #tpu.memory_space<vmem>>, vector<1x256xf32>
    %715 = vector.broadcast %714 : vector<1x256xf32> to vector<32x256xf32>
    %716 = arith.mulf %713, %715 : vector<32x256xf32>
    %c0_359 = arith.constant 0 : index
    %c0_360 = arith.constant 0 : index
    %717 = vector.load %arg21[%c0_359, %c0_360] : memref<1x256xf32, #tpu.memory_space<vmem>>, vector<1x256xf32>
    %718 = vector.broadcast %717 : vector<1x256xf32> to vector<32x256xf32>
    %719 = arith.addf %716, %718 : vector<32x256xf32>
    %cst_361 = arith.constant 0.000000e+00 : f32
    %720 = vector.broadcast %cst_361 : f32 to vector<32x256xf32>
    %721 = arith.maximumf %719, %720 : vector<32x256xf32>
    %722 = arith.truncf %721 : vector<32x256xf32> to vector<32x256xbf16>
    %c0_362 = arith.constant 0 : index
    %c0_363 = arith.constant 0 : index
    %723 = vector.load %arg22[%c0_362, %c0_363] : memref<256x64xbf16, #tpu.memory_space<vmem>>, vector<256x64xbf16>
    %cst_364 = arith.constant dense<0.000000e+00> : vector<32x64xf32>
    %724 = tpu.matmul %722, %723, %cst_364 {dimension_numbers = #tpu.dot_dimension_numbers<[1], [0], [0], [1], [0, 0, 1, 1], [], []>} : vector<32x256xbf16>, vector<256x64xbf16>, vector<32x64xf32> -> vector<32x64xf32>
    %c0_365 = arith.constant 0 : index
    %c0_366 = arith.constant 0 : index
    %725 = vector.load %arg23[%c0_365, %c0_366] : memref<1x64xf32, #tpu.memory_space<vmem>>, vector<1x64xf32>
    %726 = vector.broadcast %725 : vector<1x64xf32> to vector<32x64xf32>
    %727 = arith.addf %724, %726 : vector<32x64xf32>
    %728 = math.tanh %727 : vector<32x64xf32>
    %729 = arith.truncf %728 : vector<32x64xf32> to vector<32x64xbf16>
    %cst_367 = arith.constant dense<0.000000e+00> : vector<16x64xf32>
    %730 = tpu.matmul %72, %729, %cst_367 {dimension_numbers = #tpu.dot_dimension_numbers<[1], [0], [0], [1], [0, 0, 1, 1], [], []>} : vector<16x32xbf16>, vector<32x64xbf16>, vector<16x64xf32> -> vector<16x64xf32>
    %731 = arith.truncf %730 : vector<16x64xf32> to vector<16x64xbf16>
    %c0_368 = arith.constant 0 : index
    %c0_369 = arith.constant 0 : index
    %732 = vector.load %arg24[%c0_368, %c0_369] : memref<64x256xbf16, #tpu.memory_space<vmem>>, vector<64x256xbf16>
    %cst_370 = arith.constant dense<0.000000e+00> : vector<16x256xf32>
    %733 = tpu.matmul %731, %732, %cst_370 {dimension_numbers = #tpu.dot_dimension_numbers<[1], [0], [0], [1], [0, 0, 1, 1], [], []>} : vector<16x64xbf16>, vector<64x256xbf16>, vector<16x256xf32> -> vector<16x256xf32>
    %c0_371 = arith.constant 0 : index
    %c0_372 = arith.constant 0 : index
    %734 = vector.load %arg25[%c0_371, %c0_372] : memref<64x256xbf16, #tpu.memory_space<vmem>>, vector<64x256xbf16>
    %cst_373 = arith.constant dense<0.000000e+00> : vector<16x256xf32>
    %735 = tpu.matmul %658, %734, %cst_373 {dimension_numbers = #tpu.dot_dimension_numbers<[1], [0], [0], [1], [0, 0, 1, 1], [], []>} : vector<16x64xbf16>, vector<64x256xbf16>, vector<16x256xf32> -> vector<16x256xf32>
    %736 = arith.addf %733, %735 : vector<16x256xf32>
    %c0_374 = arith.constant 0 : index
    %c0_375 = arith.constant 0 : index
    %737 = vector.load %arg26[%c0_374, %c0_375] : memref<1x256xf32, #tpu.memory_space<vmem>>, vector<1x256xf32>
    %738 = vector.broadcast %737 : vector<1x256xf32> to vector<16x256xf32>
    %739 = arith.addf %736, %738 : vector<16x256xf32>
    %cst_376 = arith.constant dense<0.000000e+00> : vector<16xf32>
    %740 = vector.multi_reduction <add>, %739, %cst_376 [1] : vector<16x256xf32> to vector<16xf32>
    %741 = vector.shape_cast %740 : vector<16xf32> to vector<16x1xf32>
    %cst_377 = arith.constant 2.560000e+02 : f32
    %742 = vector.broadcast %cst_377 : f32 to vector<16x1xf32>
    %743 = arith.divf %741, %742 : vector<16x1xf32>
    %744 = vector.broadcast %743 : vector<16x1xf32> to vector<16x256xf32>
    %745 = arith.subf %739, %744 : vector<16x256xf32>
    %746 = arith.mulf %745, %745 : vector<16x256xf32>
    %cst_378 = arith.constant dense<0.000000e+00> : vector<16xf32>
    %747 = vector.multi_reduction <add>, %746, %cst_378 [1] : vector<16x256xf32> to vector<16xf32>
    %748 = vector.shape_cast %747 : vector<16xf32> to vector<16x1xf32>
    %cst_379 = arith.constant 2.560000e+02 : f32
    %749 = vector.broadcast %cst_379 : f32 to vector<16x1xf32>
    %750 = arith.divf %748, %749 : vector<16x1xf32>
    %751 = vector.broadcast %743 : vector<16x1xf32> to vector<16x256xf32>
    %752 = arith.subf %739, %751 : vector<16x256xf32>
    %cst_380 = arith.constant 9.99999974E-6 : f32
    %753 = vector.broadcast %cst_380 : f32 to vector<16x1xf32>
    %754 = arith.addf %750, %753 : vector<16x1xf32>
    %755 = math.rsqrt %754 : vector<16x1xf32>
    %756 = vector.broadcast %755 : vector<16x1xf32> to vector<16x256xf32>
    %757 = arith.mulf %752, %756 : vector<16x256xf32>
    %c0_381 = arith.constant 0 : index
    %c0_382 = arith.constant 0 : index
    %758 = vector.load %arg27[%c0_381, %c0_382] : memref<1x256xf32, #tpu.memory_space<vmem>>, vector<1x256xf32>
    %759 = vector.broadcast %758 : vector<1x256xf32> to vector<16x256xf32>
    %760 = arith.mulf %757, %759 : vector<16x256xf32>
    %c0_383 = arith.constant 0 : index
    %c0_384 = arith.constant 0 : index
    %761 = vector.load %arg28[%c0_383, %c0_384] : memref<1x256xf32, #tpu.memory_space<vmem>>, vector<1x256xf32>
    %762 = vector.broadcast %761 : vector<1x256xf32> to vector<16x256xf32>
    %763 = arith.addf %760, %762 : vector<16x256xf32>
    %cst_385 = arith.constant 0.000000e+00 : f32
    %764 = vector.broadcast %cst_385 : f32 to vector<16x256xf32>
    %765 = arith.maximumf %763, %764 : vector<16x256xf32>
    %766 = arith.truncf %765 : vector<16x256xf32> to vector<16x256xbf16>
    %c0_386 = arith.constant 0 : index
    %c0_387 = arith.constant 0 : index
    %767 = vector.load %arg29[%c0_386, %c0_387] : memref<256x256xbf16, #tpu.memory_space<vmem>>, vector<256x256xbf16>
    %cst_388 = arith.constant dense<0.000000e+00> : vector<16x256xf32>
    %768 = tpu.matmul %766, %767, %cst_388 {dimension_numbers = #tpu.dot_dimension_numbers<[1], [0], [0], [1], [0, 0, 1, 1], [], []>} : vector<16x256xbf16>, vector<256x256xbf16>, vector<16x256xf32> -> vector<16x256xf32>
    %c0_389 = arith.constant 0 : index
    %c0_390 = arith.constant 0 : index
    %769 = vector.load %arg30[%c0_389, %c0_390] : memref<1x256xf32, #tpu.memory_space<vmem>>, vector<1x256xf32>
    %770 = vector.broadcast %769 : vector<1x256xf32> to vector<16x256xf32>
    %771 = arith.addf %768, %770 : vector<16x256xf32>
    %cst_391 = arith.constant dense<0.000000e+00> : vector<16xf32>
    %772 = vector.multi_reduction <add>, %771, %cst_391 [1] : vector<16x256xf32> to vector<16xf32>
    %773 = vector.shape_cast %772 : vector<16xf32> to vector<16x1xf32>
    %cst_392 = arith.constant 2.560000e+02 : f32
    %774 = vector.broadcast %cst_392 : f32 to vector<16x1xf32>
    %775 = arith.divf %773, %774 : vector<16x1xf32>
    %776 = vector.broadcast %775 : vector<16x1xf32> to vector<16x256xf32>
    %777 = arith.subf %771, %776 : vector<16x256xf32>
    %778 = arith.mulf %777, %777 : vector<16x256xf32>
    %cst_393 = arith.constant dense<0.000000e+00> : vector<16xf32>
    %779 = vector.multi_reduction <add>, %778, %cst_393 [1] : vector<16x256xf32> to vector<16xf32>
    %780 = vector.shape_cast %779 : vector<16xf32> to vector<16x1xf32>
    %cst_394 = arith.constant 2.560000e+02 : f32
    %781 = vector.broadcast %cst_394 : f32 to vector<16x1xf32>
    %782 = arith.divf %780, %781 : vector<16x1xf32>
    %783 = vector.broadcast %775 : vector<16x1xf32> to vector<16x256xf32>
    %784 = arith.subf %771, %783 : vector<16x256xf32>
    %cst_395 = arith.constant 9.99999974E-6 : f32
    %785 = vector.broadcast %cst_395 : f32 to vector<16x1xf32>
    %786 = arith.addf %782, %785 : vector<16x1xf32>
    %787 = math.rsqrt %786 : vector<16x1xf32>
    %788 = vector.broadcast %787 : vector<16x1xf32> to vector<16x256xf32>
    %789 = arith.mulf %784, %788 : vector<16x256xf32>
    %c0_396 = arith.constant 0 : index
    %c0_397 = arith.constant 0 : index
    %790 = vector.load %arg31[%c0_396, %c0_397] : memref<1x256xf32, #tpu.memory_space<vmem>>, vector<1x256xf32>
    %791 = vector.broadcast %790 : vector<1x256xf32> to vector<16x256xf32>
    %792 = arith.mulf %789, %791 : vector<16x256xf32>
    %c0_398 = arith.constant 0 : index
    %c0_399 = arith.constant 0 : index
    %793 = vector.load %arg32[%c0_398, %c0_399] : memref<1x256xf32, #tpu.memory_space<vmem>>, vector<1x256xf32>
    %794 = vector.broadcast %793 : vector<1x256xf32> to vector<16x256xf32>
    %795 = arith.addf %792, %794 : vector<16x256xf32>
    %cst_400 = arith.constant 0.000000e+00 : f32
    %796 = vector.broadcast %cst_400 : f32 to vector<16x256xf32>
    %797 = arith.maximumf %795, %796 : vector<16x256xf32>
    %798 = arith.truncf %797 : vector<16x256xf32> to vector<16x256xbf16>
    %c0_401 = arith.constant 0 : index
    %c0_402 = arith.constant 0 : index
    %799 = vector.load %arg33[%c0_401, %c0_402] : memref<256x64xbf16, #tpu.memory_space<vmem>>, vector<256x64xbf16>
    %cst_403 = arith.constant dense<0.000000e+00> : vector<16x64xf32>
    %800 = tpu.matmul %798, %799, %cst_403 {dimension_numbers = #tpu.dot_dimension_numbers<[1], [0], [0], [1], [0, 0, 1, 1], [], []>} : vector<16x256xbf16>, vector<256x64xbf16>, vector<16x64xf32> -> vector<16x64xf32>
    %c0_404 = arith.constant 0 : index
    %c0_405 = arith.constant 0 : index
    %801 = vector.load %arg34[%c0_404, %c0_405] : memref<1x64xf32, #tpu.memory_space<vmem>>, vector<1x64xf32>
    %802 = vector.broadcast %801 : vector<1x64xf32> to vector<16x64xf32>
    %803 = arith.addf %800, %802 : vector<16x64xf32>
    %c5_i32 = arith.constant 5 : i32
    %804 = arith.truncf %803 : vector<16x64xf32> to vector<16x64xbf16>
    %cst_406 = arith.constant dense<0.000000e+00> : vector<32x64xf32>
    %805 = tpu.matmul %71, %804, %cst_406 {dimension_numbers = #tpu.dot_dimension_numbers<[1], [0], [0], [1], [0, 0, 1, 1], [], []>} : vector<32x16xbf16>, vector<16x64xbf16>, vector<32x64xf32> -> vector<32x64xf32>
    %806 = arith.truncf %805 : vector<32x64xf32> to vector<32x64xbf16>
    %c0_407 = arith.constant 0 : index
    %c0_408 = arith.constant 0 : index
    %807 = vector.load %arg15[%c0_407, %c0_408] : memref<64x256xbf16, #tpu.memory_space<vmem>>, vector<64x256xbf16>
    %cst_409 = arith.constant dense<0.000000e+00> : vector<32x256xf32>
    %808 = tpu.matmul %806, %807, %cst_409 {dimension_numbers = #tpu.dot_dimension_numbers<[1], [0], [0], [1], [0, 0, 1, 1], [], []>} : vector<32x64xbf16>, vector<64x256xbf16>, vector<32x256xf32> -> vector<32x256xf32>
    %809 = arith.addf %808, %73 : vector<32x256xf32>
    %cst_410 = arith.constant dense<0.000000e+00> : vector<32xf32>
    %810 = vector.multi_reduction <add>, %809, %cst_410 [1] : vector<32x256xf32> to vector<32xf32>
    %811 = vector.shape_cast %810 : vector<32xf32> to vector<32x1xf32>
    %cst_411 = arith.constant 2.560000e+02 : f32
    %812 = vector.broadcast %cst_411 : f32 to vector<32x1xf32>
    %813 = arith.divf %811, %812 : vector<32x1xf32>
    %814 = vector.broadcast %813 : vector<32x1xf32> to vector<32x256xf32>
    %815 = arith.subf %809, %814 : vector<32x256xf32>
    %816 = arith.mulf %815, %815 : vector<32x256xf32>
    %cst_412 = arith.constant dense<0.000000e+00> : vector<32xf32>
    %817 = vector.multi_reduction <add>, %816, %cst_412 [1] : vector<32x256xf32> to vector<32xf32>
    %818 = vector.shape_cast %817 : vector<32xf32> to vector<32x1xf32>
    %cst_413 = arith.constant 2.560000e+02 : f32
    %819 = vector.broadcast %cst_413 : f32 to vector<32x1xf32>
    %820 = arith.divf %818, %819 : vector<32x1xf32>
    %821 = vector.broadcast %813 : vector<32x1xf32> to vector<32x256xf32>
    %822 = arith.subf %809, %821 : vector<32x256xf32>
    %cst_414 = arith.constant 9.99999974E-6 : f32
    %823 = vector.broadcast %cst_414 : f32 to vector<32x1xf32>
    %824 = arith.addf %820, %823 : vector<32x1xf32>
    %825 = math.rsqrt %824 : vector<32x1xf32>
    %826 = vector.broadcast %825 : vector<32x1xf32> to vector<32x256xf32>
    %827 = arith.mulf %822, %826 : vector<32x256xf32>
    %c0_415 = arith.constant 0 : index
    %c0_416 = arith.constant 0 : index
    %828 = vector.load %arg16[%c0_415, %c0_416] : memref<1x256xf32, #tpu.memory_space<vmem>>, vector<1x256xf32>
    %829 = vector.broadcast %828 : vector<1x256xf32> to vector<32x256xf32>
    %830 = arith.mulf %827, %829 : vector<32x256xf32>
    %c0_417 = arith.constant 0 : index
    %c0_418 = arith.constant 0 : index
    %831 = vector.load %arg17[%c0_417, %c0_418] : memref<1x256xf32, #tpu.memory_space<vmem>>, vector<1x256xf32>
    %832 = vector.broadcast %831 : vector<1x256xf32> to vector<32x256xf32>
    %833 = arith.addf %830, %832 : vector<32x256xf32>
    %cst_419 = arith.constant 0.000000e+00 : f32
    %834 = vector.broadcast %cst_419 : f32 to vector<32x256xf32>
    %835 = arith.maximumf %833, %834 : vector<32x256xf32>
    %836 = arith.truncf %835 : vector<32x256xf32> to vector<32x256xbf16>
    %c0_420 = arith.constant 0 : index
    %c0_421 = arith.constant 0 : index
    %837 = vector.load %arg18[%c0_420, %c0_421] : memref<256x256xbf16, #tpu.memory_space<vmem>>, vector<256x256xbf16>
    %cst_422 = arith.constant dense<0.000000e+00> : vector<32x256xf32>
    %838 = tpu.matmul %836, %837, %cst_422 {dimension_numbers = #tpu.dot_dimension_numbers<[1], [0], [0], [1], [0, 0, 1, 1], [], []>} : vector<32x256xbf16>, vector<256x256xbf16>, vector<32x256xf32> -> vector<32x256xf32>
    %c0_423 = arith.constant 0 : index
    %c0_424 = arith.constant 0 : index
    %839 = vector.load %arg19[%c0_423, %c0_424] : memref<1x256xf32, #tpu.memory_space<vmem>>, vector<1x256xf32>
    %840 = vector.broadcast %839 : vector<1x256xf32> to vector<32x256xf32>
    %841 = arith.addf %838, %840 : vector<32x256xf32>
    %cst_425 = arith.constant dense<0.000000e+00> : vector<32xf32>
    %842 = vector.multi_reduction <add>, %841, %cst_425 [1] : vector<32x256xf32> to vector<32xf32>
    %843 = vector.shape_cast %842 : vector<32xf32> to vector<32x1xf32>
    %cst_426 = arith.constant 2.560000e+02 : f32
    %844 = vector.broadcast %cst_426 : f32 to vector<32x1xf32>
    %845 = arith.divf %843, %844 : vector<32x1xf32>
    %846 = vector.broadcast %845 : vector<32x1xf32> to vector<32x256xf32>
    %847 = arith.subf %841, %846 : vector<32x256xf32>
    %848 = arith.mulf %847, %847 : vector<32x256xf32>
    %cst_427 = arith.constant dense<0.000000e+00> : vector<32xf32>
    %849 = vector.multi_reduction <add>, %848, %cst_427 [1] : vector<32x256xf32> to vector<32xf32>
    %850 = vector.shape_cast %849 : vector<32xf32> to vector<32x1xf32>
    %cst_428 = arith.constant 2.560000e+02 : f32
    %851 = vector.broadcast %cst_428 : f32 to vector<32x1xf32>
    %852 = arith.divf %850, %851 : vector<32x1xf32>
    %853 = vector.broadcast %845 : vector<32x1xf32> to vector<32x256xf32>
    %854 = arith.subf %841, %853 : vector<32x256xf32>
    %cst_429 = arith.constant 9.99999974E-6 : f32
    %855 = vector.broadcast %cst_429 : f32 to vector<32x1xf32>
    %856 = arith.addf %852, %855 : vector<32x1xf32>
    %857 = math.rsqrt %856 : vector<32x1xf32>
    %858 = vector.broadcast %857 : vector<32x1xf32> to vector<32x256xf32>
    %859 = arith.mulf %854, %858 : vector<32x256xf32>
    %c0_430 = arith.constant 0 : index
    %c0_431 = arith.constant 0 : index
    %860 = vector.load %arg20[%c0_430, %c0_431] : memref<1x256xf32, #tpu.memory_space<vmem>>, vector<1x256xf32>
    %861 = vector.broadcast %860 : vector<1x256xf32> to vector<32x256xf32>
    %862 = arith.mulf %859, %861 : vector<32x256xf32>
    %c0_432 = arith.constant 0 : index
    %c0_433 = arith.constant 0 : index
    %863 = vector.load %arg21[%c0_432, %c0_433] : memref<1x256xf32, #tpu.memory_space<vmem>>, vector<1x256xf32>
    %864 = vector.broadcast %863 : vector<1x256xf32> to vector<32x256xf32>
    %865 = arith.addf %862, %864 : vector<32x256xf32>
    %cst_434 = arith.constant 0.000000e+00 : f32
    %866 = vector.broadcast %cst_434 : f32 to vector<32x256xf32>
    %867 = arith.maximumf %865, %866 : vector<32x256xf32>
    %868 = arith.truncf %867 : vector<32x256xf32> to vector<32x256xbf16>
    %c0_435 = arith.constant 0 : index
    %c0_436 = arith.constant 0 : index
    %869 = vector.load %arg22[%c0_435, %c0_436] : memref<256x64xbf16, #tpu.memory_space<vmem>>, vector<256x64xbf16>
    %cst_437 = arith.constant dense<0.000000e+00> : vector<32x64xf32>
    %870 = tpu.matmul %868, %869, %cst_437 {dimension_numbers = #tpu.dot_dimension_numbers<[1], [0], [0], [1], [0, 0, 1, 1], [], []>} : vector<32x256xbf16>, vector<256x64xbf16>, vector<32x64xf32> -> vector<32x64xf32>
    %c0_438 = arith.constant 0 : index
    %c0_439 = arith.constant 0 : index
    %871 = vector.load %arg23[%c0_438, %c0_439] : memref<1x64xf32, #tpu.memory_space<vmem>>, vector<1x64xf32>
    %872 = vector.broadcast %871 : vector<1x64xf32> to vector<32x64xf32>
    %873 = arith.addf %870, %872 : vector<32x64xf32>
    %874 = math.tanh %873 : vector<32x64xf32>
    %875 = arith.truncf %874 : vector<32x64xf32> to vector<32x64xbf16>
    %cst_440 = arith.constant dense<0.000000e+00> : vector<16x64xf32>
    %876 = tpu.matmul %72, %875, %cst_440 {dimension_numbers = #tpu.dot_dimension_numbers<[1], [0], [0], [1], [0, 0, 1, 1], [], []>} : vector<16x32xbf16>, vector<32x64xbf16>, vector<16x64xf32> -> vector<16x64xf32>
    %877 = arith.truncf %876 : vector<16x64xf32> to vector<16x64xbf16>
    %c0_441 = arith.constant 0 : index
    %c0_442 = arith.constant 0 : index
    %878 = vector.load %arg24[%c0_441, %c0_442] : memref<64x256xbf16, #tpu.memory_space<vmem>>, vector<64x256xbf16>
    %cst_443 = arith.constant dense<0.000000e+00> : vector<16x256xf32>
    %879 = tpu.matmul %877, %878, %cst_443 {dimension_numbers = #tpu.dot_dimension_numbers<[1], [0], [0], [1], [0, 0, 1, 1], [], []>} : vector<16x64xbf16>, vector<64x256xbf16>, vector<16x256xf32> -> vector<16x256xf32>
    %c0_444 = arith.constant 0 : index
    %c0_445 = arith.constant 0 : index
    %880 = vector.load %arg25[%c0_444, %c0_445] : memref<64x256xbf16, #tpu.memory_space<vmem>>, vector<64x256xbf16>
    %cst_446 = arith.constant dense<0.000000e+00> : vector<16x256xf32>
    %881 = tpu.matmul %804, %880, %cst_446 {dimension_numbers = #tpu.dot_dimension_numbers<[1], [0], [0], [1], [0, 0, 1, 1], [], []>} : vector<16x64xbf16>, vector<64x256xbf16>, vector<16x256xf32> -> vector<16x256xf32>
    %882 = arith.addf %879, %881 : vector<16x256xf32>
    %c0_447 = arith.constant 0 : index
    %c0_448 = arith.constant 0 : index
    %883 = vector.load %arg26[%c0_447, %c0_448] : memref<1x256xf32, #tpu.memory_space<vmem>>, vector<1x256xf32>
    %884 = vector.broadcast %883 : vector<1x256xf32> to vector<16x256xf32>
    %885 = arith.addf %882, %884 : vector<16x256xf32>
    %cst_449 = arith.constant dense<0.000000e+00> : vector<16xf32>
    %886 = vector.multi_reduction <add>, %885, %cst_449 [1] : vector<16x256xf32> to vector<16xf32>
    %887 = vector.shape_cast %886 : vector<16xf32> to vector<16x1xf32>
    %cst_450 = arith.constant 2.560000e+02 : f32
    %888 = vector.broadcast %cst_450 : f32 to vector<16x1xf32>
    %889 = arith.divf %887, %888 : vector<16x1xf32>
    %890 = vector.broadcast %889 : vector<16x1xf32> to vector<16x256xf32>
    %891 = arith.subf %885, %890 : vector<16x256xf32>
    %892 = arith.mulf %891, %891 : vector<16x256xf32>
    %cst_451 = arith.constant dense<0.000000e+00> : vector<16xf32>
    %893 = vector.multi_reduction <add>, %892, %cst_451 [1] : vector<16x256xf32> to vector<16xf32>
    %894 = vector.shape_cast %893 : vector<16xf32> to vector<16x1xf32>
    %cst_452 = arith.constant 2.560000e+02 : f32
    %895 = vector.broadcast %cst_452 : f32 to vector<16x1xf32>
    %896 = arith.divf %894, %895 : vector<16x1xf32>
    %897 = vector.broadcast %889 : vector<16x1xf32> to vector<16x256xf32>
    %898 = arith.subf %885, %897 : vector<16x256xf32>
    %cst_453 = arith.constant 9.99999974E-6 : f32
    %899 = vector.broadcast %cst_453 : f32 to vector<16x1xf32>
    %900 = arith.addf %896, %899 : vector<16x1xf32>
    %901 = math.rsqrt %900 : vector<16x1xf32>
    %902 = vector.broadcast %901 : vector<16x1xf32> to vector<16x256xf32>
    %903 = arith.mulf %898, %902 : vector<16x256xf32>
    %c0_454 = arith.constant 0 : index
    %c0_455 = arith.constant 0 : index
    %904 = vector.load %arg27[%c0_454, %c0_455] : memref<1x256xf32, #tpu.memory_space<vmem>>, vector<1x256xf32>
    %905 = vector.broadcast %904 : vector<1x256xf32> to vector<16x256xf32>
    %906 = arith.mulf %903, %905 : vector<16x256xf32>
    %c0_456 = arith.constant 0 : index
    %c0_457 = arith.constant 0 : index
    %907 = vector.load %arg28[%c0_456, %c0_457] : memref<1x256xf32, #tpu.memory_space<vmem>>, vector<1x256xf32>
    %908 = vector.broadcast %907 : vector<1x256xf32> to vector<16x256xf32>
    %909 = arith.addf %906, %908 : vector<16x256xf32>
    %cst_458 = arith.constant 0.000000e+00 : f32
    %910 = vector.broadcast %cst_458 : f32 to vector<16x256xf32>
    %911 = arith.maximumf %909, %910 : vector<16x256xf32>
    %912 = arith.truncf %911 : vector<16x256xf32> to vector<16x256xbf16>
    %c0_459 = arith.constant 0 : index
    %c0_460 = arith.constant 0 : index
    %913 = vector.load %arg29[%c0_459, %c0_460] : memref<256x256xbf16, #tpu.memory_space<vmem>>, vector<256x256xbf16>
    %cst_461 = arith.constant dense<0.000000e+00> : vector<16x256xf32>
    %914 = tpu.matmul %912, %913, %cst_461 {dimension_numbers = #tpu.dot_dimension_numbers<[1], [0], [0], [1], [0, 0, 1, 1], [], []>} : vector<16x256xbf16>, vector<256x256xbf16>, vector<16x256xf32> -> vector<16x256xf32>
    %c0_462 = arith.constant 0 : index
    %c0_463 = arith.constant 0 : index
    %915 = vector.load %arg30[%c0_462, %c0_463] : memref<1x256xf32, #tpu.memory_space<vmem>>, vector<1x256xf32>
    %916 = vector.broadcast %915 : vector<1x256xf32> to vector<16x256xf32>
    %917 = arith.addf %914, %916 : vector<16x256xf32>
    %cst_464 = arith.constant dense<0.000000e+00> : vector<16xf32>
    %918 = vector.multi_reduction <add>, %917, %cst_464 [1] : vector<16x256xf32> to vector<16xf32>
    %919 = vector.shape_cast %918 : vector<16xf32> to vector<16x1xf32>
    %cst_465 = arith.constant 2.560000e+02 : f32
    %920 = vector.broadcast %cst_465 : f32 to vector<16x1xf32>
    %921 = arith.divf %919, %920 : vector<16x1xf32>
    %922 = vector.broadcast %921 : vector<16x1xf32> to vector<16x256xf32>
    %923 = arith.subf %917, %922 : vector<16x256xf32>
    %924 = arith.mulf %923, %923 : vector<16x256xf32>
    %cst_466 = arith.constant dense<0.000000e+00> : vector<16xf32>
    %925 = vector.multi_reduction <add>, %924, %cst_466 [1] : vector<16x256xf32> to vector<16xf32>
    %926 = vector.shape_cast %925 : vector<16xf32> to vector<16x1xf32>
    %cst_467 = arith.constant 2.560000e+02 : f32
    %927 = vector.broadcast %cst_467 : f32 to vector<16x1xf32>
    %928 = arith.divf %926, %927 : vector<16x1xf32>
    %929 = vector.broadcast %921 : vector<16x1xf32> to vector<16x256xf32>
    %930 = arith.subf %917, %929 : vector<16x256xf32>
    %cst_468 = arith.constant 9.99999974E-6 : f32
    %931 = vector.broadcast %cst_468 : f32 to vector<16x1xf32>
    %932 = arith.addf %928, %931 : vector<16x1xf32>
    %933 = math.rsqrt %932 : vector<16x1xf32>
    %934 = vector.broadcast %933 : vector<16x1xf32> to vector<16x256xf32>
    %935 = arith.mulf %930, %934 : vector<16x256xf32>
    %c0_469 = arith.constant 0 : index
    %c0_470 = arith.constant 0 : index
    %936 = vector.load %arg31[%c0_469, %c0_470] : memref<1x256xf32, #tpu.memory_space<vmem>>, vector<1x256xf32>
    %937 = vector.broadcast %936 : vector<1x256xf32> to vector<16x256xf32>
    %938 = arith.mulf %935, %937 : vector<16x256xf32>
    %c0_471 = arith.constant 0 : index
    %c0_472 = arith.constant 0 : index
    %939 = vector.load %arg32[%c0_471, %c0_472] : memref<1x256xf32, #tpu.memory_space<vmem>>, vector<1x256xf32>
    %940 = vector.broadcast %939 : vector<1x256xf32> to vector<16x256xf32>
    %941 = arith.addf %938, %940 : vector<16x256xf32>
    %cst_473 = arith.constant 0.000000e+00 : f32
    %942 = vector.broadcast %cst_473 : f32 to vector<16x256xf32>
    %943 = arith.maximumf %941, %942 : vector<16x256xf32>
    %944 = arith.truncf %943 : vector<16x256xf32> to vector<16x256xbf16>
    %c0_474 = arith.constant 0 : index
    %c0_475 = arith.constant 0 : index
    %945 = vector.load %arg33[%c0_474, %c0_475] : memref<256x64xbf16, #tpu.memory_space<vmem>>, vector<256x64xbf16>
    %cst_476 = arith.constant dense<0.000000e+00> : vector<16x64xf32>
    %946 = tpu.matmul %944, %945, %cst_476 {dimension_numbers = #tpu.dot_dimension_numbers<[1], [0], [0], [1], [0, 0, 1, 1], [], []>} : vector<16x256xbf16>, vector<256x64xbf16>, vector<16x64xf32> -> vector<16x64xf32>
    %c0_477 = arith.constant 0 : index
    %c0_478 = arith.constant 0 : index
    %947 = vector.load %arg34[%c0_477, %c0_478] : memref<1x64xf32, #tpu.memory_space<vmem>>, vector<1x64xf32>
    %948 = vector.broadcast %947 : vector<1x64xf32> to vector<16x64xf32>
    %949 = arith.addf %946, %948 : vector<16x64xf32>
    %950 = arith.truncf %949 : vector<16x64xf32> to vector<16x64xbf16>
    %c0_479 = arith.constant 0 : index
    %c0_480 = arith.constant 0 : index
    %951 = vector.load %arg35[%c0_479, %c0_480] : memref<64x256xbf16, #tpu.memory_space<vmem>>, vector<64x256xbf16>
    %cst_481 = arith.constant dense<0.000000e+00> : vector<16x256xf32>
    %952 = tpu.matmul %950, %951, %cst_481 {dimension_numbers = #tpu.dot_dimension_numbers<[1], [0], [0], [1], [0, 0, 1, 1], [], []>} : vector<16x64xbf16>, vector<64x256xbf16>, vector<16x256xf32> -> vector<16x256xf32>
    %c0_482 = arith.constant 0 : index
    %c0_483 = arith.constant 0 : index
    %953 = vector.load %arg36[%c0_482, %c0_483] : memref<1x256xf32, #tpu.memory_space<vmem>>, vector<1x256xf32>
    %954 = vector.broadcast %953 : vector<1x256xf32> to vector<16x256xf32>
    %955 = arith.addf %952, %954 : vector<16x256xf32>
    %cst_484 = arith.constant dense<0.000000e+00> : vector<16xf32>
    %956 = vector.multi_reduction <add>, %955, %cst_484 [1] : vector<16x256xf32> to vector<16xf32>
    %957 = vector.shape_cast %956 : vector<16xf32> to vector<16x1xf32>
    %cst_485 = arith.constant 2.560000e+02 : f32
    %958 = vector.broadcast %cst_485 : f32 to vector<16x1xf32>
    %959 = arith.divf %957, %958 : vector<16x1xf32>
    %960 = vector.broadcast %959 : vector<16x1xf32> to vector<16x256xf32>
    %961 = arith.subf %955, %960 : vector<16x256xf32>
    %962 = arith.mulf %961, %961 : vector<16x256xf32>
    %cst_486 = arith.constant dense<0.000000e+00> : vector<16xf32>
    %963 = vector.multi_reduction <add>, %962, %cst_486 [1] : vector<16x256xf32> to vector<16xf32>
    %964 = vector.shape_cast %963 : vector<16xf32> to vector<16x1xf32>
    %cst_487 = arith.constant 2.560000e+02 : f32
    %965 = vector.broadcast %cst_487 : f32 to vector<16x1xf32>
    %966 = arith.divf %964, %965 : vector<16x1xf32>
    %967 = vector.broadcast %959 : vector<16x1xf32> to vector<16x256xf32>
    %968 = arith.subf %955, %967 : vector<16x256xf32>
    %cst_488 = arith.constant 9.99999974E-6 : f32
    %969 = vector.broadcast %cst_488 : f32 to vector<16x1xf32>
    %970 = arith.addf %966, %969 : vector<16x1xf32>
    %971 = math.rsqrt %970 : vector<16x1xf32>
    %972 = vector.broadcast %971 : vector<16x1xf32> to vector<16x256xf32>
    %973 = arith.mulf %968, %972 : vector<16x256xf32>
    %c0_489 = arith.constant 0 : index
    %c0_490 = arith.constant 0 : index
    %974 = vector.load %arg37[%c0_489, %c0_490] : memref<1x256xf32, #tpu.memory_space<vmem>>, vector<1x256xf32>
    %975 = vector.broadcast %974 : vector<1x256xf32> to vector<16x256xf32>
    %976 = arith.mulf %973, %975 : vector<16x256xf32>
    %c0_491 = arith.constant 0 : index
    %c0_492 = arith.constant 0 : index
    %977 = vector.load %arg38[%c0_491, %c0_492] : memref<1x256xf32, #tpu.memory_space<vmem>>, vector<1x256xf32>
    %978 = vector.broadcast %977 : vector<1x256xf32> to vector<16x256xf32>
    %979 = arith.addf %976, %978 : vector<16x256xf32>
    %cst_493 = arith.constant 0.000000e+00 : f32
    %980 = vector.broadcast %cst_493 : f32 to vector<16x256xf32>
    %981 = arith.maximumf %979, %980 : vector<16x256xf32>
    %982 = arith.truncf %981 : vector<16x256xf32> to vector<16x256xbf16>
    %c0_494 = arith.constant 0 : index
    %c0_495 = arith.constant 0 : index
    %983 = vector.load %arg39[%c0_494, %c0_495] : memref<256x256xbf16, #tpu.memory_space<vmem>>, vector<256x256xbf16>
    %cst_496 = arith.constant dense<0.000000e+00> : vector<16x256xf32>
    %984 = tpu.matmul %982, %983, %cst_496 {dimension_numbers = #tpu.dot_dimension_numbers<[1], [0], [0], [1], [0, 0, 1, 1], [], []>} : vector<16x256xbf16>, vector<256x256xbf16>, vector<16x256xf32> -> vector<16x256xf32>
    %c0_497 = arith.constant 0 : index
    %c0_498 = arith.constant 0 : index
    %985 = vector.load %arg40[%c0_497, %c0_498] : memref<1x256xf32, #tpu.memory_space<vmem>>, vector<1x256xf32>
    %986 = vector.broadcast %985 : vector<1x256xf32> to vector<16x256xf32>
    %987 = arith.addf %984, %986 : vector<16x256xf32>
    %cst_499 = arith.constant dense<0.000000e+00> : vector<16xf32>
    %988 = vector.multi_reduction <add>, %987, %cst_499 [1] : vector<16x256xf32> to vector<16xf32>
    %989 = vector.shape_cast %988 : vector<16xf32> to vector<16x1xf32>
    %cst_500 = arith.constant 2.560000e+02 : f32
    %990 = vector.broadcast %cst_500 : f32 to vector<16x1xf32>
    %991 = arith.divf %989, %990 : vector<16x1xf32>
    %992 = vector.broadcast %991 : vector<16x1xf32> to vector<16x256xf32>
    %993 = arith.subf %987, %992 : vector<16x256xf32>
    %994 = arith.mulf %993, %993 : vector<16x256xf32>
    %cst_501 = arith.constant dense<0.000000e+00> : vector<16xf32>
    %995 = vector.multi_reduction <add>, %994, %cst_501 [1] : vector<16x256xf32> to vector<16xf32>
    %996 = vector.shape_cast %995 : vector<16xf32> to vector<16x1xf32>
    %cst_502 = arith.constant 2.560000e+02 : f32
    %997 = vector.broadcast %cst_502 : f32 to vector<16x1xf32>
    %998 = arith.divf %996, %997 : vector<16x1xf32>
    %999 = vector.broadcast %991 : vector<16x1xf32> to vector<16x256xf32>
    %1000 = arith.subf %987, %999 : vector<16x256xf32>
    %cst_503 = arith.constant 9.99999974E-6 : f32
    %1001 = vector.broadcast %cst_503 : f32 to vector<16x1xf32>
    %1002 = arith.addf %998, %1001 : vector<16x1xf32>
    %1003 = math.rsqrt %1002 : vector<16x1xf32>
    %1004 = vector.broadcast %1003 : vector<16x1xf32> to vector<16x256xf32>
    %1005 = arith.mulf %1000, %1004 : vector<16x256xf32>
    %c0_504 = arith.constant 0 : index
    %c0_505 = arith.constant 0 : index
    %1006 = vector.load %arg41[%c0_504, %c0_505] : memref<1x256xf32, #tpu.memory_space<vmem>>, vector<1x256xf32>
    %1007 = vector.broadcast %1006 : vector<1x256xf32> to vector<16x256xf32>
    %1008 = arith.mulf %1005, %1007 : vector<16x256xf32>
    %c0_506 = arith.constant 0 : index
    %c0_507 = arith.constant 0 : index
    %1009 = vector.load %arg42[%c0_506, %c0_507] : memref<1x256xf32, #tpu.memory_space<vmem>>, vector<1x256xf32>
    %1010 = vector.broadcast %1009 : vector<1x256xf32> to vector<16x256xf32>
    %1011 = arith.addf %1008, %1010 : vector<16x256xf32>
    %cst_508 = arith.constant 0.000000e+00 : f32
    %1012 = vector.broadcast %cst_508 : f32 to vector<16x256xf32>
    %1013 = arith.maximumf %1011, %1012 : vector<16x256xf32>
    %1014 = arith.truncf %1013 : vector<16x256xf32> to vector<16x256xbf16>
    %c0_509 = arith.constant 0 : index
    %c0_510 = arith.constant 0 : index
    %1015 = vector.load %arg43[%c0_509, %c0_510] : memref<256x128xbf16, #tpu.memory_space<vmem>>, vector<256x128xbf16>
    %cst_511 = arith.constant dense<0.000000e+00> : vector<16x128xf32>
    %1016 = tpu.matmul %1014, %1015, %cst_511 {dimension_numbers = #tpu.dot_dimension_numbers<[1], [0], [0], [1], [0, 0, 1, 1], [], []>} : vector<16x256xbf16>, vector<256x128xbf16>, vector<16x128xf32> -> vector<16x128xf32>
    %c0_512 = arith.constant 0 : index
    %c0_513 = arith.constant 0 : index
    %1017 = vector.load %arg44[%c0_512, %c0_513] : memref<1x128xf32, #tpu.memory_space<vmem>>, vector<1x128xf32>
    %1018 = vector.broadcast %1017 : vector<1x128xf32> to vector<16x128xf32>
    %1019 = arith.addf %1016, %1018 : vector<16x128xf32>
    %1020 = vector.extract_strided_slice %1019 {offsets = [0, 0], sizes = [16, 1], strides = [1, 1]} : vector<16x128xf32> to vector<16x1xf32>
    %1021 = math.tanh %1020 : vector<16x1xf32>
    %1022 = vector.extract_strided_slice %1019 {offsets = [0, 1], sizes = [16, 1], strides = [1, 1]} : vector<16x128xf32> to vector<16x1xf32>
    %1023 = arith.negf %1022 : vector<16x1xf32>
    %1024 = math.exp %1023 : vector<16x1xf32>
    %cst_514 = arith.constant 1.000000e+00 : f32
    %1025 = vector.broadcast %cst_514 : f32 to vector<16x1xf32>
    %1026 = arith.addf %1025, %1024 : vector<16x1xf32>
    %1027 = arith.divf %1025, %1026 : vector<16x1xf32>
    %1028 = tpu.iota {dimensions = array<i32: 1>} : vector<16x128xi32>
    %c0_i32_515 = arith.constant 0 : i32
    %1029 = vector.broadcast %c0_i32_515 : i32 to vector<16x128xi32>
    %1030 = arith.cmpi eq, %1028, %1029 : vector<16x128xi32>
    %c1_i32_516 = arith.constant 1 : i32
    %1031 = vector.broadcast %c1_i32_516 : i32 to vector<16x128xi32>
    %1032 = arith.cmpi eq, %1028, %1031 : vector<16x128xi32>
    %cst_517 = arith.constant 0.000000e+00 : f32
    %1033 = vector.shape_cast %1027 : vector<16x1xf32> to vector<16x1xf32>
    %1034 = vector.broadcast %1033 : vector<16x1xf32> to vector<16x128xf32>
    %1035 = vector.broadcast %cst_517 : f32 to vector<16x128xf32>
    %1036 = arith.select %1032, %1034, %1035 : vector<16x128xi1>, vector<16x128xf32>
    %1037 = vector.shape_cast %1021 : vector<16x1xf32> to vector<16x1xf32>
    %1038 = vector.broadcast %1037 : vector<16x1xf32> to vector<16x128xf32>
    %1039 = arith.select %1030, %1038, %1036 : vector<16x128xi1>, vector<16x128xf32>
    %c0_518 = arith.constant 0 : index
    %c0_519 = arith.constant 0 : index
    %1040 = vector.load %arg45[%c0_518, %c0_519] : memref<16x128xf32, #tpu.memory_space<vmem>>, vector<16x128xf32>
    tpu.vector_store %arg45[%c0_518, %c0_519], %1039 {strides = array<i32>} : memref<16x128xf32, #tpu.memory_space<vmem>>, vector<16x128xf32>,
    return
  }
  func.func @transform_0(%arg0: i32) -> (i32, i32) {
    %c0_i32 = arith.constant 0 : i32
    %c0_i32_0 = arith.constant 0 : i32
    return %arg0, %c0_i32 : i32, i32
  }
  func.func @transform_1(%arg0: i32) -> (i32, i32) {
    %c0_i32 = arith.constant 0 : i32
    %c0_i32_0 = arith.constant 0 : i32
    return %arg0, %c0_i32 : i32, i32
  }
  func.func @transform_2(%arg0: i32) -> (i32, i32) {
    %c0_i32 = arith.constant 0 : i32
    %c0_i32_0 = arith.constant 0 : i32
    %c0_i32_1 = arith.constant 0 : i32
    return %c0_i32, %c0_i32_0 : i32, i32
  }
  func.func @transform_3(%arg0: i32) -> (i32, i32) {
    %c0_i32 = arith.constant 0 : i32
    %c0_i32_0 = arith.constant 0 : i32
    %c0_i32_1 = arith.constant 0 : i32
    return %c0_i32, %c0_i32_0 : i32, i32
  }
  func.func @transform_4(%arg0: i32) -> (i32, i32) {
    %c0_i32 = arith.constant 0 : i32
    %c0_i32_0 = arith.constant 0 : i32
    %c0_i32_1 = arith.constant 0 : i32
    return %c0_i32, %c0_i32_0 : i32, i32
  }
  func.func @transform_5(%arg0: i32) -> (i32, i32) {
    %c0_i32 = arith.constant 0 : i32
    %c0_i32_0 = arith.constant 0 : i32
    %c0_i32_1 = arith.constant 0 : i32
    return %c0_i32, %c0_i32_0 : i32, i32
  }
  func.func @transform_6(%arg0: i32) -> (i32, i32) {
    %c0_i32 = arith.constant 0 : i32
    %c0_i32_0 = arith.constant 0 : i32
    %c0_i32_1 = arith.constant 0 : i32
    return %c0_i32, %c0_i32_0 : i32, i32
  }
  func.func @transform_7(%arg0: i32) -> (i32, i32) {
    %c0_i32 = arith.constant 0 : i32
    %c0_i32_0 = arith.constant 0 : i32
    %c0_i32_1 = arith.constant 0 : i32
    return %c0_i32, %c0_i32_0 : i32, i32
  }
  func.func @transform_8(%arg0: i32) -> (i32, i32) {
    %c0_i32 = arith.constant 0 : i32
    %c0_i32_0 = arith.constant 0 : i32
    %c0_i32_1 = arith.constant 0 : i32
    return %c0_i32, %c0_i32_0 : i32, i32
  }
  func.func @transform_9(%arg0: i32) -> (i32, i32) {
    %c0_i32 = arith.constant 0 : i32
    %c0_i32_0 = arith.constant 0 : i32
    %c0_i32_1 = arith.constant 0 : i32
    return %c0_i32, %c0_i32_0 : i32, i32
  }
  func.func @transform_10(%arg0: i32) -> (i32, i32) {
    %c0_i32 = arith.constant 0 : i32
    %c0_i32_0 = arith.constant 0 : i32
    %c0_i32_1 = arith.constant 0 : i32
    return %c0_i32, %c0_i32_0 : i32, i32
  }
  func.func @transform_11(%arg0: i32) -> (i32, i32) {
    %c0_i32 = arith.constant 0 : i32
    %c0_i32_0 = arith.constant 0 : i32
    %c0_i32_1 = arith.constant 0 : i32
    return %c0_i32, %c0_i32_0 : i32, i32
  }
  func.func @transform_12(%arg0: i32) -> (i32, i32) {
    %c0_i32 = arith.constant 0 : i32
    %c0_i32_0 = arith.constant 0 : i32
    %c0_i32_1 = arith.constant 0 : i32
    return %c0_i32, %c0_i32_0 : i32, i32
  }
  func.func @transform_13(%arg0: i32) -> (i32, i32) {
    %c0_i32 = arith.constant 0 : i32
    %c0_i32_0 = arith.constant 0 : i32
    %c0_i32_1 = arith.constant 0 : i32
    return %c0_i32, %c0_i32_0 : i32, i32
  }
  func.func @transform_14(%arg0: i32) -> (i32, i32) {
    %c0_i32 = arith.constant 0 : i32
    %c0_i32_0 = arith.constant 0 : i32
    %c0_i32_1 = arith.constant 0 : i32
    return %c0_i32, %c0_i32_0 : i32, i32
  }
  func.func @transform_15(%arg0: i32) -> (i32, i32) {
    %c0_i32 = arith.constant 0 : i32
    %c0_i32_0 = arith.constant 0 : i32
    %c0_i32_1 = arith.constant 0 : i32
    return %c0_i32, %c0_i32_0 : i32, i32
  }
  func.func @transform_16(%arg0: i32) -> (i32, i32) {
    %c0_i32 = arith.constant 0 : i32
    %c0_i32_0 = arith.constant 0 : i32
    %c0_i32_1 = arith.constant 0 : i32
    return %c0_i32, %c0_i32_0 : i32, i32
  }
  func.func @transform_17(%arg0: i32) -> (i32, i32) {
    %c0_i32 = arith.constant 0 : i32
    %c0_i32_0 = arith.constant 0 : i32
    %c0_i32_1 = arith.constant 0 : i32
    return %c0_i32, %c0_i32_0 : i32, i32
  }
  func.func @transform_18(%arg0: i32) -> (i32, i32) {
    %c0_i32 = arith.constant 0 : i32
    %c0_i32_0 = arith.constant 0 : i32
    %c0_i32_1 = arith.constant 0 : i32
    return %c0_i32, %c0_i32_0 : i32, i32
  }
  func.func @transform_19(%arg0: i32) -> (i32, i32) {
    %c0_i32 = arith.constant 0 : i32
    %c0_i32_0 = arith.constant 0 : i32
    %c0_i32_1 = arith.constant 0 : i32
    return %c0_i32, %c0_i32_0 : i32, i32
  }
  func.func @transform_20(%arg0: i32) -> (i32, i32) {
    %c0_i32 = arith.constant 0 : i32
    %c0_i32_0 = arith.constant 0 : i32
    %c0_i32_1 = arith.constant 0 : i32
    return %c0_i32, %c0_i32_0 : i32, i32
  }
  func.func @transform_21(%arg0: i32) -> (i32, i32) {
    %c0_i32 = arith.constant 0 : i32
    %c0_i32_0 = arith.constant 0 : i32
    %c0_i32_1 = arith.constant 0 : i32
    return %c0_i32, %c0_i32_0 : i32, i32
  }
  func.func @transform_22(%arg0: i32) -> (i32, i32) {
    %c0_i32 = arith.constant 0 : i32
    %c0_i32_0 = arith.constant 0 : i32
    %c0_i32_1 = arith.constant 0 : i32
    return %c0_i32, %c0_i32_0 : i32, i32
  }
  func.func @transform_23(%arg0: i32) -> (i32, i32) {
    %c0_i32 = arith.constant 0 : i32
    %c0_i32_0 = arith.constant 0 : i32
    %c0_i32_1 = arith.constant 0 : i32
    return %c0_i32, %c0_i32_0 : i32, i32
  }
  func.func @transform_24(%arg0: i32) -> (i32, i32) {
    %c0_i32 = arith.constant 0 : i32
    %c0_i32_0 = arith.constant 0 : i32
    %c0_i32_1 = arith.constant 0 : i32
    return %c0_i32, %c0_i32_0 : i32, i32
  }
  func.func @transform_25(%arg0: i32) -> (i32, i32) {
    %c0_i32 = arith.constant 0 : i32
    %c0_i32_0 = arith.constant 0 : i32
    %c0_i32_1 = arith.constant 0 : i32
    return %c0_i32, %c0_i32_0 : i32, i32
  }
  func.func @transform_26(%arg0: i32) -> (i32, i32) {
    %c0_i32 = arith.constant 0 : i32
    %c0_i32_0 = arith.constant 0 : i32
    %c0_i32_1 = arith.constant 0 : i32
    return %c0_i32, %c0_i32_0 : i32, i32
  }
  func.func @transform_27(%arg0: i32) -> (i32, i32) {
    %c0_i32 = arith.constant 0 : i32
    %c0_i32_0 = arith.constant 0 : i32
    %c0_i32_1 = arith.constant 0 : i32
    return %c0_i32, %c0_i32_0 : i32, i32
  }
  func.func @transform_28(%arg0: i32) -> (i32, i32) {
    %c0_i32 = arith.constant 0 : i32
    %c0_i32_0 = arith.constant 0 : i32
    %c0_i32_1 = arith.constant 0 : i32
    return %c0_i32, %c0_i32_0 : i32, i32
  }
  func.func @transform_29(%arg0: i32) -> (i32, i32) {
    %c0_i32 = arith.constant 0 : i32
    %c0_i32_0 = arith.constant 0 : i32
    %c0_i32_1 = arith.constant 0 : i32
    return %c0_i32, %c0_i32_0 : i32, i32
  }
  func.func @transform_30(%arg0: i32) -> (i32, i32) {
    %c0_i32 = arith.constant 0 : i32
    %c0_i32_0 = arith.constant 0 : i32
    %c0_i32_1 = arith.constant 0 : i32
    return %c0_i32, %c0_i32_0 : i32, i32
  }
  func.func @transform_31(%arg0: i32) -> (i32, i32) {
    %c0_i32 = arith.constant 0 : i32
    %c0_i32_0 = arith.constant 0 : i32
    %c0_i32_1 = arith.constant 0 : i32
    return %c0_i32, %c0_i32_0 : i32, i32
  }
  func.func @transform_32(%arg0: i32) -> (i32, i32) {
    %c0_i32 = arith.constant 0 : i32
    %c0_i32_0 = arith.constant 0 : i32
    %c0_i32_1 = arith.constant 0 : i32
    return %c0_i32, %c0_i32_0 : i32, i32
  }
  func.func @transform_33(%arg0: i32) -> (i32, i32) {
    %c0_i32 = arith.constant 0 : i32
    %c0_i32_0 = arith.constant 0 : i32
    %c0_i32_1 = arith.constant 0 : i32
    return %c0_i32, %c0_i32_0 : i32, i32
  }
  func.func @transform_34(%arg0: i32) -> (i32, i32) {
    %c0_i32 = arith.constant 0 : i32
    %c0_i32_0 = arith.constant 0 : i32
    %c0_i32_1 = arith.constant 0 : i32
    return %c0_i32, %c0_i32_0 : i32, i32
  }
  func.func @transform_35(%arg0: i32) -> (i32, i32) {
    %c0_i32 = arith.constant 0 : i32
    %c0_i32_0 = arith.constant 0 : i32
    %c0_i32_1 = arith.constant 0 : i32
    return %c0_i32, %c0_i32_0 : i32, i32
  }
  func.func @transform_36(%arg0: i32) -> (i32, i32) {
    %c0_i32 = arith.constant 0 : i32
    %c0_i32_0 = arith.constant 0 : i32
    %c0_i32_1 = arith.constant 0 : i32
    return %c0_i32, %c0_i32_0 : i32, i32
  }
  func.func @transform_37(%arg0: i32) -> (i32, i32) {
    %c0_i32 = arith.constant 0 : i32
    %c0_i32_0 = arith.constant 0 : i32
    %c0_i32_1 = arith.constant 0 : i32
    return %c0_i32, %c0_i32_0 : i32, i32
  }
  func.func @transform_38(%arg0: i32) -> (i32, i32) {
    %c0_i32 = arith.constant 0 : i32
    %c0_i32_0 = arith.constant 0 : i32
    %c0_i32_1 = arith.constant 0 : i32
    return %c0_i32, %c0_i32_0 : i32, i32
  }
  func.func @transform_39(%arg0: i32) -> (i32, i32) {
    %c0_i32 = arith.constant 0 : i32
    %c0_i32_0 = arith.constant 0 : i32
    %c0_i32_1 = arith.constant 0 : i32
    return %c0_i32, %c0_i32_0 : i32, i32
  }
  func.func @transform_40(%arg0: i32) -> (i32, i32) {
    %c0_i32 = arith.constant 0 : i32
    %c0_i32_0 = arith.constant 0 : i32
    %c0_i32_1 = arith.constant 0 : i32
    return %c0_i32, %c0_i32_0 : i32, i32
  }
  func.func @transform_41(%arg0: i32) -> (i32, i32) {
    %c0_i32 = arith.constant 0 : i32
    %c0_i32_0 = arith.constant 0 : i32
    %c0_i32_1 = arith.constant 0 : i32
    return %c0_i32, %c0_i32_0 : i32, i32
  }
  func.func @transform_42(%arg0: i32) -> (i32, i32) {
    %c0_i32 = arith.constant 0 : i32
    %c0_i32_0 = arith.constant 0 : i32
    %c0_i32_1 = arith.constant 0 : i32
    return %c0_i32, %c0_i32_0 : i32, i32
  }
  func.func @transform_43(%arg0: i32) -> (i32, i32) {
    %c0_i32 = arith.constant 0 : i32
    %c0_i32_0 = arith.constant 0 : i32
    %c0_i32_1 = arith.constant 0 : i32
    return %c0_i32, %c0_i32_0 : i32, i32
  }
  func.func @transform_44(%arg0: i32) -> (i32, i32) {
    %c0_i32 = arith.constant 0 : i32
    %c0_i32_0 = arith.constant 0 : i32
    return %arg0, %c0_i32 : i32, i32
  }
}

</mosaic_0001>

<llo_original>
// kernel: tile.8
$region0: #{tile.8}
  #allocation0 [shape = 's32[1]{0}', space=sflag, size = 0x4, scoped, tag = 'scoped memory for tile.8']
  %s0 = inlined_call_operand.vmem [shape: f32[8], index: 0, kind: input, shape index: {}]
  %s1 = inlined_call_operand.vmem [shape: f32[8,8], index: 1, kind: output, shape index: {}]
  // Predicated region
  $region2: #{tile.8} parent=0 // pred_check
    _
  $region3: #{tile.8} parent=0 // pred_check_branch
    %3 = sbr.rel (0) target = $region5
  $region4: #{tile.8} parent=0 // pred_region
    _
  $region5: #{tile.8} parent=0 // pred_fallthru
    _
  %v4 = vld [vmem:[%s0] ss:$0 sm:$0xff]
  %5 = vst [vmem:[%s1] sm:$0xff] %v4

// kernel: gnn_forward.1
$region0: #{gnn_forward.1}
  #allocation0 [shape = 'u32[]', space=smem, size = 0x4, offset = 0x4, fixed_abs, tag = 'smem constant byte address 0x4 - core index']
  #allocation1 [shape = 'u32[144,128]{1,0:T(1,128)}', space=vmem, size = 0x12000, scoped, tag = 'internal scratch']
  %s0 = inlined_call_operand.smem [shape: u32[45], index: -1, kind: input, shape index: {}]
  %s1 = sld [smem:[%s0]]
  %s2 = scalar_lea.smem %s0, 1
  %s3 = sld [smem:[%s2]]
  %s4 = scalar_lea.smem %s0, 2
  %s5 = sld [smem:[%s4]]
  %s6 = scalar_lea.smem %s0, 3
  %s7 = sld [smem:[%s6]]
  %s8 = scalar_lea.smem %s0, 4
  %s9 = sld [smem:[%s8]]
  %s10 = scalar_lea.smem %s0, 5
  %s11 = sld [smem:[%s10]]
  %s12 = scalar_lea.smem %s0, 6
  %s13 = sld [smem:[%s12]]
  %s14 = scalar_lea.smem %s0, 7
  %s15 = sld [smem:[%s14]]
  %s16 = scalar_lea.smem %s0, 8
  %s17 = sld [smem:[%s16]]
  %s18 = scalar_lea.smem %s0, 9
  %s19 = sld [smem:[%s18]]
  %s20 = scalar_lea.smem %s0, 10
  %s21 = sld [smem:[%s20]]
  %s22 = scalar_lea.smem %s0, 11
  %s23 = sld [smem:[%s22]]
  %s24 = scalar_lea.smem %s0, 12
  %s25 = sld [smem:[%s24]]
  %s26 = scalar_lea.smem %s0, 13
  %s27 = sld [smem:[%s26]]
  %s28 = scalar_lea.smem %s0, 14
  %s29 = sld [smem:[%s28]]
  %s30 = scalar_lea.smem %s0, 15
  %s31 = sld [smem:[%s30]]
  %s32 = scalar_lea.smem %s0, 16
  %s33 = sld [smem:[%s32]]
  %s34 = scalar_lea.smem %s0, 17
  %s35 = sld [smem:[%s34]]
  %s36 = scalar_lea.smem %s0, 18
  %s37 = sld [smem:[%s36]]
  %s38 = scalar_lea.smem %s0, 19
  %s39 = sld [smem:[%s38]]
  %s40 = scalar_lea.smem %s0, 20
  %s41 = sld [smem:[%s40]]
  %s42 = scalar_lea.smem %s0, 21
  %s43 = sld [smem:[%s42]]
  %s44 = scalar_lea.smem %s0, 22
  %s45 = sld [smem:[%s44]]
  %s46 = scalar_lea.smem %s0, 23
  %s47 = sld [smem:[%s46]]
  %s48 = scalar_lea.smem %s0, 24
  %s49 = sld [smem:[%s48]]
  %s50 = scalar_lea.smem %s0, 25
  %s51 = sld [smem:[%s50]]
  %s52 = scalar_lea.smem %s0, 26
  %s53 = sld [smem:[%s52]]
  %s54 = scalar_lea.smem %s0, 27
  %s55 = sld [smem:[%s54]]
  %s56 = scalar_lea.smem %s0, 28
  %s57 = sld [smem:[%s56]]
  %s58 = scalar_lea.smem %s0, 29
  %s59 = sld [smem:[%s58]]
  %s60 = scalar_lea.smem %s0, 30
  %s61 = sld [smem:[%s60]]
  %s62 = scalar_lea.smem %s0, 31
  %s63 = sld [smem:[%s62]]
  %s64 = scalar_lea.smem %s0, 32
  %s65 = sld [smem:[%s64]]
  %s66 = scalar_lea.smem %s0, 33
  %s67 = sld [smem:[%s66]]
  %s68 = scalar_lea.smem %s0, 34
  %s69 = sld [smem:[%s68]]
  %s70 = scalar_lea.smem %s0, 35
  %s71 = sld [smem:[%s70]]
  %s72 = scalar_lea.smem %s0, 36
  %s73 = sld [smem:[%s72]]
  %s74 = scalar_lea.smem %s0, 37
  %s75 = sld [smem:[%s74]]
  %s76 = scalar_lea.smem %s0, 38
  %s77 = sld [smem:[%s76]]
  %s78 = scalar_lea.smem %s0, 39
  %s79 = sld [smem:[%s78]]
  %s80 = scalar_lea.smem %s0, 40
  %s81 = sld [smem:[%s80]]
  %s82 = scalar_lea.smem %s0, 41
  %s83 = sld [smem:[%s82]]
  %s84 = scalar_lea.smem %s0, 42
  %s85 = sld [smem:[%s84]]
  %s86 = scalar_lea.smem %s0, 43
  %s87 = sld [smem:[%s86]]
  %s88 = scalar_lea.smem %s0, 44
  %s89 = sld [smem:[%s88]]
  %s90 = sld [smem:[#allocation0]]
  $region209: #{gnn_forward.1} parent=0
    _
  %s92 = ssub.s32 1, %s90
  %s93 = scalar_select 0, %s92, %s90
  loop: start=0, step=1, limit=4
  $region2: #{gnn_forward.1} parent=0 // loop_pre_header
    _
  $region3: #{gnn_forward.1} parent=0 // loop_header
    %s95 = sphi 0, %s99
    %p96 = scmp.ge.s32.totalorder %s95, 4
    %s105 = sphi 0, %s107
    %s108 = sphi 0, %s105
    %s109 = sphi 0, %s108
    %s125 = sphi 0, %s109
    %s131 = sphi 0, %s133
    %s134 = sphi 0, %s131
    %s135 = sphi 0, %s134
    %s151 = sphi 0, %s135
    %s155 = sphi 0, %s155
    %s157 = sphi 0, %s155
    %s158 = sphi 0, %s157
    %s172 = sphi 0, %s158
    %s176 = sphi 0, %s176
    %s178 = sphi 0, %s176
    %s179 = sphi 0, %s178
    %s193 = sphi 0, %s179
    %s197 = sphi 0, %s197
    %s199 = sphi 0, %s197
    %s200 = sphi 0, %s199
    %s214 = sphi 0, %s200
    %s218 = sphi 0, %s218
    %s220 = sphi 0, %s218
    %s221 = sphi 0, %s220
    %s235 = sphi 0, %s221
    %s239 = sphi 0, %s239
    %s241 = sphi 0, %s239
    %s242 = sphi 0, %s241
    %s256 = sphi 0, %s242
    %s260 = sphi 0, %s260
    %s262 = sphi 0, %s260
    %s263 = sphi 0, %s262
    %s277 = sphi 0, %s263
    %s281 = sphi 0, %s281
    %s283 = sphi 0, %s281
    %s284 = sphi 0, %s283
    %s298 = sphi 0, %s284
    %s302 = sphi 0, %s302
    %s304 = sphi 0, %s302
    %s305 = sphi 0, %s304
    %s319 = sphi 0, %s305
    %s323 = sphi 0, %s323
    %s325 = sphi 0, %s323
    %s326 = sphi 0, %s325
    %s340 = sphi 0, %s326
    %s344 = sphi 0, %s344
    %s346 = sphi 0, %s344
    %s347 = sphi 0, %s346
    %s361 = sphi 0, %s347
    %s365 = sphi 0, %s365
    %s367 = sphi 0, %s365
    %s368 = sphi 0, %s367
    %s382 = sphi 0, %s368
    %s386 = sphi 0, %s386
    %s388 = sphi 0, %s386
    %s389 = sphi 0, %s388
    %s403 = sphi 0, %s389
    %s407 = sphi 0, %s407
    %s409 = sphi 0, %s407
    %s410 = sphi 0, %s409
    %s424 = sphi 0, %s410
    %s428 = sphi 0, %s428
    %s430 = sphi 0, %s428
    %s431 = sphi 0, %s430
    %s445 = sphi 0, %s431
    %s449 = sphi 0, %s449
    %s451 = sphi 0, %s449
    %s452 = sphi 0, %s451
    %s466 = sphi 0, %s452
    %s470 = sphi 0, %s470
    %s472 = sphi 0, %s470
    %s473 = sphi 0, %s472
    %s487 = sphi 0, %s473
    %s491 = sphi 0, %s491
    %s493 = sphi 0, %s491
    %s494 = sphi 0, %s493
    %s508 = sphi 0, %s494
    %s512 = sphi 0, %s512
    %s514 = sphi 0, %s512
    %s515 = sphi 0, %s514
    %s529 = sphi 0, %s515
    %s533 = sphi 0, %s533
    %s535 = sphi 0, %s533
    %s536 = sphi 0, %s535
    %s550 = sphi 0, %s536
    %s554 = sphi 0, %s554
    %s556 = sphi 0, %s554
    %s557 = sphi 0, %s556
    %s571 = sphi 0, %s557
    %s575 = sphi 0, %s575
    %s577 = sphi 0, %s575
    %s578 = sphi 0, %s577
    %s592 = sphi 0, %s578
    %s596 = sphi 0, %s596
    %s598 = sphi 0, %s596
    %s599 = sphi 0, %s598
    %s613 = sphi 0, %s599
    %s617 = sphi 0, %s617
    %s619 = sphi 0, %s617
    %s620 = sphi 0, %s619
    %s634 = sphi 0, %s620
    %s638 = sphi 0, %s638
    %s640 = sphi 0, %s638
    %s641 = sphi 0, %s640
    %s655 = sphi 0, %s641
    %s659 = sphi 0, %s659
    %s661 = sphi 0, %s659
    %s662 = sphi 0, %s661
    %s676 = sphi 0, %s662
    %s680 = sphi 0, %s680
    %s682 = sphi 0, %s680
    %s683 = sphi 0, %s682
    %s697 = sphi 0, %s683
    %s701 = sphi 0, %s701
    %s703 = sphi 0, %s701
    %s704 = sphi 0, %s703
    %s718 = sphi 0, %s704
    %s722 = sphi 0, %s722
    %s724 = sphi 0, %s722
    %s725 = sphi 0, %s724
    %s739 = sphi 0, %s725
    %s743 = sphi 0, %s743
    %s745 = sphi 0, %s743
    %s746 = sphi 0, %s745
    %s760 = sphi 0, %s746
    %s764 = sphi 0, %s764
    %s766 = sphi 0, %s764
    %s767 = sphi 0, %s766
    %s781 = sphi 0, %s767
    %s785 = sphi 0, %s785
    %s787 = sphi 0, %s785
    %s788 = sphi 0, %s787
    %s802 = sphi 0, %s788
    %s806 = sphi 0, %s806
    %s808 = sphi 0, %s806
    %s809 = sphi 0, %s808
    %s823 = sphi 0, %s809
    %s827 = sphi 0, %s827
    %s829 = sphi 0, %s827
    %s830 = sphi 0, %s829
    %s844 = sphi 0, %s830
    %s848 = sphi 0, %s848
    %s850 = sphi 0, %s848
    %s851 = sphi 0, %s850
    %s865 = sphi 0, %s851
    %s869 = sphi 0, %s869
    %s871 = sphi 0, %s869
    %s872 = sphi 0, %s871
    %s886 = sphi 0, %s872
    %s890 = sphi 0, %s890
    %s892 = sphi 0, %s890
    %s893 = sphi 0, %s892
    %s907 = sphi 0, %s893
    %s911 = sphi 0, %s911
    %s913 = sphi 0, %s911
    %s914 = sphi 0, %s913
    %s928 = sphi 0, %s914
    %s932 = sphi 0, %s932
    %s934 = sphi 0, %s932
    %s935 = sphi 0, %s934
    %s949 = sphi 0, %s935
    %s953 = sphi 0, %s953
    %s955 = sphi 0, %s953
    %s956 = sphi 0, %s955
    %s970 = sphi 0, %s956
    %s974 = sphi 0, %s974
    %s976 = sphi 0, %s974
    %s977 = sphi 0, %s976
    %s991 = sphi 0, %s977
    %s995 = sphi 0, %s995
    %s997 = sphi 0, %s995
    %s998 = sphi 0, %s997
    %s1012 = sphi 0, %s998
    %s1016 = sphi 0, %s1016
    %s1018 = sphi 0, %s1016
    %s1019 = sphi 0, %s1018
    %s1033 = sphi 0, %s1019
    %s1039 = sphi 0, %s1041
    %s1042 = sphi 0, %s1039
    %s1043 = sphi 0, %s1042
    %s1059 = sphi 0, %s1043
  $region4: #{gnn_forward.1} parent=0 // loop_header_branch
    %98 = sbr.rel (%p96) target = $region8
  $region5: #{gnn_forward.1} parent=0 // loop_body
    %s100 = ssub.s32 %s95, 1
    %s101 = ssub.s32 %s95, 2
    %s102 = sadd.s32 %s95, 1
    %s103 = ssub.s32 %s95, %s102
    %p104 = scmp.eq.s32.totalorder %s103, 0
    %s106 = sadd.s32 %s105, 1
    %s107 = scalar_select %p104, %s105, %s106
    %p110 = pneg %p104
    %p111 = scmp.eq.s32.totalorder %s95, 1
    %p112 = por %p110, %p111
    %p113 = scmp.ne.s32.totalorder %s105, %s108
    %p114 = scmp.eq.s32.totalorder %s95, 0
    %p115 = por %p113, %p114
    %p116 = scmp.ne.s32.totalorder %s105, %s108
    %p117 = scmp.eq.s32.totalorder %s100, 1
    %p118 = por %p116, %p117
    %p119 = scmp.ne.s32.totalorder %s108, %s109
    %p120 = scmp.eq.s32.totalorder %s100, 0
    %p121 = por %p119, %p120
    %p122 = scmp.ne.s32.totalorder %s108, %s109
    %p123 = scmp.eq.s32.totalorder %s101, 1
    %p124 = por %p122, %p123
    %p126 = scmp.ne.s32.totalorder %s109, %s125
    %p127 = scmp.eq.s32.totalorder %s101, 0
    %p128 = por %p126, %p127
    %s129 = ssub.s32 %s95, %s102
    %p130 = scmp.eq.s32.totalorder %s129, 0
    %s132 = sadd.s32 %s131, 1
    %s133 = scalar_select %p130, %s131, %s132
    %p136 = pneg %p130
    %p137 = scmp.eq.s32.totalorder %s95, 1
    %p138 = por %p136, %p137
    %p139 = scmp.ne.s32.totalorder %s131, %s134
    %p140 = scmp.eq.s32.totalorder %s95, 0
    %p141 = por %p139, %p140
    %p142 = scmp.ne.s32.totalorder %s131, %s134
    %p143 = scmp.eq.s32.totalorder %s100, 1
    %p144 = por %p142, %p143
    %p145 = scmp.ne.s32.totalorder %s134, %s135
    %p146 = scmp.eq.s32.totalorder %s100, 0
    %p147 = por %p145, %p146
    %p148 = scmp.ne.s32.totalorder %s134, %s135
    %p149 = scmp.eq.s32.totalorder %s101, 1
    %p150 = por %p148, %p149
    %p152 = scmp.ne.s32.totalorder %s135, %s151
    %p153 = scmp.eq.s32.totalorder %s101, 0
    %p154 = por %p152, %p153
    %s156 = sadd.s32 %s155, 1
    %p159 = scmp.eq.s32.totalorder %s95, 1
    %p160 = scmp.ne.s32.totalorder %s155, %s157
    %p161 = scmp.eq.s32.totalorder %s95, 0
    %p162 = por %p160, %p161
    %p163 = scmp.ne.s32.totalorder %s155, %s157
    %p164 = scmp.eq.s32.totalorder %s100, 1
    %p165 = por %p163, %p164
    %p166 = scmp.ne.s32.totalorder %s157, %s158
    %p167 = scmp.eq.s32.totalorder %s100, 0
    %p168 = por %p166, %p167
    %p169 = scmp.ne.s32.totalorder %s157, %s158
    %p170 = scmp.eq.s32.totalorder %s101, 1
    %p171 = por %p169, %p170
    %p173 = scmp.ne.s32.totalorder %s158, %s172
    %p174 = scmp.eq.s32.totalorder %s101, 0
    %p175 = por %p173, %p174
    %s177 = sadd.s32 %s176, 1
    %p180 = scmp.eq.s32.totalorder %s95, 1
    %p181 = scmp.ne.s32.totalorder %s176, %s178
    %p182 = scmp.eq.s32.totalorder %s95, 0
    %p183 = por %p181, %p182
    %p184 = scmp.ne.s32.totalorder %s176, %s178
    %p185 = scmp.eq.s32.totalorder %s100, 1
    %p186 = por %p184, %p185
    %p187 = scmp.ne.s32.totalorder %s178, %s179
    %p188 = scmp.eq.s32.totalorder %s100, 0
    %p189 = por %p187, %p188
    %p190 = scmp.ne.s32.totalorder %s178, %s179
    %p191 = scmp.eq.s32.totalorder %s101, 1
    %p192 = por %p190, %p191
    %p194 = scmp.ne.s32.totalorder %s179, %s193
    %p195 = scmp.eq.s32.totalorder %s101, 0
    %p196 = por %p194, %p195
    %s198 = sadd.s32 %s197, 1
    %p201 = scmp.eq.s32.totalorder %s95, 1
    %p202 = scmp.ne.s32.totalorder %s197, %s199
    %p203 = scmp.eq.s32.totalorder %s95, 0
    %p204 = por %p202, %p203
    %p205 = scmp.ne.s32.totalorder %s197, %s199
    %p206 = scmp.eq.s32.totalorder %s100, 1
    %p207 = por %p205, %p206
    %p208 = scmp.ne.s32.totalorder %s199, %s200
    %p209 = scmp.eq.s32.totalorder %s100, 0
    %p210 = por %p208, %p209
    %p211 = scmp.ne.s32.totalorder %s199, %s200
    %p212 = scmp.eq.s32.totalorder %s101, 1
    %p213 = por %p211, %p212
    %p215 = scmp.ne.s32.totalorder %s200, %s214
    %p216 = scmp.eq.s32.totalorder %s101, 0
    %p217 = por %p215, %p216
    %s219 = sadd.s32 %s218, 1
    %p222 = scmp.eq.s32.totalorder %s95, 1
    %p223 = scmp.ne.s32.totalorder %s218, %s220
    %p224 = scmp.eq.s32.totalorder %s95, 0
    %p225 = por %p223, %p224
    %p226 = scmp.ne.s32.totalorder %s218, %s220
    %p227 = scmp.eq.s32.totalorder %s100, 1
    %p228 = por %p226, %p227
    %p229 = scmp.ne.s32.totalorder %s220, %s221
    %p230 = scmp.eq.s32.totalorder %s100, 0
    %p231 = por %p229, %p230
    %p232 = scmp.ne.s32.totalorder %s220, %s221
    %p233 = scmp.eq.s32.totalorder %s101, 1
    %p234 = por %p232, %p233
    %p236 = scmp.ne.s32.totalorder %s221, %s235
    %p237 = scmp.eq.s32.totalorder %s101, 0
    %p238 = por %p236, %p237
    %s240 = sadd.s32 %s239, 1
    %p243 = scmp.eq.s32.totalorder %s95, 1
    %p244 = scmp.ne.s32.totalorder %s239, %s241
    %p245 = scmp.eq.s32.totalorder %s95, 0
    %p246 = por %p244, %p245
    %p247 = scmp.ne.s32.totalorder %s239, %s241
    %p248 = scmp.eq.s32.totalorder %s100, 1
    %p249 = por %p247, %p248
    %p250 = scmp.ne.s32.totalorder %s241, %s242
    %p251 = scmp.eq.s32.totalorder %s100, 0
    %p252 = por %p250, %p251
    %p253 = scmp.ne.s32.totalorder %s241, %s242
    %p254 = scmp.eq.s32.totalorder %s101, 1
    %p255 = por %p253, %p254
    %p257 = scmp.ne.s32.totalorder %s242, %s256
    %p258 = scmp.eq.s32.totalorder %s101, 0
    %p259 = por %p257, %p258
    %s261 = sadd.s32 %s260, 1
    %p264 = scmp.eq.s32.totalorder %s95, 1
    %p265 = scmp.ne.s32.totalorder %s260, %s262
    %p266 = scmp.eq.s32.totalorder %s95, 0
    %p267 = por %p265, %p266
    %p268 = scmp.ne.s32.totalorder %s260, %s262
    %p269 = scmp.eq.s32.totalorder %s100, 1
    %p270 = por %p268, %p269
    %p271 = scmp.ne.s32.totalorder %s262, %s263
    %p272 = scmp.eq.s32.totalorder %s100, 0
    %p273 = por %p271, %p272
    %p274 = scmp.ne.s32.totalorder %s262, %s263
    %p275 = scmp.eq.s32.totalorder %s101, 1
    %p276 = por %p274, %p275
    %p278 = scmp.ne.s32.totalorder %s263, %s277
    %p279 = scmp.eq.s32.totalorder %s101, 0
    %p280 = por %p278, %p279
    %s282 = sadd.s32 %s281, 1
    %p285 = scmp.eq.s32.totalorder %s95, 1
    %p286 = scmp.ne.s32.totalorder %s281, %s283
    %p287 = scmp.eq.s32.totalorder %s95, 0
    %p288 = por %p286, %p287
    %p289 = scmp.ne.s32.totalorder %s281, %s283
    %p290 = scmp.eq.s32.totalorder %s100, 1
    %p291 = por %p289, %p290
    %p292 = scmp.ne.s32.totalorder %s283, %s284
    %p293 = scmp.eq.s32.totalorder %s100, 0
    %p294 = por %p292, %p293
    %p295 = scmp.ne.s32.totalorder %s283, %s284
    %p296 = scmp.eq.s32.totalorder %s101, 1
    %p297 = por %p295, %p296
    %p299 = scmp.ne.s32.totalorder %s284, %s298
    %p300 = scmp.eq.s32.totalorder %s101, 0
    %p301 = por %p299, %p300
    %s303 = sadd.s32 %s302, 1
    %p306 = scmp.eq.s32.totalorder %s95, 1
    %p307 = scmp.ne.s32.totalorder %s302, %s304
    %p308 = scmp.eq.s32.totalorder %s95, 0
    %p309 = por %p307, %p308
    %p310 = scmp.ne.s32.totalorder %s302, %s304
    %p311 = scmp.eq.s32.totalorder %s100, 1
    %p312 = por %p310, %p311
    %p313 = scmp.ne.s32.totalorder %s304, %s305
    %p314 = scmp.eq.s32.totalorder %s100, 0
    %p315 = por %p313, %p314
    %p316 = scmp.ne.s32.totalorder %s304, %s305
    %p317 = scmp.eq.s32.totalorder %s101, 1
    %p318 = por %p316, %p317
    %p320 = scmp.ne.s32.totalorder %s305, %s319
    %p321 = scmp.eq.s32.totalorder %s101, 0
    %p322 = por %p320, %p321
    %s324 = sadd.s32 %s323, 1
    %p327 = scmp.eq.s32.totalorder %s95, 1
    %p328 = scmp.ne.s32.totalorder %s323, %s325
    %p329 = scmp.eq.s32.totalorder %s95, 0
    %p330 = por %p328, %p329
    %p331 = scmp.ne.s32.totalorder %s323, %s325
    %p332 = scmp.eq.s32.totalorder %s100, 1
    %p333 = por %p331, %p332
    %p334 = scmp.ne.s32.totalorder %s325, %s326
    %p335 = scmp.eq.s32.totalorder %s100, 0
    %p336 = por %p334, %p335
    %p337 = scmp.ne.s32.totalorder %s325, %s326
    %p338 = scmp.eq.s32.totalorder %s101, 1
    %p339 = por %p337, %p338
    %p341 = scmp.ne.s32.totalorder %s326, %s340
    %p342 = scmp.eq.s32.totalorder %s101, 0
    %p343 = por %p341, %p342
    %s345 = sadd.s32 %s344, 1
    %p348 = scmp.eq.s32.totalorder %s95, 1
    %p349 = scmp.ne.s32.totalorder %s344, %s346
    %p350 = scmp.eq.s32.totalorder %s95, 0
    %p351 = por %p349, %p350
    %p352 = scmp.ne.s32.totalorder %s344, %s346
    %p353 = scmp.eq.s32.totalorder %s100, 1
    %p354 = por %p352, %p353
    %p355 = scmp.ne.s32.totalorder %s346, %s347
    %p356 = scmp.eq.s32.totalorder %s100, 0
    %p357 = por %p355, %p356
    %p358 = scmp.ne.s32.totalorder %s346, %s347
    %p359 = scmp.eq.s32.totalorder %s101, 1
    %p360 = por %p358, %p359
    %p362 = scmp.ne.s32.totalorder %s347, %s361
    %p363 = scmp.eq.s32.totalorder %s101, 0
    %p364 = por %p362, %p363
    %s366 = sadd.s32 %s365, 1
    %p369 = scmp.eq.s32.totalorder %s95, 1
    %p370 = scmp.ne.s32.totalorder %s365, %s367
    %p371 = scmp.eq.s32.totalorder %s95, 0
    %p372 = por %p370, %p371
    %p373 = scmp.ne.s32.totalorder %s365, %s367
    %p374 = scmp.eq.s32.totalorder %s100, 1
    %p375 = por %p373, %p374
    %p376 = scmp.ne.s32.totalorder %s367, %s368
    %p377 = scmp.eq.s32.totalorder %s100, 0
    %p378 = por %p376, %p377
    %p379 = scmp.ne.s32.totalorder %s367, %s368
    %p380 = scmp.eq.s32.totalorder %s101, 1
    %p381 = por %p379, %p380
    %p383 = scmp.ne.s32.totalorder %s368, %s382
    %p384 = scmp.eq.s32.totalorder %s101, 0
    %p385 = por %p383, %p384
    %s387 = sadd.s32 %s386, 1
    %p390 = scmp.eq.s32.totalorder %s95, 1
    %p391 = scmp.ne.s32.totalorder %s386, %s388
    %p392 = scmp.eq.s32.totalorder %s95, 0
    %p393 = por %p391, %p392
    %p394 = scmp.ne.s32.totalorder %s386, %s388
    %p395 = scmp.eq.s32.totalorder %s100, 1
    %p396 = por %p394, %p395
    %p397 = scmp.ne.s32.totalorder %s388, %s389
    %p398 = scmp.eq.s32.totalorder %s100, 0
    %p399 = por %p397, %p398
    %p400 = scmp.ne.s32.totalorder %s388, %s389
    %p401 = scmp.eq.s32.totalorder %s101, 1
    %p402 = por %p400, %p401
    %p404 = scmp.ne.s32.totalorder %s389, %s403
    %p405 = scmp.eq.s32.totalorder %s101, 0
    %p406 = por %p404, %p405
    %s408 = sadd.s32 %s407, 1
    %p411 = scmp.eq.s32.totalorder %s95, 1
    %p412 = scmp.ne.s32.totalorder %s407, %s409
    %p413 = scmp.eq.s32.totalorder %s95, 0
    %p414 = por %p412, %p413
    %p415 = scmp.ne.s32.totalorder %s407, %s409
    %p416 = scmp.eq.s32.totalorder %s100, 1
    %p417 = por %p415, %p416
    %p418 = scmp.ne.s32.totalorder %s409, %s410
    %p419 = scmp.eq.s32.totalorder %s100, 0
    %p420 = por %p418, %p419
    %p421 = scmp.ne.s32.totalorder %s409, %s410
    %p422 = scmp.eq.s32.totalorder %s101, 1
    %p423 = por %p421, %p422
    %p425 = scmp.ne.s32.totalorder %s410, %s424
    %p426 = scmp.eq.s32.totalorder %s101, 0
    %p427 = por %p425, %p426
    %s429 = sadd.s32 %s428, 1
    %p432 = scmp.eq.s32.totalorder %s95, 1
    %p433 = scmp.ne.s32.totalorder %s428, %s430
    %p434 = scmp.eq.s32.totalorder %s95, 0
    %p435 = por %p433, %p434
    %p436 = scmp.ne.s32.totalorder %s428, %s430
    %p437 = scmp.eq.s32.totalorder %s100, 1
    %p438 = por %p436, %p437
    %p439 = scmp.ne.s32.totalorder %s430, %s431
    %p440 = scmp.eq.s32.totalorder %s100, 0
    %p441 = por %p439, %p440
    %p442 = scmp.ne.s32.totalorder %s430, %s431
    %p443 = scmp.eq.s32.totalorder %s101, 1
    %p444 = por %p442, %p443
    %p446 = scmp.ne.s32.totalorder %s431, %s445
    %p447 = scmp.eq.s32.totalorder %s101, 0
    %p448 = por %p446, %p447
    %s450 = sadd.s32 %s449, 1
    %p453 = scmp.eq.s32.totalorder %s95, 1
    %p454 = scmp.ne.s32.totalorder %s449, %s451
    %p455 = scmp.eq.s32.totalorder %s95, 0
    %p456 = por %p454, %p455
    %p457 = scmp.ne.s32.totalorder %s449, %s451
    %p458 = scmp.eq.s32.totalorder %s100, 1
    %p459 = por %p457, %p458
    %p460 = scmp.ne.s32.totalorder %s451, %s452
    %p461 = scmp.eq.s32.totalorder %s100, 0
    %p462 = por %p460, %p461
    %p463 = scmp.ne.s32.totalorder %s451, %s452
    %p464 = scmp.eq.s32.totalorder %s101, 1
    %p465 = por %p463, %p464
    %p467 = scmp.ne.s32.totalorder %s452, %s466
    %p468 = scmp.eq.s32.totalorder %s101, 0
    %p469 = por %p467, %p468
    %s471 = sadd.s32 %s470, 1
    %p474 = scmp.eq.s32.totalorder %s95, 1
    %p475 = scmp.ne.s32.totalorder %s470, %s472
    %p476 = scmp.eq.s32.totalorder %s95, 0
    %p477 = por %p475, %p476
    %p478 = scmp.ne.s32.totalorder %s470, %s472
    %p479 = scmp.eq.s32.totalorder %s100, 1
    %p480 = por %p478, %p479
    %p481 = scmp.ne.s32.totalorder %s472, %s473
    %p482 = scmp.eq.s32.totalorder %s100, 0
    %p483 = por %p481, %p482
    %p484 = scmp.ne.s32.totalorder %s472, %s473
    %p485 = scmp.eq.s32.totalorder %s101, 1
    %p486 = por %p484, %p485
    %p488 = scmp.ne.s32.totalorder %s473, %s487
    %p489 = scmp.eq.s32.totalorder %s101, 0
    %p490 = por %p488, %p489
    %s492 = sadd.s32 %s491, 1
    %p495 = scmp.eq.s32.totalorder %s95, 1
    %p496 = scmp.ne.s32.totalorder %s491, %s493
    %p497 = scmp.eq.s32.totalorder %s95, 0
    %p498 = por %p496, %p497
    %p499 = scmp.ne.s32.totalorder %s491, %s493
    %p500 = scmp.eq.s32.totalorder %s100, 1
    %p501 = por %p499, %p500
    %p502 = scmp.ne.s32.totalorder %s493, %s494
    %p503 = scmp.eq.s32.totalorder %s100, 0
    %p504 = por %p502, %p503
    %p505 = scmp.ne.s32.totalorder %s493, %s494
    %p506 = scmp.eq.s32.totalorder %s101, 1
    %p507 = por %p505, %p506
    %p509 = scmp.ne.s32.totalorder %s494, %s508
    %p510 = scmp.eq.s32.totalorder %s101, 0
    %p511 = por %p509, %p510
    %s513 = sadd.s32 %s512, 1
    %p516 = scmp.eq.s32.totalorder %s95, 1
    %p517 = scmp.ne.s32.totalorder %s512, %s514
    %p518 = scmp.eq.s32.totalorder %s95, 0
    %p519 = por %p517, %p518
    %p520 = scmp.ne.s32.totalorder %s512, %s514
    %p521 = scmp.eq.s32.totalorder %s100, 1
    %p522 = por %p520, %p521
    %p523 = scmp.ne.s32.totalorder %s514, %s515
    %p524 = scmp.eq.s32.totalorder %s100, 0
    %p525 = por %p523, %p524
    %p526 = scmp.ne.s32.totalorder %s514, %s515
    %p527 = scmp.eq.s32.totalorder %s101, 1
    %p528 = por %p526, %p527
    %p530 = scmp.ne.s32.totalorder %s515, %s529
    %p531 = scmp.eq.s32.totalorder %s101, 0
    %p532 = por %p530, %p531
    %s534 = sadd.s32 %s533, 1
    %p537 = scmp.eq.s32.totalorder %s95, 1
    %p538 = scmp.ne.s32.totalorder %s533, %s535
    %p539 = scmp.eq.s32.totalorder %s95, 0
    %p540 = por %p538, %p539
    %p541 = scmp.ne.s32.totalorder %s533, %s535
    %p542 = scmp.eq.s32.totalorder %s100, 1
    %p543 = por %p541, %p542
    %p544 = scmp.ne.s32.totalorder %s535, %s536
    %p545 = scmp.eq.s32.totalorder %s100, 0
    %p546 = por %p544, %p545
    %p547 = scmp.ne.s32.totalorder %s535, %s536
    %p548 = scmp.eq.s32.totalorder %s101, 1
    %p549 = por %p547, %p548
    %p551 = scmp.ne.s32.totalorder %s536, %s550
    %p552 = scmp.eq.s32.totalorder %s101, 0
    %p553 = por %p551, %p552
    %s555 = sadd.s32 %s554, 1
    %p558 = scmp.eq.s32.totalorder %s95, 1
    %p559 = scmp.ne.s32.totalorder %s554, %s556
    %p560 = scmp.eq.s32.totalorder %s95, 0
    %p561 = por %p559, %p560
    %p562 = scmp.ne.s32.totalorder %s554, %s556
    %p563 = scmp.eq.s32.totalorder %s100, 1
    %p564 = por %p562, %p563
    %p565 = scmp.ne.s32.totalorder %s556, %s557
    %p566 = scmp.eq.s32.totalorder %s100, 0
    %p567 = por %p565, %p566
    %p568 = scmp.ne.s32.totalorder %s556, %s557
    %p569 = scmp.eq.s32.totalorder %s101, 1
    %p570 = por %p568, %p569
    %p572 = scmp.ne.s32.totalorder %s557, %s571
    %p573 = scmp.eq.s32.totalorder %s101, 0
    %p574 = por %p572, %p573
    %s576 = sadd.s32 %s575, 1
    %p579 = scmp.eq.s32.totalorder %s95, 1
    %p580 = scmp.ne.s32.totalorder %s575, %s577
    %p581 = scmp.eq.s32.totalorder %s95, 0
    %p582 = por %p580, %p581
    %p583 = scmp.ne.s32.totalorder %s575, %s577
    %p584 = scmp.eq.s32.totalorder %s100, 1
    %p585 = por %p583, %p584
    %p586 = scmp.ne.s32.totalorder %s577, %s578
    %p587 = scmp.eq.s32.totalorder %s100, 0
    %p588 = por %p586, %p587
    %p589 = scmp.ne.s32.totalorder %s577, %s578
    %p590 = scmp.eq.s32.totalorder %s101, 1
    %p591 = por %p589, %p590
    %p593 = scmp.ne.s32.totalorder %s578, %s592
    %p594 = scmp.eq.s32.totalorder %s101, 0
    %p595 = por %p593, %p594
    %s597 = sadd.s32 %s596, 1
    %p600 = scmp.eq.s32.totalorder %s95, 1
    %p601 = scmp.ne.s32.totalorder %s596, %s598
    %p602 = scmp.eq.s32.totalorder %s95, 0
    %p603 = por %p601, %p602
    %p604 = scmp.ne.s32.totalorder %s596, %s598
    %p605 = scmp.eq.s32.totalorder %s100, 1
    %p606 = por %p604, %p605
    %p607 = scmp.ne.s32.totalorder %s598, %s599
    %p608 = scmp.eq.s32.totalorder %s100, 0
    %p609 = por %p607, %p608
    %p610 = scmp.ne.s32.totalorder %s598, %s599
    %p611 = scmp.eq.s32.totalorder %s101, 1
    %p612 = por %p610, %p611
    %p614 = scmp.ne.s32.totalorder %s599, %s613
    %p615 = scmp.eq.s32.totalorder %s101, 0
    %p616 = por %p614, %p615
    %s618 = sadd.s32 %s617, 1
    %p621 = scmp.eq.s32.totalorder %s95, 1
    %p622 = scmp.ne.s32.totalorder %s617, %s619
    %p623 = scmp.eq.s32.totalorder %s95, 0
    %p624 = por %p622, %p623
    %p625 = scmp.ne.s32.totalorder %s617, %s619
    %p626 = scmp.eq.s32.totalorder %s100, 1
    %p627 = por %p625, %p626
    %p628 = scmp.ne.s32.totalorder %s619, %s620
    %p629 = scmp.eq.s32.totalorder %s100, 0
    %p630 = por %p628, %p629
    %p631 = scmp.ne.s32.totalorder %s619, %s620
    %p632 = scmp.eq.s32.totalorder %s101, 1
    %p633 = por %p631, %p632
    %p635 = scmp.ne.s32.totalorder %s620, %s634
    %p636 = scmp.eq.s32.totalorder %s101, 0
    %p637 = por %p635, %p636
    %s639 = sadd.s32 %s638, 1
    %p642 = scmp.eq.s32.totalorder %s95, 1
    %p643 = scmp.ne.s32.totalorder %s638, %s640
    %p644 = scmp.eq.s32.totalorder %s95, 0
    %p645 = por %p643, %p644
    %p646 = scmp.ne.s32.totalorder %s638, %s640
    %p647 = scmp.eq.s32.totalorder %s100, 1
    %p648 = por %p646, %p647
    %p649 = scmp.ne.s32.totalorder %s640, %s641
    %p650 = scmp.eq.s32.totalorder %s100, 0
    %p651 = por %p649, %p650
    %p652 = scmp.ne.s32.totalorder %s640, %s641
    %p653 = scmp.eq.s32.totalorder %s101, 1
    %p654 = por %p652, %p653
    %p656 = scmp.ne.s32.totalorder %s641, %s655
    %p657 = scmp.eq.s32.totalorder %s101, 0
    %p658 = por %p656, %p657
    %s660 = sadd.s32 %s659, 1
    %p663 = scmp.eq.s32.totalorder %s95, 1
    %p664 = scmp.ne.s32.totalorder %s659, %s661
    %p665 = scmp.eq.s32.totalorder %s95, 0
    %p666 = por %p664, %p665
    %p667 = scmp.ne.s32.totalorder %s659, %s661
    %p668 = scmp.eq.s32.totalorder %s100, 1
    %p669 = por %p667, %p668
    %p670 = scmp.ne.s32.totalorder %s661, %s662
    %p671 = scmp.eq.s32.totalorder %s100, 0
    %p672 = por %p670, %p671
    %p673 = scmp.ne.s32.totalorder %s661, %s662
    %p674 = scmp.eq.s32.totalorder %s101, 1
    %p675 = por %p673, %p674
    %p677 = scmp.ne.s32.totalorder %s662, %s676
    %p678 = scmp.eq.s32.totalorder %s101, 0
    %p679 = por %p677, %p678
    %s681 = sadd.s32 %s680, 1
    %p684 = scmp.eq.s32.totalorder %s95, 1
    %p685 = scmp.ne.s32.totalorder %s680, %s682
    %p686 = scmp.eq.s32.totalorder %s95, 0
    %p687 = por %p685, %p686
    %p688 = scmp.ne.s32.totalorder %s680, %s682
    %p689 = scmp.eq.s32.totalorder %s100, 1
    %p690 = por %p688, %p689
    %p691 = scmp.ne.s32.totalorder %s682, %s683
    %p692 = scmp.eq.s32.totalorder %s100, 0
    %p693 = por %p691, %p692
    %p694 = scmp.ne.s32.totalorder %s682, %s683
    %p695 = scmp.eq.s32.totalorder %s101, 1
    %p696 = por %p694, %p695
    %p698 = scmp.ne.s32.totalorder %s683, %s697
    %p699 = scmp.eq.s32.totalorder %s101, 0
    %p700 = por %p698, %p699
    %s702 = sadd.s32 %s701, 1
    %p705 = scmp.eq.s32.totalorder %s95, 1
    %p706 = scmp.ne.s32.totalorder %s701, %s703
    %p707 = scmp.eq.s32.totalorder %s95, 0
    %p708 = por %p706, %p707
    %p709 = scmp.ne.s32.totalorder %s701, %s703
    %p710 = scmp.eq.s32.totalorder %s100, 1
    %p711 = por %p709, %p710
    %p712 = scmp.ne.s32.totalorder %s703, %s704
    %p713 = scmp.eq.s32.totalorder %s100, 0
    %p714 = por %p712, %p713
    %p715 = scmp.ne.s32.totalorder %s703, %s704
    %p716 = scmp.eq.s32.totalorder %s101, 1
    %p717 = por %p715, %p716
    %p719 = scmp.ne.s32.totalorder %s704, %s718
    %p720 = scmp.eq.s32.totalorder %s101, 0
    %p721 = por %p719, %p720
    %s723 = sadd.s32 %s722, 1
    %p726 = scmp.eq.s32.totalorder %s95, 1
    %p727 = scmp.ne.s32.totalorder %s722, %s724
    %p728 = scmp.eq.s32.totalorder %s95, 0
    %p729 = por %p727, %p728
    %p730 = scmp.ne.s32.totalorder %s722, %s724
    %p731 = scmp.eq.s32.totalorder %s100, 1
    %p732 = por %p730, %p731
    %p733 = scmp.ne.s32.totalorder %s724, %s725
    %p734 = scmp.eq.s32.totalorder %s100, 0
    %p735 = por %p733, %p734
    %p736 = scmp.ne.s32.totalorder %s724, %s725
    %p737 = scmp.eq.s32.totalorder %s101, 1
    %p738 = por %p736, %p737
    %p740 = scmp.ne.s32.totalorder %s725, %s739
    %p741 = scmp.eq.s32.totalorder %s101, 0
    %p742 = por %p740, %p741
    %s744 = sadd.s32 %s743, 1
    %p747 = scmp.eq.s32.totalorder %s95, 1
    %p748 = scmp.ne.s32.totalorder %s743, %s745
    %p749 = scmp.eq.s32.totalorder %s95, 0
    %p750 = por %p748, %p749
    %p751 = scmp.ne.s32.totalorder %s743, %s745
    %p752 = scmp.eq.s32.totalorder %s100, 1
    %p753 = por %p751, %p752
    %p754 = scmp.ne.s32.totalorder %s745, %s746
    %p755 = scmp.eq.s32.totalorder %s100, 0
    %p756 = por %p754, %p755
    %p757 = scmp.ne.s32.totalorder %s745, %s746
    %p758 = scmp.eq.s32.totalorder %s101, 1
    %p759 = por %p757, %p758
    %p761 = scmp.ne.s32.totalorder %s746, %s760
    %p762 = scmp.eq.s32.totalorder %s101, 0
    %p763 = por %p761, %p762
    %s765 = sadd.s32 %s764, 1
    %p768 = scmp.eq.s32.totalorder %s95, 1
    %p769 = scmp.ne.s32.totalorder %s764, %s766
    %p770 = scmp.eq.s32.totalorder %s95, 0
    %p771 = por %p769, %p770
    %p772 = scmp.ne.s32.totalorder %s764, %s766
    %p773 = scmp.eq.s32.totalorder %s100, 1
    %p774 = por %p772, %p773
    %p775 = scmp.ne.s32.totalorder %s766, %s767
    %p776 = scmp.eq.s32.totalorder %s100, 0
    %p777 = por %p775, %p776
    %p778 = scmp.ne.s32.totalorder %s766, %s767
    %p779 = scmp.eq.s32.totalorder %s101, 1
    %p780 = por %p778, %p779
    %p782 = scmp.ne.s32.totalorder %s767, %s781
    %p783 = scmp.eq.s32.totalorder %s101, 0
    %p784 = por %p782, %p783
    %s786 = sadd.s32 %s785, 1
    %p789 = scmp.eq.s32.totalorder %s95, 1
    %p790 = scmp.ne.s32.totalorder %s785, %s787
    %p791 = scmp.eq.s32.totalorder %s95, 0
    %p792 = por %p790, %p791
    %p793 = scmp.ne.s32.totalorder %s785, %s787
    %p794 = scmp.eq.s32.totalorder %s100, 1
    %p795 = por %p793, %p794
    %p796 = scmp.ne.s32.totalorder %s787, %s788
    %p797 = scmp.eq.s32.totalorder %s100, 0
    %p798 = por %p796, %p797
    %p799 = scmp.ne.s32.totalorder %s787, %s788
    %p800 = scmp.eq.s32.totalorder %s101, 1
    %p801 = por %p799, %p800
    %p803 = scmp.ne.s32.totalorder %s788, %s802
    %p804 = scmp.eq.s32.totalorder %s101, 0
    %p805 = por %p803, %p804
    %s807 = sadd.s32 %s806, 1
    %p810 = scmp.eq.s32.totalorder %s95, 1
    %p811 = scmp.ne.s32.totalorder %s806, %s808
    %p812 = scmp.eq.s32.totalorder %s95, 0
    %p813 = por %p811, %p812
    %p814 = scmp.ne.s32.totalorder %s806, %s808
    %p815 = scmp.eq.s32.totalorder %s100, 1
    %p816 = por %p814, %p815
    %p817 = scmp.ne.s32.totalorder %s808, %s809
    %p818 = scmp.eq.s32.totalorder %s100, 0
    %p819 = por %p817, %p818
    %p820 = scmp.ne.s32.totalorder %s808, %s809
    %p821 = scmp.eq.s32.totalorder %s101, 1
    %p822 = por %p820, %p821
    %p824 = scmp.ne.s32.totalorder %s809, %s823
    %p825 = scmp.eq.s32.totalorder %s101, 0
    %p826 = por %p824, %p825
    %s828 = sadd.s32 %s827, 1
    %p831 = scmp.eq.s32.totalorder %s95, 1
    %p832 = scmp.ne.s32.totalorder %s827, %s829
    %p833 = scmp.eq.s32.totalorder %s95, 0
    %p834 = por %p832, %p833
    %p835 = scmp.ne.s32.totalorder %s827, %s829
    %p836 = scmp.eq.s32.totalorder %s100, 1
    %p837 = por %p835, %p836
    %p838 = scmp.ne.s32.totalorder %s829, %s830
    %p839 = scmp.eq.s32.totalorder %s100, 0
    %p840 = por %p838, %p839
    %p841 = scmp.ne.s32.totalorder %s829, %s830
    %p842 = scmp.eq.s32.totalorder %s101, 1
    %p843 = por %p841, %p842
    %p845 = scmp.ne.s32.totalorder %s830, %s844
    %p846 = scmp.eq.s32.totalorder %s101, 0
    %p847 = por %p845, %p846
    %s849 = sadd.s32 %s848, 1
    %p852 = scmp.eq.s32.totalorder %s95, 1
    %p853 = scmp.ne.s32.totalorder %s848, %s850
    %p854 = scmp.eq.s32.totalorder %s95, 0
    %p855 = por %p853, %p854
    %p856 = scmp.ne.s32.totalorder %s848, %s850
    %p857 = scmp.eq.s32.totalorder %s100, 1
    %p858 = por %p856, %p857
    %p859 = scmp.ne.s32.totalorder %s850, %s851
    %p860 = scmp.eq.s32.totalorder %s100, 0
    %p861 = por %p859, %p860
    %p862 = scmp.ne.s32.totalorder %s850, %s851
    %p863 = scmp.eq.s32.totalorder %s101, 1
    %p864 = por %p862, %p863
    %p866 = scmp.ne.s32.totalorder %s851, %s865
    %p867 = scmp.eq.s32.totalorder %s101, 0
    %p868 = por %p866, %p867
    %s870 = sadd.s32 %s869, 1
    %p873 = scmp.eq.s32.totalorder %s95, 1
    %p874 = scmp.ne.s32.totalorder %s869, %s871
    %p875 = scmp.eq.s32.totalorder %s95, 0
    %p876 = por %p874, %p875
    %p877 = scmp.ne.s32.totalorder %s869, %s871
    %p878 = scmp.eq.s32.totalorder %s100, 1
    %p879 = por %p877, %p878
    %p880 = scmp.ne.s32.totalorder %s871, %s872
    %p881 = scmp.eq.s32.totalorder %s100, 0
    %p882 = por %p880, %p881
    %p883 = scmp.ne.s32.totalorder %s871, %s872
    %p884 = scmp.eq.s32.totalorder %s101, 1
    %p885 = por %p883, %p884
    %p887 = scmp.ne.s32.totalorder %s872, %s886
    %p888 = scmp.eq.s32.totalorder %s101, 0
    %p889 = por %p887, %p888
    %s891 = sadd.s32 %s890, 1
    %p894 = scmp.eq.s32.totalorder %s95, 1
    %p895 = scmp.ne.s32.totalorder %s890, %s892
    %p896 = scmp.eq.s32.totalorder %s95, 0
    %p897 = por %p895, %p896
    %p898 = scmp.ne.s32.totalorder %s890, %s892
    %p899 = scmp.eq.s32.totalorder %s100, 1
    %p900 = por %p898, %p899
    %p901 = scmp.ne.s32.totalorder %s892, %s893
    %p902 = scmp.eq.s32.totalorder %s100, 0
    %p903 = por %p901, %p902
    %p904 = scmp.ne.s32.totalorder %s892, %s893
    %p905 = scmp.eq.s32.totalorder %s101, 1
    %p906 = por %p904, %p905
    %p908 = scmp.ne.s32.totalorder %s893, %s907
    %p909 = scmp.eq.s32.totalorder %s101, 0
    %p910 = por %p908, %p909
    %s912 = sadd.s32 %s911, 1
    %p915 = scmp.eq.s32.totalorder %s95, 1
    %p916 = scmp.ne.s32.totalorder %s911, %s913
    %p917 = scmp.eq.s32.totalorder %s95, 0
    %p918 = por %p916, %p917
    %p919 = scmp.ne.s32.totalorder %s911, %s913
    %p920 = scmp.eq.s32.totalorder %s100, 1
    %p921 = por %p919, %p920
    %p922 = scmp.ne.s32.totalorder %s913, %s914
    %p923 = scmp.eq.s32.totalorder %s100, 0
    %p924 = por %p922, %p923
    %p925 = scmp.ne.s32.totalorder %s913, %s914
    %p926 = scmp.eq.s32.totalorder %s101, 1
    %p927 = por %p925, %p926
    %p929 = scmp.ne.s32.totalorder %s914, %s928
    %p930 = scmp.eq.s32.totalorder %s101, 0
    %p931 = por %p929, %p930
    %s933 = sadd.s32 %s932, 1
    %p936 = scmp.eq.s32.totalorder %s95, 1
    %p937 = scmp.ne.s32.totalorder %s932, %s934
    %p938 = scmp.eq.s32.totalorder %s95, 0
    %p939 = por %p937, %p938
    %p940 = scmp.ne.s32.totalorder %s932, %s934
    %p941 = scmp.eq.s32.totalorder %s100, 1
    %p942 = por %p940, %p941
    %p943 = scmp.ne.s32.totalorder %s934, %s935
    %p944 = scmp.eq.s32.totalorder %s100, 0
    %p945 = por %p943, %p944
    %p946 = scmp.ne.s32.totalorder %s934, %s935
    %p947 = scmp.eq.s32.totalorder %s101, 1
    %p948 = por %p946, %p947
    %p950 = scmp.ne.s32.totalorder %s935, %s949
    %p951 = scmp.eq.s32.totalorder %s101, 0
    %p952 = por %p950, %p951
    %s954 = sadd.s32 %s953, 1
    %p957 = scmp.eq.s32.totalorder %s95, 1
    %p958 = scmp.ne.s32.totalorder %s953, %s955
    %p959 = scmp.eq.s32.totalorder %s95, 0
    %p960 = por %p958, %p959
    %p961 = scmp.ne.s32.totalorder %s953, %s955
    %p962 = scmp.eq.s32.totalorder %s100, 1
    %p963 = por %p961, %p962
    %p964 = scmp.ne.s32.totalorder %s955, %s956
    %p965 = scmp.eq.s32.totalorder %s100, 0
    %p966 = por %p964, %p965
    %p967 = scmp.ne.s32.totalorder %s955, %s956
    %p968 = scmp.eq.s32.totalorder %s101, 1
    %p969 = por %p967, %p968
    %p971 = scmp.ne.s32.totalorder %s956, %s970
    %p972 = scmp.eq.s32.totalorder %s101, 0
    %p973 = por %p971, %p972
    %s975 = sadd.s32 %s974, 1
    %p978 = scmp.eq.s32.totalorder %s95, 1
    %p979 = scmp.ne.s32.totalorder %s974, %s976
    %p980 = scmp.eq.s32.totalorder %s95, 0
    %p981 = por %p979, %p980
    %p982 = scmp.ne.s32.totalorder %s974, %s976
    %p983 = scmp.eq.s32.totalorder %s100, 1
    %p984 = por %p982, %p983
    %p985 = scmp.ne.s32.totalorder %s976, %s977
    %p986 = scmp.eq.s32.totalorder %s100, 0
    %p987 = por %p985, %p986
    %p988 = scmp.ne.s32.totalorder %s976, %s977
    %p989 = scmp.eq.s32.totalorder %s101, 1
    %p990 = por %p988, %p989
    %p992 = scmp.ne.s32.totalorder %s977, %s991
    %p993 = scmp.eq.s32.totalorder %s101, 0
    %p994 = por %p992, %p993
    %s996 = sadd.s32 %s995, 1
    %p999 = scmp.eq.s32.totalorder %s95, 1
    %p1000 = scmp.ne.s32.totalorder %s995, %s997
    %p1001 = scmp.eq.s32.totalorder %s95, 0
    %p1002 = por %p1000, %p1001
    %p1003 = scmp.ne.s32.totalorder %s995, %s997
    %p1004 = scmp.eq.s32.totalorder %s100, 1
    %p1005 = por %p1003, %p1004
    %p1006 = scmp.ne.s32.totalorder %s997, %s998
    %p1007 = scmp.eq.s32.totalorder %s100, 0
    %p1008 = por %p1006, %p1007
    %p1009 = scmp.ne.s32.totalorder %s997, %s998
    %p1010 = scmp.eq.s32.totalorder %s101, 1
    %p1011 = por %p1009, %p1010
    %p1013 = scmp.ne.s32.totalorder %s998, %s1012
    %p1014 = scmp.eq.s32.totalorder %s101, 0
    %p1015 = por %p1013, %p1014
    %s1017 = sadd.s32 %s1016, 1
    %p1020 = scmp.eq.s32.totalorder %s95, 1
    %p1021 = scmp.ne.s32.totalorder %s1016, %s1018
    %p1022 = scmp.eq.s32.totalorder %s95, 0
    %p1023 = por %p1021, %p1022
    %p1024 = scmp.ne.s32.totalorder %s1016, %s1018
    %p1025 = scmp.eq.s32.totalorder %s100, 1
    %p1026 = por %p1024, %p1025
    %p1027 = scmp.ne.s32.totalorder %s1018, %s1019
    %p1028 = scmp.eq.s32.totalorder %s100, 0
    %p1029 = por %p1027, %p1028
    %p1030 = scmp.ne.s32.totalorder %s1018, %s1019
    %p1031 = scmp.eq.s32.totalorder %s101, 1
    %p1032 = por %p1030, %p1031
    %p1034 = scmp.ne.s32.totalorder %s1019, %s1033
    %p1035 = scmp.eq.s32.totalorder %s101, 0
    %p1036 = por %p1034, %p1035
    %s1037 = ssub.s32 %s95, %s102
    %p1038 = scmp.eq.s32.totalorder %s1037, 0
    %s1040 = sadd.s32 %s1039, 1
    %s1041 = scalar_select %p1038, %s1039, %s1040
    %p1044 = pneg %p1038
    %p1045 = scmp.eq.s32.totalorder %s95, 1
    %p1046 = por %p1044, %p1045
    %p1047 = scmp.ne.s32.totalorder %s1039, %s1042
    %p1048 = scmp.eq.s32.totalorder %s95, 0
    %p1049 = por %p1047, %p1048
    %p1050 = scmp.ne.s32.totalorder %s1039, %s1042
    %p1051 = scmp.eq.s32.totalorder %s100, 1
    %p1052 = por %p1050, %p1051
    %p1053 = scmp.ne.s32.totalorder %s1042, %s1043
    %p1054 = scmp.eq.s32.totalorder %s100, 0
    %p1055 = por %p1053, %p1054
    %p1056 = scmp.ne.s32.totalorder %s1042, %s1043
    %p1057 = scmp.eq.s32.totalorder %s101, 1
    %p1058 = por %p1056, %p1057
    %p1060 = scmp.ne.s32.totalorder %s1043, %s1059
    %p1061 = scmp.eq.s32.totalorder %s101, 0
    %p1062 = por %p1060, %p1061
    %p1063 = scmp.le.s32.totalorder 1, %s95
    %p1064 = scmp.lt.s32.totalorder %s95, 3
    %p1065 = pnand %p1063, %p1064
    %p1066 = pneg %p1065
    // Predicated region
    $region9: #{gnn_forward.1} parent=5 // pred_check
      _
    $region10: #{gnn_forward.1} parent=5 // pred_check_branch
      %1068 = sbr.rel (%p1065) target = $region12
    $region11: #{gnn_forward.1} parent=5 // pred_region
      %s1069 = ssub.s32 %s95, 1
      // Predicated region
      $region13: #{gnn_forward.1} parent=11 // pred_check
        %p1070 = pneg %p168
      $region14: #{gnn_forward.1} parent=11 // pred_check_branch
        %1072 = sbr.rel (%p1070) target = $region16
      $region15: #{gnn_forward.1} parent=11 // pred_region
        _
      $region16: #{gnn_forward.1} parent=11 // pred_fallthru
        _
      // Predicated region
      $region17: #{gnn_forward.1} parent=11 // pred_check
        %p1073 = pneg %p189
      $region18: #{gnn_forward.1} parent=11 // pred_check_branch
        %1075 = sbr.rel (%p1073) target = $region20
      $region19: #{gnn_forward.1} parent=11 // pred_region
        _
      $region20: #{gnn_forward.1} parent=11 // pred_fallthru
        _
      // Predicated region
      $region21: #{gnn_forward.1} parent=11 // pred_check
        %p1076 = pneg %p210
      $region22: #{gnn_forward.1} parent=11 // pred_check_branch
        %1078 = sbr.rel (%p1076) target = $region24
      $region23: #{gnn_forward.1} parent=11 // pred_region
        _
      $region24: #{gnn_forward.1} parent=11 // pred_fallthru
        _
      // Predicated region
      $region25: #{gnn_forward.1} parent=11 // pred_check
        %p1079 = pneg %p231
      $region26: #{gnn_forward.1} parent=11 // pred_check_branch
        %1081 = sbr.rel (%p1079) target = $region28
      $region27: #{gnn_forward.1} parent=11 // pred_region
        _
      $region28: #{gnn_forward.1} parent=11 // pred_fallthru
        _
      // Predicated region
      $region29: #{gnn_forward.1} parent=11 // pred_check
        %p1082 = pneg %p252
      $region30: #{gnn_forward.1} parent=11 // pred_check_branch
        %1084 = sbr.rel (%p1082) target = $region32
      $region31: #{gnn_forward.1} parent=11 // pred_region
        _
      $region32: #{gnn_forward.1} parent=11 // pred_fallthru
        _
      // Predicated region
      $region33: #{gnn_forward.1} parent=11 // pred_check
        %p1085 = pneg %p273
      $region34: #{gnn_forward.1} parent=11 // pred_check_branch
        %1087 = sbr.rel (%p1085) target = $region36
      $region35: #{gnn_forward.1} parent=11 // pred_region
        _
      $region36: #{gnn_forward.1} parent=11 // pred_fallthru
        _
      // Predicated region
      $region37: #{gnn_forward.1} parent=11 // pred_check
        %p1088 = pneg %p294
      $region38: #{gnn_forward.1} parent=11 // pred_check_branch
        %1090 = sbr.rel (%p1088) target = $region40
      $region39: #{gnn_forward.1} parent=11 // pred_region
        _
      $region40: #{gnn_forward.1} parent=11 // pred_fallthru
        _
      // Predicated region
      $region41: #{gnn_forward.1} parent=11 // pred_check
        %p1091 = pneg %p315
      $region42: #{gnn_forward.1} parent=11 // pred_check_branch
        %1093 = sbr.rel (%p1091) target = $region44
      $region43: #{gnn_forward.1} parent=11 // pred_region
        _
      $region44: #{gnn_forward.1} parent=11 // pred_fallthru
        _
      // Predicated region
      $region45: #{gnn_forward.1} parent=11 // pred_check
        %p1094 = pneg %p336
      $region46: #{gnn_forward.1} parent=11 // pred_check_branch
        %1096 = sbr.rel (%p1094) target = $region48
      $region47: #{gnn_forward.1} parent=11 // pred_region
        _
      $region48: #{gnn_forward.1} parent=11 // pred_fallthru
        _
      // Predicated region
      $region49: #{gnn_forward.1} parent=11 // pred_check
        %p1097 = pneg %p357
      $region50: #{gnn_forward.1} parent=11 // pred_check_branch
        %1099 = sbr.rel (%p1097) target = $region52
      $region51: #{gnn_forward.1} parent=11 // pred_region
        _
      $region52: #{gnn_forward.1} parent=11 // pred_fallthru
        _
      // Predicated region
      $region53: #{gnn_forward.1} parent=11 // pred_check
        %p1100 = pneg %p378
      $region54: #{gnn_forward.1} parent=11 // pred_check_branch
        %1102 = sbr.rel (%p1100) target = $region56
      $region55: #{gnn_forward.1} parent=11 // pred_region
        _
      $region56: #{gnn_forward.1} parent=11 // pred_fallthru
        _
      // Predicated region
      $region57: #{gnn_forward.1} parent=11 // pred_check
        %p1103 = pneg %p399
      $region58: #{gnn_forward.1} parent=11 // pred_check_branch
        %1105 = sbr.rel (%p1103) target = $region60
      $region59: #{gnn_forward.1} parent=11 // pred_region
        _
      $region60: #{gnn_forward.1} parent=11 // pred_fallthru
        _
      // Predicated region
      $region61: #{gnn_forward.1} parent=11 // pred_check
        %p1106 = pneg %p420
      $region62: #{gnn_forward.1} parent=11 // pred_check_branch
        %1108 = sbr.rel (%p1106) target = $region64
      $region63: #{gnn_forward.1} parent=11 // pred_region
        _
      $region64: #{gnn_forward.1} parent=11 // pred_fallthru
        _
      // Predicated region
      $region65: #{gnn_forward.1} parent=11 // pred_check
        %p1109 = pneg %p441
      $region66: #{gnn_forward.1} parent=11 // pred_check_branch
        %1111 = sbr.rel (%p1109) target = $region68
      $region67: #{gnn_forward.1} parent=11 // pred_region
        _
      $region68: #{gnn_forward.1} parent=11 // pred_fallthru
        _
      // Predicated region
      $region69: #{gnn_forward.1} parent=11 // pred_check
        %p1112 = pneg %p462
      $region70: #{gnn_forward.1} parent=11 // pred_check_branch
        %1114 = sbr.rel (%p1112) target = $region72
      $region71: #{gnn_forward.1} parent=11 // pred_region
        _
      $region72: #{gnn_forward.1} parent=11 // pred_fallthru
        _
      // Predicated region
      $region73: #{gnn_forward.1} parent=11 // pred_check
        %p1115 = pneg %p483
      $region74: #{gnn_forward.1} parent=11 // pred_check_branch
        %1117 = sbr.rel (%p1115) target = $region76
      $region75: #{gnn_forward.1} parent=11 // pred_region
        _
      $region76: #{gnn_forward.1} parent=11 // pred_fallthru
        _
      // Predicated region
      $region77: #{gnn_forward.1} parent=11 // pred_check
        %p1118 = pneg %p504
      $region78: #{gnn_forward.1} parent=11 // pred_check_branch
        %1120 = sbr.rel (%p1118) target = $region80
      $region79: #{gnn_forward.1} parent=11 // pred_region
        _
      $region80: #{gnn_forward.1} parent=11 // pred_fallthru
        _
      // Predicated region
      $region81: #{gnn_forward.1} parent=11 // pred_check
        %p1121 = pneg %p525
      $region82: #{gnn_forward.1} parent=11 // pred_check_branch
        %1123 = sbr.rel (%p1121) target = $region84
      $region83: #{gnn_forward.1} parent=11 // pred_region
        _
      $region84: #{gnn_forward.1} parent=11 // pred_fallthru
        _
      // Predicated region
      $region85: #{gnn_forward.1} parent=11 // pred_check
        %p1124 = pneg %p546
      $region86: #{gnn_forward.1} parent=11 // pred_check_branch
        %1126 = sbr.rel (%p1124) target = $region88
      $region87: #{gnn_forward.1} parent=11 // pred_region
        _
      $region88: #{gnn_forward.1} parent=11 // pred_fallthru
        _
      // Predicated region
      $region89: #{gnn_forward.1} parent=11 // pred_check
        %p1127 = pneg %p567
      $region90: #{gnn_forward.1} parent=11 // pred_check_branch
        %1129 = sbr.rel (%p1127) target = $region92
      $region91: #{gnn_forward.1} parent=11 // pred_region
        _
      $region92: #{gnn_forward.1} parent=11 // pred_fallthru
        _
      // Predicated region
      $region93: #{gnn_forward.1} parent=11 // pred_check
        %p1130 = pneg %p588
      $region94: #{gnn_forward.1} parent=11 // pred_check_branch
        %1132 = sbr.rel (%p1130) target = $region96
      $region95: #{gnn_forward.1} parent=11 // pred_region
        _
      $region96: #{gnn_forward.1} parent=11 // pred_fallthru
        _
      // Predicated region
      $region97: #{gnn_forward.1} parent=11 // pred_check
        %p1133 = pneg %p609
      $region98: #{gnn_forward.1} parent=11 // pred_check_branch
        %1135 = sbr.rel (%p1133) target = $region100
      $region99: #{gnn_forward.1} parent=11 // pred_region
        _
      $region100: #{gnn_forward.1} parent=11 // pred_fallthru
        _
      // Predicated region
      $region101: #{gnn_forward.1} parent=11 // pred_check
        %p1136 = pneg %p630
      $region102: #{gnn_forward.1} parent=11 // pred_check_branch
        %1138 = sbr.rel (%p1136) target = $region104
      $region103: #{gnn_forward.1} parent=11 // pred_region
        _
      $region104: #{gnn_forward.1} parent=11 // pred_fallthru
        _
      // Predicated region
      $region105: #{gnn_forward.1} parent=11 // pred_check
        %p1139 = pneg %p651
      $region106: #{gnn_forward.1} parent=11 // pred_check_branch
        %1141 = sbr.rel (%p1139) target = $region108
      $region107: #{gnn_forward.1} parent=11 // pred_region
        _
      $region108: #{gnn_forward.1} parent=11 // pred_fallthru
        _
      // Predicated region
      $region109: #{gnn_forward.1} parent=11 // pred_check
        %p1142 = pneg %p672
      $region110: #{gnn_forward.1} parent=11 // pred_check_branch
        %1144 = sbr.rel (%p1142) target = $region112
      $region111: #{gnn_forward.1} parent=11 // pred_region
        _
      $region112: #{gnn_forward.1} parent=11 // pred_fallthru
        _
      // Predicated region
      $region113: #{gnn_forward.1} parent=11 // pred_check
        %p1145 = pneg %p693
      $region114: #{gnn_forward.1} parent=11 // pred_check_branch
        %1147 = sbr.rel (%p1145) target = $region116
      $region115: #{gnn_forward.1} parent=11 // pred_region
        _
      $region116: #{gnn_forward.1} parent=11 // pred_fallthru
        _
      // Predicated region
      $region117: #{gnn_forward.1} parent=11 // pred_check
        %p1148 = pneg %p714
      $region118: #{gnn_forward.1} parent=11 // pred_check_branch
        %1150 = sbr.rel (%p1148) target = $region120
      $region119: #{gnn_forward.1} parent=11 // pred_region
        _
      $region120: #{gnn_forward.1} parent=11 // pred_fallthru
        _
      // Predicated region
      $region121: #{gnn_forward.1} parent=11 // pred_check
        %p1151 = pneg %p735
      $region122: #{gnn_forward.1} parent=11 // pred_check_branch
        %1153 = sbr.rel (%p1151) target = $region124
      $region123: #{gnn_forward.1} parent=11 // pred_region
        _
      $region124: #{gnn_forward.1} parent=11 // pred_fallthru
        _
      // Predicated region
      $region125: #{gnn_forward.1} parent=11 // pred_check
        %p1154 = pneg %p756
      $region126: #{gnn_forward.1} parent=11 // pred_check_branch
        %1156 = sbr.rel (%p1154) target = $region128
      $region127: #{gnn_forward.1} parent=11 // pred_region
        _
      $region128: #{gnn_forward.1} parent=11 // pred_fallthru
        _
      // Predicated region
      $region129: #{gnn_forward.1} parent=11 // pred_check
        %p1157 = pneg %p777
      $region130: #{gnn_forward.1} parent=11 // pred_check_branch
        %1159 = sbr.rel (%p1157) target = $region132
      $region131: #{gnn_forward.1} parent=11 // pred_region
        _
      $region132: #{gnn_forward.1} parent=11 // pred_fallthru
        _
      // Predicated region
      $region133: #{gnn_forward.1} parent=11 // pred_check
        %p1160 = pneg %p798
      $region134: #{gnn_forward.1} parent=11 // pred_check_branch
        %1162 = sbr.rel (%p1160) target = $region136
      $region135: #{gnn_forward.1} parent=11 // pred_region
        _
      $region136: #{gnn_forward.1} parent=11 // pred_fallthru
        _
      // Predicated region
      $region137: #{gnn_forward.1} parent=11 // pred_check
        %p1163 = pneg %p819
      $region138: #{gnn_forward.1} parent=11 // pred_check_branch
        %1165 = sbr.rel (%p1163) target = $region140
      $region139: #{gnn_forward.1} parent=11 // pred_region
        _
      $region140: #{gnn_forward.1} parent=11 // pred_fallthru
        _
      // Predicated region
      $region141: #{gnn_forward.1} parent=11 // pred_check
        %p1166 = pneg %p840
      $region142: #{gnn_forward.1} parent=11 // pred_check_branch
        %1168 = sbr.rel (%p1166) target = $region144
      $region143: #{gnn_forward.1} parent=11 // pred_region
        _
      $region144: #{gnn_forward.1} parent=11 // pred_fallthru
        _
      // Predicated region
      $region145: #{gnn_forward.1} parent=11 // pred_check
        %p1169 = pneg %p861
      $region146: #{gnn_forward.1} parent=11 // pred_check_branch
        %1171 = sbr.rel (%p1169) target = $region148
      $region147: #{gnn_forward.1} parent=11 // pred_region
        _
      $region148: #{gnn_forward.1} parent=11 // pred_fallthru
        _
      // Predicated region
      $region149: #{gnn_forward.1} parent=11 // pred_check
        %p1172 = pneg %p882
      $region150: #{gnn_forward.1} parent=11 // pred_check_branch
        %1174 = sbr.rel (%p1172) target = $region152
      $region151: #{gnn_forward.1} parent=11 // pred_region
        _
      $region152: #{gnn_forward.1} parent=11 // pred_fallthru
        _
      // Predicated region
      $region153: #{gnn_forward.1} parent=11 // pred_check
        %p1175 = pneg %p903
      $region154: #{gnn_forward.1} parent=11 // pred_check_branch
        %1177 = sbr.rel (%p1175) target = $region156
      $region155: #{gnn_forward.1} parent=11 // pred_region
        _
      $region156: #{gnn_forward.1} parent=11 // pred_fallthru
        _
      // Predicated region
      $region157: #{gnn_forward.1} parent=11 // pred_check
        %p1178 = pneg %p924
      $region158: #{gnn_forward.1} parent=11 // pred_check_branch
        %1180 = sbr.rel (%p1178) target = $region160
      $region159: #{gnn_forward.1} parent=11 // pred_region
        _
      $region160: #{gnn_forward.1} parent=11 // pred_fallthru
        _
      // Predicated region
      $region161: #{gnn_forward.1} parent=11 // pred_check
        %p1181 = pneg %p945
      $region162: #{gnn_forward.1} parent=11 // pred_check_branch
        %1183 = sbr.rel (%p1181) target = $region164
      $region163: #{gnn_forward.1} parent=11 // pred_region
        _
      $region164: #{gnn_forward.1} parent=11 // pred_fallthru
        _
      // Predicated region
      $region165: #{gnn_forward.1} parent=11 // pred_check
        %p1184 = pneg %p966
      $region166: #{gnn_forward.1} parent=11 // pred_check_branch
        %1186 = sbr.rel (%p1184) target = $region168
      $region167: #{gnn_forward.1} parent=11 // pred_region
        _
      $region168: #{gnn_forward.1} parent=11 // pred_fallthru
        _
      // Predicated region
      $region169: #{gnn_forward.1} parent=11 // pred_check
        %p1187 = pneg %p987
      $region170: #{gnn_forward.1} parent=11 // pred_check_branch
        %1189 = sbr.rel (%p1187) target = $region172
      $region171: #{gnn_forward.1} parent=11 // pred_region
        _
      $region172: #{gnn_forward.1} parent=11 // pred_fallthru
        _
      // Predicated region
      $region173: #{gnn_forward.1} parent=11 // pred_check
        %p1190 = pneg %p1008
      $region174: #{gnn_forward.1} parent=11 // pred_check_branch
        %1192 = sbr.rel (%p1190) target = $region176
      $region175: #{gnn_forward.1} parent=11 // pred_region
        _
      $region176: #{gnn_forward.1} parent=11 // pred_fallthru
        _
      // Predicated region
      $region177: #{gnn_forward.1} parent=11 // pred_check
        %p1193 = pneg %p1029
      $region178: #{gnn_forward.1} parent=11 // pred_check_branch
        %1195 = sbr.rel (%p1193) target = $region180
      $region179: #{gnn_forward.1} parent=11 // pred_region
        _
      $region180: #{gnn_forward.1} parent=11 // pred_fallthru
        _
    $region12: #{gnn_forward.1} parent=5 // pred_fallthru
      _
    %p1196 = scmp.lt.s32.totalorder %s95, 2
    // Predicated region
    $region181: #{gnn_forward.1} parent=5 // pred_check
      %p1197 = pneg %p1196
    $region182: #{gnn_forward.1} parent=5 // pred_check_branch
      %1199 = sbr.rel (%p1197) target = $region184
    $region183: #{gnn_forward.1} parent=5 // pred_region
      // Predicated region
      $region185: #{gnn_forward.1} parent=183 // pred_check
        %p1200 = pneg %p115
      $region186: #{gnn_forward.1} parent=183 // pred_check_branch
        %1202 = sbr.rel (%p1200) target = $region188
      $region187: #{gnn_forward.1} parent=183 // pred_region
        %s1203 = smul.u32 2, %s95
        %p1204 = scmp.lt.s32.totalorder %s1203, 3
        %s1205 = scalar_select %p1204, %s1203, 3
        %s1206 = smul.addr %s1205, 8
        %s1207 = scalar_lea.vmem %s1, %s1206
        %s1208 = smul.u32 2, %s95
      $region188: #{gnn_forward.1} parent=183 // pred_fallthru
        _
      // Predicated region
      $region189: #{gnn_forward.1} parent=183 // pred_check
        %p1209 = pneg %p141
      $region190: #{gnn_forward.1} parent=183 // pred_check_branch
        %1211 = sbr.rel (%p1209) target = $region192
      $region191: #{gnn_forward.1} parent=183 // pred_region
        %s1212 = smul.u32 4, %s95
        %p1213 = scmp.lt.s32.totalorder %s1212, 7
        %s1214 = scalar_select %p1213, %s1212, 7
        %s1215 = smul.addr %s1214, 2
        %s1216 = smul.addr %s1215, 8
        %s1217 = scalar_lea.vmem %s3, %s1216
        %s1218 = smul.u32 4, %s95
      $region192: #{gnn_forward.1} parent=183 // pred_fallthru
        _
    $region184: #{gnn_forward.1} parent=5 // pred_fallthru
      _
    %p1219 = scmp.le.s32.totalorder 1, %s95
    %p1220 = scmp.lt.s32.totalorder %s95, 3
    %p1221 = pnand %p1219, %p1220
    %p1222 = pneg %p1221
    // Predicated region
    $region193: #{gnn_forward.1} parent=5 // pred_check
      _
    $region194: #{gnn_forward.1} parent=5 // pred_check_branch
      %1224 = sbr.rel (%p1221) target = $region196
    $region195: #{gnn_forward.1} parent=5 // pred_region
      %s1225 = ssub.s32 %s95, 1
      %s1226 = smul.u32 2, %s100
      %p1227 = scmp.lt.s32.totalorder %s1226, 3
      %s1228 = scalar_select %p1227, %s1226, 3
      %s1229 = smul.addr %s1228, 8
      %s1230 = scalar_lea.vmem %s1, %s1229
      %p1231 = pneg %p121
      %p1232 = pneg %p118
      %s1233 = smul.u32 4, %s100
      %p1234 = scmp.lt.s32.totalorder %s1233, 7
      %s1235 = scalar_select %p1234, %s1233, 7
      %s1236 = smul.addr %s1235, 2
      %s1237 = smul.addr %s1236, 8
      %s1238 = scalar_lea.vmem %s3, %s1237
      %p1239 = pneg %p147
      %p1240 = pneg %p144
      %p1241 = pneg %p168
      %p1242 = pneg %p165
      %p1243 = pneg %p189
      %p1244 = pneg %p186
      %p1245 = pneg %p210
      %p1246 = pneg %p207
      %p1247 = pneg %p231
      %p1248 = pneg %p228
      %p1249 = pneg %p252
      %p1250 = pneg %p249
      %p1251 = pneg %p273
      %p1252 = pneg %p270
      %p1253 = pneg %p294
      %p1254 = pneg %p291
      %p1255 = pneg %p315
      %p1256 = pneg %p312
      %p1257 = pneg %p336
      %p1258 = pneg %p333
      %p1259 = pneg %p357
      %p1260 = pneg %p354
      %p1261 = pneg %p378
      %p1262 = pneg %p375
      %p1263 = pneg %p399
      %p1264 = pneg %p396
      %p1265 = pneg %p420
      %p1266 = pneg %p417
      %p1267 = pneg %p441
      %p1268 = pneg %p438
      %p1269 = pneg %p462
      %p1270 = pneg %p459
      %p1271 = pneg %p483
      %p1272 = pneg %p480
      %p1273 = pneg %p504
      %p1274 = pneg %p501
      %p1275 = pneg %p525
      %p1276 = pneg %p522
      %p1277 = pneg %p546
      %p1278 = pneg %p543
      %p1279 = pneg %p567
      %p1280 = pneg %p564
      %p1281 = pneg %p588
      %p1282 = pneg %p585
      %p1283 = pneg %p609
      %p1284 = pneg %p606
      %p1285 = pneg %p630
      %p1286 = pneg %p627
      %p1287 = pneg %p651
      %p1288 = pneg %p648
      %p1289 = pneg %p672
      %p1290 = pneg %p669
      %p1291 = pneg %p693
      %p1292 = pneg %p690
      %p1293 = pneg %p714
      %p1294 = pneg %p711
      %p1295 = pneg %p735
      %p1296 = pneg %p732
      %p1297 = pneg %p756
      %p1298 = pneg %p753
      %p1299 = pneg %p777
      %p1300 = pneg %p774
      %p1301 = pneg %p798
      %p1302 = pneg %p795
      %p1303 = pneg %p819
      %p1304 = pneg %p816
      %p1305 = pneg %p840
      %p1306 = pneg %p837
      %p1307 = pneg %p861
      %p1308 = pneg %p858
      %p1309 = pneg %p882
      %p1310 = pneg %p879
      %p1311 = pneg %p903
      %p1312 = pneg %p900
      %p1313 = pneg %p924
      %p1314 = pneg %p921
      %p1315 = pneg %p945
      %p1316 = pneg %p942
      %p1317 = pneg %p966
      %p1318 = pneg %p963
      %p1319 = pneg %p987
      %p1320 = pneg %p984
      %p1321 = pneg %p1008
      %p1322 = pneg %p1005
      %p1323 = pneg %p1029
      %p1324 = pneg %p1026
      %p1325 = pneg %p1055
      %p1326 = pneg %p1052
      %s1327 = smul.u32 2, %s100
      %p1328 = scmp.lt.s32.totalorder %s1327, 3
      %s1329 = scalar_select %p1328, %s1327, 3
      %s1330 = smul.addr %s1329, 8
      %s1331 = scalar_lea.vmem %s89, %s1330
      %s1332 = smul.u32 2, %s100
      %p1333 = scmp.lt.s32.totalorder %s1332, 3
      %s1334 = scalar_select %p1333, %s1332, 3
      %s1335 = smul.addr %s1334, 8
      %s1336 = scalar_lea.vmem %s1, %s1335
      %s1337 = smul.u32 2, %s100
      %s1338 = smul.u32 4, %s100
      %p1339 = scmp.lt.s32.totalorder %s1338, 7
      %s1340 = scalar_select %p1339, %s1338, 7
      %s1341 = smul.addr %s1340, 2
      %s1342 = smul.addr %s1341, 8
      %s1343 = scalar_lea.vmem %s3, %s1342
      %s1344 = smul.u32 4, %s100
      %s1345 = smul.u32 2, %s100
      %p1346 = scmp.lt.s32.totalorder %s1345, 3
      %s1347 = scalar_select %p1346, %s1345, 3
      %s1348 = smul.addr %s1347, 8
      %s1349 = scalar_lea.vmem %s89, %s1348
      %s1350 = smul.u32 2, %s100
      %v1352 = vld [vmem:[%s1336] sm:$0xff]
      %v1353 = vld [vmem:[%s1336 + $0x8] sm:$0xff]
      %v1354 = vpack.c.bf16 %v1353, %v1352
      %v1355 = vld [vmem:[%s9] sm:$0xff]
      %v1356 = vld [vmem:[%s9 + $0x8] sm:$0xff]
      %v1357 = vld [vmem:[%s9 + $0x10] sm:$0x33]
      %v1358 = vld [vmem:[%s11] sm:$0x3]
      %v1360 = vlaneseq
      %v1361 = vshrl.u32 %v1360, 7
      %v1362 = vsub.s32 0, %v1361
      %v1363 = vrot.slane %v1358, %v1362
      %v1364 = vlaneseq
      %v1365 = vshrl.u32 %v1364, 7
      %v1366 = vsub.s32 1, %v1365
      %v1367 = vrot.slane %v1358, %v1366
      %v1373 = vunpack.c.l.b16 %v1355
      %v1374 = vunpack.c.h.b16 %v1355
      %v1375 = vunpack.c.l.b16 %v1356
      %v1376 = vunpack.c.h.b16 %v1356
      %v1377 = vunpack.c.l.b16 %v1357
      %v1378 = vunpack.c.h.b16 %v1357
      %v1379 = vpack.c.b16 %v1375, %v1373
      %v1380 = vpack.c.b16 %v1376, %v1374
      %v1381 = vpack.c.b16 %v1377, %v1377
      %v1382 = vpack.c.b16 %v1378, %v1378
      %vm1385 = vcmask 162816
      %v1387 = vsel %vm1385, %v1354, 0
      %vm1389 = vcmask 1041408
      %v1391 = vsel %vm1389, %v1381, 0
      %v1394 = vsel %vm1389, %v1382, 0
      %1396 = vmatprep.subr.bf16.mxu0 0
      %1397 = vmatpush1.bf16.msra.mxu0 0
      %1398 = vmatprep.subr.bf16.mxu0 0
      %1399 = vmatpush1.bf16.msra.mxu0 0
      %1400 = vmatprep.subr.bf16.mxu0 0
      %1401 = vmatpush1.bf16.msra.mxu0 0
      %1402 = vmatprep.subr.bf16.mxu0 0
      %1403 = vmatpush1.bf16.msra.mxu0 0
      %1404 = vmatprep.subr.bf16.mxu0 0
      %1405 = vmatpush1.bf16.msra.mxu0 0
      %1406 = vmatprep.subr.bf16.mxu0 0
      %1407 = vmatpush1.bf16.msra.mxu0 0
      %1408 = vmatprep.subr.bf16.mxu0 %v1394
      %1409 = vmatpush1.bf16.msra.mxu0 %v1391
      %1410 = vmatprep.subr.bf16.mxu0 %v1380
      %1411 = vmatpush1.bf16.msra.mxu0 %v1379
      %1412 = vmatprep.subr.bf16.mxu0 0
      %1413 = vmatpush2.bf16.msra.mxu0 0
      %1414 = vmatprep.subr.bf16.mxu0 0
      %1415 = vmatpush2.bf16.msra.mxu0 0
      %1416 = vmatprep.subr.bf16.mxu0 0
      %1417 = vmatpush2.bf16.msra.mxu0 0
      %1418 = vmatprep.subr.bf16.mxu0 0
      %1419 = vmatpush2.bf16.msra.mxu0 0
      %1420 = vmatprep.subr.bf16.mxu0 0
      %1421 = vmatpush2.bf16.msra.mxu0 0
      %1422 = vmatprep.subr.bf16.mxu0 0
      %1423 = vmatpush2.bf16.msra.mxu0 0
      %1424 = vmatprep.subr.bf16.mxu0 0
      %1425 = vmatpush2.bf16.msra.mxu0 0
      %1426 = vmatprep.subr.bf16.mxu0 0
      %1427 = vmatpush2.bf16.msra.mxu0 0
      %1428 = vmatprep.mubr.bf16.mxu0 0
      %1429 = vmatmul.mubr.bf16.gmra.mxu0 %v1387
      %v1430 = vpop.f32.mrf.mxu0
      %v1431 = vadd.f32 %v1363, %v1430
      %v1432 = vpop.f32.mrf.mxu0
      %v1433 = vadd.f32 %v1367, %v1432
      %v1434 = vpop.f32.mrf.mxu0
      %v1435 = vadd.f32 %v1363, %v1434
      %v1436 = vpop.f32.mrf.mxu0
      %v1437 = vadd.f32 %v1367, %v1436
      %1438 = vdwg.mxu0
      %v1439 = vadd.f32 %v1431, %v1433
      %1440 = vadd.xlane.f32.xlu0 %v1439
      %v1441 = vpop.xlane.xlu0 %1440
      %v1442 = vadd.f32 %v1435, %v1437
      %1443 = vadd.xlane.f32.xlu0 %v1442
      %v1444 = vpop.xlane.xlu0 %1443
      %v1445 = vrcp.pop 256.0
      %v1446 = vmul.f32 %v1441, %v1445
      %v1447 = vmul.f32 %v1444, %v1445
      %v1448 = vsub.f32 %v1431, %v1446
      %v1449 = vsub.f32 %v1433, %v1446
      %v1450 = vsub.f32 %v1435, %v1447
      %v1451 = vsub.f32 %v1437, %v1447
      %v1452 = vmul.f32 %v1448, %v1448
      %v1453 = vmul.f32 %v1449, %v1449
      %v1454 = vmul.f32 %v1450, %v1450
      %v1455 = vmul.f32 %v1451, %v1451
      %v1456 = vadd.f32 %v1452, %v1453
      %1457 = vadd.xlane.f32.xlu0 %v1456
      %v1458 = vpop.xlane.xlu0 %1457
      %v1459 = vadd.f32 %v1454, %v1455
      %1460 = vadd.xlane.f32.xlu0 %v1459
      %v1461 = vpop.xlane.xlu0 %1460
      %v1462 = vmul.f32 %v1458, %v1445
      %v1463 = vmul.f32 %v1461, %v1445
      %v1464 = vadd.f32 %v1462, 1e-05
      %v1465 = vadd.f32 %v1463, 1e-05
      %v1466 = vrsqrt.pop %v1464
      %v1467 = vrsqrt.pop %v1465
      %v1468 = vmul.f32 %v1448, %v1466
      %v1469 = vmul.f32 %v1449, %v1466
      %v1470 = vmul.f32 %v1450, %v1467
      %v1471 = vmul.f32 %v1451, %v1467
      %v1472 = vld [vmem:[%s13] sm:$0x3]
      %v1474 = vlaneseq
      %v1475 = vshrl.u32 %v1474, 7
      %v1476 = vsub.s32 0, %v1475
      %v1477 = vrot.slane %v1472, %v1476
      %v1478 = vlaneseq
      %v1479 = vshrl.u32 %v1478, 7
      %v1480 = vsub.s32 1, %v1479
      %v1481 = vrot.slane %v1472, %v1480
      %v1484 = vmul.f32 %v1468, %v1477
      %v1485 = vmul.f32 %v1469, %v1481
      %v1486 = vmul.f32 %v1470, %v1477
      %v1487 = vmul.f32 %v1471, %v1481
      %v1488 = vld [vmem:[%s15] sm:$0x3]
      %v1490 = vlaneseq
      %v1491 = vshrl.u32 %v1490, 7
      %v1492 = vsub.s32 0, %v1491
      %v1493 = vrot.slane %v1488, %v1492
      %v1494 = vlaneseq
      %v1495 = vshrl.u32 %v1494, 7
      %v1496 = vsub.s32 1, %v1495
      %v1497 = vrot.slane %v1488, %v1496
      %v1500 = vadd.f32 %v1484, %v1493
      %v1501 = vadd.f32 %v1485, %v1497
      %v1502 = vadd.f32 %v1486, %v1493
      %v1503 = vadd.f32 %v1487, %v1497
      %v1504 = vmax.f32 %v1500, 0.0
      %v1505 = vmax.f32 %v1501, 0.0
      %v1506 = vmax.f32 %v1502, 0.0
      %v1507 = vmax.f32 %v1503, 0.0
      %v1508 = vpack.c.bf16 %v1506, %v1504
      %v1509 = vpack.c.bf16 %v1507, %v1505
      %v1510 = vld [vmem:[%s17] sm:$0xff]
      %v1511 = vld [vmem:[%s17 + $0x8] sm:$0xff]
      %v1512 = vld [vmem:[%s17 + $0x10] sm:$0xff]
      %v1513 = vld [vmem:[%s17 + $0x18] sm:$0xff]
      %v1514 = vld [vmem:[%s17 + $0x20] sm:$0xff]
      %v1515 = vld [vmem:[%s17 + $0x28] sm:$0xff]
      %v1516 = vld [vmem:[%s17 + $0x30] sm:$0xff]
      %v1517 = vld [vmem:[%s17 + $0x38] sm:$0xff]
      %v1518 = vld [vmem:[%s17 + $0x40] sm:$0xff]
      %v1519 = vld [vmem:[%s17 + $0x48] sm:$0xff]
      %v1520 = vld [vmem:[%s17 + $0x50] sm:$0xff]
      %v1521 = vld [vmem:[%s17 + $0x58] sm:$0xff]
      %v1522 = vld [vmem:[%s17 + $0x60] sm:$0xff]
      %v1523 = vld [vmem:[%s17 + $0x68] sm:$0xff]
      %v1524 = vld [vmem:[%s17 + $0x70] sm:$0xff]
      %v1525 = vld [vmem:[%s17 + $0x78] sm:$0xff]
      %v1526 = vld [vmem:[%s17 + $0x80] sm:$0xff]
      %v1527 = vld [vmem:[%s17 + $0x88] sm:$0xff]
      %v1528 = vld [vmem:[%s17 + $0x90] sm:$0xff]
      %v1529 = vld [vmem:[%s17 + $0x98] sm:$0xff]
      %v1530 = vld [vmem:[%s17 + $0xa0] sm:$0xff]
      %v1531 = vld [vmem:[%s17 + $0xa8] sm:$0xff]
      %v1532 = vld [vmem:[%s17 + $0xb0] sm:$0xff]
      %v1533 = vld [vmem:[%s17 + $0xb8] sm:$0xff]
      %v1534 = vld [vmem:[%s17 + $0xc0] sm:$0xff]
      %v1535 = vld [vmem:[%s17 + $0xc8] sm:$0xff]
      %v1536 = vld [vmem:[%s17 + $0xd0] sm:$0xff]
      %v1537 = vld [vmem:[%s17 + $0xd8] sm:$0xff]
      %v1538 = vld [vmem:[%s17 + $0xe0] sm:$0xff]
      %v1539 = vld [vmem:[%s17 + $0xe8] sm:$0xff]
      %v1540 = vld [vmem:[%s17 + $0xf0] sm:$0xff]
      %v1541 = vld [vmem:[%s17 + $0xf8] sm:$0xff]
      %v1542 = vld [vmem:[%s19] sm:$0x3]
      %v1544 = vlaneseq
      %v1545 = vshrl.u32 %v1544, 7
      %v1546 = vsub.s32 0, %v1545
      %v1547 = vrot.slane %v1542, %v1546
      %v1548 = vlaneseq
      %v1549 = vshrl.u32 %v1548, 7
      %v1550 = vsub.s32 1, %v1549
      %v1551 = vrot.slane %v1542, %v1550
      %v1586 = vunpack.c.l.b16 %v1510
      %v1587 = vunpack.c.h.b16 %v1510
      %v1588 = vunpack.c.l.b16 %v1511
      %v1589 = vunpack.c.h.b16 %v1511
      %v1590 = vunpack.c.l.b16 %v1512
      %v1591 = vunpack.c.h.b16 %v1512
      %v1592 = vunpack.c.l.b16 %v1513
      %v1593 = vunpack.c.h.b16 %v1513
      %v1594 = vunpack.c.l.b16 %v1514
      %v1595 = vunpack.c.h.b16 %v1514
      %v1596 = vunpack.c.l.b16 %v1515
      %v1597 = vunpack.c.h.b16 %v1515
      %v1598 = vunpack.c.l.b16 %v1516
      %v1599 = vunpack.c.h.b16 %v1516
      %v1600 = vunpack.c.l.b16 %v1517
      %v1601 = vunpack.c.h.b16 %v1517
      %v1602 = vunpack.c.l.b16 %v1518
      %v1603 = vunpack.c.h.b16 %v1518
      %v1604 = vunpack.c.l.b16 %v1519
      %v1605 = vunpack.c.h.b16 %v1519
      %v1606 = vunpack.c.l.b16 %v1520
      %v1607 = vunpack.c.h.b16 %v1520
      %v1608 = vunpack.c.l.b16 %v1521
      %v1609 = vunpack.c.h.b16 %v1521
      %v1610 = vunpack.c.l.b16 %v1522
      %v1611 = vunpack.c.h.b16 %v1522
      %v1612 = vunpack.c.l.b16 %v1523
      %v1613 = vunpack.c.h.b16 %v1523
      %v1614 = vunpack.c.l.b16 %v1524
      %v1615 = vunpack.c.h.b16 %v1524
      %v1616 = vunpack.c.l.b16 %v1525
      %v1617 = vunpack.c.h.b16 %v1525
      %v1618 = vunpack.c.l.b16 %v1526
      %v1619 = vunpack.c.h.b16 %v1526
      %v1620 = vunpack.c.l.b16 %v1527
      %v1621 = vunpack.c.h.b16 %v1527
      %v1622 = vunpack.c.l.b16 %v1528
      %v1623 = vunpack.c.h.b16 %v1528
      %v1624 = vunpack.c.l.b16 %v1529
      %v1625 = vunpack.c.h.b16 %v1529
      %v1626 = vunpack.c.l.b16 %v1530
      %v1627 = vunpack.c.h.b16 %v1530
      %v1628 = vunpack.c.l.b16 %v1531
      %v1629 = vunpack.c.h.b16 %v1531
      %v1630 = vunpack.c.l.b16 %v1532
      %v1631 = vunpack.c.h.b16 %v1532
      %v1632 = vunpack.c.l.b16 %v1533
      %v1633 = vunpack.c.h.b16 %v1533
      %v1634 = vunpack.c.l.b16 %v1534
      %v1635 = vunpack.c.h.b16 %v1534
      %v1636 = vunpack.c.l.b16 %v1535
      %v1637 = vunpack.c.h.b16 %v1535
      %v1638 = vunpack.c.l.b16 %v1536
      %v1639 = vunpack.c.h.b16 %v1536
      %v1640 = vunpack.c.l.b16 %v1537
      %v1641 = vunpack.c.h.b16 %v1537
      %v1642 = vunpack.c.l.b16 %v1538
      %v1643 = vunpack.c.h.b16 %v1538
      %v1644 = vunpack.c.l.b16 %v1539
      %v1645 = vunpack.c.h.b16 %v1539
      %v1646 = vunpack.c.l.b16 %v1540
      %v1647 = vunpack.c.h.b16 %v1540
      %v1648 = vunpack.c.l.b16 %v1541
      %v1649 = vunpack.c.h.b16 %v1541
      %v1650 = vpack.c.b16 %v1588, %v1586
      %v1651 = vpack.c.b16 %v1589, %v1587
      %v1652 = vpack.c.b16 %v1592, %v1590
      %v1653 = vpack.c.b16 %v1593, %v1591
      %v1654 = vpack.c.b16 %v1596, %v1594
      %v1655 = vpack.c.b16 %v1597, %v1595
      %v1656 = vpack.c.b16 %v1600, %v1598
      %v1657 = vpack.c.b16 %v1601, %v1599
      %v1658 = vpack.c.b16 %v1604, %v1602
      %v1659 = vpack.c.b16 %v1605, %v1603
      %v1660 = vpack.c.b16 %v1608, %v1606
      %v1661 = vpack.c.b16 %v1609, %v1607
      %v1662 = vpack.c.b16 %v1612, %v1610
      %v1663 = vpack.c.b16 %v1613, %v1611
      %v1664 = vpack.c.b16 %v1616, %v1614
      %v1665 = vpack.c.b16 %v1617, %v1615
      %v1666 = vpack.c.b16 %v1620, %v1618
      %v1667 = vpack.c.b16 %v1621, %v1619
      %v1668 = vpack.c.b16 %v1624, %v1622
      %v1669 = vpack.c.b16 %v1625, %v1623
      %v1670 = vpack.c.b16 %v1628, %v1626
      %v1671 = vpack.c.b16 %v1629, %v1627
      %v1672 = vpack.c.b16 %v1632, %v1630
      %v1673 = vpack.c.b16 %v1633, %v1631
      %v1674 = vpack.c.b16 %v1636, %v1634
      %v1675 = vpack.c.b16 %v1637, %v1635
      %v1676 = vpack.c.b16 %v1640, %v1638
      %v1677 = vpack.c.b16 %v1641, %v1639
      %v1678 = vpack.c.b16 %v1644, %v1642
      %v1679 = vpack.c.b16 %v1645, %v1643
      %v1680 = vpack.c.b16 %v1648, %v1646
      %v1681 = vpack.c.b16 %v1649, %v1647
      %1714 = vmatprep.subr.bf16.mxu0 %v1665
      %1715 = vmatpush1.bf16.msra.mxu0 %v1664
      %1716 = vmatprep.subr.bf16.mxu0 %v1663
      %1717 = vmatpush1.bf16.msra.mxu0 %v1662
      %1718 = vmatprep.subr.bf16.mxu0 %v1661
      %1719 = vmatpush1.bf16.msra.mxu0 %v1660
      %1720 = vmatprep.subr.bf16.mxu0 %v1659
      %1721 = vmatpush1.bf16.msra.mxu0 %v1658
      %1722 = vmatprep.subr.bf16.mxu0 %v1657
      %1723 = vmatpush1.bf16.msra.mxu0 %v1656
      %1724 = vmatprep.subr.bf16.mxu0 %v1655
      %1725 = vmatpush1.bf16.msra.mxu0 %v1654
      %1726 = vmatprep.subr.bf16.mxu0 %v1653
      %1727 = vmatpush1.bf16.msra.mxu0 %v1652
      %1728 = vmatprep.subr.bf16.mxu0 %v1651
      %1729 = vmatpush1.bf16.msra.mxu0 %v1650
      %1730 = vmatprep.subr.bf16.mxu0 %v1681
      %1731 = vmatpush2.bf16.msra.mxu0 %v1680
      %1732 = vmatprep.subr.bf16.mxu0 %v1679
      %1733 = vmatpush2.bf16.msra.mxu0 %v1678
      %1734 = vmatprep.subr.bf16.mxu0 %v1677
      %1735 = vmatpush2.bf16.msra.mxu0 %v1676
      %1736 = vmatprep.subr.bf16.mxu0 %v1675
      %1737 = vmatpush2.bf16.msra.mxu0 %v1674
      %1738 = vmatprep.subr.bf16.mxu0 %v1673
      %1739 = vmatpush2.bf16.msra.mxu0 %v1672
      %1740 = vmatprep.subr.bf16.mxu0 %v1671
      %1741 = vmatpush2.bf16.msra.mxu0 %v1670
      %1742 = vmatprep.subr.bf16.mxu0 %v1669
      %1743 = vmatpush2.bf16.msra.mxu0 %v1668
      %1744 = vmatprep.subr.bf16.mxu0 %v1667
      %1745 = vmatpush2.bf16.msra.mxu0 %v1666
      %1746 = vmatprep.mubr.bf16.mxu0 %v1509
      %1747 = vmatmul.mubr.bf16.gmra.mxu0 %v1508
      %v1748 = vpop.f32.mrf.mxu0
      %v1749 = vadd.f32 %v1547, %v1748
      %v1750 = vpop.f32.mrf.mxu0
      %v1751 = vadd.f32 %v1551, %v1750
      %v1752 = vpop.f32.mrf.mxu0
      %v1753 = vadd.f32 %v1547, %v1752
      %v1754 = vpop.f32.mrf.mxu0
      %v1755 = vadd.f32 %v1551, %v1754
      %1756 = vdwg.mxu0
      %v1757 = vadd.f32 %v1749, %v1751
      %1758 = vadd.xlane.f32.xlu0 %v1757
      %v1759 = vpop.xlane.xlu0 %1758
      %v1760 = vadd.f32 %v1753, %v1755
      %1761 = vadd.xlane.f32.xlu0 %v1760
      %v1762 = vpop.xlane.xlu0 %1761
      %v1763 = vmul.f32 %v1759, %v1445
      %v1764 = vmul.f32 %v1762, %v1445
      %v1765 = vsub.f32 %v1749, %v1763
      %v1766 = vsub.f32 %v1751, %v1763
      %v1767 = vsub.f32 %v1753, %v1764
      %v1768 = vsub.f32 %v1755, %v1764
      %v1769 = vmul.f32 %v1765, %v1765
      %v1770 = vmul.f32 %v1766, %v1766
      %v1771 = vmul.f32 %v1767, %v1767
      %v1772 = vmul.f32 %v1768, %v1768
      %v1773 = vadd.f32 %v1769, %v1770
      %1774 = vadd.xlane.f32.xlu0 %v1773
      %v1775 = vpop.xlane.xlu0 %1774
      %v1776 = vadd.f32 %v1771, %v1772
      %1777 = vadd.xlane.f32.xlu0 %v1776
      %v1778 = vpop.xlane.xlu0 %1777
      %v1779 = vmul.f32 %v1775, %v1445
      %v1780 = vmul.f32 %v1778, %v1445
      %v1781 = vadd.f32 %v1779, 1e-05
      %v1782 = vadd.f32 %v1780, 1e-05
      %v1783 = vrsqrt.pop %v1781
      %v1784 = vrsqrt.pop %v1782
      %v1785 = vmul.f32 %v1765, %v1783
      %v1786 = vmul.f32 %v1766, %v1783
      %v1787 = vmul.f32 %v1767, %v1784
      %v1788 = vmul.f32 %v1768, %v1784
      %v1789 = vld [vmem:[%s21] sm:$0x3]
      %v1791 = vlaneseq
      %v1792 = vshrl.u32 %v1791, 7
      %v1793 = vsub.s32 0, %v1792
      %v1794 = vrot.slane %v1789, %v1793
      %v1795 = vlaneseq
      %v1796 = vshrl.u32 %v1795, 7
      %v1797 = vsub.s32 1, %v1796
      %v1798 = vrot.slane %v1789, %v1797
      %v1801 = vmul.f32 %v1785, %v1794
      %v1802 = vmul.f32 %v1786, %v1798
      %v1803 = vmul.f32 %v1787, %v1794
      %v1804 = vmul.f32 %v1788, %v1798
      %v1805 = vld [vmem:[%s23] sm:$0x3]
      %v1807 = vlaneseq
      %v1808 = vshrl.u32 %v1807, 7
      %v1809 = vsub.s32 0, %v1808
      %v1810 = vrot.slane %v1805, %v1809
      %v1811 = vlaneseq
      %v1812 = vshrl.u32 %v1811, 7
      %v1813 = vsub.s32 1, %v1812
      %v1814 = vrot.slane %v1805, %v1813
      %v1817 = vadd.f32 %v1801, %v1810
      %v1818 = vadd.f32 %v1802, %v1814
      %v1819 = vadd.f32 %v1803, %v1810
      %v1820 = vadd.f32 %v1804, %v1814
      %v1821 = vmax.f32 %v1817, 0.0
      %v1822 = vmax.f32 %v1818, 0.0
      %v1823 = vmax.f32 %v1819, 0.0
      %v1824 = vmax.f32 %v1820, 0.0
      %v1825 = vpack.c.bf16 %v1823, %v1821
      %v1826 = vpack.c.bf16 %v1824, %v1822
      %v1827 = vld [vmem:[%s25] sm:$0xf]
      %v1828 = vld [vmem:[%s25 + $0x4] sm:$0xf]
      %v1829 = vld [vmem:[%s25 + $0x8] sm:$0xf]
      %v1830 = vld [vmem:[%s25 + $0xc] sm:$0xf]
      %v1831 = vld [vmem:[%s25 + $0x10] sm:$0xf]
      %v1832 = vld [vmem:[%s25 + $0x14] sm:$0xf]
      %v1833 = vld [vmem:[%s25 + $0x18] sm:$0xf]
      %v1834 = vld [vmem:[%s25 + $0x1c] sm:$0xf]
      %v1835 = vld [vmem:[%s25 + $0x20] sm:$0xf]
      %v1836 = vld [vmem:[%s25 + $0x24] sm:$0xf]
      %v1837 = vld [vmem:[%s25 + $0x28] sm:$0xf]
      %v1838 = vld [vmem:[%s25 + $0x2c] sm:$0xf]
      %v1839 = vld [vmem:[%s25 + $0x30] sm:$0xf]
      %v1840 = vld [vmem:[%s25 + $0x34] sm:$0xf]
      %v1841 = vld [vmem:[%s25 + $0x38] sm:$0xf]
      %v1842 = vld [vmem:[%s25 + $0x3c] sm:$0xf]
      %v1843 = vld [vmem:[%s25 + $0x40] sm:$0xf]
      %v1844 = vld [vmem:[%s25 + $0x44] sm:$0xf]
      %v1845 = vld [vmem:[%s25 + $0x48] sm:$0xf]
      %v1846 = vld [vmem:[%s25 + $0x4c] sm:$0xf]
      %v1847 = vld [vmem:[%s25 + $0x50] sm:$0xf]
      %v1848 = vld [vmem:[%s25 + $0x54] sm:$0xf]
      %v1849 = vld [vmem:[%s25 + $0x58] sm:$0xf]
      %v1850 = vld [vmem:[%s25 + $0x5c] sm:$0xf]
      %v1851 = vld [vmem:[%s25 + $0x60] sm:$0xf]
      %v1852 = vld [vmem:[%s25 + $0x64] sm:$0xf]
      %v1853 = vld [vmem:[%s25 + $0x68] sm:$0xf]
      %v1854 = vld [vmem:[%s25 + $0x6c] sm:$0xf]
      %v1855 = vld [vmem:[%s25 + $0x70] sm:$0xf]
      %v1856 = vld [vmem:[%s25 + $0x74] sm:$0xf]
      %v1857 = vld [vmem:[%s25 + $0x78] sm:$0xf]
      %v1858 = vld [vmem:[%s25 + $0x7c] sm:$0xf]
      %v1859 = vld [vmem:[%s27] sm:$0x1]
      %v1861 = vlaneseq
      %v1862 = vshrl.u32 %v1861, 7
      %v1863 = vsub.s32 0, %v1862
      %v1864 = vrot.slane %v1859, %v1863
      %v1898 = vunpack.c.l.b16 %v1827
      %v1899 = vunpack.c.l.b16 %v1828
      %v1900 = vunpack.c.l.b16 %v1829
      %v1901 = vunpack.c.l.b16 %v1830
      %v1902 = vunpack.c.l.b16 %v1831
      %v1903 = vunpack.c.l.b16 %v1832
      %v1904 = vunpack.c.l.b16 %v1833
      %v1905 = vunpack.c.l.b16 %v1834
      %v1906 = vunpack.c.l.b16 %v1835
      %v1907 = vunpack.c.l.b16 %v1836
      %v1908 = vunpack.c.l.b16 %v1837
      %v1909 = vunpack.c.l.b16 %v1838
      %v1910 = vunpack.c.l.b16 %v1839
      %v1911 = vunpack.c.l.b16 %v1840
      %v1912 = vunpack.c.l.b16 %v1841
      %v1913 = vunpack.c.l.b16 %v1842
      %v1914 = vunpack.c.l.b16 %v1843
      %v1915 = vunpack.c.l.b16 %v1844
      %v1916 = vunpack.c.l.b16 %v1845
      %v1917 = vunpack.c.l.b16 %v1846
      %v1918 = vunpack.c.l.b16 %v1847
      %v1919 = vunpack.c.l.b16 %v1848
      %v1920 = vunpack.c.l.b16 %v1849
      %v1921 = vunpack.c.l.b16 %v1850
      %v1922 = vunpack.c.l.b16 %v1851
      %v1923 = vunpack.c.l.b16 %v1852
      %v1924 = vunpack.c.l.b16 %v1853
      %v1925 = vunpack.c.l.b16 %v1854
      %v1926 = vunpack.c.l.b16 %v1855
      %v1927 = vunpack.c.l.b16 %v1856
      %v1928 = vunpack.c.l.b16 %v1857
      %v1929 = vunpack.c.l.b16 %v1858
      %v1930 = vpack.c.b16 %v1899, %v1898
      %v1931 = vpack.c.b16 %v1901, %v1900
      %v1932 = vpack.c.b16 %v1903, %v1902
      %v1933 = vpack.c.b16 %v1905, %v1904
      %v1934 = vpack.c.b16 %v1907, %v1906
      %v1935 = vpack.c.b16 %v1909, %v1908
      %v1936 = vpack.c.b16 %v1911, %v1910
      %v1937 = vpack.c.b16 %v1913, %v1912
      %v1938 = vpack.c.b16 %v1915, %v1914
      %v1939 = vpack.c.b16 %v1917, %v1916
      %v1940 = vpack.c.b16 %v1919, %v1918
      %v1941 = vpack.c.b16 %v1921, %v1920
      %v1942 = vpack.c.b16 %v1923, %v1922
      %v1943 = vpack.c.b16 %v1925, %v1924
      %v1944 = vpack.c.b16 %v1927, %v1926
      %v1945 = vpack.c.b16 %v1929, %v1928
      %1962 = vmatprep.subr.bf16.mxu0 0
      %1963 = vmatpush1.bf16.msra.mxu0 %v1937
      %1964 = vmatprep.subr.bf16.mxu0 0
      %1965 = vmatpush1.bf16.msra.mxu0 %v1936
      %1966 = vmatprep.subr.bf16.mxu0 0
      %1967 = vmatpush1.bf16.msra.mxu0 %v1935
      %1968 = vmatprep.subr.bf16.mxu0 0
      %1969 = vmatpush1.bf16.msra.mxu0 %v1934
      %1970 = vmatprep.subr.bf16.mxu0 0
      %1971 = vmatpush1.bf16.msra.mxu0 %v1933
      %1972 = vmatprep.subr.bf16.mxu0 0
      %1973 = vmatpush1.bf16.msra.mxu0 %v1932
      %1974 = vmatprep.subr.bf16.mxu0 0
      %1975 = vmatpush1.bf16.msra.mxu0 %v1931
      %1976 = vmatprep.subr.bf16.mxu0 0
      %1977 = vmatpush1.bf16.msra.mxu0 %v1930
      %1978 = vmatprep.subr.bf16.mxu0 0
      %1979 = vmatpush2.bf16.msra.mxu0 %v1945
      %1980 = vmatprep.subr.bf16.mxu0 0
      %1981 = vmatpush2.bf16.msra.mxu0 %v1944
      %1982 = vmatprep.subr.bf16.mxu0 0
      %1983 = vmatpush2.bf16.msra.mxu0 %v1943
      %1984 = vmatprep.subr.bf16.mxu0 0
      %1985 = vmatpush2.bf16.msra.mxu0 %v1942
      %1986 = vmatprep.subr.bf16.mxu0 0
      %1987 = vmatpush2.bf16.msra.mxu0 %v1941
      %1988 = vmatprep.subr.bf16.mxu0 0
      %1989 = vmatpush2.bf16.msra.mxu0 %v1940
      %1990 = vmatprep.subr.bf16.mxu0 0
      %1991 = vmatpush2.bf16.msra.mxu0 %v1939
      %1992 = vmatprep.subr.bf16.mxu0 0
      %1993 = vmatpush2.bf16.msra.mxu0 %v1938
      %1994 = vmatprep.mubr.bf16.mxu0 %v1826
      %1995 = vmatmul.mubr.bf16.gmra.mxu0 %v1825
      %v1996 = vpop.f32.mrf.mxu0
      %v1997 = vadd.f32 %v1864, %v1996
      %v1998 = vpop.f32.mrf.mxu0
      %v1999 = vpop.f32.mrf.mxu0
      %v2000 = vadd.f32 %v1864, %v1999
      %v2001 = vpop.f32.mrf.mxu0
      %2002 = vdwg.mxu0
      %v2003 = vld [vmem:[%s5] sm:$0xf]
      %v2004 = vld [vmem:[%s5 + $0x4] sm:$0xf]
      %v2005 = vld [vmem:[%s5 + $0x8] sm:$0xf]
      %v2006 = vld [vmem:[%s5 + $0xc] sm:$0xf]
      %v2007 = vld [vmem:[%s7] sm:$0xf]
      %v2008 = vld [vmem:[%s7 + $0x4] sm:$0xf]
      %v2009 = vld [vmem:[%s1343] sm:$0xff]
      %v2010 = vld [vmem:[%s1343 + $0x8] sm:$0xff]
      %v2011 = vld [vmem:[%s1343 + $0x10] sm:$0xff]
      %v2012 = vld [vmem:[%s1343 + $0x18] sm:$0xff]
      %v2013 = vld [vmem:[%s1343 + $0x20] sm:$0xff]
      %v2014 = vld [vmem:[%s1343 + $0x28] sm:$0xff]
      %v2015 = vld [vmem:[%s1343 + $0x30] sm:$0xff]
      %v2016 = vld [vmem:[%s1343 + $0x38] sm:$0xff]
      %v2017 = vpack.c.bf16 %v2000, %v1997
      %v2022 = vunpack.c.l.b16 %v2003
      %v2023 = vunpack.c.l.b16 %v2004
      %v2024 = vunpack.c.l.b16 %v2005
      %v2025 = vunpack.c.l.b16 %v2006
      %v2026 = vpack.c.b16 %v2023, %v2022
      %v2027 = vpack.c.b16 %v2025, %v2024
      %vm2028 = vcmask 130048
      %v2030 = vsel %vm2028, %v2026, 0
      %v2033 = vsel %vm2028, %v2027, 0
      %2035 = vmatprep.subr.bf16.mxu0 0
      %2036 = vmatpush1.bf16.msra.mxu0 0
      %2037 = vmatprep.subr.bf16.mxu0 0
      %2038 = vmatpush1.bf16.msra.mxu0 0
      %2039 = vmatprep.subr.bf16.mxu0 0
      %2040 = vmatpush1.bf16.msra.mxu0 0
      %2041 = vmatprep.subr.bf16.mxu0 0
      %2042 = vmatpush1.bf16.msra.mxu0 0
      %2043 = vmatprep.subr.bf16.mxu0 0
      %2044 = vmatpush1.bf16.msra.mxu0 0
      %2045 = vmatprep.subr.bf16.mxu0 0
      %2046 = vmatpush1.bf16.msra.mxu0 0
      %2047 = vmatprep.subr.bf16.mxu0 0
      %2048 = vmatpush1.bf16.msra.mxu0 0
      %2049 = vmatprep.subr.bf16.mxu0 0
      %2050 = vmatpush1.bf16.msra.mxu0 %v2017
      %2051 = vmatprep.subr.bf16.mxu0 0
      %2052 = vmatpush2.bf16.msra.mxu0 0
      %2053 = vmatprep.subr.bf16.mxu0 0
      %2054 = vmatpush2.bf16.msra.mxu0 0
      %2055 = vmatprep.subr.bf16.mxu0 0
      %2056 = vmatpush2.bf16.msra.mxu0 0
      %2057 = vmatprep.subr.bf16.mxu0 0
      %2058 = vmatpush2.bf16.msra.mxu0 0
      %2059 = vmatprep.subr.bf16.mxu0 0
      %2060 = vmatpush2.bf16.msra.mxu0 0
      %2061 = vmatprep.subr.bf16.mxu0 0
      %2062 = vmatpush2.bf16.msra.mxu0 0
      %2063 = vmatprep.subr.bf16.mxu0 0
      %2064 = vmatpush2.bf16.msra.mxu0 0
      %2065 = vmatprep.subr.bf16.mxu0 0
      %2066 = vmatpush2.bf16.msra.mxu0 0
      %2067 = vmatprep.mubr.bf16.mxu0 0
      %2068 = vmatmul.mubr.bf16.gmra.mxu0 %v2030
      %v2069 = vpop.f32.mrf.mxu0
      %v2070 = vadd.f32 0.0, %v2069
      %v2071 = vpop.f32.mrf.mxu0
      %v2072 = vpop.f32.mrf.mxu0
      %v2073 = vadd.f32 0.0, %v2072
      %v2074 = vpop.f32.mrf.mxu0
      %2075 = vmatprep.mubr.bf16.mxu0 0
      %2076 = vmatmul.mubr.bf16.gmra.mxu0 %v2033
      %v2077 = vpop.f32.mrf.mxu0
      %v2078 = vadd.f32 0.0, %v2077
      %v2079 = vpop.f32.mrf.mxu0
      %v2080 = vpop.f32.mrf.mxu0
      %v2081 = vadd.f32 0.0, %v2080
      %v2082 = vpop.f32.mrf.mxu0
      %2083 = vdwg.mxu0
      %v2084 = vpack.c.bf16 %v2073, %v2070
      %v2085 = vpack.c.bf16 %v2081, %v2078
      %v2086 = vld [vmem:[%s29] sm:$0xff]
      %v2087 = vld [vmem:[%s29 + $0x8] sm:$0xff]
      %v2088 = vld [vmem:[%s29 + $0x10] sm:$0xff]
      %v2089 = vld [vmem:[%s29 + $0x18] sm:$0xff]
      %v2090 = vld [vmem:[%s29 + $0x20] sm:$0xff]
      %v2091 = vld [vmem:[%s29 + $0x28] sm:$0xff]
      %v2092 = vld [vmem:[%s29 + $0x30] sm:$0xff]
      %v2093 = vld [vmem:[%s29 + $0x38] sm:$0xff]
      %v2102 = vunpack.c.l.b16 %v2086
      %v2103 = vunpack.c.h.b16 %v2086
      %v2104 = vunpack.c.l.b16 %v2087
      %v2105 = vunpack.c.h.b16 %v2087
      %v2106 = vunpack.c.l.b16 %v2088
      %v2107 = vunpack.c.h.b16 %v2088
      %v2108 = vunpack.c.l.b16 %v2089
      %v2109 = vunpack.c.h.b16 %v2089
      %v2110 = vunpack.c.l.b16 %v2090
      %v2111 = vunpack.c.h.b16 %v2090
      %v2112 = vunpack.c.l.b16 %v2091
      %v2113 = vunpack.c.h.b16 %v2091
      %v2114 = vunpack.c.l.b16 %v2092
      %v2115 = vunpack.c.h.b16 %v2092
      %v2116 = vunpack.c.l.b16 %v2093
      %v2117 = vunpack.c.h.b16 %v2093
      %v2118 = vpack.c.b16 %v2104, %v2102
      %v2119 = vpack.c.b16 %v2105, %v2103
      %v2120 = vpack.c.b16 %v2108, %v2106
      %v2121 = vpack.c.b16 %v2109, %v2107
      %v2122 = vpack.c.b16 %v2112, %v2110
      %v2123 = vpack.c.b16 %v2113, %v2111
      %v2124 = vpack.c.b16 %v2116, %v2114
      %v2125 = vpack.c.b16 %v2117, %v2115
      %vm2134 = vcmask 523264
      %v2136 = vsel %vm2134, %v2084, 0
      %v2139 = vsel %vm2134, %v2085, 0
      %2141 = vmatprep.subr.bf16.mxu0 0
      %2142 = vmatpush1.bf16.msra.mxu0 0
      %2143 = vmatprep.subr.bf16.mxu0 0
      %2144 = vmatpush1.bf16.msra.mxu0 0
      %2145 = vmatprep.subr.bf16.mxu0 0
      %2146 = vmatpush1.bf16.msra.mxu0 0
      %2147 = vmatprep.subr.bf16.mxu0 0
      %2148 = vmatpush1.bf16.msra.mxu0 0
      %2149 = vmatprep.subr.bf16.mxu0 %v2125
      %2150 = vmatpush1.bf16.msra.mxu0 %v2124
      %2151 = vmatprep.subr.bf16.mxu0 %v2123
      %2152 = vmatpush1.bf16.msra.mxu0 %v2122
      %2153 = vmatprep.subr.bf16.mxu0 %v2121
      %2154 = vmatpush1.bf16.msra.mxu0 %v2120
      %2155 = vmatprep.subr.bf16.mxu0 %v2119
      %2156 = vmatpush1.bf16.msra.mxu0 %v2118
      %2157 = vmatprep.subr.bf16.mxu0 0
      %2158 = vmatpush2.bf16.msra.mxu0 0
      %2159 = vmatprep.subr.bf16.mxu0 0
      %2160 = vmatpush2.bf16.msra.mxu0 0
      %2161 = vmatprep.subr.bf16.mxu0 0
      %2162 = vmatpush2.bf16.msra.mxu0 0
      %2163 = vmatprep.subr.bf16.mxu0 0
      %2164 = vmatpush2.bf16.msra.mxu0 0
      %2165 = vmatprep.subr.bf16.mxu0 0
      %2166 = vmatpush2.bf16.msra.mxu0 0
      %2167 = vmatprep.subr.bf16.mxu0 0
      %2168 = vmatpush2.bf16.msra.mxu0 0
      %2169 = vmatprep.subr.bf16.mxu0 0
      %2170 = vmatpush2.bf16.msra.mxu0 0
      %2171 = vmatprep.subr.bf16.mxu0 0
      %2172 = vmatpush2.bf16.msra.mxu0 0
      %2173 = vmatprep.mubr.bf16.mxu0 0
      %2174 = vmatmul.mubr.bf16.gmra.mxu0 %v2136
      %v2175 = vpop.f32.mrf.mxu0
      %v2176 = vadd.f32 %v2009, %v2175
      %v2177 = vpop.f32.mrf.mxu0
      %v2178 = vadd.f32 %v2010, %v2177
      %v2179 = vpop.f32.mrf.mxu0
      %v2180 = vadd.f32 %v2011, %v2179
      %v2181 = vpop.f32.mrf.mxu0
      %v2182 = vadd.f32 %v2012, %v2181
      %2183 = vmatprep.mubr.bf16.mxu0 0
      %2184 = vmatmul.mubr.bf16.gmra.mxu0 %v2139
      %v2185 = vpop.f32.mrf.mxu0
      %v2186 = vadd.f32 %v2013, %v2185
      %v2187 = vpop.f32.mrf.mxu0
      %v2188 = vadd.f32 %v2014, %v2187
      %v2189 = vpop.f32.mrf.mxu0
      %v2190 = vadd.f32 %v2015, %v2189
      %v2191 = vpop.f32.mrf.mxu0
      %v2192 = vadd.f32 %v2016, %v2191
      %2193 = vdwg.mxu0
      %v2194 = vadd.f32 %v2176, %v2178
      %2195 = vadd.xlane.f32.xlu0 %v2194
      %v2196 = vpop.xlane.xlu0 %2195
      %v2197 = vadd.f32 %v2180, %v2182
      %2198 = vadd.xlane.f32.xlu0 %v2197
      %v2199 = vpop.xlane.xlu0 %2198
      %v2200 = vadd.f32 %v2186, %v2188
      %2201 = vadd.xlane.f32.xlu0 %v2200
      %v2202 = vpop.xlane.xlu0 %2201
      %v2203 = vadd.f32 %v2190, %v2192
      %2204 = vadd.xlane.f32.xlu0 %v2203
      %v2205 = vpop.xlane.xlu0 %2204
      %v2206 = vmul.f32 %v2196, %v1445
      %v2207 = vmul.f32 %v2199, %v1445
      %v2208 = vmul.f32 %v2202, %v1445
      %v2209 = vmul.f32 %v2205, %v1445
      %v2210 = vsub.f32 %v2176, %v2206
      %v2211 = vsub.f32 %v2178, %v2206
      %v2212 = vsub.f32 %v2180, %v2207
      %v2213 = vsub.f32 %v2182, %v2207
      %v2214 = vsub.f32 %v2186, %v2208
      %v2215 = vsub.f32 %v2188, %v2208
      %v2216 = vsub.f32 %v2190, %v2209
      %v2217 = vsub.f32 %v2192, %v2209
      %v2218 = vmul.f32 %v2210, %v2210
      %v2219 = vmul.f32 %v2211, %v2211
      %v2220 = vmul.f32 %v2212, %v2212
      %v2221 = vmul.f32 %v2213, %v2213
      %v2222 = vmul.f32 %v2214, %v2214
      %v2223 = vmul.f32 %v2215, %v2215
      %v2224 = vmul.f32 %v2216, %v2216
      %v2225 = vmul.f32 %v2217, %v2217
      %v2226 = vadd.f32 %v2218, %v2219
      %2227 = vadd.xlane.f32.xlu0 %v2226
      %v2228 = vpop.xlane.xlu0 %2227
      %v2229 = vadd.f32 %v2220, %v2221
      %2230 = vadd.xlane.f32.xlu0 %v2229
      %v2231 = vpop.xlane.xlu0 %2230
      %v2232 = vadd.f32 %v2222, %v2223
      %2233 = vadd.xlane.f32.xlu0 %v2232
      %v2234 = vpop.xlane.xlu0 %2233
      %v2235 = vadd.f32 %v2224, %v2225
      %2236 = vadd.xlane.f32.xlu0 %v2235
      %v2237 = vpop.xlane.xlu0 %2236
      %v2238 = vmul.f32 %v2228, %v1445
      %v2239 = vmul.f32 %v2231, %v1445
      %v2240 = vmul.f32 %v2234, %v1445
      %v2241 = vmul.f32 %v2237, %v1445
      %v2242 = vadd.f32 %v2238, 1e-05
      %v2243 = vadd.f32 %v2239, 1e-05
      %v2244 = vadd.f32 %v2240, 1e-05
      %v2245 = vadd.f32 %v2241, 1e-05
      %v2246 = vrsqrt.pop %v2242
      %v2247 = vrsqrt.pop %v2243
      %v2248 = vrsqrt.pop %v2244
      %v2249 = vrsqrt.pop %v2245
      %v2250 = vmul.f32 %v2210, %v2246
      %v2251 = vmul.f32 %v2211, %v2246
      %v2252 = vmul.f32 %v2212, %v2247
      %v2253 = vmul.f32 %v2213, %v2247
      %v2254 = vmul.f32 %v2214, %v2248
      %v2255 = vmul.f32 %v2215, %v2248
      %v2256 = vmul.f32 %v2216, %v2249
      %v2257 = vmul.f32 %v2217, %v2249
      %v2258 = vld [vmem:[%s31] sm:$0x3]
      %v2260 = vlaneseq
      %v2261 = vshrl.u32 %v2260, 7
      %v2262 = vsub.s32 0, %v2261
      %v2263 = vrot.slane %v2258, %v2262
      %v2264 = vlaneseq
      %v2265 = vshrl.u32 %v2264, 7
      %v2266 = vsub.s32 1, %v2265
      %v2267 = vrot.slane %v2258, %v2266
      %v2270 = vmul.f32 %v2250, %v2263
      %v2271 = vmul.f32 %v2251, %v2267
      %v2272 = vmul.f32 %v2252, %v2263
      %v2273 = vmul.f32 %v2253, %v2267
      %v2274 = vmul.f32 %v2254, %v2263
      %v2275 = vmul.f32 %v2255, %v2267
      %v2276 = vmul.f32 %v2256, %v2263
      %v2277 = vmul.f32 %v2257, %v2267
      %v2278 = vld [vmem:[%s33] sm:$0x3]
      %v2280 = vlaneseq
      %v2281 = vshrl.u32 %v2280, 7
      %v2282 = vsub.s32 0, %v2281
      %v2283 = vrot.slane %v2278, %v2282
      %v2284 = vlaneseq
      %v2285 = vshrl.u32 %v2284, 7
      %v2286 = vsub.s32 1, %v2285
      %v2287 = vrot.slane %v2278, %v2286
      %v2290 = vadd.f32 %v2270, %v2283
      %v2291 = vadd.f32 %v2271, %v2287
      %v2292 = vadd.f32 %v2272, %v2283
      %v2293 = vadd.f32 %v2273, %v2287
      %v2294 = vadd.f32 %v2274, %v2283
      %v2295 = vadd.f32 %v2275, %v2287
      %v2296 = vadd.f32 %v2276, %v2283
      %v2297 = vadd.f32 %v2277, %v2287
      %v2298 = vmax.f32 %v2290, 0.0
      %v2299 = vmax.f32 %v2291, 0.0
      %v2300 = vmax.f32 %v2292, 0.0
      %v2301 = vmax.f32 %v2293, 0.0
      %v2302 = vmax.f32 %v2294, 0.0
      %v2303 = vmax.f32 %v2295, 0.0
      %v2304 = vmax.f32 %v2296, 0.0
      %v2305 = vmax.f32 %v2297, 0.0
      %v2306 = vpack.c.bf16 %v2300, %v2298
      %v2307 = vpack.c.bf16 %v2301, %v2299
      %v2308 = vpack.c.bf16 %v2304, %v2302
      %v2309 = vpack.c.bf16 %v2305, %v2303
      %v2310 = vld [vmem:[%s35] sm:$0xff]
      %v2311 = vld [vmem:[%s35 + $0x8] sm:$0xff]
      %v2312 = vld [vmem:[%s35 + $0x10] sm:$0xff]
      %v2313 = vld [vmem:[%s35 + $0x18] sm:$0xff]
      %v2314 = vld [vmem:[%s35 + $0x20] sm:$0xff]
      %v2315 = vld [vmem:[%s35 + $0x28] sm:$0xff]
      %v2316 = vld [vmem:[%s35 + $0x30] sm:$0xff]
      %v2317 = vld [vmem:[%s35 + $0x38] sm:$0xff]
      %v2318 = vld [vmem:[%s35 + $0x40] sm:$0xff]
      %v2319 = vld [vmem:[%s35 + $0x48] sm:$0xff]
      %v2320 = vld [vmem:[%s35 + $0x50] sm:$0xff]
      %v2321 = vld [vmem:[%s35 + $0x58] sm:$0xff]
      %v2322 = vld [vmem:[%s35 + $0x60] sm:$0xff]
      %v2323 = vld [vmem:[%s35 + $0x68] sm:$0xff]
      %v2324 = vld [vmem:[%s35 + $0x70] sm:$0xff]
      %v2325 = vld [vmem:[%s35 + $0x78] sm:$0xff]
      %v2326 = vld [vmem:[%s35 + $0x80] sm:$0xff]
      %v2327 = vld [vmem:[%s35 + $0x88] sm:$0xff]
      %v2328 = vld [vmem:[%s35 + $0x90] sm:$0xff]
      %v2329 = vld [vmem:[%s35 + $0x98] sm:$0xff]
      %v2330 = vld [vmem:[%s35 + $0xa0] sm:$0xff]
      %v2331 = vld [vmem:[%s35 + $0xa8] sm:$0xff]
      %v2332 = vld [vmem:[%s35 + $0xb0] sm:$0xff]
      %v2333 = vld [vmem:[%s35 + $0xb8] sm:$0xff]
      %v2334 = vld [vmem:[%s35 + $0xc0] sm:$0xff]
      %v2335 = vld [vmem:[%s35 + $0xc8] sm:$0xff]
      %v2336 = vld [vmem:[%s35 + $0xd0] sm:$0xff]
      %v2337 = vld [vmem:[%s35 + $0xd8] sm:$0xff]
      %v2338 = vld [vmem:[%s35 + $0xe0] sm:$0xff]
      %v2339 = vld [vmem:[%s35 + $0xe8] sm:$0xff]
      %v2340 = vld [vmem:[%s35 + $0xf0] sm:$0xff]
      %v2341 = vld [vmem:[%s35 + $0xf8] sm:$0xff]
      %v2342 = vld [vmem:[%s37] sm:$0x3]
      %v2344 = vlaneseq
      %v2345 = vshrl.u32 %v2344, 7
      %v2346 = vsub.s32 0, %v2345
      %v2347 = vrot.slane %v2342, %v2346
      %v2348 = vlaneseq
      %v2349 = vshrl.u32 %v2348, 7
      %v2350 = vsub.s32 1, %v2349
      %v2351 = vrot.slane %v2342, %v2350
      %v2386 = vunpack.c.l.b16 %v2310
      %v2387 = vunpack.c.h.b16 %v2310
      %v2388 = vunpack.c.l.b16 %v2311
      %v2389 = vunpack.c.h.b16 %v2311
      %v2390 = vunpack.c.l.b16 %v2312
      %v2391 = vunpack.c.h.b16 %v2312
      %v2392 = vunpack.c.l.b16 %v2313
      %v2393 = vunpack.c.h.b16 %v2313
      %v2394 = vunpack.c.l.b16 %v2314
      %v2395 = vunpack.c.h.b16 %v2314
      %v2396 = vunpack.c.l.b16 %v2315
      %v2397 = vunpack.c.h.b16 %v2315
      %v2398 = vunpack.c.l.b16 %v2316
      %v2399 = vunpack.c.h.b16 %v2316
      %v2400 = vunpack.c.l.b16 %v2317
      %v2401 = vunpack.c.h.b16 %v2317
      %v2402 = vunpack.c.l.b16 %v2318
      %v2403 = vunpack.c.h.b16 %v2318
      %v2404 = vunpack.c.l.b16 %v2319
      %v2405 = vunpack.c.h.b16 %v2319
      %v2406 = vunpack.c.l.b16 %v2320
      %v2407 = vunpack.c.h.b16 %v2320
      %v2408 = vunpack.c.l.b16 %v2321
      %v2409 = vunpack.c.h.b16 %v2321
      %v2410 = vunpack.c.l.b16 %v2322
      %v2411 = vunpack.c.h.b16 %v2322
      %v2412 = vunpack.c.l.b16 %v2323
      %v2413 = vunpack.c.h.b16 %v2323
      %v2414 = vunpack.c.l.b16 %v2324
      %v2415 = vunpack.c.h.b16 %v2324
      %v2416 = vunpack.c.l.b16 %v2325
      %v2417 = vunpack.c.h.b16 %v2325
      %v2418 = vunpack.c.l.b16 %v2326
      %v2419 = vunpack.c.h.b16 %v2326
      %v2420 = vunpack.c.l.b16 %v2327
      %v2421 = vunpack.c.h.b16 %v2327
      %v2422 = vunpack.c.l.b16 %v2328
      %v2423 = vunpack.c.h.b16 %v2328
      %v2424 = vunpack.c.l.b16 %v2329
      %v2425 = vunpack.c.h.b16 %v2329
      %v2426 = vunpack.c.l.b16 %v2330
      %v2427 = vunpack.c.h.b16 %v2330
      %v2428 = vunpack.c.l.b16 %v2331
      %v2429 = vunpack.c.h.b16 %v2331
      %v2430 = vunpack.c.l.b16 %v2332
      %v2431 = vunpack.c.h.b16 %v2332
      %v2432 = vunpack.c.l.b16 %v2333
      %v2433 = vunpack.c.h.b16 %v2333
      %v2434 = vunpack.c.l.b16 %v2334
      %v2435 = vunpack.c.h.b16 %v2334
      %v2436 = vunpack.c.l.b16 %v2335
      %v2437 = vunpack.c.h.b16 %v2335
      %v2438 = vunpack.c.l.b16 %v2336
      %v2439 = vunpack.c.h.b16 %v2336
      %v2440 = vunpack.c.l.b16 %v2337
      %v2441 = vunpack.c.h.b16 %v2337
      %v2442 = vunpack.c.l.b16 %v2338
      %v2443 = vunpack.c.h.b16 %v2338
      %v2444 = vunpack.c.l.b16 %v2339
      %v2445 = vunpack.c.h.b16 %v2339
      %v2446 = vunpack.c.l.b16 %v2340
      %v2447 = vunpack.c.h.b16 %v2340
      %v2448 = vunpack.c.l.b16 %v2341
      %v2449 = vunpack.c.h.b16 %v2341
      %v2450 = vpack.c.b16 %v2388, %v2386
      %v2451 = vpack.c.b16 %v2389, %v2387
      %v2452 = vpack.c.b16 %v2392, %v2390
      %v2453 = vpack.c.b16 %v2393, %v2391
      %v2454 = vpack.c.b16 %v2396, %v2394
      %v2455 = vpack.c.b16 %v2397, %v2395
      %v2456 = vpack.c.b16 %v2400, %v2398
      %v2457 = vpack.c.b16 %v2401, %v2399
      %v2458 = vpack.c.b16 %v2404, %v2402
      %v2459 = vpack.c.b16 %v2405, %v2403
      %v2460 = vpack.c.b16 %v2408, %v2406
      %v2461 = vpack.c.b16 %v2409, %v2407
      %v2462 = vpack.c.b16 %v2412, %v2410
      %v2463 = vpack.c.b16 %v2413, %v2411
      %v2464 = vpack.c.b16 %v2416, %v2414
      %v2465 = vpack.c.b16 %v2417, %v2415
      %v2466 = vpack.c.b16 %v2420, %v2418
      %v2467 = vpack.c.b16 %v2421, %v2419
      %v2468 = vpack.c.b16 %v2424, %v2422
      %v2469 = vpack.c.b16 %v2425, %v2423
      %v2470 = vpack.c.b16 %v2428, %v2426
      %v2471 = vpack.c.b16 %v2429, %v2427
      %v2472 = vpack.c.b16 %v2432, %v2430
      %v2473 = vpack.c.b16 %v2433, %v2431
      %v2474 = vpack.c.b16 %v2436, %v2434
      %v2475 = vpack.c.b16 %v2437, %v2435
      %v2476 = vpack.c.b16 %v2440, %v2438
      %v2477 = vpack.c.b16 %v2441, %v2439
      %v2478 = vpack.c.b16 %v2444, %v2442
      %v2479 = vpack.c.b16 %v2445, %v2443
      %v2480 = vpack.c.b16 %v2448, %v2446
      %v2481 = vpack.c.b16 %v2449, %v2447
      %2514 = vmatprep.subr.bf16.mxu0 %v2465
      %2515 = vmatpush1.bf16.msra.mxu0 %v2464
      %2516 = vmatprep.subr.bf16.mxu0 %v2463
      %2517 = vmatpush1.bf16.msra.mxu0 %v2462
      %2518 = vmatprep.subr.bf16.mxu0 %v2461
      %2519 = vmatpush1.bf16.msra.mxu0 %v2460
      %2520 = vmatprep.subr.bf16.mxu0 %v2459
      %2521 = vmatpush1.bf16.msra.mxu0 %v2458
      %2522 = vmatprep.subr.bf16.mxu0 %v2457
      %2523 = vmatpush1.bf16.msra.mxu0 %v2456
      %2524 = vmatprep.subr.bf16.mxu0 %v2455
      %2525 = vmatpush1.bf16.msra.mxu0 %v2454
      %2526 = vmatprep.subr.bf16.mxu0 %v2453
      %2527 = vmatpush1.bf16.msra.mxu0 %v2452
      %2528 = vmatprep.subr.bf16.mxu0 %v2451
      %2529 = vmatpush1.bf16.msra.mxu0 %v2450
      %2530 = vmatprep.subr.bf16.mxu0 %v2481
      %2531 = vmatpush2.bf16.msra.mxu0 %v2480
      %2532 = vmatprep.subr.bf16.mxu0 %v2479
      %2533 = vmatpush2.bf16.msra.mxu0 %v2478
      %2534 = vmatprep.subr.bf16.mxu0 %v2477
      %2535 = vmatpush2.bf16.msra.mxu0 %v2476
      %2536 = vmatprep.subr.bf16.mxu0 %v2475
      %2537 = vmatpush2.bf16.msra.mxu0 %v2474
      %2538 = vmatprep.subr.bf16.mxu0 %v2473
      %2539 = vmatpush2.bf16.msra.mxu0 %v2472
      %2540 = vmatprep.subr.bf16.mxu0 %v2471
      %2541 = vmatpush2.bf16.msra.mxu0 %v2470
      %2542 = vmatprep.subr.bf16.mxu0 %v2469
      %2543 = vmatpush2.bf16.msra.mxu0 %v2468
      %2544 = vmatprep.subr.bf16.mxu0 %v2467
      %2545 = vmatpush2.bf16.msra.mxu0 %v2466
      %2546 = vmatprep.mubr.bf16.mxu0 %v2307
      %2547 = vmatmul.mubr.bf16.gmra.mxu0 %v2306
      %v2548 = vpop.f32.mrf.mxu0
      %v2549 = vadd.f32 %v2347, %v2548
      %v2550 = vpop.f32.mrf.mxu0
      %v2551 = vadd.f32 %v2351, %v2550
      %v2552 = vpop.f32.mrf.mxu0
      %v2553 = vadd.f32 %v2347, %v2552
      %v2554 = vpop.f32.mrf.mxu0
      %v2555 = vadd.f32 %v2351, %v2554
      %2556 = vmatprep.mubr.bf16.mxu0 %v2309
      %2557 = vmatmul.mubr.bf16.gmra.mxu0 %v2308
      %v2558 = vpop.f32.mrf.mxu0
      %v2559 = vadd.f32 %v2347, %v2558
      %v2560 = vpop.f32.mrf.mxu0
      %v2561 = vadd.f32 %v2351, %v2560
      %v2562 = vpop.f32.mrf.mxu0
      %v2563 = vadd.f32 %v2347, %v2562
      %v2564 = vpop.f32.mrf.mxu0
      %v2565 = vadd.f32 %v2351, %v2564
      %2566 = vdwg.mxu0
      %v2567 = vadd.f32 %v2549, %v2551
      %2568 = vadd.xlane.f32.xlu0 %v2567
      %v2569 = vpop.xlane.xlu0 %2568
      %v2570 = vadd.f32 %v2553, %v2555
      %2571 = vadd.xlane.f32.xlu0 %v2570
      %v2572 = vpop.xlane.xlu0 %2571
      %v2573 = vadd.f32 %v2559, %v2561
      %2574 = vadd.xlane.f32.xlu0 %v2573
      %v2575 = vpop.xlane.xlu0 %2574
      %v2576 = vadd.f32 %v2563, %v2565
      %2577 = vadd.xlane.f32.xlu0 %v2576
      %v2578 = vpop.xlane.xlu0 %2577
      %v2579 = vmul.f32 %v2569, %v1445
      %v2580 = vmul.f32 %v2572, %v1445
      %v2581 = vmul.f32 %v2575, %v1445
      %v2582 = vmul.f32 %v2578, %v1445
      %v2583 = vsub.f32 %v2549, %v2579
      %v2584 = vsub.f32 %v2551, %v2579
      %v2585 = vsub.f32 %v2553, %v2580
      %v2586 = vsub.f32 %v2555, %v2580
      %v2587 = vsub.f32 %v2559, %v2581
      %v2588 = vsub.f32 %v2561, %v2581
      %v2589 = vsub.f32 %v2563, %v2582
      %v2590 = vsub.f32 %v2565, %v2582
      %v2591 = vmul.f32 %v2583, %v2583
      %v2592 = vmul.f32 %v2584, %v2584
      %v2593 = vmul.f32 %v2585, %v2585
      %v2594 = vmul.f32 %v2586, %v2586
      %v2595 = vmul.f32 %v2587, %v2587
      %v2596 = vmul.f32 %v2588, %v2588
      %v2597 = vmul.f32 %v2589, %v2589
      %v2598 = vmul.f32 %v2590, %v2590
      %v2599 = vadd.f32 %v2591, %v2592
      %2600 = vadd.xlane.f32.xlu0 %v2599
      %v2601 = vpop.xlane.xlu0 %2600
      %v2602 = vadd.f32 %v2593, %v2594
      %2603 = vadd.xlane.f32.xlu0 %v2602
      %v2604 = vpop.xlane.xlu0 %2603
      %v2605 = vadd.f32 %v2595, %v2596
      %2606 = vadd.xlane.f32.xlu0 %v2605
      %v2607 = vpop.xlane.xlu0 %2606
      %v2608 = vadd.f32 %v2597, %v2598
      %2609 = vadd.xlane.f32.xlu0 %v2608
      %v2610 = vpop.xlane.xlu0 %2609
      %v2611 = vmul.f32 %v2601, %v1445
      %v2612 = vmul.f32 %v2604, %v1445
      %v2613 = vmul.f32 %v2607, %v1445
      %v2614 = vmul.f32 %v2610, %v1445
      %v2615 = vadd.f32 %v2611, 1e-05
      %v2616 = vadd.f32 %v2612, 1e-05
      %v2617 = vadd.f32 %v2613, 1e-05
      %v2618 = vadd.f32 %v2614, 1e-05
      %v2619 = vrsqrt.pop %v2615
      %v2620 = vrsqrt.pop %v2616
      %v2621 = vrsqrt.pop %v2617
      %v2622 = vrsqrt.pop %v2618
      %v2623 = vmul.f32 %v2583, %v2619
      %v2624 = vmul.f32 %v2584, %v2619
      %v2625 = vmul.f32 %v2585, %v2620
      %v2626 = vmul.f32 %v2586, %v2620
      %v2627 = vmul.f32 %v2587, %v2621
      %v2628 = vmul.f32 %v2588, %v2621
      %v2629 = vmul.f32 %v2589, %v2622
      %v2630 = vmul.f32 %v2590, %v2622
      %v2631 = vld [vmem:[%s39] sm:$0x3]
      %v2633 = vlaneseq
      %v2634 = vshrl.u32 %v2633, 7
      %v2635 = vsub.s32 0, %v2634
      %v2636 = vrot.slane %v2631, %v2635
      %v2637 = vlaneseq
      %v2638 = vshrl.u32 %v2637, 7
      %v2639 = vsub.s32 1, %v2638
      %v2640 = vrot.slane %v2631, %v2639
      %v2643 = vmul.f32 %v2623, %v2636
      %v2644 = vmul.f32 %v2624, %v2640
      %v2645 = vmul.f32 %v2625, %v2636
      %v2646 = vmul.f32 %v2626, %v2640
      %v2647 = vmul.f32 %v2627, %v2636
      %v2648 = vmul.f32 %v2628, %v2640
      %v2649 = vmul.f32 %v2629, %v2636
      %v2650 = vmul.f32 %v2630, %v2640
      %v2651 = vld [vmem:[%s41] sm:$0x3]
      %v2653 = vlaneseq
      %v2654 = vshrl.u32 %v2653, 7
      %v2655 = vsub.s32 0, %v2654
      %v2656 = vrot.slane %v2651, %v2655
      %v2657 = vlaneseq
      %v2658 = vshrl.u32 %v2657, 7
      %v2659 = vsub.s32 1, %v2658
      %v2660 = vrot.slane %v2651, %v2659
      %v2663 = vadd.f32 %v2643, %v2656
      %v2664 = vadd.f32 %v2644, %v2660
      %v2665 = vadd.f32 %v2645, %v2656
      %v2666 = vadd.f32 %v2646, %v2660
      %v2667 = vadd.f32 %v2647, %v2656
      %v2668 = vadd.f32 %v2648, %v2660
      %v2669 = vadd.f32 %v2649, %v2656
      %v2670 = vadd.f32 %v2650, %v2660
      %v2671 = vmax.f32 %v2663, 0.0
      %v2672 = vmax.f32 %v2664, 0.0
      %v2673 = vmax.f32 %v2665, 0.0
      %v2674 = vmax.f32 %v2666, 0.0
      %v2675 = vmax.f32 %v2667, 0.0
      %v2676 = vmax.f32 %v2668, 0.0
      %v2677 = vmax.f32 %v2669, 0.0
      %v2678 = vmax.f32 %v2670, 0.0
      %v2679 = vpack.c.bf16 %v2673, %v2671
      %v2680 = vpack.c.bf16 %v2674, %v2672
      %v2681 = vpack.c.bf16 %v2677, %v2675
      %v2682 = vpack.c.bf16 %v2678, %v2676
      %v2683 = vld [vmem:[%s43] sm:$0xf]
      %v2684 = vld [vmem:[%s43 + $0x4] sm:$0xf]
      %v2685 = vld [vmem:[%s43 + $0x8] sm:$0xf]
      %v2686 = vld [vmem:[%s43 + $0xc] sm:$0xf]
      %v2687 = vld [vmem:[%s43 + $0x10] sm:$0xf]
      %v2688 = vld [vmem:[%s43 + $0x14] sm:$0xf]
      %v2689 = vld [vmem:[%s43 + $0x18] sm:$0xf]
      %v2690 = vld [vmem:[%s43 + $0x1c] sm:$0xf]
      %v2691 = vld [vmem:[%s43 + $0x20] sm:$0xf]
      %v2692 = vld [vmem:[%s43 + $0x24] sm:$0xf]
      %v2693 = vld [vmem:[%s43 + $0x28] sm:$0xf]
      %v2694 = vld [vmem:[%s43 + $0x2c] sm:$0xf]
      %v2695 = vld [vmem:[%s43 + $0x30] sm:$0xf]
      %v2696 = vld [vmem:[%s43 + $0x34] sm:$0xf]
      %v2697 = vld [vmem:[%s43 + $0x38] sm:$0xf]
      %v2698 = vld [vmem:[%s43 + $0x3c] sm:$0xf]
      %v2699 = vld [vmem:[%s43 + $0x40] sm:$0xf]
      %v2700 = vld [vmem:[%s43 + $0x44] sm:$0xf]
      %v2701 = vld [vmem:[%s43 + $0x48] sm:$0xf]
      %v2702 = vld [vmem:[%s43 + $0x4c] sm:$0xf]
      %v2703 = vld [vmem:[%s43 + $0x50] sm:$0xf]
      %v2704 = vld [vmem:[%s43 + $0x54] sm:$0xf]
      %v2705 = vld [vmem:[%s43 + $0x58] sm:$0xf]
      %v2706 = vld [vmem:[%s43 + $0x5c] sm:$0xf]
      %v2707 = vld [vmem:[%s43 + $0x60] sm:$0xf]
      %v2708 = vld [vmem:[%s43 + $0x64] sm:$0xf]
      %v2709 = vld [vmem:[%s43 + $0x68] sm:$0xf]
      %v2710 = vld [vmem:[%s43 + $0x6c] sm:$0xf]
      %v2711 = vld [vmem:[%s43 + $0x70] sm:$0xf]
      %v2712 = vld [vmem:[%s43 + $0x74] sm:$0xf]
      %v2713 = vld [vmem:[%s43 + $0x78] sm:$0xf]
      %v2714 = vld [vmem:[%s43 + $0x7c] sm:$0xf]
      %v2715 = vld [vmem:[%s45] sm:$0x1]
      %v2717 = vlaneseq
      %v2718 = vshrl.u32 %v2717, 7
      %v2719 = vsub.s32 0, %v2718
      %v2720 = vrot.slane %v2715, %v2719
      %v2754 = vunpack.c.l.b16 %v2683
      %v2755 = vunpack.c.l.b16 %v2684
      %v2756 = vunpack.c.l.b16 %v2685
      %v2757 = vunpack.c.l.b16 %v2686
      %v2758 = vunpack.c.l.b16 %v2687
      %v2759 = vunpack.c.l.b16 %v2688
      %v2760 = vunpack.c.l.b16 %v2689
      %v2761 = vunpack.c.l.b16 %v2690
      %v2762 = vunpack.c.l.b16 %v2691
      %v2763 = vunpack.c.l.b16 %v2692
      %v2764 = vunpack.c.l.b16 %v2693
      %v2765 = vunpack.c.l.b16 %v2694
      %v2766 = vunpack.c.l.b16 %v2695
      %v2767 = vunpack.c.l.b16 %v2696
      %v2768 = vunpack.c.l.b16 %v2697
      %v2769 = vunpack.c.l.b16 %v2698
      %v2770 = vunpack.c.l.b16 %v2699
      %v2771 = vunpack.c.l.b16 %v2700
      %v2772 = vunpack.c.l.b16 %v2701
      %v2773 = vunpack.c.l.b16 %v2702
      %v2774 = vunpack.c.l.b16 %v2703
      %v2775 = vunpack.c.l.b16 %v2704
      %v2776 = vunpack.c.l.b16 %v2705
      %v2777 = vunpack.c.l.b16 %v2706
      %v2778 = vunpack.c.l.b16 %v2707
      %v2779 = vunpack.c.l.b16 %v2708
      %v2780 = vunpack.c.l.b16 %v2709
      %v2781 = vunpack.c.l.b16 %v2710
      %v2782 = vunpack.c.l.b16 %v2711
      %v2783 = vunpack.c.l.b16 %v2712
      %v2784 = vunpack.c.l.b16 %v2713
      %v2785 = vunpack.c.l.b16 %v2714
      %v2786 = vpack.c.b16 %v2755, %v2754
      %v2787 = vpack.c.b16 %v2757, %v2756
      %v2788 = vpack.c.b16 %v2759, %v2758
      %v2789 = vpack.c.b16 %v2761, %v2760
      %v2790 = vpack.c.b16 %v2763, %v2762
      %v2791 = vpack.c.b16 %v2765, %v2764
      %v2792 = vpack.c.b16 %v2767, %v2766
      %v2793 = vpack.c.b16 %v2769, %v2768
      %v2794 = vpack.c.b16 %v2771, %v2770
      %v2795 = vpack.c.b16 %v2773, %v2772
      %v2796 = vpack.c.b16 %v2775, %v2774
      %v2797 = vpack.c.b16 %v2777, %v2776
      %v2798 = vpack.c.b16 %v2779, %v2778
      %v2799 = vpack.c.b16 %v2781, %v2780
      %v2800 = vpack.c.b16 %v2783, %v2782
      %v2801 = vpack.c.b16 %v2785, %v2784
      %2818 = vmatprep.subr.bf16.mxu0 0
      %2819 = vmatpush1.bf16.msra.mxu0 %v2793
      %2820 = vmatprep.subr.bf16.mxu0 0
      %2821 = vmatpush1.bf16.msra.mxu0 %v2792
      %2822 = vmatprep.subr.bf16.mxu0 0
      %2823 = vmatpush1.bf16.msra.mxu0 %v2791
      %2824 = vmatprep.subr.bf16.mxu0 0
      %2825 = vmatpush1.bf16.msra.mxu0 %v2790
      %2826 = vmatprep.subr.bf16.mxu0 0
      %2827 = vmatpush1.bf16.msra.mxu0 %v2789
      %2828 = vmatprep.subr.bf16.mxu0 0
      %2829 = vmatpush1.bf16.msra.mxu0 %v2788
      %2830 = vmatprep.subr.bf16.mxu0 0
      %2831 = vmatpush1.bf16.msra.mxu0 %v2787
      %2832 = vmatprep.subr.bf16.mxu0 0
      %2833 = vmatpush1.bf16.msra.mxu0 %v2786
      %2834 = vmatprep.subr.bf16.mxu0 0
      %2835 = vmatpush2.bf16.msra.mxu0 %v2801
      %2836 = vmatprep.subr.bf16.mxu0 0
      %2837 = vmatpush2.bf16.msra.mxu0 %v2800
      %2838 = vmatprep.subr.bf16.mxu0 0
      %2839 = vmatpush2.bf16.msra.mxu0 %v2799
      %2840 = vmatprep.subr.bf16.mxu0 0
      %2841 = vmatpush2.bf16.msra.mxu0 %v2798
      %2842 = vmatprep.subr.bf16.mxu0 0
      %2843 = vmatpush2.bf16.msra.mxu0 %v2797
      %2844 = vmatprep.subr.bf16.mxu0 0
      %2845 = vmatpush2.bf16.msra.mxu0 %v2796
      %2846 = vmatprep.subr.bf16.mxu0 0
      %2847 = vmatpush2.bf16.msra.mxu0 %v2795
      %2848 = vmatprep.subr.bf16.mxu0 0
      %2849 = vmatpush2.bf16.msra.mxu0 %v2794
      %2850 = vmatprep.mubr.bf16.mxu0 %v2680
      %2851 = vmatmul.mubr.bf16.gmra.mxu0 %v2679
      %v2852 = vpop.f32.mrf.mxu0
      %v2853 = vadd.f32 %v2720, %v2852
      %v2854 = vpop.f32.mrf.mxu0
      %v2855 = vpop.f32.mrf.mxu0
      %v2856 = vadd.f32 %v2720, %v2855
      %v2857 = vpop.f32.mrf.mxu0
      %2858 = vmatprep.mubr.bf16.mxu0 %v2682
      %2859 = vmatmul.mubr.bf16.gmra.mxu0 %v2681
      %v2860 = vpop.f32.mrf.mxu0
      %v2861 = vadd.f32 %v2720, %v2860
      %v2862 = vpop.f32.mrf.mxu0
      %v2863 = vpop.f32.mrf.mxu0
      %v2864 = vadd.f32 %v2720, %v2863
      %v2865 = vpop.f32.mrf.mxu0
      %2866 = vdwg.mxu0
      %v2867 = vtanh.pop %v2853
      %v2868 = vtanh.pop %v2856
      %v2869 = vtanh.pop %v2861
      %v2870 = vtanh.pop %v2864
      %v2871 = vpack.c.bf16 %v2868, %v2867
      %v2872 = vpack.c.bf16 %v2870, %v2869
      %v2875 = vunpack.c.l.b16 %v2007
      %v2876 = vunpack.c.l.b16 %v2008
      %v2877 = vpack.c.b16 %v2876, %v2875
      %vm2878 = vcmask 261120
      %v2880 = vsel %vm2878, %v2877, 0
      %2882 = vmatprep.subr.bf16.mxu0 0
      %2883 = vmatpush1.bf16.msra.mxu0 0
      %2884 = vmatprep.subr.bf16.mxu0 0
      %2885 = vmatpush1.bf16.msra.mxu0 0
      %2886 = vmatprep.subr.bf16.mxu0 0
      %2887 = vmatpush1.bf16.msra.mxu0 0
      %2888 = vmatprep.subr.bf16.mxu0 0
      %2889 = vmatpush1.bf16.msra.mxu0 0
      %2890 = vmatprep.subr.bf16.mxu0 0
      %2891 = vmatpush1.bf16.msra.mxu0 0
      %2892 = vmatprep.subr.bf16.mxu0 0
      %2893 = vmatpush1.bf16.msra.mxu0 0
      %2894 = vmatprep.subr.bf16.mxu0 0
      %2895 = vmatpush1.bf16.msra.mxu0 %v2872
      %2896 = vmatprep.subr.bf16.mxu0 0
      %2897 = vmatpush1.bf16.msra.mxu0 %v2871
      %2898 = vmatprep.subr.bf16.mxu0 0
      %2899 = vmatpush2.bf16.msra.mxu0 0
      %2900 = vmatprep.subr.bf16.mxu0 0
      %2901 = vmatpush2.bf16.msra.mxu0 0
      %2902 = vmatprep.subr.bf16.mxu0 0
      %2903 = vmatpush2.bf16.msra.mxu0 0
      %2904 = vmatprep.subr.bf16.mxu0 0
      %2905 = vmatpush2.bf16.msra.mxu0 0
      %2906 = vmatprep.subr.bf16.mxu0 0
      %2907 = vmatpush2.bf16.msra.mxu0 0
      %2908 = vmatprep.subr.bf16.mxu0 0
      %2909 = vmatpush2.bf16.msra.mxu0 0
      %2910 = vmatprep.subr.bf16.mxu0 0
      %2911 = vmatpush2.bf16.msra.mxu0 0
      %2912 = vmatprep.subr.bf16.mxu0 0
      %2913 = vmatpush2.bf16.msra.mxu0 0
      %2914 = vmatprep.mubr.bf16.mxu0 0
      %2915 = vmatmul.mubr.bf16.gmra.mxu0 %v2880
      %v2916 = vpop.f32.mrf.mxu0
      %v2917 = vadd.f32 0.0, %v2916
      %v2918 = vpop.f32.mrf.mxu0
      %v2919 = vpop.f32.mrf.mxu0
      %v2920 = vadd.f32 0.0, %v2919
      %v2921 = vpop.f32.mrf.mxu0
      %2922 = vdwg.mxu0
      %v2923 = vpack.c.bf16 %v2920, %v2917
      %v2924 = vld [vmem:[%s47] sm:$0xff]
      %v2925 = vld [vmem:[%s47 + $0x8] sm:$0xff]
      %v2926 = vld [vmem:[%s47 + $0x10] sm:$0xff]
      %v2927 = vld [vmem:[%s47 + $0x18] sm:$0xff]
      %v2928 = vld [vmem:[%s47 + $0x20] sm:$0xff]
      %v2929 = vld [vmem:[%s47 + $0x28] sm:$0xff]
      %v2930 = vld [vmem:[%s47 + $0x30] sm:$0xff]
      %v2931 = vld [vmem:[%s47 + $0x38] sm:$0xff]
      %v2932 = vld [vmem:[%s49] sm:$0xff]
      %v2933 = vld [vmem:[%s49 + $0x8] sm:$0xff]
      %v2934 = vld [vmem:[%s49 + $0x10] sm:$0xff]
      %v2935 = vld [vmem:[%s49 + $0x18] sm:$0xff]
      %v2936 = vld [vmem:[%s49 + $0x20] sm:$0xff]
      %v2937 = vld [vmem:[%s49 + $0x28] sm:$0xff]
      %v2938 = vld [vmem:[%s49 + $0x30] sm:$0xff]
      %v2939 = vld [vmem:[%s49 + $0x38] sm:$0xff]
      %v2948 = vunpack.c.l.b16 %v2932
      %v2949 = vunpack.c.h.b16 %v2932
      %v2950 = vunpack.c.l.b16 %v2933
      %v2951 = vunpack.c.h.b16 %v2933
      %v2952 = vunpack.c.l.b16 %v2934
      %v2953 = vunpack.c.h.b16 %v2934
      %v2954 = vunpack.c.l.b16 %v2935
      %v2955 = vunpack.c.h.b16 %v2935
      %v2956 = vunpack.c.l.b16 %v2936
      %v2957 = vunpack.c.h.b16 %v2936
      %v2958 = vunpack.c.l.b16 %v2937
      %v2959 = vunpack.c.h.b16 %v2937
      %v2960 = vunpack.c.l.b16 %v2938
      %v2961 = vunpack.c.h.b16 %v2938
      %v2962 = vunpack.c.l.b16 %v2939
      %v2963 = vunpack.c.h.b16 %v2939
      %v2964 = vpack.c.b16 %v2950, %v2948
      %v2965 = vpack.c.b16 %v2951, %v2949
      %v2966 = vpack.c.b16 %v2954, %v2952
      %v2967 = vpack.c.b16 %v2955, %v2953
      %v2968 = vpack.c.b16 %v2958, %v2956
      %v2969 = vpack.c.b16 %v2959, %v2957
      %v2970 = vpack.c.b16 %v2962, %v2960
      %v2971 = vpack.c.b16 %v2963, %v2961
      %v2981 = vsel %vm2134, %v2017, 0
      %2983 = vmatprep.subr.bf16.mxu0 0
      %2984 = vmatpush1.bf16.msra.mxu0 0
      %2985 = vmatprep.subr.bf16.mxu0 0
      %2986 = vmatpush1.bf16.msra.mxu0 0
      %2987 = vmatprep.subr.bf16.mxu0 0
      %2988 = vmatpush1.bf16.msra.mxu0 0
      %2989 = vmatprep.subr.bf16.mxu0 0
      %2990 = vmatpush1.bf16.msra.mxu0 0
      %2991 = vmatprep.subr.bf16.mxu0 %v2971
      %2992 = vmatpush1.bf16.msra.mxu0 %v2970
      %2993 = vmatprep.subr.bf16.mxu0 %v2969
      %2994 = vmatpush1.bf16.msra.mxu0 %v2968
      %2995 = vmatprep.subr.bf16.mxu0 %v2967
      %2996 = vmatpush1.bf16.msra.mxu0 %v2966
      %2997 = vmatprep.subr.bf16.mxu0 %v2965
      %2998 = vmatpush1.bf16.msra.mxu0 %v2964
      %2999 = vmatprep.subr.bf16.mxu0 0
      %3000 = vmatpush2.bf16.msra.mxu0 0
      %3001 = vmatprep.subr.bf16.mxu0 0
      %3002 = vmatpush2.bf16.msra.mxu0 0
      %3003 = vmatprep.subr.bf16.mxu0 0
      %3004 = vmatpush2.bf16.msra.mxu0 0
      %3005 = vmatprep.subr.bf16.mxu0 0
      %3006 = vmatpush2.bf16.msra.mxu0 0
      %3007 = vmatprep.subr.bf16.mxu0 0
      %3008 = vmatpush2.bf16.msra.mxu0 0
      %3009 = vmatprep.subr.bf16.mxu0 0
      %3010 = vmatpush2.bf16.msra.mxu0 0
      %3011 = vmatprep.subr.bf16.mxu0 0
      %3012 = vmatpush2.bf16.msra.mxu0 0
      %3013 = vmatprep.subr.bf16.mxu0 0
      %3014 = vmatpush2.bf16.msra.mxu0 0
      %3015 = vmatprep.mubr.bf16.mxu0 0
      %3016 = vmatmul.mubr.bf16.gmra.mxu0 %v2981
      %v3017 = vpop.f32.mrf.mxu0
      %v3018 = vadd.f32 0.0, %v3017
      %v3019 = vpop.f32.mrf.mxu0
      %v3020 = vadd.f32 0.0, %v3019
      %v3021 = vpop.f32.mrf.mxu0
      %v3022 = vadd.f32 0.0, %v3021
      %v3023 = vpop.f32.mrf.mxu0
      %v3024 = vadd.f32 0.0, %v3023
      %3025 = vdwg.mxu0
      %v3034 = vunpack.c.l.b16 %v2924
      %v3035 = vunpack.c.h.b16 %v2924
      %v3036 = vunpack.c.l.b16 %v2925
      %v3037 = vunpack.c.h.b16 %v2925
      %v3038 = vunpack.c.l.b16 %v2926
      %v3039 = vunpack.c.h.b16 %v2926
      %v3040 = vunpack.c.l.b16 %v2927
      %v3041 = vunpack.c.h.b16 %v2927
      %v3042 = vunpack.c.l.b16 %v2928
      %v3043 = vunpack.c.h.b16 %v2928
      %v3044 = vunpack.c.l.b16 %v2929
      %v3045 = vunpack.c.h.b16 %v2929
      %v3046 = vunpack.c.l.b16 %v2930
      %v3047 = vunpack.c.h.b16 %v2930
      %v3048 = vunpack.c.l.b16 %v2931
      %v3049 = vunpack.c.h.b16 %v2931
      %v3050 = vpack.c.b16 %v3036, %v3034
      %v3051 = vpack.c.b16 %v3037, %v3035
      %v3052 = vpack.c.b16 %v3040, %v3038
      %v3053 = vpack.c.b16 %v3041, %v3039
      %v3054 = vpack.c.b16 %v3044, %v3042
      %v3055 = vpack.c.b16 %v3045, %v3043
      %v3056 = vpack.c.b16 %v3048, %v3046
      %v3057 = vpack.c.b16 %v3049, %v3047
      %v3067 = vsel %vm2134, %v2923, 0
      %3069 = vmatprep.subr.bf16.mxu0 0
      %3070 = vmatpush1.bf16.msra.mxu0 0
      %3071 = vmatprep.subr.bf16.mxu0 0
      %3072 = vmatpush1.bf16.msra.mxu0 0
      %3073 = vmatprep.subr.bf16.mxu0 0
      %3074 = vmatpush1.bf16.msra.mxu0 0
      %3075 = vmatprep.subr.bf16.mxu0 0
      %3076 = vmatpush1.bf16.msra.mxu0 0
      %3077 = vmatprep.subr.bf16.mxu0 %v3057
      %3078 = vmatpush1.bf16.msra.mxu0 %v3056
      %3079 = vmatprep.subr.bf16.mxu0 %v3055
      %3080 = vmatpush1.bf16.msra.mxu0 %v3054
      %3081 = vmatprep.subr.bf16.mxu0 %v3053
      %3082 = vmatpush1.bf16.msra.mxu0 %v3052
      %3083 = vmatprep.subr.bf16.mxu0 %v3051
      %3084 = vmatpush1.bf16.msra.mxu0 %v3050
      %3085 = vmatprep.subr.bf16.mxu0 0
      %3086 = vmatpush2.bf16.msra.mxu0 0
      %3087 = vmatprep.subr.bf16.mxu0 0
      %3088 = vmatpush2.bf16.msra.mxu0 0
      %3089 = vmatprep.subr.bf16.mxu0 0
      %3090 = vmatpush2.bf16.msra.mxu0 0
      %3091 = vmatprep.subr.bf16.mxu0 0
      %3092 = vmatpush2.bf16.msra.mxu0 0
      %3093 = vmatprep.subr.bf16.mxu0 0
      %3094 = vmatpush2.bf16.msra.mxu0 0
      %3095 = vmatprep.subr.bf16.mxu0 0
      %3096 = vmatpush2.bf16.msra.mxu0 0
      %3097 = vmatprep.subr.bf16.mxu0 0
      %3098 = vmatpush2.bf16.msra.mxu0 0
      %3099 = vmatprep.subr.bf16.mxu0 0
      %3100 = vmatpush2.bf16.msra.mxu0 0
      %3101 = vmatprep.mubr.bf16.mxu0 0
      %3102 = vmatmul.mubr.bf16.gmra.mxu0 %v3067
      %v3103 = vpop.f32.mrf.mxu0
      %v3104 = vadd.f32 %v3018, %v3103
      %v3105 = vpop.f32.mrf.mxu0
      %v3106 = vadd.f32 %v3020, %v3105
      %v3107 = vpop.f32.mrf.mxu0
      %v3108 = vadd.f32 %v3022, %v3107
      %v3109 = vpop.f32.mrf.mxu0
      %v3110 = vadd.f32 %v3024, %v3109
      %3111 = vdwg.mxu0
      %v3112 = vld [vmem:[%s51] sm:$0x3]
      %v3114 = vlaneseq
      %v3115 = vshrl.u32 %v3114, 7
      %v3116 = vsub.s32 0, %v3115
      %v3117 = vrot.slane %v3112, %v3116
      %v3118 = vlaneseq
      %v3119 = vshrl.u32 %v3118, 7
      %v3120 = vsub.s32 1, %v3119
      %v3121 = vrot.slane %v3112, %v3120
      %v3124 = vadd.f32 %v3104, %v3117
      %v3125 = vadd.f32 %v3106, %v3121
      %v3126 = vadd.f32 %v3108, %v3117
      %v3127 = vadd.f32 %v3110, %v3121
      %v3128 = vadd.f32 %v3124, %v3125
      %3129 = vadd.xlane.f32.xlu0 %v3128
      %v3130 = vpop.xlane.xlu0 %3129
      %v3131 = vadd.f32 %v3126, %v3127
      %3132 = vadd.xlane.f32.xlu0 %v3131
      %v3133 = vpop.xlane.xlu0 %3132
      %v3134 = vmul.f32 %v3130, %v1445
      %v3135 = vmul.f32 %v3133, %v1445
      %v3136 = vsub.f32 %v3124, %v3134
      %v3137 = vsub.f32 %v3125, %v3134
      %v3138 = vsub.f32 %v3126, %v3135
      %v3139 = vsub.f32 %v3127, %v3135
      %v3140 = vmul.f32 %v3136, %v3136
      %v3141 = vmul.f32 %v3137, %v3137
      %v3142 = vmul.f32 %v3138, %v3138
      %v3143 = vmul.f32 %v3139, %v3139
      %v3144 = vadd.f32 %v3140, %v3141
      %3145 = vadd.xlane.f32.xlu0 %v3144
      %v3146 = vpop.xlane.xlu0 %3145
      %v3147 = vadd.f32 %v3142, %v3143
      %3148 = vadd.xlane.f32.xlu0 %v3147
      %v3149 = vpop.xlane.xlu0 %3148
      %v3150 = vmul.f32 %v3146, %v1445
      %v3151 = vmul.f32 %v3149, %v1445
      %v3152 = vadd.f32 %v3150, 1e-05
      %v3153 = vadd.f32 %v3151, 1e-05
      %v3154 = vrsqrt.pop %v3152
      %v3155 = vrsqrt.pop %v3153
      %v3156 = vmul.f32 %v3136, %v3154
      %v3157 = vmul.f32 %v3137, %v3154
      %v3158 = vmul.f32 %v3138, %v3155
      %v3159 = vmul.f32 %v3139, %v3155
      %v3160 = vld [vmem:[%s53] sm:$0x3]
      %v3162 = vlaneseq
      %v3163 = vshrl.u32 %v3162, 7
      %v3164 = vsub.s32 0, %v3163
      %v3165 = vrot.slane %v3160, %v3164
      %v3166 = vlaneseq
      %v3167 = vshrl.u32 %v3166, 7
      %v3168 = vsub.s32 1, %v3167
      %v3169 = vrot.slane %v3160, %v3168
      %v3172 = vmul.f32 %v3156, %v3165
      %v3173 = vmul.f32 %v3157, %v3169
      %v3174 = vmul.f32 %v3158, %v3165
      %v3175 = vmul.f32 %v3159, %v3169
      %v3176 = vld [vmem:[%s55] sm:$0x3]
      %v3178 = vlaneseq
      %v3179 = vshrl.u32 %v3178, 7
      %v3180 = vsub.s32 0, %v3179
      %v3181 = vrot.slane %v3176, %v3180
      %v3182 = vlaneseq
      %v3183 = vshrl.u32 %v3182, 7
      %v3184 = vsub.s32 1, %v3183
      %v3185 = vrot.slane %v3176, %v3184
      %v3188 = vadd.f32 %v3172, %v3181
      %v3189 = vadd.f32 %v3173, %v3185
      %v3190 = vadd.f32 %v3174, %v3181
      %v3191 = vadd.f32 %v3175, %v3185
      %v3192 = vmax.f32 %v3188, 0.0
      %v3193 = vmax.f32 %v3189, 0.0
      %v3194 = vmax.f32 %v3190, 0.0
      %v3195 = vmax.f32 %v3191, 0.0
      %v3196 = vpack.c.bf16 %v3194, %v3192
      %v3197 = vpack.c.bf16 %v3195, %v3193
      %v3198 = vld [vmem:[%s57] sm:$0xff]
      %v3199 = vld [vmem:[%s57 + $0x8] sm:$0xff]
      %v3200 = vld [vmem:[%s57 + $0x10] sm:$0xff]
      %v3201 = vld [vmem:[%s57 + $0x18] sm:$0xff]
      %v3202 = vld [vmem:[%s57 + $0x20] sm:$0xff]
      %v3203 = vld [vmem:[%s57 + $0x28] sm:$0xff]
      %v3204 = vld [vmem:[%s57 + $0x30] sm:$0xff]
      %v3205 = vld [vmem:[%s57 + $0x38] sm:$0xff]
      %v3206 = vld [vmem:[%s57 + $0x40] sm:$0xff]
      %v3207 = vld [vmem:[%s57 + $0x48] sm:$0xff]
      %v3208 = vld [vmem:[%s57 + $0x50] sm:$0xff]
      %v3209 = vld [vmem:[%s57 + $0x58] sm:$0xff]
      %v3210 = vld [vmem:[%s57 + $0x60] sm:$0xff]
      %v3211 = vld [vmem:[%s57 + $0x68] sm:$0xff]
      %v3212 = vld [vmem:[%s57 + $0x70] sm:$0xff]
      %v3213 = vld [vmem:[%s57 + $0x78] sm:$0xff]
      %v3214 = vld [vmem:[%s57 + $0x80] sm:$0xff]
      %v3215 = vld [vmem:[%s57 + $0x88] sm:$0xff]
      %v3216 = vld [vmem:[%s57 + $0x90] sm:$0xff]
      %v3217 = vld [vmem:[%s57 + $0x98] sm:$0xff]
      %v3218 = vld [vmem:[%s57 + $0xa0] sm:$0xff]
      %v3219 = vld [vmem:[%s57 + $0xa8] sm:$0xff]
      %v3220 = vld [vmem:[%s57 + $0xb0] sm:$0xff]
      %v3221 = vld [vmem:[%s57 + $0xb8] sm:$0xff]
      %v3222 = vld [vmem:[%s57 + $0xc0] sm:$0xff]
      %v3223 = vld [vmem:[%s57 + $0xc8] sm:$0xff]
      %v3224 = vld [vmem:[%s57 + $0xd0] sm:$0xff]
      %v3225 = vld [vmem:[%s57 + $0xd8] sm:$0xff]
      %v3226 = vld [vmem:[%s57 + $0xe0] sm:$0xff]
      %v3227 = vld [vmem:[%s57 + $0xe8] sm:$0xff]
      %v3228 = vld [vmem:[%s57 + $0xf0] sm:$0xff]
      %v3229 = vld [vmem:[%s57 + $0xf8] sm:$0xff]
      %v3230 = vld [vmem:[%s59] sm:$0x3]
      %v3232 = vlaneseq
      %v3233 = vshrl.u32 %v3232, 7
      %v3234 = vsub.s32 0, %v3233
      %v3235 = vrot.slane %v3230, %v3234
      %v3236 = vlaneseq
      %v3237 = vshrl.u32 %v3236, 7
      %v3238 = vsub.s32 1, %v3237
      %v3239 = vrot.slane %v3230, %v3238
      %v3274 = vunpack.c.l.b16 %v3198
      %v3275 = vunpack.c.h.b16 %v3198
      %v3276 = vunpack.c.l.b16 %v3199
      %v3277 = vunpack.c.h.b16 %v3199
      %v3278 = vunpack.c.l.b16 %v3200
      %v3279 = vunpack.c.h.b16 %v3200
      %v3280 = vunpack.c.l.b16 %v3201
      %v3281 = vunpack.c.h.b16 %v3201
      %v3282 = vunpack.c.l.b16 %v3202
      %v3283 = vunpack.c.h.b16 %v3202
      %v3284 = vunpack.c.l.b16 %v3203
      %v3285 = vunpack.c.h.b16 %v3203
      %v3286 = vunpack.c.l.b16 %v3204
      %v3287 = vunpack.c.h.b16 %v3204
      %v3288 = vunpack.c.l.b16 %v3205
      %v3289 = vunpack.c.h.b16 %v3205
      %v3290 = vunpack.c.l.b16 %v3206
      %v3291 = vunpack.c.h.b16 %v3206
      %v3292 = vunpack.c.l.b16 %v3207
      %v3293 = vunpack.c.h.b16 %v3207
      %v3294 = vunpack.c.l.b16 %v3208
      %v3295 = vunpack.c.h.b16 %v3208
      %v3296 = vunpack.c.l.b16 %v3209
      %v3297 = vunpack.c.h.b16 %v3209
      %v3298 = vunpack.c.l.b16 %v3210
      %v3299 = vunpack.c.h.b16 %v3210
      %v3300 = vunpack.c.l.b16 %v3211
      %v3301 = vunpack.c.h.b16 %v3211
      %v3302 = vunpack.c.l.b16 %v3212
      %v3303 = vunpack.c.h.b16 %v3212
      %v3304 = vunpack.c.l.b16 %v3213
      %v3305 = vunpack.c.h.b16 %v3213
      %v3306 = vunpack.c.l.b16 %v3214
      %v3307 = vunpack.c.h.b16 %v3214
      %v3308 = vunpack.c.l.b16 %v3215
      %v3309 = vunpack.c.h.b16 %v3215
      %v3310 = vunpack.c.l.b16 %v3216
      %v3311 = vunpack.c.h.b16 %v3216
      %v3312 = vunpack.c.l.b16 %v3217
      %v3313 = vunpack.c.h.b16 %v3217
      %v3314 = vunpack.c.l.b16 %v3218
      %v3315 = vunpack.c.h.b16 %v3218
      %v3316 = vunpack.c.l.b16 %v3219
      %v3317 = vunpack.c.h.b16 %v3219
      %v3318 = vunpack.c.l.b16 %v3220
      %v3319 = vunpack.c.h.b16 %v3220
      %v3320 = vunpack.c.l.b16 %v3221
      %v3321 = vunpack.c.h.b16 %v3221
      %v3322 = vunpack.c.l.b16 %v3222
      %v3323 = vunpack.c.h.b16 %v3222
      %v3324 = vunpack.c.l.b16 %v3223
      %v3325 = vunpack.c.h.b16 %v3223
      %v3326 = vunpack.c.l.b16 %v3224
      %v3327 = vunpack.c.h.b16 %v3224
      %v3328 = vunpack.c.l.b16 %v3225
      %v3329 = vunpack.c.h.b16 %v3225
      %v3330 = vunpack.c.l.b16 %v3226
      %v3331 = vunpack.c.h.b16 %v3226
      %v3332 = vunpack.c.l.b16 %v3227
      %v3333 = vunpack.c.h.b16 %v3227
      %v3334 = vunpack.c.l.b16 %v3228
      %v3335 = vunpack.c.h.b16 %v3228
      %v3336 = vunpack.c.l.b16 %v3229
      %v3337 = vunpack.c.h.b16 %v3229
      %v3338 = vpack.c.b16 %v3276, %v3274
      %v3339 = vpack.c.b16 %v3277, %v3275
      %v3340 = vpack.c.b16 %v3280, %v3278
      %v3341 = vpack.c.b16 %v3281, %v3279
      %v3342 = vpack.c.b16 %v3284, %v3282
      %v3343 = vpack.c.b16 %v3285, %v3283
      %v3344 = vpack.c.b16 %v3288, %v3286
      %v3345 = vpack.c.b16 %v3289, %v3287
      %v3346 = vpack.c.b16 %v3292, %v3290
      %v3347 = vpack.c.b16 %v3293, %v3291
      %v3348 = vpack.c.b16 %v3296, %v3294
      %v3349 = vpack.c.b16 %v3297, %v3295
      %v3350 = vpack.c.b16 %v3300, %v3298
      %v3351 = vpack.c.b16 %v3301, %v3299
      %v3352 = vpack.c.b16 %v3304, %v3302
      %v3353 = vpack.c.b16 %v3305, %v3303
      %v3354 = vpack.c.b16 %v3308, %v3306
      %v3355 = vpack.c.b16 %v3309, %v3307
      %v3356 = vpack.c.b16 %v3312, %v3310
      %v3357 = vpack.c.b16 %v3313, %v3311
      %v3358 = vpack.c.b16 %v3316, %v3314
      %v3359 = vpack.c.b16 %v3317, %v3315
      %v3360 = vpack.c.b16 %v3320, %v3318
      %v3361 = vpack.c.b16 %v3321, %v3319
      %v3362 = vpack.c.b16 %v3324, %v3322
      %v3363 = vpack.c.b16 %v3325, %v3323
      %v3364 = vpack.c.b16 %v3328, %v3326
      %v3365 = vpack.c.b16 %v3329, %v3327
      %v3366 = vpack.c.b16 %v3332, %v3330
      %v3367 = vpack.c.b16 %v3333, %v3331
      %v3368 = vpack.c.b16 %v3336, %v3334
      %v3369 = vpack.c.b16 %v3337, %v3335
      %3402 = vmatprep.subr.bf16.mxu0 %v3353
      %3403 = vmatpush1.bf16.msra.mxu0 %v3352
      %3404 = vmatprep.subr.bf16.mxu0 %v3351
      %3405 = vmatpush1.bf16.msra.mxu0 %v3350
      %3406 = vmatprep.subr.bf16.mxu0 %v3349
      %3407 = vmatpush1.bf16.msra.mxu0 %v3348
      %3408 = vmatprep.subr.bf16.mxu0 %v3347
      %3409 = vmatpush1.bf16.msra.mxu0 %v3346
      %3410 = vmatprep.subr.bf16.mxu0 %v3345
      %3411 = vmatpush1.bf16.msra.mxu0 %v3344
      %3412 = vmatprep.subr.bf16.mxu0 %v3343
      %3413 = vmatpush1.bf16.msra.mxu0 %v3342
      %3414 = vmatprep.subr.bf16.mxu0 %v3341
      %3415 = vmatpush1.bf16.msra.mxu0 %v3340
      %3416 = vmatprep.subr.bf16.mxu0 %v3339
      %3417 = vmatpush1.bf16.msra.mxu0 %v3338
      %3418 = vmatprep.subr.bf16.mxu0 %v3369
      %3419 = vmatpush2.bf16.msra.mxu0 %v3368
      %3420 = vmatprep.subr.bf16.mxu0 %v3367
      %3421 = vmatpush2.bf16.msra.mxu0 %v3366
      %3422 = vmatprep.subr.bf16.mxu0 %v3365
      %3423 = vmatpush2.bf16.msra.mxu0 %v3364
      %3424 = vmatprep.subr.bf16.mxu0 %v3363
      %3425 = vmatpush2.bf16.msra.mxu0 %v3362
      %3426 = vmatprep.subr.bf16.mxu0 %v3361
      %3427 = vmatpush2.bf16.msra.mxu0 %v3360
      %3428 = vmatprep.subr.bf16.mxu0 %v3359
      %3429 = vmatpush2.bf16.msra.mxu0 %v3358
      %3430 = vmatprep.subr.bf16.mxu0 %v3357
      %3431 = vmatpush2.bf16.msra.mxu0 %v3356
      %3432 = vmatprep.subr.bf16.mxu0 %v3355
      %3433 = vmatpush2.bf16.msra.mxu0 %v3354
      %3434 = vmatprep.mubr.bf16.mxu0 %v3197
      %3435 = vmatmul.mubr.bf16.gmra.mxu0 %v3196
      %v3436 = vpop.f32.mrf.mxu0
      %v3437 = vadd.f32 %v3235, %v3436
      %v3438 = vpop.f32.mrf.mxu0
      %v3439 = vadd.f32 %v3239, %v3438
      %v3440 = vpop.f32.mrf.mxu0
      %v3441 = vadd.f32 %v3235, %v3440
      %v3442 = vpop.f32.mrf.mxu0
      %v3443 = vadd.f32 %v3239, %v3442
      %3444 = vdwg.mxu0
      %v3445 = vadd.f32 %v3437, %v3439
      %3446 = vadd.xlane.f32.xlu0 %v3445
      %v3447 = vpop.xlane.xlu0 %3446
      %v3448 = vadd.f32 %v3441, %v3443
      %3449 = vadd.xlane.f32.xlu0 %v3448
      %v3450 = vpop.xlane.xlu0 %3449
      %v3451 = vmul.f32 %v3447, %v1445
      %v3452 = vmul.f32 %v3450, %v1445
      %v3453 = vsub.f32 %v3437, %v3451
      %v3454 = vsub.f32 %v3439, %v3451
      %v3455 = vsub.f32 %v3441, %v3452
      %v3456 = vsub.f32 %v3443, %v3452
      %v3457 = vmul.f32 %v3453, %v3453
      %v3458 = vmul.f32 %v3454, %v3454
      %v3459 = vmul.f32 %v3455, %v3455
      %v3460 = vmul.f32 %v3456, %v3456
      %v3461 = vadd.f32 %v3457, %v3458
      %3462 = vadd.xlane.f32.xlu0 %v3461
      %v3463 = vpop.xlane.xlu0 %3462
      %v3464 = vadd.f32 %v3459, %v3460
      %3465 = vadd.xlane.f32.xlu0 %v3464
      %v3466 = vpop.xlane.xlu0 %3465
      %v3467 = vmul.f32 %v3463, %v1445
      %v3468 = vmul.f32 %v3466, %v1445
      %v3469 = vadd.f32 %v3467, 1e-05
      %v3470 = vadd.f32 %v3468, 1e-05
      %v3471 = vrsqrt.pop %v3469
      %v3472 = vrsqrt.pop %v3470
      %v3473 = vmul.f32 %v3453, %v3471
      %v3474 = vmul.f32 %v3454, %v3471
      %v3475 = vmul.f32 %v3455, %v3472
      %v3476 = vmul.f32 %v3456, %v3472
      %v3477 = vld [vmem:[%s61] sm:$0x3]
      %v3479 = vlaneseq
      %v3480 = vshrl.u32 %v3479, 7
      %v3481 = vsub.s32 0, %v3480
      %v3482 = vrot.slane %v3477, %v3481
      %v3483 = vlaneseq
      %v3484 = vshrl.u32 %v3483, 7
      %v3485 = vsub.s32 1, %v3484
      %v3486 = vrot.slane %v3477, %v3485
      %v3489 = vmul.f32 %v3473, %v3482
      %v3490 = vmul.f32 %v3474, %v3486
      %v3491 = vmul.f32 %v3475, %v3482
      %v3492 = vmul.f32 %v3476, %v3486
      %v3493 = vld [vmem:[%s63] sm:$0x3]
      %v3495 = vlaneseq
      %v3496 = vshrl.u32 %v3495, 7
      %v3497 = vsub.s32 0, %v3496
      %v3498 = vrot.slane %v3493, %v3497
      %v3499 = vlaneseq
      %v3500 = vshrl.u32 %v3499, 7
      %v3501 = vsub.s32 1, %v3500
      %v3502 = vrot.slane %v3493, %v3501
      %v3505 = vadd.f32 %v3489, %v3498
      %v3506 = vadd.f32 %v3490, %v3502
      %v3507 = vadd.f32 %v3491, %v3498
      %v3508 = vadd.f32 %v3492, %v3502
      %v3509 = vmax.f32 %v3505, 0.0
      %v3510 = vmax.f32 %v3506, 0.0
      %v3511 = vmax.f32 %v3507, 0.0
      %v3512 = vmax.f32 %v3508, 0.0
      %v3513 = vpack.c.bf16 %v3511, %v3509
      %v3514 = vpack.c.bf16 %v3512, %v3510
      %v3515 = vld [vmem:[%s65] sm:$0xf]
      %v3516 = vld [vmem:[%s65 + $0x4] sm:$0xf]
      %v3517 = vld [vmem:[%s65 + $0x8] sm:$0xf]
      %v3518 = vld [vmem:[%s65 + $0xc] sm:$0xf]
      %v3519 = vld [vmem:[%s65 + $0x10] sm:$0xf]
      %v3520 = vld [vmem:[%s65 + $0x14] sm:$0xf]
      %v3521 = vld [vmem:[%s65 + $0x18] sm:$0xf]
      %v3522 = vld [vmem:[%s65 + $0x1c] sm:$0xf]
      %v3523 = vld [vmem:[%s65 + $0x20] sm:$0xf]
      %v3524 = vld [vmem:[%s65 + $0x24] sm:$0xf]
      %v3525 = vld [vmem:[%s65 + $0x28] sm:$0xf]
      %v3526 = vld [vmem:[%s65 + $0x2c] sm:$0xf]
      %v3527 = vld [vmem:[%s65 + $0x30] sm:$0xf]
      %v3528 = vld [vmem:[%s65 + $0x34] sm:$0xf]
      %v3529 = vld [vmem:[%s65 + $0x38] sm:$0xf]
      %v3530 = vld [vmem:[%s65 + $0x3c] sm:$0xf]
      %v3531 = vld [vmem:[%s65 + $0x40] sm:$0xf]
      %v3532 = vld [vmem:[%s65 + $0x44] sm:$0xf]
      %v3533 = vld [vmem:[%s65 + $0x48] sm:$0xf]
      %v3534 = vld [vmem:[%s65 + $0x4c] sm:$0xf]
      %v3535 = vld [vmem:[%s65 + $0x50] sm:$0xf]
      %v3536 = vld [vmem:[%s65 + $0x54] sm:$0xf]
      %v3537 = vld [vmem:[%s65 + $0x58] sm:$0xf]
      %v3538 = vld [vmem:[%s65 + $0x5c] sm:$0xf]
      %v3539 = vld [vmem:[%s65 + $0x60] sm:$0xf]
      %v3540 = vld [vmem:[%s65 + $0x64] sm:$0xf]
      %v3541 = vld [vmem:[%s65 + $0x68] sm:$0xf]
      %v3542 = vld [vmem:[%s65 + $0x6c] sm:$0xf]
      %v3543 = vld [vmem:[%s65 + $0x70] sm:$0xf]
      %v3544 = vld [vmem:[%s65 + $0x74] sm:$0xf]
      %v3545 = vld [vmem:[%s65 + $0x78] sm:$0xf]
      %v3546 = vld [vmem:[%s65 + $0x7c] sm:$0xf]
      %v3547 = vld [vmem:[%s67] sm:$0x1]
      %v3549 = vlaneseq
      %v3550 = vshrl.u32 %v3549, 7
      %v3551 = vsub.s32 0, %v3550
      %v3552 = vrot.slane %v3547, %v3551
      %v3586 = vunpack.c.l.b16 %v3515
      %v3587 = vunpack.c.l.b16 %v3516
      %v3588 = vunpack.c.l.b16 %v3517
      %v3589 = vunpack.c.l.b16 %v3518
      %v3590 = vunpack.c.l.b16 %v3519
      %v3591 = vunpack.c.l.b16 %v3520
      %v3592 = vunpack.c.l.b16 %v3521
      %v3593 = vunpack.c.l.b16 %v3522
      %v3594 = vunpack.c.l.b16 %v3523
      %v3595 = vunpack.c.l.b16 %v3524
      %v3596 = vunpack.c.l.b16 %v3525
      %v3597 = vunpack.c.l.b16 %v3526
      %v3598 = vunpack.c.l.b16 %v3527
      %v3599 = vunpack.c.l.b16 %v3528
      %v3600 = vunpack.c.l.b16 %v3529
      %v3601 = vunpack.c.l.b16 %v3530
      %v3602 = vunpack.c.l.b16 %v3531
      %v3603 = vunpack.c.l.b16 %v3532
      %v3604 = vunpack.c.l.b16 %v3533
      %v3605 = vunpack.c.l.b16 %v3534
      %v3606 = vunpack.c.l.b16 %v3535
      %v3607 = vunpack.c.l.b16 %v3536
      %v3608 = vunpack.c.l.b16 %v3537
      %v3609 = vunpack.c.l.b16 %v3538
      %v3610 = vunpack.c.l.b16 %v3539
      %v3611 = vunpack.c.l.b16 %v3540
      %v3612 = vunpack.c.l.b16 %v3541
      %v3613 = vunpack.c.l.b16 %v3542
      %v3614 = vunpack.c.l.b16 %v3543
      %v3615 = vunpack.c.l.b16 %v3544
      %v3616 = vunpack.c.l.b16 %v3545
      %v3617 = vunpack.c.l.b16 %v3546
      %v3618 = vpack.c.b16 %v3587, %v3586
      %v3619 = vpack.c.b16 %v3589, %v3588
      %v3620 = vpack.c.b16 %v3591, %v3590
      %v3621 = vpack.c.b16 %v3593, %v3592
      %v3622 = vpack.c.b16 %v3595, %v3594
      %v3623 = vpack.c.b16 %v3597, %v3596
      %v3624 = vpack.c.b16 %v3599, %v3598
      %v3625 = vpack.c.b16 %v3601, %v3600
      %v3626 = vpack.c.b16 %v3603, %v3602
      %v3627 = vpack.c.b16 %v3605, %v3604
      %v3628 = vpack.c.b16 %v3607, %v3606
      %v3629 = vpack.c.b16 %v3609, %v3608
      %v3630 = vpack.c.b16 %v3611, %v3610
      %v3631 = vpack.c.b16 %v3613, %v3612
      %v3632 = vpack.c.b16 %v3615, %v3614
      %v3633 = vpack.c.b16 %v3617, %v3616
      %3650 = vmatprep.subr.bf16.mxu0 0
      %3651 = vmatpush1.bf16.msra.mxu0 %v3625
      %3652 = vmatprep.subr.bf16.mxu0 0
      %3653 = vmatpush1.bf16.msra.mxu0 %v3624
      %3654 = vmatprep.subr.bf16.mxu0 0
      %3655 = vmatpush1.bf16.msra.mxu0 %v3623
      %3656 = vmatprep.subr.bf16.mxu0 0
      %3657 = vmatpush1.bf16.msra.mxu0 %v3622
      %3658 = vmatprep.subr.bf16.mxu0 0
      %3659 = vmatpush1.bf16.msra.mxu0 %v3621
      %3660 = vmatprep.subr.bf16.mxu0 0
      %3661 = vmatpush1.bf16.msra.mxu0 %v3620
      %3662 = vmatprep.subr.bf16.mxu0 0
      %3663 = vmatpush1.bf16.msra.mxu0 %v3619
      %3664 = vmatprep.subr.bf16.mxu0 0
      %3665 = vmatpush1.bf16.msra.mxu0 %v3618
      %3666 = vmatprep.subr.bf16.mxu0 0
      %3667 = vmatpush2.bf16.msra.mxu0 %v3633
      %3668 = vmatprep.subr.bf16.mxu0 0
      %3669 = vmatpush2.bf16.msra.mxu0 %v3632
      %3670 = vmatprep.subr.bf16.mxu0 0
      %3671 = vmatpush2.bf16.msra.mxu0 %v3631
      %3672 = vmatprep.subr.bf16.mxu0 0
      %3673 = vmatpush2.bf16.msra.mxu0 %v3630
      %3674 = vmatprep.subr.bf16.mxu0 0
      %3675 = vmatpush2.bf16.msra.mxu0 %v3629
      %3676 = vmatprep.subr.bf16.mxu0 0
      %3677 = vmatpush2.bf16.msra.mxu0 %v3628
      %3678 = vmatprep.subr.bf16.mxu0 0
      %3679 = vmatpush2.bf16.msra.mxu0 %v3627
      %3680 = vmatprep.subr.bf16.mxu0 0
      %3681 = vmatpush2.bf16.msra.mxu0 %v3626
      %3682 = vmatprep.mubr.bf16.mxu0 %v3514
      %3683 = vmatmul.mubr.bf16.gmra.mxu0 %v3513
      %v3684 = vpop.f32.mrf.mxu0
      %v3685 = vadd.f32 %v3552, %v3684
      %v3686 = vpop.f32.mrf.mxu0
      %v3687 = vpop.f32.mrf.mxu0
      %v3688 = vadd.f32 %v3552, %v3687
      %v3689 = vpop.f32.mrf.mxu0
      %3690 = vdwg.mxu0
      %v3691 = vpack.c.bf16 %v3688, %v3685
      %3692 = vmatprep.subr.bf16.mxu0 0
      %3693 = vmatpush1.bf16.msra.mxu0 0
      %3694 = vmatprep.subr.bf16.mxu0 0
      %3695 = vmatpush1.bf16.msra.mxu0 0
      %3696 = vmatprep.subr.bf16.mxu0 0
      %3697 = vmatpush1.bf16.msra.mxu0 0
      %3698 = vmatprep.subr.bf16.mxu0 0
      %3699 = vmatpush1.bf16.msra.mxu0 0
      %3700 = vmatprep.subr.bf16.mxu0 0
      %3701 = vmatpush1.bf16.msra.mxu0 0
      %3702 = vmatprep.subr.bf16.mxu0 0
      %3703 = vmatpush1.bf16.msra.mxu0 0
      %3704 = vmatprep.subr.bf16.mxu0 0
      %3705 = vmatpush1.bf16.msra.mxu0 0
      %3706 = vmatprep.subr.bf16.mxu0 0
      %3707 = vmatpush1.bf16.msra.mxu0 %v3691
      %3708 = vmatprep.subr.bf16.mxu0 0
      %3709 = vmatpush2.bf16.msra.mxu0 0
      %3710 = vmatprep.subr.bf16.mxu0 0
      %3711 = vmatpush2.bf16.msra.mxu0 0
      %3712 = vmatprep.subr.bf16.mxu0 0
      %3713 = vmatpush2.bf16.msra.mxu0 0
      %3714 = vmatprep.subr.bf16.mxu0 0
      %3715 = vmatpush2.bf16.msra.mxu0 0
      %3716 = vmatprep.subr.bf16.mxu0 0
      %3717 = vmatpush2.bf16.msra.mxu0 0
      %3718 = vmatprep.subr.bf16.mxu0 0
      %3719 = vmatpush2.bf16.msra.mxu0 0
      %3720 = vmatprep.subr.bf16.mxu0 0
      %3721 = vmatpush2.bf16.msra.mxu0 0
      %3722 = vmatprep.subr.bf16.mxu0 0
      %3723 = vmatpush2.bf16.msra.mxu0 0
      %3724 = vmatprep.mubr.bf16.mxu0 0
      %3725 = vmatmul.mubr.bf16.gmra.mxu0 %v2030
      %v3726 = vpop.f32.mrf.mxu0
      %v3727 = vadd.f32 0.0, %v3726
      %v3728 = vpop.f32.mrf.mxu0
      %v3729 = vpop.f32.mrf.mxu0
      %v3730 = vadd.f32 0.0, %v3729
      %v3731 = vpop.f32.mrf.mxu0
      %3732 = vmatprep.mubr.bf16.mxu0 0
      %3733 = vmatmul.mubr.bf16.gmra.mxu0 %v2033
      %v3734 = vpop.f32.mrf.mxu0
      %v3735 = vadd.f32 0.0, %v3734
      %v3736 = vpop.f32.mrf.mxu0
      %v3737 = vpop.f32.mrf.mxu0
      %v3738 = vadd.f32 0.0, %v3737
      %v3739 = vpop.f32.mrf.mxu0
      %3740 = vdwg.mxu0
      %v3741 = vpack.c.bf16 %v3730, %v3727
      %v3742 = vpack.c.bf16 %v3738, %v3735
      %v3744 = vsel %vm2134, %v3741, 0
      %v3747 = vsel %vm2134, %v3742, 0
      %3749 = vmatprep.subr.bf16.mxu0 0
      %3750 = vmatpush1.bf16.msra.mxu0 0
      %3751 = vmatprep.subr.bf16.mxu0 0
      %3752 = vmatpush1.bf16.msra.mxu0 0
      %3753 = vmatprep.subr.bf16.mxu0 0
      %3754 = vmatpush1.bf16.msra.mxu0 0
      %3755 = vmatprep.subr.bf16.mxu0 0
      %3756 = vmatpush1.bf16.msra.mxu0 0
      %3757 = vmatprep.subr.bf16.mxu0 %v2125
      %3758 = vmatpush1.bf16.msra.mxu0 %v2124
      %3759 = vmatprep.subr.bf16.mxu0 %v2123
      %3760 = vmatpush1.bf16.msra.mxu0 %v2122
      %3761 = vmatprep.subr.bf16.mxu0 %v2121
      %3762 = vmatpush1.bf16.msra.mxu0 %v2120
      %3763 = vmatprep.subr.bf16.mxu0 %v2119
      %3764 = vmatpush1.bf16.msra.mxu0 %v2118
      %3765 = vmatprep.subr.bf16.mxu0 0
      %3766 = vmatpush2.bf16.msra.mxu0 0
      %3767 = vmatprep.subr.bf16.mxu0 0
      %3768 = vmatpush2.bf16.msra.mxu0 0
      %3769 = vmatprep.subr.bf16.mxu0 0
      %3770 = vmatpush2.bf16.msra.mxu0 0
      %3771 = vmatprep.subr.bf16.mxu0 0
      %3772 = vmatpush2.bf16.msra.mxu0 0
      %3773 = vmatprep.subr.bf16.mxu0 0
      %3774 = vmatpush2.bf16.msra.mxu0 0
      %3775 = vmatprep.subr.bf16.mxu0 0
      %3776 = vmatpush2.bf16.msra.mxu0 0
      %3777 = vmatprep.subr.bf16.mxu0 0
      %3778 = vmatpush2.bf16.msra.mxu0 0
      %3779 = vmatprep.subr.bf16.mxu0 0
      %3780 = vmatpush2.bf16.msra.mxu0 0
      %3781 = vmatprep.mubr.bf16.mxu0 0
      %3782 = vmatmul.mubr.bf16.gmra.mxu0 %v3744
      %v3783 = vpop.f32.mrf.mxu0
      %v3784 = vadd.f32 %v2009, %v3783
      %v3785 = vpop.f32.mrf.mxu0
      %v3786 = vadd.f32 %v2010, %v3785
      %v3787 = vpop.f32.mrf.mxu0
      %v3788 = vadd.f32 %v2011, %v3787
      %v3789 = vpop.f32.mrf.mxu0
      %v3790 = vadd.f32 %v2012, %v3789
      %3791 = vmatprep.mubr.bf16.mxu0 0
      %3792 = vmatmul.mubr.bf16.gmra.mxu0 %v3747
      %v3793 = vpop.f32.mrf.mxu0
      %v3794 = vadd.f32 %v2013, %v3793
      %v3795 = vpop.f32.mrf.mxu0
      %v3796 = vadd.f32 %v2014, %v3795
      %v3797 = vpop.f32.mrf.mxu0
      %v3798 = vadd.f32 %v2015, %v3797
      %v3799 = vpop.f32.mrf.mxu0
      %v3800 = vadd.f32 %v2016, %v3799
      %3801 = vdwg.mxu0
      %v3802 = vadd.f32 %v3784, %v3786
      %3803 = vadd.xlane.f32.xlu0 %v3802
      %v3804 = vpop.xlane.xlu0 %3803
      %v3805 = vadd.f32 %v3788, %v3790
      %3806 = vadd.xlane.f32.xlu0 %v3805
      %v3807 = vpop.xlane.xlu0 %3806
      %v3808 = vadd.f32 %v3794, %v3796
      %3809 = vadd.xlane.f32.xlu0 %v3808
      %v3810 = vpop.xlane.xlu0 %3809
      %v3811 = vadd.f32 %v3798, %v3800
      %3812 = vadd.xlane.f32.xlu0 %v3811
      %v3813 = vpop.xlane.xlu0 %3812
      %v3814 = vmul.f32 %v3804, %v1445
      %v3815 = vmul.f32 %v3807, %v1445
      %v3816 = vmul.f32 %v3810, %v1445
      %v3817 = vmul.f32 %v3813, %v1445
      %v3818 = vsub.f32 %v3784, %v3814
      %v3819 = vsub.f32 %v3786, %v3814
      %v3820 = vsub.f32 %v3788, %v3815
      %v3821 = vsub.f32 %v3790, %v3815
      %v3822 = vsub.f32 %v3794, %v3816
      %v3823 = vsub.f32 %v3796, %v3816
      %v3824 = vsub.f32 %v3798, %v3817
      %v3825 = vsub.f32 %v3800, %v3817
      %v3826 = vmul.f32 %v3818, %v3818
      %v3827 = vmul.f32 %v3819, %v3819
      %v3828 = vmul.f32 %v3820, %v3820
      %v3829 = vmul.f32 %v3821, %v3821
      %v3830 = vmul.f32 %v3822, %v3822
      %v3831 = vmul.f32 %v3823, %v3823
      %v3832 = vmul.f32 %v3824, %v3824
      %v3833 = vmul.f32 %v3825, %v3825
      %v3834 = vadd.f32 %v3826, %v3827
      %3835 = vadd.xlane.f32.xlu0 %v3834
      %v3836 = vpop.xlane.xlu0 %3835
      %v3837 = vadd.f32 %v3828, %v3829
      %3838 = vadd.xlane.f32.xlu0 %v3837
      %v3839 = vpop.xlane.xlu0 %3838
      %v3840 = vadd.f32 %v3830, %v3831
      %3841 = vadd.xlane.f32.xlu0 %v3840
      %v3842 = vpop.xlane.xlu0 %3841
      %v3843 = vadd.f32 %v3832, %v3833
      %3844 = vadd.xlane.f32.xlu0 %v3843
      %v3845 = vpop.xlane.xlu0 %3844
      %v3846 = vmul.f32 %v3836, %v1445
      %v3847 = vmul.f32 %v3839, %v1445
      %v3848 = vmul.f32 %v3842, %v1445
      %v3849 = vmul.f32 %v3845, %v1445
      %v3850 = vadd.f32 %v3846, 1e-05
      %v3851 = vadd.f32 %v3847, 1e-05
      %v3852 = vadd.f32 %v3848, 1e-05
      %v3853 = vadd.f32 %v3849, 1e-05
      %v3854 = vrsqrt.pop %v3850
      %v3855 = vrsqrt.pop %v3851
      %v3856 = vrsqrt.pop %v3852
      %v3857 = vrsqrt.pop %v3853
      %v3858 = vmul.f32 %v3818, %v3854
      %v3859 = vmul.f32 %v3819, %v3854
      %v3860 = vmul.f32 %v3820, %v3855
      %v3861 = vmul.f32 %v3821, %v3855
      %v3862 = vmul.f32 %v3822, %v3856
      %v3863 = vmul.f32 %v3823, %v3856
      %v3864 = vmul.f32 %v3824, %v3857
      %v3865 = vmul.f32 %v3825, %v3857
      %v3866 = vmul.f32 %v3858, %v2263
      %v3867 = vmul.f32 %v3859, %v2267
      %v3868 = vmul.f32 %v3860, %v2263
      %v3869 = vmul.f32 %v3861, %v2267
      %v3870 = vmul.f32 %v3862, %v2263
      %v3871 = vmul.f32 %v3863, %v2267
      %v3872 = vmul.f32 %v3864, %v2263
      %v3873 = vmul.f32 %v3865, %v2267
      %v3874 = vadd.f32 %v3866, %v2283
      %v3875 = vadd.f32 %v3867, %v2287
      %v3876 = vadd.f32 %v3868, %v2283
      %v3877 = vadd.f32 %v3869, %v2287
      %v3878 = vadd.f32 %v3870, %v2283
      %v3879 = vadd.f32 %v3871, %v2287
      %v3880 = vadd.f32 %v3872, %v2283
      %v3881 = vadd.f32 %v3873, %v2287
      %v3882 = vmax.f32 %v3874, 0.0
      %v3883 = vmax.f32 %v3875, 0.0
      %v3884 = vmax.f32 %v3876, 0.0
      %v3885 = vmax.f32 %v3877, 0.0
      %v3886 = vmax.f32 %v3878, 0.0
      %v3887 = vmax.f32 %v3879, 0.0
      %v3888 = vmax.f32 %v3880, 0.0
      %v3889 = vmax.f32 %v3881, 0.0
      %v3890 = vpack.c.bf16 %v3884, %v3882
      %v3891 = vpack.c.bf16 %v3885, %v3883
      %v3892 = vpack.c.bf16 %v3888, %v3886
      %v3893 = vpack.c.bf16 %v3889, %v3887
      %3894 = vmatprep.subr.bf16.mxu0 %v2465
      %3895 = vmatpush1.bf16.msra.mxu0 %v2464
      %3896 = vmatprep.subr.bf16.mxu0 %v2463
      %3897 = vmatpush1.bf16.msra.mxu0 %v2462
      %3898 = vmatprep.subr.bf16.mxu0 %v2461
      %3899 = vmatpush1.bf16.msra.mxu0 %v2460
      %3900 = vmatprep.subr.bf16.mxu0 %v2459
      %3901 = vmatpush1.bf16.msra.mxu0 %v2458
      %3902 = vmatprep.subr.bf16.mxu0 %v2457
      %3903 = vmatpush1.bf16.msra.mxu0 %v2456
      %3904 = vmatprep.subr.bf16.mxu0 %v2455
      %3905 = vmatpush1.bf16.msra.mxu0 %v2454
      %3906 = vmatprep.subr.bf16.mxu0 %v2453
      %3907 = vmatpush1.bf16.msra.mxu0 %v2452
      %3908 = vmatprep.subr.bf16.mxu0 %v2451
      %3909 = vmatpush1.bf16.msra.mxu0 %v2450
      %3910 = vmatprep.subr.bf16.mxu0 %v2481
      %3911 = vmatpush2.bf16.msra.mxu0 %v2480
      %3912 = vmatprep.subr.bf16.mxu0 %v2479
      %3913 = vmatpush2.bf16.msra.mxu0 %v2478
      %3914 = vmatprep.subr.bf16.mxu0 %v2477
      %3915 = vmatpush2.bf16.msra.mxu0 %v2476
      %3916 = vmatprep.subr.bf16.mxu0 %v2475
      %3917 = vmatpush2.bf16.msra.mxu0 %v2474
      %3918 = vmatprep.subr.bf16.mxu0 %v2473
      %3919 = vmatpush2.bf16.msra.mxu0 %v2472
      %3920 = vmatprep.subr.bf16.mxu0 %v2471
      %3921 = vmatpush2.bf16.msra.mxu0 %v2470
      %3922 = vmatprep.subr.bf16.mxu0 %v2469
      %3923 = vmatpush2.bf16.msra.mxu0 %v2468
      %3924 = vmatprep.subr.bf16.mxu0 %v2467
      %3925 = vmatpush2.bf16.msra.mxu0 %v2466
      %3926 = vmatprep.mubr.bf16.mxu0 %v3891
      %3927 = vmatmul.mubr.bf16.gmra.mxu0 %v3890
      %v3928 = vpop.f32.mrf.mxu0
      %v3929 = vadd.f32 %v2347, %v3928
      %v3930 = vpop.f32.mrf.mxu0
      %v3931 = vadd.f32 %v2351, %v3930
      %v3932 = vpop.f32.mrf.mxu0
      %v3933 = vadd.f32 %v2347, %v3932
      %v3934 = vpop.f32.mrf.mxu0
      %v3935 = vadd.f32 %v2351, %v3934
      %3936 = vmatprep.mubr.bf16.mxu0 %v3893
      %3937 = vmatmul.mubr.bf16.gmra.mxu0 %v3892
      %v3938 = vpop.f32.mrf.mxu0
      %v3939 = vadd.f32 %v2347, %v3938
      %v3940 = vpop.f32.mrf.mxu0
      %v3941 = vadd.f32 %v2351, %v3940
      %v3942 = vpop.f32.mrf.mxu0
      %v3943 = vadd.f32 %v2347, %v3942
      %v3944 = vpop.f32.mrf.mxu0
      %v3945 = vadd.f32 %v2351, %v3944
      %3946 = vdwg.mxu0
      %v3947 = vadd.f32 %v3929, %v3931
      %3948 = vadd.xlane.f32.xlu0 %v3947
      %v3949 = vpop.xlane.xlu0 %3948
      %v3950 = vadd.f32 %v3933, %v3935
      %3951 = vadd.xlane.f32.xlu0 %v3950
      %v3952 = vpop.xlane.xlu0 %3951
      %v3953 = vadd.f32 %v3939, %v3941
      %3954 = vadd.xlane.f32.xlu0 %v3953
      %v3955 = vpop.xlane.xlu0 %3954
      %v3956 = vadd.f32 %v3943, %v3945
      %3957 = vadd.xlane.f32.xlu0 %v3956
      %v3958 = vpop.xlane.xlu0 %3957
      %v3959 = vmul.f32 %v3949, %v1445
      %v3960 = vmul.f32 %v3952, %v1445
      %v3961 = vmul.f32 %v3955, %v1445
      %v3962 = vmul.f32 %v3958, %v1445
      %v3963 = vsub.f32 %v3929, %v3959
      %v3964 = vsub.f32 %v3931, %v3959
      %v3965 = vsub.f32 %v3933, %v3960
      %v3966 = vsub.f32 %v3935, %v3960
      %v3967 = vsub.f32 %v3939, %v3961
      %v3968 = vsub.f32 %v3941, %v3961
      %v3969 = vsub.f32 %v3943, %v3962
      %v3970 = vsub.f32 %v3945, %v3962
      %v3971 = vmul.f32 %v3963, %v3963
      %v3972 = vmul.f32 %v3964, %v3964
      %v3973 = vmul.f32 %v3965, %v3965
      %v3974 = vmul.f32 %v3966, %v3966
      %v3975 = vmul.f32 %v3967, %v3967
      %v3976 = vmul.f32 %v3968, %v3968
      %v3977 = vmul.f32 %v3969, %v3969
      %v3978 = vmul.f32 %v3970, %v3970
      %v3979 = vadd.f32 %v3971, %v3972
      %3980 = vadd.xlane.f32.xlu0 %v3979
      %v3981 = vpop.xlane.xlu0 %3980
      %v3982 = vadd.f32 %v3973, %v3974
      %3983 = vadd.xlane.f32.xlu0 %v3982
      %v3984 = vpop.xlane.xlu0 %3983
      %v3985 = vadd.f32 %v3975, %v3976
      %3986 = vadd.xlane.f32.xlu0 %v3985
      %v3987 = vpop.xlane.xlu0 %3986
      %v3988 = vadd.f32 %v3977, %v3978
      %3989 = vadd.xlane.f32.xlu0 %v3988
      %v3990 = vpop.xlane.xlu0 %3989
      %v3991 = vmul.f32 %v3981, %v1445
      %v3992 = vmul.f32 %v3984, %v1445
      %v3993 = vmul.f32 %v3987, %v1445
      %v3994 = vmul.f32 %v3990, %v1445
      %v3995 = vadd.f32 %v3991, 1e-05
      %v3996 = vadd.f32 %v3992, 1e-05
      %v3997 = vadd.f32 %v3993, 1e-05
      %v3998 = vadd.f32 %v3994, 1e-05
      %v3999 = vrsqrt.pop %v3995
      %v4000 = vrsqrt.pop %v3996
      %v4001 = vrsqrt.pop %v3997
      %v4002 = vrsqrt.pop %v3998
      %v4003 = vmul.f32 %v3963, %v3999
      %v4004 = vmul.f32 %v3964, %v3999
      %v4005 = vmul.f32 %v3965, %v4000
      %v4006 = vmul.f32 %v3966, %v4000
      %v4007 = vmul.f32 %v3967, %v4001
      %v4008 = vmul.f32 %v3968, %v4001
      %v4009 = vmul.f32 %v3969, %v4002
      %v4010 = vmul.f32 %v3970, %v4002
      %v4011 = vmul.f32 %v4003, %v2636
      %v4012 = vmul.f32 %v4004, %v2640
      %v4013 = vmul.f32 %v4005, %v2636
      %v4014 = vmul.f32 %v4006, %v2640
      %v4015 = vmul.f32 %v4007, %v2636
      %v4016 = vmul.f32 %v4008, %v2640
      %v4017 = vmul.f32 %v4009, %v2636
      %v4018 = vmul.f32 %v4010, %v2640
      %v4019 = vadd.f32 %v4011, %v2656
      %v4020 = vadd.f32 %v4012, %v2660
      %v4021 = vadd.f32 %v4013, %v2656
      %v4022 = vadd.f32 %v4014, %v2660
      %v4023 = vadd.f32 %v4015, %v2656
      %v4024 = vadd.f32 %v4016, %v2660
      %v4025 = vadd.f32 %v4017, %v2656
      %v4026 = vadd.f32 %v4018, %v2660
      %v4027 = vmax.f32 %v4019, 0.0
      %v4028 = vmax.f32 %v4020, 0.0
      %v4029 = vmax.f32 %v4021, 0.0
      %v4030 = vmax.f32 %v4022, 0.0
      %v4031 = vmax.f32 %v4023, 0.0
      %v4032 = vmax.f32 %v4024, 0.0
      %v4033 = vmax.f32 %v4025, 0.0
      %v4034 = vmax.f32 %v4026, 0.0
      %v4035 = vpack.c.bf16 %v4029, %v4027
      %v4036 = vpack.c.bf16 %v4030, %v4028
      %v4037 = vpack.c.bf16 %v4033, %v4031
      %v4038 = vpack.c.bf16 %v4034, %v4032
      %4039 = vmatprep.subr.bf16.mxu0 0
      %4040 = vmatpush1.bf16.msra.mxu0 %v2793
      %4041 = vmatprep.subr.bf16.mxu0 0
      %4042 = vmatpush1.bf16.msra.mxu0 %v2792
      %4043 = vmatprep.subr.bf16.mxu0 0
      %4044 = vmatpush1.bf16.msra.mxu0 %v2791
      %4045 = vmatprep.subr.bf16.mxu0 0
      %4046 = vmatpush1.bf16.msra.mxu0 %v2790
      %4047 = vmatprep.subr.bf16.mxu0 0
      %4048 = vmatpush1.bf16.msra.mxu0 %v2789
      %4049 = vmatprep.subr.bf16.mxu0 0
      %4050 = vmatpush1.bf16.msra.mxu0 %v2788
      %4051 = vmatprep.subr.bf16.mxu0 0
      %4052 = vmatpush1.bf16.msra.mxu0 %v2787
      %4053 = vmatprep.subr.bf16.mxu0 0
      %4054 = vmatpush1.bf16.msra.mxu0 %v2786
      %4055 = vmatprep.subr.bf16.mxu0 0
      %4056 = vmatpush2.bf16.msra.mxu0 %v2801
      %4057 = vmatprep.subr.bf16.mxu0 0
      %4058 = vmatpush2.bf16.msra.mxu0 %v2800
      %4059 = vmatprep.subr.bf16.mxu0 0
      %4060 = vmatpush2.bf16.msra.mxu0 %v2799
      %4061 = vmatprep.subr.bf16.mxu0 0
      %4062 = vmatpush2.bf16.msra.mxu0 %v2798
      %4063 = vmatprep.subr.bf16.mxu0 0
      %4064 = vmatpush2.bf16.msra.mxu0 %v2797
      %4065 = vmatprep.subr.bf16.mxu0 0
      %4066 = vmatpush2.bf16.msra.mxu0 %v2796
      %4067 = vmatprep.subr.bf16.mxu0 0
      %4068 = vmatpush2.bf16.msra.mxu0 %v2795
      %4069 = vmatprep.subr.bf16.mxu0 0
      %4070 = vmatpush2.bf16.msra.mxu0 %v2794
      %4071 = vmatprep.mubr.bf16.mxu0 %v4036
      %4072 = vmatmul.mubr.bf16.gmra.mxu0 %v4035
      %v4073 = vpop.f32.mrf.mxu0
      %v4074 = vadd.f32 %v2720, %v4073
      %v4075 = vpop.f32.mrf.mxu0
      %v4076 = vpop.f32.mrf.mxu0
      %v4077 = vadd.f32 %v2720, %v4076
      %v4078 = vpop.f32.mrf.mxu0
      %4079 = vmatprep.mubr.bf16.mxu0 %v4038
      %4080 = vmatmul.mubr.bf16.gmra.mxu0 %v4037
      %v4081 = vpop.f32.mrf.mxu0
      %v4082 = vadd.f32 %v2720, %v4081
      %v4083 = vpop.f32.mrf.mxu0
      %v4084 = vpop.f32.mrf.mxu0
      %v4085 = vadd.f32 %v2720, %v4084
      %v4086 = vpop.f32.mrf.mxu0
      %4087 = vdwg.mxu0
      %v4088 = vtanh.pop %v4074
      %v4089 = vtanh.pop %v4077
      %v4090 = vtanh.pop %v4082
      %v4091 = vtanh.pop %v4085
      %v4092 = vpack.c.bf16 %v4089, %v4088
      %v4093 = vpack.c.bf16 %v4091, %v4090
      %4094 = vmatprep.subr.bf16.mxu0 0
      %4095 = vmatpush1.bf16.msra.mxu0 0
      %4096 = vmatprep.subr.bf16.mxu0 0
      %4097 = vmatpush1.bf16.msra.mxu0 0
      %4098 = vmatprep.subr.bf16.mxu0 0
      %4099 = vmatpush1.bf16.msra.mxu0 0
      %4100 = vmatprep.subr.bf16.mxu0 0
      %4101 = vmatpush1.bf16.msra.mxu0 0
      %4102 = vmatprep.subr.bf16.mxu0 0
      %4103 = vmatpush1.bf16.msra.mxu0 0
      %4104 = vmatprep.subr.bf16.mxu0 0
      %4105 = vmatpush1.bf16.msra.mxu0 0
      %4106 = vmatprep.subr.bf16.mxu0 0
      %4107 = vmatpush1.bf16.msra.mxu0 %v4093
      %4108 = vmatprep.subr.bf16.mxu0 0
      %4109 = vmatpush1.bf16.msra.mxu0 %v4092
      %4110 = vmatprep.subr.bf16.mxu0 0
      %4111 = vmatpush2.bf16.msra.mxu0 0
      %4112 = vmatprep.subr.bf16.mxu0 0
      %4113 = vmatpush2.bf16.msra.mxu0 0
      %4114 = vmatprep.subr.bf16.mxu0 0
      %4115 = vmatpush2.bf16.msra.mxu0 0
      %4116 = vmatprep.subr.bf16.mxu0 0
      %4117 = vmatpush2.bf16.msra.mxu0 0
      %4118 = vmatprep.subr.bf16.mxu0 0
      %4119 = vmatpush2.bf16.msra.mxu0 0
      %4120 = vmatprep.subr.bf16.mxu0 0
      %4121 = vmatpush2.bf16.msra.mxu0 0
      %4122 = vmatprep.subr.bf16.mxu0 0
      %4123 = vmatpush2.bf16.msra.mxu0 0
      %4124 = vmatprep.subr.bf16.mxu0 0
      %4125 = vmatpush2.bf16.msra.mxu0 0
      %4126 = vmatprep.mubr.bf16.mxu0 0
      %4127 = vmatmul.mubr.bf16.gmra.mxu0 %v2880
      %v4128 = vpop.f32.mrf.mxu0
      %v4129 = vadd.f32 0.0, %v4128
      %v4130 = vpop.f32.mrf.mxu0
      %v4131 = vpop.f32.mrf.mxu0
      %v4132 = vadd.f32 0.0, %v4131
      %v4133 = vpop.f32.mrf.mxu0
      %4134 = vdwg.mxu0
      %v4135 = vpack.c.bf16 %v4132, %v4129
      %v4137 = vsel %vm2134, %v3691, 0
      %4139 = vmatprep.subr.bf16.mxu0 0
      %4140 = vmatpush1.bf16.msra.mxu0 0
      %4141 = vmatprep.subr.bf16.mxu0 0
      %4142 = vmatpush1.bf16.msra.mxu0 0
      %4143 = vmatprep.subr.bf16.mxu0 0
      %4144 = vmatpush1.bf16.msra.mxu0 0
      %4145 = vmatprep.subr.bf16.mxu0 0
      %4146 = vmatpush1.bf16.msra.mxu0 0
      %4147 = vmatprep.subr.bf16.mxu0 %v2971
      %4148 = vmatpush1.bf16.msra.mxu0 %v2970
      %4149 = vmatprep.subr.bf16.mxu0 %v2969
      %4150 = vmatpush1.bf16.msra.mxu0 %v2968
      %4151 = vmatprep.subr.bf16.mxu0 %v2967
      %4152 = vmatpush1.bf16.msra.mxu0 %v2966
      %4153 = vmatprep.subr.bf16.mxu0 %v2965
      %4154 = vmatpush1.bf16.msra.mxu0 %v2964
      %4155 = vmatprep.subr.bf16.mxu0 0
      %4156 = vmatpush2.bf16.msra.mxu0 0
      %4157 = vmatprep.subr.bf16.mxu0 0
      %4158 = vmatpush2.bf16.msra.mxu0 0
      %4159 = vmatprep.subr.bf16.mxu0 0
      %4160 = vmatpush2.bf16.msra.mxu0 0
      %4161 = vmatprep.subr.bf16.mxu0 0
      %4162 = vmatpush2.bf16.msra.mxu0 0
      %4163 = vmatprep.subr.bf16.mxu0 0
      %4164 = vmatpush2.bf16.msra.mxu0 0
      %4165 = vmatprep.subr.bf16.mxu0 0
      %4166 = vmatpush2.bf16.msra.mxu0 0
      %4167 = vmatprep.subr.bf16.mxu0 0
      %4168 = vmatpush2.bf16.msra.mxu0 0
      %4169 = vmatprep.subr.bf16.mxu0 0
      %4170 = vmatpush2.bf16.msra.mxu0 0
      %4171 = vmatprep.mubr.bf16.mxu0 0
      %4172 = vmatmul.mubr.bf16.gmra.mxu0 %v4137
      %v4173 = vpop.f32.mrf.mxu0
      %v4174 = vadd.f32 0.0, %v4173
      %v4175 = vpop.f32.mrf.mxu0
      %v4176 = vadd.f32 0.0, %v4175
      %v4177 = vpop.f32.mrf.mxu0
      %v4178 = vadd.f32 0.0, %v4177
      %v4179 = vpop.f32.mrf.mxu0
      %v4180 = vadd.f32 0.0, %v4179
      %4181 = vdwg.mxu0
      %v4183 = vsel %vm2134, %v4135, 0
      %4185 = vmatprep.subr.bf16.mxu0 0
      %4186 = vmatpush1.bf16.msra.mxu0 0
      %4187 = vmatprep.subr.bf16.mxu0 0
      %4188 = vmatpush1.bf16.msra.mxu0 0
      %4189 = vmatprep.subr.bf16.mxu0 0
      %4190 = vmatpush1.bf16.msra.mxu0 0
      %4191 = vmatprep.subr.bf16.mxu0 0
      %4192 = vmatpush1.bf16.msra.mxu0 0
      %4193 = vmatprep.subr.bf16.mxu0 %v3057
      %4194 = vmatpush1.bf16.msra.mxu0 %v3056
      %4195 = vmatprep.subr.bf16.mxu0 %v3055
      %4196 = vmatpush1.bf16.msra.mxu0 %v3054
      %4197 = vmatprep.subr.bf16.mxu0 %v3053
      %4198 = vmatpush1.bf16.msra.mxu0 %v3052
      %4199 = vmatprep.subr.bf16.mxu0 %v3051
      %4200 = vmatpush1.bf16.msra.mxu0 %v3050
      %4201 = vmatprep.subr.bf16.mxu0 0
      %4202 = vmatpush2.bf16.msra.mxu0 0
      %4203 = vmatprep.subr.bf16.mxu0 0
      %4204 = vmatpush2.bf16.msra.mxu0 0
      %4205 = vmatprep.subr.bf16.mxu0 0
      %4206 = vmatpush2.bf16.msra.mxu0 0
      %4207 = vmatprep.subr.bf16.mxu0 0
      %4208 = vmatpush2.bf16.msra.mxu0 0
      %4209 = vmatprep.subr.bf16.mxu0 0
      %4210 = vmatpush2.bf16.msra.mxu0 0
      %4211 = vmatprep.subr.bf16.mxu0 0
      %4212 = vmatpush2.bf16.msra.mxu0 0
      %4213 = vmatprep.subr.bf16.mxu0 0
      %4214 = vmatpush2.bf16.msra.mxu0 0
      %4215 = vmatprep.subr.bf16.mxu0 0
      %4216 = vmatpush2.bf16.msra.mxu0 0
      %4217 = vmatprep.mubr.bf16.mxu0 0
      %4218 = vmatmul.mubr.bf16.gmra.mxu0 %v4183
      %v4219 = vpop.f32.mrf.mxu0
      %v4220 = vadd.f32 %v4174, %v4219
      %v4221 = vpop.f32.mrf.mxu0
      %v4222 = vadd.f32 %v4176, %v4221
      %v4223 = vpop.f32.mrf.mxu0
      %v4224 = vadd.f32 %v4178, %v4223
      %v4225 = vpop.f32.mrf.mxu0
      %v4226 = vadd.f32 %v4180, %v4225
      %4227 = vdwg.mxu0
      %v4228 = vadd.f32 %v4220, %v3117
      %v4229 = vadd.f32 %v4222, %v3121
      %v4230 = vadd.f32 %v4224, %v3117
      %v4231 = vadd.f32 %v4226, %v3121
      %v4232 = vadd.f32 %v4228, %v4229
      %4233 = vadd.xlane.f32.xlu0 %v4232
      %v4234 = vpop.xlane.xlu0 %4233
      %v4235 = vadd.f32 %v4230, %v4231
      %4236 = vadd.xlane.f32.xlu0 %v4235
      %v4237 = vpop.xlane.xlu0 %4236
      %v4238 = vmul.f32 %v4234, %v1445
      %v4239 = vmul.f32 %v4237, %v1445
      %v4240 = vsub.f32 %v4228, %v4238
      %v4241 = vsub.f32 %v4229, %v4238
      %v4242 = vsub.f32 %v4230, %v4239
      %v4243 = vsub.f32 %v4231, %v4239
      %v4244 = vmul.f32 %v4240, %v4240
      %v4245 = vmul.f32 %v4241, %v4241
      %v4246 = vmul.f32 %v4242, %v4242
      %v4247 = vmul.f32 %v4243, %v4243
      %v4248 = vadd.f32 %v4244, %v4245
      %4249 = vadd.xlane.f32.xlu0 %v4248
      %v4250 = vpop.xlane.xlu0 %4249
      %v4251 = vadd.f32 %v4246, %v4247
      %4252 = vadd.xlane.f32.xlu0 %v4251
      %v4253 = vpop.xlane.xlu0 %4252
      %v4254 = vmul.f32 %v4250, %v1445
      %v4255 = vmul.f32 %v4253, %v1445
      %v4256 = vadd.f32 %v4254, 1e-05
      %v4257 = vadd.f32 %v4255, 1e-05
      %v4258 = vrsqrt.pop %v4256
      %v4259 = vrsqrt.pop %v4257
      %v4260 = vmul.f32 %v4240, %v4258
      %v4261 = vmul.f32 %v4241, %v4258
      %v4262 = vmul.f32 %v4242, %v4259
      %v4263 = vmul.f32 %v4243, %v4259
      %v4264 = vmul.f32 %v4260, %v3165
      %v4265 = vmul.f32 %v4261, %v3169
      %v4266 = vmul.f32 %v4262, %v3165
      %v4267 = vmul.f32 %v4263, %v3169
      %v4268 = vadd.f32 %v4264, %v3181
      %v4269 = vadd.f32 %v4265, %v3185
      %v4270 = vadd.f32 %v4266, %v3181
      %v4271 = vadd.f32 %v4267, %v3185
      %v4272 = vmax.f32 %v4268, 0.0
      %v4273 = vmax.f32 %v4269, 0.0
      %v4274 = vmax.f32 %v4270, 0.0
      %v4275 = vmax.f32 %v4271, 0.0
      %v4276 = vpack.c.bf16 %v4274, %v4272
      %v4277 = vpack.c.bf16 %v4275, %v4273
      %4278 = vmatprep.subr.bf16.mxu0 %v3353
      %4279 = vmatpush1.bf16.msra.mxu0 %v3352
      %4280 = vmatprep.subr.bf16.mxu0 %v3351
      %4281 = vmatpush1.bf16.msra.mxu0 %v3350
      %4282 = vmatprep.subr.bf16.mxu0 %v3349
      %4283 = vmatpush1.bf16.msra.mxu0 %v3348
      %4284 = vmatprep.subr.bf16.mxu0 %v3347
      %4285 = vmatpush1.bf16.msra.mxu0 %v3346
      %4286 = vmatprep.subr.bf16.mxu0 %v3345
      %4287 = vmatpush1.bf16.msra.mxu0 %v3344
      %4288 = vmatprep.subr.bf16.mxu0 %v3343
      %4289 = vmatpush1.bf16.msra.mxu0 %v3342
      %4290 = vmatprep.subr.bf16.mxu0 %v3341
      %4291 = vmatpush1.bf16.msra.mxu0 %v3340
      %4292 = vmatprep.subr.bf16.mxu0 %v3339
      %4293 = vmatpush1.bf16.msra.mxu0 %v3338
      %4294 = vmatprep.subr.bf16.mxu0 %v3369
      %4295 = vmatpush2.bf16.msra.mxu0 %v3368
      %4296 = vmatprep.subr.bf16.mxu0 %v3367
      %4297 = vmatpush2.bf16.msra.mxu0 %v3366
      %4298 = vmatprep.subr.bf16.mxu0 %v3365
      %4299 = vmatpush2.bf16.msra.mxu0 %v3364
      %4300 = vmatprep.subr.bf16.mxu0 %v3363
      %4301 = vmatpush2.bf16.msra.mxu0 %v3362
      %4302 = vmatprep.subr.bf16.mxu0 %v3361
      %4303 = vmatpush2.bf16.msra.mxu0 %v3360
      %4304 = vmatprep.subr.bf16.mxu0 %v3359
      %4305 = vmatpush2.bf16.msra.mxu0 %v3358
      %4306 = vmatprep.subr.bf16.mxu0 %v3357
      %4307 = vmatpush2.bf16.msra.mxu0 %v3356
      %4308 = vmatprep.subr.bf16.mxu0 %v3355
      %4309 = vmatpush2.bf16.msra.mxu0 %v3354
      %4310 = vmatprep.mubr.bf16.mxu0 %v4277
      %4311 = vmatmul.mubr.bf16.gmra.mxu0 %v4276
      %v4312 = vpop.f32.mrf.mxu0
      %v4313 = vadd.f32 %v3235, %v4312
      %v4314 = vpop.f32.mrf.mxu0
      %v4315 = vadd.f32 %v3239, %v4314
      %v4316 = vpop.f32.mrf.mxu0
      %v4317 = vadd.f32 %v3235, %v4316
      %v4318 = vpop.f32.mrf.mxu0
      %v4319 = vadd.f32 %v3239, %v4318
      %4320 = vdwg.mxu0
      %v4321 = vadd.f32 %v4313, %v4315
      %4322 = vadd.xlane.f32.xlu0 %v4321
      %v4323 = vpop.xlane.xlu0 %4322
      %v4324 = vadd.f32 %v4317, %v4319
      %4325 = vadd.xlane.f32.xlu0 %v4324
      %v4326 = vpop.xlane.xlu0 %4325
      %v4327 = vmul.f32 %v4323, %v1445
      %v4328 = vmul.f32 %v4326, %v1445
      %v4329 = vsub.f32 %v4313, %v4327
      %v4330 = vsub.f32 %v4315, %v4327
      %v4331 = vsub.f32 %v4317, %v4328
      %v4332 = vsub.f32 %v4319, %v4328
      %v4333 = vmul.f32 %v4329, %v4329
      %v4334 = vmul.f32 %v4330, %v4330
      %v4335 = vmul.f32 %v4331, %v4331
      %v4336 = vmul.f32 %v4332, %v4332
      %v4337 = vadd.f32 %v4333, %v4334
      %4338 = vadd.xlane.f32.xlu0 %v4337
      %v4339 = vpop.xlane.xlu0 %4338
      %v4340 = vadd.f32 %v4335, %v4336
      %4341 = vadd.xlane.f32.xlu0 %v4340
      %v4342 = vpop.xlane.xlu0 %4341
      %v4343 = vmul.f32 %v4339, %v1445
      %v4344 = vmul.f32 %v4342, %v1445
      %v4345 = vadd.f32 %v4343, 1e-05
      %v4346 = vadd.f32 %v4344, 1e-05
      %v4347 = vrsqrt.pop %v4345
      %v4348 = vrsqrt.pop %v4346
      %v4349 = vmul.f32 %v4329, %v4347
      %v4350 = vmul.f32 %v4330, %v4347
      %v4351 = vmul.f32 %v4331, %v4348
      %v4352 = vmul.f32 %v4332, %v4348
      %v4353 = vmul.f32 %v4349, %v3482
      %v4354 = vmul.f32 %v4350, %v3486
      %v4355 = vmul.f32 %v4351, %v3482
      %v4356 = vmul.f32 %v4352, %v3486
      %v4357 = vadd.f32 %v4353, %v3498
      %v4358 = vadd.f32 %v4354, %v3502
      %v4359 = vadd.f32 %v4355, %v3498
      %v4360 = vadd.f32 %v4356, %v3502
      %v4361 = vmax.f32 %v4357, 0.0
      %v4362 = vmax.f32 %v4358, 0.0
      %v4363 = vmax.f32 %v4359, 0.0
      %v4364 = vmax.f32 %v4360, 0.0
      %v4365 = vpack.c.bf16 %v4363, %v4361
      %v4366 = vpack.c.bf16 %v4364, %v4362
      %4367 = vmatprep.subr.bf16.mxu0 0
      %4368 = vmatpush1.bf16.msra.mxu0 %v3625
      %4369 = vmatprep.subr.bf16.mxu0 0
      %4370 = vmatpush1.bf16.msra.mxu0 %v3624
      %4371 = vmatprep.subr.bf16.mxu0 0
      %4372 = vmatpush1.bf16.msra.mxu0 %v3623
      %4373 = vmatprep.subr.bf16.mxu0 0
      %4374 = vmatpush1.bf16.msra.mxu0 %v3622
      %4375 = vmatprep.subr.bf16.mxu0 0
      %4376 = vmatpush1.bf16.msra.mxu0 %v3621
      %4377 = vmatprep.subr.bf16.mxu0 0
      %4378 = vmatpush1.bf16.msra.mxu0 %v3620
      %4379 = vmatprep.subr.bf16.mxu0 0
      %4380 = vmatpush1.bf16.msra.mxu0 %v3619
      %4381 = vmatprep.subr.bf16.mxu0 0
      %4382 = vmatpush1.bf16.msra.mxu0 %v3618
      %4383 = vmatprep.subr.bf16.mxu0 0
      %4384 = vmatpush2.bf16.msra.mxu0 %v3633
      %4385 = vmatprep.subr.bf16.mxu0 0
      %4386 = vmatpush2.bf16.msra.mxu0 %v3632
      %4387 = vmatprep.subr.bf16.mxu0 0
      %4388 = vmatpush2.bf16.msra.mxu0 %v3631
      %4389 = vmatprep.subr.bf16.mxu0 0
      %4390 = vmatpush2.bf16.msra.mxu0 %v3630
      %4391 = vmatprep.subr.bf16.mxu0 0
      %4392 = vmatpush2.bf16.msra.mxu0 %v3629
      %4393 = vmatprep.subr.bf16.mxu0 0
      %4394 = vmatpush2.bf16.msra.mxu0 %v3628
      %4395 = vmatprep.subr.bf16.mxu0 0
      %4396 = vmatpush2.bf16.msra.mxu0 %v3627
      %4397 = vmatprep.subr.bf16.mxu0 0
      %4398 = vmatpush2.bf16.msra.mxu0 %v3626
      %4399 = vmatprep.mubr.bf16.mxu0 %v4366
      %4400 = vmatmul.mubr.bf16.gmra.mxu0 %v4365
      %v4401 = vpop.f32.mrf.mxu0
      %v4402 = vadd.f32 %v3552, %v4401
      %v4403 = vpop.f32.mrf.mxu0
      %v4404 = vpop.f32.mrf.mxu0
      %v4405 = vadd.f32 %v3552, %v4404
      %v4406 = vpop.f32.mrf.mxu0
      %4407 = vdwg.mxu0
      %v4408 = vpack.c.bf16 %v4405, %v4402
      %4409 = vmatprep.subr.bf16.mxu0 0
      %4410 = vmatpush1.bf16.msra.mxu0 0
      %4411 = vmatprep.subr.bf16.mxu0 0
      %4412 = vmatpush1.bf16.msra.mxu0 0
      %4413 = vmatprep.subr.bf16.mxu0 0
      %4414 = vmatpush1.bf16.msra.mxu0 0
      %4415 = vmatprep.subr.bf16.mxu0 0
      %4416 = vmatpush1.bf16.msra.mxu0 0
      %4417 = vmatprep.subr.bf16.mxu0 0
      %4418 = vmatpush1.bf16.msra.mxu0 0
      %4419 = vmatprep.subr.bf16.mxu0 0
      %4420 = vmatpush1.bf16.msra.mxu0 0
      %4421 = vmatprep.subr.bf16.mxu0 0
      %4422 = vmatpush1.bf16.msra.mxu0 0
      %4423 = vmatprep.subr.bf16.mxu0 0
      %4424 = vmatpush1.bf16.msra.mxu0 %v4408
      %4425 = vmatprep.subr.bf16.mxu0 0
      %4426 = vmatpush2.bf16.msra.mxu0 0
      %4427 = vmatprep.subr.bf16.mxu0 0
      %4428 = vmatpush2.bf16.msra.mxu0 0
      %4429 = vmatprep.subr.bf16.mxu0 0
      %4430 = vmatpush2.bf16.msra.mxu0 0
      %4431 = vmatprep.subr.bf16.mxu0 0
      %4432 = vmatpush2.bf16.msra.mxu0 0
      %4433 = vmatprep.subr.bf16.mxu0 0
      %4434 = vmatpush2.bf16.msra.mxu0 0
      %4435 = vmatprep.subr.bf16.mxu0 0
      %4436 = vmatpush2.bf16.msra.mxu0 0
      %4437 = vmatprep.subr.bf16.mxu0 0
      %4438 = vmatpush2.bf16.msra.mxu0 0
      %4439 = vmatprep.subr.bf16.mxu0 0
      %4440 = vmatpush2.bf16.msra.mxu0 0
      %4441 = vmatprep.mubr.bf16.mxu0 0
      %4442 = vmatmul.mubr.bf16.gmra.mxu0 %v2030
      %v4443 = vpop.f32.mrf.mxu0
      %v4444 = vadd.f32 0.0, %v4443
      %v4445 = vpop.f32.mrf.mxu0
      %v4446 = vpop.f32.mrf.mxu0
      %v4447 = vadd.f32 0.0, %v4446
      %v4448 = vpop.f32.mrf.mxu0
      %4449 = vmatprep.mubr.bf16.mxu0 0
      %4450 = vmatmul.mubr.bf16.gmra.mxu0 %v2033
      %v4451 = vpop.f32.mrf.mxu0
      %v4452 = vadd.f32 0.0, %v4451
      %v4453 = vpop.f32.mrf.mxu0
      %v4454 = vpop.f32.mrf.mxu0
      %v4455 = vadd.f32 0.0, %v4454
      %v4456 = vpop.f32.mrf.mxu0
      %4457 = vdwg.mxu0
      %v4458 = vpack.c.bf16 %v4447, %v4444
      %v4459 = vpack.c.bf16 %v4455, %v4452
      %v4461 = vsel %vm2134, %v4458, 0
      %v4464 = vsel %vm2134, %v4459, 0
      %4466 = vmatprep.subr.bf16.mxu0 0
      %4467 = vmatpush1.bf16.msra.mxu0 0
      %4468 = vmatprep.subr.bf16.mxu0 0
      %4469 = vmatpush1.bf16.msra.mxu0 0
      %4470 = vmatprep.subr.bf16.mxu0 0
      %4471 = vmatpush1.bf16.msra.mxu0 0
      %4472 = vmatprep.subr.bf16.mxu0 0
      %4473 = vmatpush1.bf16.msra.mxu0 0
      %4474 = vmatprep.subr.bf16.mxu0 %v2125
      %4475 = vmatpush1.bf16.msra.mxu0 %v2124
      %4476 = vmatprep.subr.bf16.mxu0 %v2123
      %4477 = vmatpush1.bf16.msra.mxu0 %v2122
      %4478 = vmatprep.subr.bf16.mxu0 %v2121
      %4479 = vmatpush1.bf16.msra.mxu0 %v2120
      %4480 = vmatprep.subr.bf16.mxu0 %v2119
      %4481 = vmatpush1.bf16.msra.mxu0 %v2118
      %4482 = vmatprep.subr.bf16.mxu0 0
      %4483 = vmatpush2.bf16.msra.mxu0 0
      %4484 = vmatprep.subr.bf16.mxu0 0
      %4485 = vmatpush2.bf16.msra.mxu0 0
      %4486 = vmatprep.subr.bf16.mxu0 0
      %4487 = vmatpush2.bf16.msra.mxu0 0
      %4488 = vmatprep.subr.bf16.mxu0 0
      %4489 = vmatpush2.bf16.msra.mxu0 0
      %4490 = vmatprep.subr.bf16.mxu0 0
      %4491 = vmatpush2.bf16.msra.mxu0 0
      %4492 = vmatprep.subr.bf16.mxu0 0
      %4493 = vmatpush2.bf16.msra.mxu0 0
      %4494 = vmatprep.subr.bf16.mxu0 0
      %4495 = vmatpush2.bf16.msra.mxu0 0
      %4496 = vmatprep.subr.bf16.mxu0 0
      %4497 = vmatpush2.bf16.msra.mxu0 0
      %4498 = vmatprep.mubr.bf16.mxu0 0
      %4499 = vmatmul.mubr.bf16.gmra.mxu0 %v4461
      %v4500 = vpop.f32.mrf.mxu0
      %v4501 = vadd.f32 %v2009, %v4500
      %v4502 = vpop.f32.mrf.mxu0
      %v4503 = vadd.f32 %v2010, %v4502
      %v4504 = vpop.f32.mrf.mxu0
      %v4505 = vadd.f32 %v2011, %v4504
      %v4506 = vpop.f32.mrf.mxu0
      %v4507 = vadd.f32 %v2012, %v4506
      %4508 = vmatprep.mubr.bf16.mxu0 0
      %4509 = vmatmul.mubr.bf16.gmra.mxu0 %v4464
      %v4510 = vpop.f32.mrf.mxu0
      %v4511 = vadd.f32 %v2013, %v4510
      %v4512 = vpop.f32.mrf.mxu0
      %v4513 = vadd.f32 %v2014, %v4512
      %v4514 = vpop.f32.mrf.mxu0
      %v4515 = vadd.f32 %v2015, %v4514
      %v4516 = vpop.f32.mrf.mxu0
      %v4517 = vadd.f32 %v2016, %v4516
      %4518 = vdwg.mxu0
      %v4519 = vadd.f32 %v4501, %v4503
      %4520 = vadd.xlane.f32.xlu0 %v4519
      %v4521 = vpop.xlane.xlu0 %4520
      %v4522 = vadd.f32 %v4505, %v4507
      %4523 = vadd.xlane.f32.xlu0 %v4522
      %v4524 = vpop.xlane.xlu0 %4523
      %v4525 = vadd.f32 %v4511, %v4513
      %4526 = vadd.xlane.f32.xlu0 %v4525
      %v4527 = vpop.xlane.xlu0 %4526
      %v4528 = vadd.f32 %v4515, %v4517
      %4529 = vadd.xlane.f32.xlu0 %v4528
      %v4530 = vpop.xlane.xlu0 %4529
      %v4531 = vmul.f32 %v4521, %v1445
      %v4532 = vmul.f32 %v4524, %v1445
      %v4533 = vmul.f32 %v4527, %v1445
      %v4534 = vmul.f32 %v4530, %v1445
      %v4535 = vsub.f32 %v4501, %v4531
      %v4536 = vsub.f32 %v4503, %v4531
      %v4537 = vsub.f32 %v4505, %v4532
      %v4538 = vsub.f32 %v4507, %v4532
      %v4539 = vsub.f32 %v4511, %v4533
      %v4540 = vsub.f32 %v4513, %v4533
      %v4541 = vsub.f32 %v4515, %v4534
      %v4542 = vsub.f32 %v4517, %v4534
      %v4543 = vmul.f32 %v4535, %v4535
      %v4544 = vmul.f32 %v4536, %v4536
      %v4545 = vmul.f32 %v4537, %v4537
      %v4546 = vmul.f32 %v4538, %v4538
      %v4547 = vmul.f32 %v4539, %v4539
      %v4548 = vmul.f32 %v4540, %v4540
      %v4549 = vmul.f32 %v4541, %v4541
      %v4550 = vmul.f32 %v4542, %v4542
      %v4551 = vadd.f32 %v4543, %v4544
      %4552 = vadd.xlane.f32.xlu0 %v4551
      %v4553 = vpop.xlane.xlu0 %4552
      %v4554 = vadd.f32 %v4545, %v4546
      %4555 = vadd.xlane.f32.xlu0 %v4554
      %v4556 = vpop.xlane.xlu0 %4555
      %v4557 = vadd.f32 %v4547, %v4548
      %4558 = vadd.xlane.f32.xlu0 %v4557
      %v4559 = vpop.xlane.xlu0 %4558
      %v4560 = vadd.f32 %v4549, %v4550
      %4561 = vadd.xlane.f32.xlu0 %v4560
      %v4562 = vpop.xlane.xlu0 %4561
      %v4563 = vmul.f32 %v4553, %v1445
      %v4564 = vmul.f32 %v4556, %v1445
      %v4565 = vmul.f32 %v4559, %v1445
      %v4566 = vmul.f32 %v4562, %v1445
      %v4567 = vadd.f32 %v4563, 1e-05
      %v4568 = vadd.f32 %v4564, 1e-05
      %v4569 = vadd.f32 %v4565, 1e-05
      %v4570 = vadd.f32 %v4566, 1e-05
      %v4571 = vrsqrt.pop %v4567
      %v4572 = vrsqrt.pop %v4568
      %v4573 = vrsqrt.pop %v4569
      %v4574 = vrsqrt.pop %v4570
      %v4575 = vmul.f32 %v4535, %v4571
      %v4576 = vmul.f32 %v4536, %v4571
      %v4577 = vmul.f32 %v4537, %v4572
      %v4578 = vmul.f32 %v4538, %v4572
      %v4579 = vmul.f32 %v4539, %v4573
      %v4580 = vmul.f32 %v4540, %v4573
      %v4581 = vmul.f32 %v4541, %v4574
      %v4582 = vmul.f32 %v4542, %v4574
      %v4583 = vmul.f32 %v4575, %v2263
      %v4584 = vmul.f32 %v4576, %v2267
      %v4585 = vmul.f32 %v4577, %v2263
      %v4586 = vmul.f32 %v4578, %v2267
      %v4587 = vmul.f32 %v4579, %v2263
      %v4588 = vmul.f32 %v4580, %v2267
      %v4589 = vmul.f32 %v4581, %v2263
      %v4590 = vmul.f32 %v4582, %v2267
      %v4591 = vadd.f32 %v4583, %v2283
      %v4592 = vadd.f32 %v4584, %v2287
      %v4593 = vadd.f32 %v4585, %v2283
      %v4594 = vadd.f32 %v4586, %v2287
      %v4595 = vadd.f32 %v4587, %v2283
      %v4596 = vadd.f32 %v4588, %v2287
      %v4597 = vadd.f32 %v4589, %v2283
      %v4598 = vadd.f32 %v4590, %v2287
      %v4599 = vmax.f32 %v4591, 0.0
      %v4600 = vmax.f32 %v4592, 0.0
      %v4601 = vmax.f32 %v4593, 0.0
      %v4602 = vmax.f32 %v4594, 0.0
      %v4603 = vmax.f32 %v4595, 0.0
      %v4604 = vmax.f32 %v4596, 0.0
      %v4605 = vmax.f32 %v4597, 0.0
      %v4606 = vmax.f32 %v4598, 0.0
      %v4607 = vpack.c.bf16 %v4601, %v4599
      %v4608 = vpack.c.bf16 %v4602, %v4600
      %v4609 = vpack.c.bf16 %v4605, %v4603
      %v4610 = vpack.c.bf16 %v4606, %v4604
      %4611 = vmatprep.subr.bf16.mxu0 %v2465
      %4612 = vmatpush1.bf16.msra.mxu0 %v2464
      %4613 = vmatprep.subr.bf16.mxu0 %v2463
      %4614 = vmatpush1.bf16.msra.mxu0 %v2462
      %4615 = vmatprep.subr.bf16.mxu0 %v2461
      %4616 = vmatpush1.bf16.msra.mxu0 %v2460
      %4617 = vmatprep.subr.bf16.mxu0 %v2459
      %4618 = vmatpush1.bf16.msra.mxu0 %v2458
      %4619 = vmatprep.subr.bf16.mxu0 %v2457
      %4620 = vmatpush1.bf16.msra.mxu0 %v2456
      %4621 = vmatprep.subr.bf16.mxu0 %v2455
      %4622 = vmatpush1.bf16.msra.mxu0 %v2454
      %4623 = vmatprep.subr.bf16.mxu0 %v2453
      %4624 = vmatpush1.bf16.msra.mxu0 %v2452
      %4625 = vmatprep.subr.bf16.mxu0 %v2451
      %4626 = vmatpush1.bf16.msra.mxu0 %v2450
      %4627 = vmatprep.subr.bf16.mxu0 %v2481
      %4628 = vmatpush2.bf16.msra.mxu0 %v2480
      %4629 = vmatprep.subr.bf16.mxu0 %v2479
      %4630 = vmatpush2.bf16.msra.mxu0 %v2478
      %4631 = vmatprep.subr.bf16.mxu0 %v2477
      %4632 = vmatpush2.bf16.msra.mxu0 %v2476
      %4633 = vmatprep.subr.bf16.mxu0 %v2475
      %4634 = vmatpush2.bf16.msra.mxu0 %v2474
      %4635 = vmatprep.subr.bf16.mxu0 %v2473
      %4636 = vmatpush2.bf16.msra.mxu0 %v2472
      %4637 = vmatprep.subr.bf16.mxu0 %v2471
      %4638 = vmatpush2.bf16.msra.mxu0 %v2470
      %4639 = vmatprep.subr.bf16.mxu0 %v2469
      %4640 = vmatpush2.bf16.msra.mxu0 %v2468
      %4641 = vmatprep.subr.bf16.mxu0 %v2467
      %4642 = vmatpush2.bf16.msra.mxu0 %v2466
      %4643 = vmatprep.mubr.bf16.mxu0 %v4608
      %4644 = vmatmul.mubr.bf16.gmra.mxu0 %v4607
      %v4645 = vpop.f32.mrf.mxu0
      %v4646 = vadd.f32 %v2347, %v4645
      %v4647 = vpop.f32.mrf.mxu0
      %v4648 = vadd.f32 %v2351, %v4647
      %v4649 = vpop.f32.mrf.mxu0
      %v4650 = vadd.f32 %v2347, %v4649
      %v4651 = vpop.f32.mrf.mxu0
      %v4652 = vadd.f32 %v2351, %v4651
      %4653 = vmatprep.mubr.bf16.mxu0 %v4610
      %4654 = vmatmul.mubr.bf16.gmra.mxu0 %v4609
      %v4655 = vpop.f32.mrf.mxu0
      %v4656 = vadd.f32 %v2347, %v4655
      %v4657 = vpop.f32.mrf.mxu0
      %v4658 = vadd.f32 %v2351, %v4657
      %v4659 = vpop.f32.mrf.mxu0
      %v4660 = vadd.f32 %v2347, %v4659
      %v4661 = vpop.f32.mrf.mxu0
      %v4662 = vadd.f32 %v2351, %v4661
      %4663 = vdwg.mxu0
      %v4664 = vadd.f32 %v4646, %v4648
      %4665 = vadd.xlane.f32.xlu0 %v4664
      %v4666 = vpop.xlane.xlu0 %4665
      %v4667 = vadd.f32 %v4650, %v4652
      %4668 = vadd.xlane.f32.xlu0 %v4667
      %v4669 = vpop.xlane.xlu0 %4668
      %v4670 = vadd.f32 %v4656, %v4658
      %4671 = vadd.xlane.f32.xlu0 %v4670
      %v4672 = vpop.xlane.xlu0 %4671
      %v4673 = vadd.f32 %v4660, %v4662
      %4674 = vadd.xlane.f32.xlu0 %v4673
      %v4675 = vpop.xlane.xlu0 %4674
      %v4676 = vmul.f32 %v4666, %v1445
      %v4677 = vmul.f32 %v4669, %v1445
      %v4678 = vmul.f32 %v4672, %v1445
      %v4679 = vmul.f32 %v4675, %v1445
      %v4680 = vsub.f32 %v4646, %v4676
      %v4681 = vsub.f32 %v4648, %v4676
      %v4682 = vsub.f32 %v4650, %v4677
      %v4683 = vsub.f32 %v4652, %v4677
      %v4684 = vsub.f32 %v4656, %v4678
      %v4685 = vsub.f32 %v4658, %v4678
      %v4686 = vsub.f32 %v4660, %v4679
      %v4687 = vsub.f32 %v4662, %v4679
      %v4688 = vmul.f32 %v4680, %v4680
      %v4689 = vmul.f32 %v4681, %v4681
      %v4690 = vmul.f32 %v4682, %v4682
      %v4691 = vmul.f32 %v4683, %v4683
      %v4692 = vmul.f32 %v4684, %v4684
      %v4693 = vmul.f32 %v4685, %v4685
      %v4694 = vmul.f32 %v4686, %v4686
      %v4695 = vmul.f32 %v4687, %v4687
      %v4696 = vadd.f32 %v4688, %v4689
      %4697 = vadd.xlane.f32.xlu0 %v4696
      %v4698 = vpop.xlane.xlu0 %4697
      %v4699 = vadd.f32 %v4690, %v4691
      %4700 = vadd.xlane.f32.xlu0 %v4699
      %v4701 = vpop.xlane.xlu0 %4700
      %v4702 = vadd.f32 %v4692, %v4693
      %4703 = vadd.xlane.f32.xlu0 %v4702
      %v4704 = vpop.xlane.xlu0 %4703
      %v4705 = vadd.f32 %v4694, %v4695
      %4706 = vadd.xlane.f32.xlu0 %v4705
      %v4707 = vpop.xlane.xlu0 %4706
      %v4708 = vmul.f32 %v4698, %v1445
      %v4709 = vmul.f32 %v4701, %v1445
      %v4710 = vmul.f32 %v4704, %v1445
      %v4711 = vmul.f32 %v4707, %v1445
      %v4712 = vadd.f32 %v4708, 1e-05
      %v4713 = vadd.f32 %v4709, 1e-05
      %v4714 = vadd.f32 %v4710, 1e-05
      %v4715 = vadd.f32 %v4711, 1e-05
      %v4716 = vrsqrt.pop %v4712
      %v4717 = vrsqrt.pop %v4713
      %v4718 = vrsqrt.pop %v4714
      %v4719 = vrsqrt.pop %v4715
      %v4720 = vmul.f32 %v4680, %v4716
      %v4721 = vmul.f32 %v4681, %v4716
      %v4722 = vmul.f32 %v4682, %v4717
      %v4723 = vmul.f32 %v4683, %v4717
      %v4724 = vmul.f32 %v4684, %v4718
      %v4725 = vmul.f32 %v4685, %v4718
      %v4726 = vmul.f32 %v4686, %v4719
      %v4727 = vmul.f32 %v4687, %v4719
      %v4728 = vmul.f32 %v4720, %v2636
      %v4729 = vmul.f32 %v4721, %v2640
      %v4730 = vmul.f32 %v4722, %v2636
      %v4731 = vmul.f32 %v4723, %v2640
      %v4732 = vmul.f32 %v4724, %v2636
      %v4733 = vmul.f32 %v4725, %v2640
      %v4734 = vmul.f32 %v4726, %v2636
      %v4735 = vmul.f32 %v4727, %v2640
      %v4736 = vadd.f32 %v4728, %v2656
      %v4737 = vadd.f32 %v4729, %v2660
      %v4738 = vadd.f32 %v4730, %v2656
      %v4739 = vadd.f32 %v4731, %v2660
      %v4740 = vadd.f32 %v4732, %v2656
      %v4741 = vadd.f32 %v4733, %v2660
      %v4742 = vadd.f32 %v4734, %v2656
      %v4743 = vadd.f32 %v4735, %v2660
      %v4744 = vmax.f32 %v4736, 0.0
      %v4745 = vmax.f32 %v4737, 0.0
      %v4746 = vmax.f32 %v4738, 0.0
      %v4747 = vmax.f32 %v4739, 0.0
      %v4748 = vmax.f32 %v4740, 0.0
      %v4749 = vmax.f32 %v4741, 0.0
      %v4750 = vmax.f32 %v4742, 0.0
      %v4751 = vmax.f32 %v4743, 0.0
      %v4752 = vpack.c.bf16 %v4746, %v4744
      %v4753 = vpack.c.bf16 %v4747, %v4745
      %v4754 = vpack.c.bf16 %v4750, %v4748
      %v4755 = vpack.c.bf16 %v4751, %v4749
      %4756 = vmatprep.subr.bf16.mxu0 0
      %4757 = vmatpush1.bf16.msra.mxu0 %v2793
      %4758 = vmatprep.subr.bf16.mxu0 0
      %4759 = vmatpush1.bf16.msra.mxu0 %v2792
      %4760 = vmatprep.subr.bf16.mxu0 0
      %4761 = vmatpush1.bf16.msra.mxu0 %v2791
      %4762 = vmatprep.subr.bf16.mxu0 0
      %4763 = vmatpush1.bf16.msra.mxu0 %v2790
      %4764 = vmatprep.subr.bf16.mxu0 0
      %4765 = vmatpush1.bf16.msra.mxu0 %v2789
      %4766 = vmatprep.subr.bf16.mxu0 0
      %4767 = vmatpush1.bf16.msra.mxu0 %v2788
      %4768 = vmatprep.subr.bf16.mxu0 0
      %4769 = vmatpush1.bf16.msra.mxu0 %v2787
      %4770 = vmatprep.subr.bf16.mxu0 0
      %4771 = vmatpush1.bf16.msra.mxu0 %v2786
      %4772 = vmatprep.subr.bf16.mxu0 0
      %4773 = vmatpush2.bf16.msra.mxu0 %v2801
      %4774 = vmatprep.subr.bf16.mxu0 0
      %4775 = vmatpush2.bf16.msra.mxu0 %v2800
      %4776 = vmatprep.subr.bf16.mxu0 0
      %4777 = vmatpush2.bf16.msra.mxu0 %v2799
      %4778 = vmatprep.subr.bf16.mxu0 0
      %4779 = vmatpush2.bf16.msra.mxu0 %v2798
      %4780 = vmatprep.subr.bf16.mxu0 0
      %4781 = vmatpush2.bf16.msra.mxu0 %v2797
      %4782 = vmatprep.subr.bf16.mxu0 0
      %4783 = vmatpush2.bf16.msra.mxu0 %v2796
      %4784 = vmatprep.subr.bf16.mxu0 0
      %4785 = vmatpush2.bf16.msra.mxu0 %v2795
      %4786 = vmatprep.subr.bf16.mxu0 0
      %4787 = vmatpush2.bf16.msra.mxu0 %v2794
      %4788 = vmatprep.mubr.bf16.mxu0 %v4753
      %4789 = vmatmul.mubr.bf16.gmra.mxu0 %v4752
      %v4790 = vpop.f32.mrf.mxu0
      %v4791 = vadd.f32 %v2720, %v4790
      %v4792 = vpop.f32.mrf.mxu0
      %v4793 = vpop.f32.mrf.mxu0
      %v4794 = vadd.f32 %v2720, %v4793
      %v4795 = vpop.f32.mrf.mxu0
      %4796 = vmatprep.mubr.bf16.mxu0 %v4755
      %4797 = vmatmul.mubr.bf16.gmra.mxu0 %v4754
      %v4798 = vpop.f32.mrf.mxu0
      %v4799 = vadd.f32 %v2720, %v4798
      %v4800 = vpop.f32.mrf.mxu0
      %v4801 = vpop.f32.mrf.mxu0
      %v4802 = vadd.f32 %v2720, %v4801
      %v4803 = vpop.f32.mrf.mxu0
      %4804 = vdwg.mxu0
      %v4805 = vtanh.pop %v4791
      %v4806 = vtanh.pop %v4794
      %v4807 = vtanh.pop %v4799
      %v4808 = vtanh.pop %v4802
      %v4809 = vpack.c.bf16 %v4806, %v4805
      %v4810 = vpack.c.bf16 %v4808, %v4807
      %4811 = vmatprep.subr.bf16.mxu0 0
      %4812 = vmatpush1.bf16.msra.mxu0 0
      %4813 = vmatprep.subr.bf16.mxu0 0
      %4814 = vmatpush1.bf16.msra.mxu0 0
      %4815 = vmatprep.subr.bf16.mxu0 0
      %4816 = vmatpush1.bf16.msra.mxu0 0
      %4817 = vmatprep.subr.bf16.mxu0 0
      %4818 = vmatpush1.bf16.msra.mxu0 0
      %4819 = vmatprep.subr.bf16.mxu0 0
      %4820 = vmatpush1.bf16.msra.mxu0 0
      %4821 = vmatprep.subr.bf16.mxu0 0
      %4822 = vmatpush1.bf16.msra.mxu0 0
      %4823 = vmatprep.subr.bf16.mxu0 0
      %4824 = vmatpush1.bf16.msra.mxu0 %v4810
      %4825 = vmatprep.subr.bf16.mxu0 0
      %4826 = vmatpush1.bf16.msra.mxu0 %v4809
      %4827 = vmatprep.subr.bf16.mxu0 0
      %4828 = vmatpush2.bf16.msra.mxu0 0
      %4829 = vmatprep.subr.bf16.mxu0 0
      %4830 = vmatpush2.bf16.msra.mxu0 0
      %4831 = vmatprep.subr.bf16.mxu0 0
      %4832 = vmatpush2.bf16.msra.mxu0 0
      %4833 = vmatprep.subr.bf16.mxu0 0
      %4834 = vmatpush2.bf16.msra.mxu0 0
      %4835 = vmatprep.subr.bf16.mxu0 0
      %4836 = vmatpush2.bf16.msra.mxu0 0
      %4837 = vmatprep.subr.bf16.mxu0 0
      %4838 = vmatpush2.bf16.msra.mxu0 0
      %4839 = vmatprep.subr.bf16.mxu0 0
      %4840 = vmatpush2.bf16.msra.mxu0 0
      %4841 = vmatprep.subr.bf16.mxu0 0
      %4842 = vmatpush2.bf16.msra.mxu0 0
      %4843 = vmatprep.mubr.bf16.mxu0 0
      %4844 = vmatmul.mubr.bf16.gmra.mxu0 %v2880
      %v4845 = vpop.f32.mrf.mxu0
      %v4846 = vadd.f32 0.0, %v4845
      %v4847 = vpop.f32.mrf.mxu0
      %v4848 = vpop.f32.mrf.mxu0
      %v4849 = vadd.f32 0.0, %v4848
      %v4850 = vpop.f32.mrf.mxu0
      %4851 = vdwg.mxu0
      %v4852 = vpack.c.bf16 %v4849, %v4846
      %v4854 = vsel %vm2134, %v4408, 0
      %4856 = vmatprep.subr.bf16.mxu0 0
      %4857 = vmatpush1.bf16.msra.mxu0 0
      %4858 = vmatprep.subr.bf16.mxu0 0
      %4859 = vmatpush1.bf16.msra.mxu0 0
      %4860 = vmatprep.subr.bf16.mxu0 0
      %4861 = vmatpush1.bf16.msra.mxu0 0
      %4862 = vmatprep.subr.bf16.mxu0 0
      %4863 = vmatpush1.bf16.msra.mxu0 0
      %4864 = vmatprep.subr.bf16.mxu0 %v2971
      %4865 = vmatpush1.bf16.msra.mxu0 %v2970
      %4866 = vmatprep.subr.bf16.mxu0 %v2969
      %4867 = vmatpush1.bf16.msra.mxu0 %v2968
      %4868 = vmatprep.subr.bf16.mxu0 %v2967
      %4869 = vmatpush1.bf16.msra.mxu0 %v2966
      %4870 = vmatprep.subr.bf16.mxu0 %v2965
      %4871 = vmatpush1.bf16.msra.mxu0 %v2964
      %4872 = vmatprep.subr.bf16.mxu0 0
      %4873 = vmatpush2.bf16.msra.mxu0 0
      %4874 = vmatprep.subr.bf16.mxu0 0
      %4875 = vmatpush2.bf16.msra.mxu0 0
      %4876 = vmatprep.subr.bf16.mxu0 0
      %4877 = vmatpush2.bf16.msra.mxu0 0
      %4878 = vmatprep.subr.bf16.mxu0 0
      %4879 = vmatpush2.bf16.msra.mxu0 0
      %4880 = vmatprep.subr.bf16.mxu0 0
      %4881 = vmatpush2.bf16.msra.mxu0 0
      %4882 = vmatprep.subr.bf16.mxu0 0
      %4883 = vmatpush2.bf16.msra.mxu0 0
      %4884 = vmatprep.subr.bf16.mxu0 0
      %4885 = vmatpush2.bf16.msra.mxu0 0
      %4886 = vmatprep.subr.bf16.mxu0 0
      %4887 = vmatpush2.bf16.msra.mxu0 0
      %4888 = vmatprep.mubr.bf16.mxu0 0
      %4889 = vmatmul.mubr.bf16.gmra.mxu0 %v4854
      %v4890 = vpop.f32.mrf.mxu0
      %v4891 = vadd.f32 0.0, %v4890
      %v4892 = vpop.f32.mrf.mxu0
      %v4893 = vadd.f32 0.0, %v4892
      %v4894 = vpop.f32.mrf.mxu0
      %v4895 = vadd.f32 0.0, %v4894
      %v4896 = vpop.f32.mrf.mxu0
      %v4897 = vadd.f32 0.0, %v4896
      %4898 = vdwg.mxu0
      %v4900 = vsel %vm2134, %v4852, 0
      %4902 = vmatprep.subr.bf16.mxu0 0
      %4903 = vmatpush1.bf16.msra.mxu0 0
      %4904 = vmatprep.subr.bf16.mxu0 0
      %4905 = vmatpush1.bf16.msra.mxu0 0
      %4906 = vmatprep.subr.bf16.mxu0 0
      %4907 = vmatpush1.bf16.msra.mxu0 0
      %4908 = vmatprep.subr.bf16.mxu0 0
      %4909 = vmatpush1.bf16.msra.mxu0 0
      %4910 = vmatprep.subr.bf16.mxu0 %v3057
      %4911 = vmatpush1.bf16.msra.mxu0 %v3056
      %4912 = vmatprep.subr.bf16.mxu0 %v3055
      %4913 = vmatpush1.bf16.msra.mxu0 %v3054
      %4914 = vmatprep.subr.bf16.mxu0 %v3053
      %4915 = vmatpush1.bf16.msra.mxu0 %v3052
      %4916 = vmatprep.subr.bf16.mxu0 %v3051
      %4917 = vmatpush1.bf16.msra.mxu0 %v3050
      %4918 = vmatprep.subr.bf16.mxu0 0
      %4919 = vmatpush2.bf16.msra.mxu0 0
      %4920 = vmatprep.subr.bf16.mxu0 0
      %4921 = vmatpush2.bf16.msra.mxu0 0
      %4922 = vmatprep.subr.bf16.mxu0 0
      %4923 = vmatpush2.bf16.msra.mxu0 0
      %4924 = vmatprep.subr.bf16.mxu0 0
      %4925 = vmatpush2.bf16.msra.mxu0 0
      %4926 = vmatprep.subr.bf16.mxu0 0
      %4927 = vmatpush2.bf16.msra.mxu0 0
      %4928 = vmatprep.subr.bf16.mxu0 0
      %4929 = vmatpush2.bf16.msra.mxu0 0
      %4930 = vmatprep.subr.bf16.mxu0 0
      %4931 = vmatpush2.bf16.msra.mxu0 0
      %4932 = vmatprep.subr.bf16.mxu0 0
      %4933 = vmatpush2.bf16.msra.mxu0 0
      %4934 = vmatprep.mubr.bf16.mxu0 0
      %4935 = vmatmul.mubr.bf16.gmra.mxu0 %v4900
      %v4936 = vpop.f32.mrf.mxu0
      %v4937 = vadd.f32 %v4891, %v4936
      %v4938 = vpop.f32.mrf.mxu0
      %v4939 = vadd.f32 %v4893, %v4938
      %v4940 = vpop.f32.mrf.mxu0
      %v4941 = vadd.f32 %v4895, %v4940
      %v4942 = vpop.f32.mrf.mxu0
      %v4943 = vadd.f32 %v4897, %v4942
      %4944 = vdwg.mxu0
      %v4945 = vadd.f32 %v4937, %v3117
      %v4946 = vadd.f32 %v4939, %v3121
      %v4947 = vadd.f32 %v4941, %v3117
      %v4948 = vadd.f32 %v4943, %v3121
      %v4949 = vadd.f32 %v4945, %v4946
      %4950 = vadd.xlane.f32.xlu0 %v4949
      %v4951 = vpop.xlane.xlu0 %4950
      %v4952 = vadd.f32 %v4947, %v4948
      %4953 = vadd.xlane.f32.xlu0 %v4952
      %v4954 = vpop.xlane.xlu0 %4953
      %v4955 = vmul.f32 %v4951, %v1445
      %v4956 = vmul.f32 %v4954, %v1445
      %v4957 = vsub.f32 %v4945, %v4955
      %v4958 = vsub.f32 %v4946, %v4955
      %v4959 = vsub.f32 %v4947, %v4956
      %v4960 = vsub.f32 %v4948, %v4956
      %v4961 = vmul.f32 %v4957, %v4957
      %v4962 = vmul.f32 %v4958, %v4958
      %v4963 = vmul.f32 %v4959, %v4959
      %v4964 = vmul.f32 %v4960, %v4960
      %v4965 = vadd.f32 %v4961, %v4962
      %4966 = vadd.xlane.f32.xlu0 %v4965
      %v4967 = vpop.xlane.xlu0 %4966
      %v4968 = vadd.f32 %v4963, %v4964
      %4969 = vadd.xlane.f32.xlu0 %v4968
      %v4970 = vpop.xlane.xlu0 %4969
      %v4971 = vmul.f32 %v4967, %v1445
      %v4972 = vmul.f32 %v4970, %v1445
      %v4973 = vadd.f32 %v4971, 1e-05
      %v4974 = vadd.f32 %v4972, 1e-05
      %v4975 = vrsqrt.pop %v4973
      %v4976 = vrsqrt.pop %v4974
      %v4977 = vmul.f32 %v4957, %v4975
      %v4978 = vmul.f32 %v4958, %v4975
      %v4979 = vmul.f32 %v4959, %v4976
      %v4980 = vmul.f32 %v4960, %v4976
      %v4981 = vmul.f32 %v4977, %v3165
      %v4982 = vmul.f32 %v4978, %v3169
      %v4983 = vmul.f32 %v4979, %v3165
      %v4984 = vmul.f32 %v4980, %v3169
      %v4985 = vadd.f32 %v4981, %v3181
      %v4986 = vadd.f32 %v4982, %v3185
      %v4987 = vadd.f32 %v4983, %v3181
      %v4988 = vadd.f32 %v4984, %v3185
      %v4989 = vmax.f32 %v4985, 0.0
      %v4990 = vmax.f32 %v4986, 0.0
      %v4991 = vmax.f32 %v4987, 0.0
      %v4992 = vmax.f32 %v4988, 0.0
      %v4993 = vpack.c.bf16 %v4991, %v4989
      %v4994 = vpack.c.bf16 %v4992, %v4990
      %4995 = vmatprep.subr.bf16.mxu0 %v3353
      %4996 = vmatpush1.bf16.msra.mxu0 %v3352
      %4997 = vmatprep.subr.bf16.mxu0 %v3351
      %4998 = vmatpush1.bf16.msra.mxu0 %v3350
      %4999 = vmatprep.subr.bf16.mxu0 %v3349
      %5000 = vmatpush1.bf16.msra.mxu0 %v3348
      %5001 = vmatprep.subr.bf16.mxu0 %v3347
      %5002 = vmatpush1.bf16.msra.mxu0 %v3346
      %5003 = vmatprep.subr.bf16.mxu0 %v3345
      %5004 = vmatpush1.bf16.msra.mxu0 %v3344
      %5005 = vmatprep.subr.bf16.mxu0 %v3343
      %5006 = vmatpush1.bf16.msra.mxu0 %v3342
      %5007 = vmatprep.subr.bf16.mxu0 %v3341
      %5008 = vmatpush1.bf16.msra.mxu0 %v3340
      %5009 = vmatprep.subr.bf16.mxu0 %v3339
      %5010 = vmatpush1.bf16.msra.mxu0 %v3338
      %5011 = vmatprep.subr.bf16.mxu0 %v3369
      %5012 = vmatpush2.bf16.msra.mxu0 %v3368
      %5013 = vmatprep.subr.bf16.mxu0 %v3367
      %5014 = vmatpush2.bf16.msra.mxu0 %v3366
      %5015 = vmatprep.subr.bf16.mxu0 %v3365
      %5016 = vmatpush2.bf16.msra.mxu0 %v3364
      %5017 = vmatprep.subr.bf16.mxu0 %v3363
      %5018 = vmatpush2.bf16.msra.mxu0 %v3362
      %5019 = vmatprep.subr.bf16.mxu0 %v3361
      %5020 = vmatpush2.bf16.msra.mxu0 %v3360
      %5021 = vmatprep.subr.bf16.mxu0 %v3359
      %5022 = vmatpush2.bf16.msra.mxu0 %v3358
      %5023 = vmatprep.subr.bf16.mxu0 %v3357
      %5024 = vmatpush2.bf16.msra.mxu0 %v3356
      %5025 = vmatprep.subr.bf16.mxu0 %v3355
      %5026 = vmatpush2.bf16.msra.mxu0 %v3354
      %5027 = vmatprep.mubr.bf16.mxu0 %v4994
      %5028 = vmatmul.mubr.bf16.gmra.mxu0 %v4993
      %v5029 = vpop.f32.mrf.mxu0
      %v5030 = vadd.f32 %v3235, %v5029
      %v5031 = vpop.f32.mrf.mxu0
      %v5032 = vadd.f32 %v3239, %v5031
      %v5033 = vpop.f32.mrf.mxu0
      %v5034 = vadd.f32 %v3235, %v5033
      %v5035 = vpop.f32.mrf.mxu0
      %v5036 = vadd.f32 %v3239, %v5035
      %5037 = vdwg.mxu0
      %v5038 = vadd.f32 %v5030, %v5032
      %5039 = vadd.xlane.f32.xlu0 %v5038
      %v5040 = vpop.xlane.xlu0 %5039
      %v5041 = vadd.f32 %v5034, %v5036
      %5042 = vadd.xlane.f32.xlu0 %v5041
      %v5043 = vpop.xlane.xlu0 %5042
      %v5044 = vmul.f32 %v5040, %v1445
      %v5045 = vmul.f32 %v5043, %v1445
      %v5046 = vsub.f32 %v5030, %v5044
      %v5047 = vsub.f32 %v5032, %v5044
      %v5048 = vsub.f32 %v5034, %v5045
      %v5049 = vsub.f32 %v5036, %v5045
      %v5050 = vmul.f32 %v5046, %v5046
      %v5051 = vmul.f32 %v5047, %v5047
      %v5052 = vmul.f32 %v5048, %v5048
      %v5053 = vmul.f32 %v5049, %v5049
      %v5054 = vadd.f32 %v5050, %v5051
      %5055 = vadd.xlane.f32.xlu0 %v5054
      %v5056 = vpop.xlane.xlu0 %5055
      %v5057 = vadd.f32 %v5052, %v5053
      %5058 = vadd.xlane.f32.xlu0 %v5057
      %v5059 = vpop.xlane.xlu0 %5058
      %v5060 = vmul.f32 %v5056, %v1445
      %v5061 = vmul.f32 %v5059, %v1445
      %v5062 = vadd.f32 %v5060, 1e-05
      %v5063 = vadd.f32 %v5061, 1e-05
      %v5064 = vrsqrt.pop %v5062
      %v5065 = vrsqrt.pop %v5063
      %v5066 = vmul.f32 %v5046, %v5064
      %v5067 = vmul.f32 %v5047, %v5064
      %v5068 = vmul.f32 %v5048, %v5065
      %v5069 = vmul.f32 %v5049, %v5065
      %v5070 = vmul.f32 %v5066, %v3482
      %v5071 = vmul.f32 %v5067, %v3486
      %v5072 = vmul.f32 %v5068, %v3482
      %v5073 = vmul.f32 %v5069, %v3486
      %v5074 = vadd.f32 %v5070, %v3498
      %v5075 = vadd.f32 %v5071, %v3502
      %v5076 = vadd.f32 %v5072, %v3498
      %v5077 = vadd.f32 %v5073, %v3502
      %v5078 = vmax.f32 %v5074, 0.0
      %v5079 = vmax.f32 %v5075, 0.0
      %v5080 = vmax.f32 %v5076, 0.0
      %v5081 = vmax.f32 %v5077, 0.0
      %v5082 = vpack.c.bf16 %v5080, %v5078
      %v5083 = vpack.c.bf16 %v5081, %v5079
      %5084 = vmatprep.subr.bf16.mxu0 0
      %5085 = vmatpush1.bf16.msra.mxu0 %v3625
      %5086 = vmatprep.subr.bf16.mxu0 0
      %5087 = vmatpush1.bf16.msra.mxu0 %v3624
      %5088 = vmatprep.subr.bf16.mxu0 0
      %5089 = vmatpush1.bf16.msra.mxu0 %v3623
      %5090 = vmatprep.subr.bf16.mxu0 0
      %5091 = vmatpush1.bf16.msra.mxu0 %v3622
      %5092 = vmatprep.subr.bf16.mxu0 0
      %5093 = vmatpush1.bf16.msra.mxu0 %v3621
      %5094 = vmatprep.subr.bf16.mxu0 0
      %5095 = vmatpush1.bf16.msra.mxu0 %v3620
      %5096 = vmatprep.subr.bf16.mxu0 0
      %5097 = vmatpush1.bf16.msra.mxu0 %v3619
      %5098 = vmatprep.subr.bf16.mxu0 0
      %5099 = vmatpush1.bf16.msra.mxu0 %v3618
      %5100 = vmatprep.subr.bf16.mxu0 0
      %5101 = vmatpush2.bf16.msra.mxu0 %v3633
      %5102 = vmatprep.subr.bf16.mxu0 0
      %5103 = vmatpush2.bf16.msra.mxu0 %v3632
      %5104 = vmatprep.subr.bf16.mxu0 0
      %5105 = vmatpush2.bf16.msra.mxu0 %v3631
      %5106 = vmatprep.subr.bf16.mxu0 0
      %5107 = vmatpush2.bf16.msra.mxu0 %v3630
      %5108 = vmatprep.subr.bf16.mxu0 0
      %5109 = vmatpush2.bf16.msra.mxu0 %v3629
      %5110 = vmatprep.subr.bf16.mxu0 0
      %5111 = vmatpush2.bf16.msra.mxu0 %v3628
      %5112 = vmatprep.subr.bf16.mxu0 0
      %5113 = vmatpush2.bf16.msra.mxu0 %v3627
      %5114 = vmatprep.subr.bf16.mxu0 0
      %5115 = vmatpush2.bf16.msra.mxu0 %v3626
      %5116 = vmatprep.mubr.bf16.mxu0 %v5083
      %5117 = vmatmul.mubr.bf16.gmra.mxu0 %v5082
      %v5118 = vpop.f32.mrf.mxu0
      %v5119 = vadd.f32 %v3552, %v5118
      %v5120 = vpop.f32.mrf.mxu0
      %v5121 = vpop.f32.mrf.mxu0
      %v5122 = vadd.f32 %v3552, %v5121
      %v5123 = vpop.f32.mrf.mxu0
      %5124 = vdwg.mxu0
      %v5125 = vpack.c.bf16 %v5122, %v5119
      %5126 = vmatprep.subr.bf16.mxu0 0
      %5127 = vmatpush1.bf16.msra.mxu0 0
      %5128 = vmatprep.subr.bf16.mxu0 0
      %5129 = vmatpush1.bf16.msra.mxu0 0
      %5130 = vmatprep.subr.bf16.mxu0 0
      %5131 = vmatpush1.bf16.msra.mxu0 0
      %5132 = vmatprep.subr.bf16.mxu0 0
      %5133 = vmatpush1.bf16.msra.mxu0 0
      %5134 = vmatprep.subr.bf16.mxu0 0
      %5135 = vmatpush1.bf16.msra.mxu0 0
      %5136 = vmatprep.subr.bf16.mxu0 0
      %5137 = vmatpush1.bf16.msra.mxu0 0
      %5138 = vmatprep.subr.bf16.mxu0 0
      %5139 = vmatpush1.bf16.msra.mxu0 0
      %5140 = vmatprep.subr.bf16.mxu0 0
      %5141 = vmatpush1.bf16.msra.mxu0 %v5125
      %5142 = vmatprep.subr.bf16.mxu0 0
      %5143 = vmatpush2.bf16.msra.mxu0 0
      %5144 = vmatprep.subr.bf16.mxu0 0
      %5145 = vmatpush2.bf16.msra.mxu0 0
      %5146 = vmatprep.subr.bf16.mxu0 0
      %5147 = vmatpush2.bf16.msra.mxu0 0
      %5148 = vmatprep.subr.bf16.mxu0 0
      %5149 = vmatpush2.bf16.msra.mxu0 0
      %5150 = vmatprep.subr.bf16.mxu0 0
      %5151 = vmatpush2.bf16.msra.mxu0 0
      %5152 = vmatprep.subr.bf16.mxu0 0
      %5153 = vmatpush2.bf16.msra.mxu0 0
      %5154 = vmatprep.subr.bf16.mxu0 0
      %5155 = vmatpush2.bf16.msra.mxu0 0
      %5156 = vmatprep.subr.bf16.mxu0 0
      %5157 = vmatpush2.bf16.msra.mxu0 0
      %5158 = vmatprep.mubr.bf16.mxu0 0
      %5159 = vmatmul.mubr.bf16.gmra.mxu0 %v2030
      %v5160 = vpop.f32.mrf.mxu0
      %v5161 = vadd.f32 0.0, %v5160
      %v5162 = vpop.f32.mrf.mxu0
      %v5163 = vpop.f32.mrf.mxu0
      %v5164 = vadd.f32 0.0, %v5163
      %v5165 = vpop.f32.mrf.mxu0
      %5166 = vmatprep.mubr.bf16.mxu0 0
      %5167 = vmatmul.mubr.bf16.gmra.mxu0 %v2033
      %v5168 = vpop.f32.mrf.mxu0
      %v5169 = vadd.f32 0.0, %v5168
      %v5170 = vpop.f32.mrf.mxu0
      %v5171 = vpop.f32.mrf.mxu0
      %v5172 = vadd.f32 0.0, %v5171
      %v5173 = vpop.f32.mrf.mxu0
      %5174 = vdwg.mxu0
      %v5175 = vpack.c.bf16 %v5164, %v5161
      %v5176 = vpack.c.bf16 %v5172, %v5169
      %v5178 = vsel %vm2134, %v5175, 0
      %v5181 = vsel %vm2134, %v5176, 0
      %5183 = vmatprep.subr.bf16.mxu0 0
      %5184 = vmatpush1.bf16.msra.mxu0 0
      %5185 = vmatprep.subr.bf16.mxu0 0
      %5186 = vmatpush1.bf16.msra.mxu0 0
      %5187 = vmatprep.subr.bf16.mxu0 0
      %5188 = vmatpush1.bf16.msra.mxu0 0
      %5189 = vmatprep.subr.bf16.mxu0 0
      %5190 = vmatpush1.bf16.msra.mxu0 0
      %5191 = vmatprep.subr.bf16.mxu0 %v2125
      %5192 = vmatpush1.bf16.msra.mxu0 %v2124
      %5193 = vmatprep.subr.bf16.mxu0 %v2123
      %5194 = vmatpush1.bf16.msra.mxu0 %v2122
      %5195 = vmatprep.subr.bf16.mxu0 %v2121
      %5196 = vmatpush1.bf16.msra.mxu0 %v2120
      %5197 = vmatprep.subr.bf16.mxu0 %v2119
      %5198 = vmatpush1.bf16.msra.mxu0 %v2118
      %5199 = vmatprep.subr.bf16.mxu0 0
      %5200 = vmatpush2.bf16.msra.mxu0 0
      %5201 = vmatprep.subr.bf16.mxu0 0
      %5202 = vmatpush2.bf16.msra.mxu0 0
      %5203 = vmatprep.subr.bf16.mxu0 0
      %5204 = vmatpush2.bf16.msra.mxu0 0
      %5205 = vmatprep.subr.bf16.mxu0 0
      %5206 = vmatpush2.bf16.msra.mxu0 0
      %5207 = vmatprep.subr.bf16.mxu0 0
      %5208 = vmatpush2.bf16.msra.mxu0 0
      %5209 = vmatprep.subr.bf16.mxu0 0
      %5210 = vmatpush2.bf16.msra.mxu0 0
      %5211 = vmatprep.subr.bf16.mxu0 0
      %5212 = vmatpush2.bf16.msra.mxu0 0
      %5213 = vmatprep.subr.bf16.mxu0 0
      %5214 = vmatpush2.bf16.msra.mxu0 0
      %5215 = vmatprep.mubr.bf16.mxu0 0
      %5216 = vmatmul.mubr.bf16.gmra.mxu0 %v5178
      %v5217 = vpop.f32.mrf.mxu0
      %v5218 = vadd.f32 %v2009, %v5217
      %v5219 = vpop.f32.mrf.mxu0
      %v5220 = vadd.f32 %v2010, %v5219
      %v5221 = vpop.f32.mrf.mxu0
      %v5222 = vadd.f32 %v2011, %v5221
      %v5223 = vpop.f32.mrf.mxu0
      %v5224 = vadd.f32 %v2012, %v5223
      %5225 = vmatprep.mubr.bf16.mxu0 0
      %5226 = vmatmul.mubr.bf16.gmra.mxu0 %v5181
      %v5227 = vpop.f32.mrf.mxu0
      %v5228 = vadd.f32 %v2013, %v5227
      %v5229 = vpop.f32.mrf.mxu0
      %v5230 = vadd.f32 %v2014, %v5229
      %v5231 = vpop.f32.mrf.mxu0
      %v5232 = vadd.f32 %v2015, %v5231
      %v5233 = vpop.f32.mrf.mxu0
      %v5234 = vadd.f32 %v2016, %v5233
      %5235 = vdwg.mxu0
      %v5236 = vadd.f32 %v5218, %v5220
      %5237 = vadd.xlane.f32.xlu0 %v5236
      %v5238 = vpop.xlane.xlu0 %5237
      %v5239 = vadd.f32 %v5222, %v5224
      %5240 = vadd.xlane.f32.xlu0 %v5239
      %v5241 = vpop.xlane.xlu0 %5240
      %v5242 = vadd.f32 %v5228, %v5230
      %5243 = vadd.xlane.f32.xlu0 %v5242
      %v5244 = vpop.xlane.xlu0 %5243
      %v5245 = vadd.f32 %v5232, %v5234
      %5246 = vadd.xlane.f32.xlu0 %v5245
      %v5247 = vpop.xlane.xlu0 %5246
      %v5248 = vmul.f32 %v5238, %v1445
      %v5249 = vmul.f32 %v5241, %v1445
      %v5250 = vmul.f32 %v5244, %v1445
      %v5251 = vmul.f32 %v5247, %v1445
      %v5252 = vsub.f32 %v5218, %v5248
      %v5253 = vsub.f32 %v5220, %v5248
      %v5254 = vsub.f32 %v5222, %v5249
      %v5255 = vsub.f32 %v5224, %v5249
      %v5256 = vsub.f32 %v5228, %v5250
      %v5257 = vsub.f32 %v5230, %v5250
      %v5258 = vsub.f32 %v5232, %v5251
      %v5259 = vsub.f32 %v5234, %v5251
      %v5260 = vmul.f32 %v5252, %v5252
      %v5261 = vmul.f32 %v5253, %v5253
      %v5262 = vmul.f32 %v5254, %v5254
      %v5263 = vmul.f32 %v5255, %v5255
      %v5264 = vmul.f32 %v5256, %v5256
      %v5265 = vmul.f32 %v5257, %v5257
      %v5266 = vmul.f32 %v5258, %v5258
      %v5267 = vmul.f32 %v5259, %v5259
      %v5268 = vadd.f32 %v5260, %v5261
      %5269 = vadd.xlane.f32.xlu0 %v5268
      %v5270 = vpop.xlane.xlu0 %5269
      %v5271 = vadd.f32 %v5262, %v5263
      %5272 = vadd.xlane.f32.xlu0 %v5271
      %v5273 = vpop.xlane.xlu0 %5272
      %v5274 = vadd.f32 %v5264, %v5265
      %5275 = vadd.xlane.f32.xlu0 %v5274
      %v5276 = vpop.xlane.xlu0 %5275
      %v5277 = vadd.f32 %v5266, %v5267
      %5278 = vadd.xlane.f32.xlu0 %v5277
      %v5279 = vpop.xlane.xlu0 %5278
      %v5280 = vmul.f32 %v5270, %v1445
      %v5281 = vmul.f32 %v5273, %v1445
      %v5282 = vmul.f32 %v5276, %v1445
      %v5283 = vmul.f32 %v5279, %v1445
      %v5284 = vadd.f32 %v5280, 1e-05
      %v5285 = vadd.f32 %v5281, 1e-05
      %v5286 = vadd.f32 %v5282, 1e-05
      %v5287 = vadd.f32 %v5283, 1e-05
      %v5288 = vrsqrt.pop %v5284
      %v5289 = vrsqrt.pop %v5285
      %v5290 = vrsqrt.pop %v5286
      %v5291 = vrsqrt.pop %v5287
      %v5292 = vmul.f32 %v5252, %v5288
      %v5293 = vmul.f32 %v5253, %v5288
      %v5294 = vmul.f32 %v5254, %v5289
      %v5295 = vmul.f32 %v5255, %v5289
      %v5296 = vmul.f32 %v5256, %v5290
      %v5297 = vmul.f32 %v5257, %v5290
      %v5298 = vmul.f32 %v5258, %v5291
      %v5299 = vmul.f32 %v5259, %v5291
      %v5300 = vmul.f32 %v5292, %v2263
      %v5301 = vmul.f32 %v5293, %v2267
      %v5302 = vmul.f32 %v5294, %v2263
      %v5303 = vmul.f32 %v5295, %v2267
      %v5304 = vmul.f32 %v5296, %v2263
      %v5305 = vmul.f32 %v5297, %v2267
      %v5306 = vmul.f32 %v5298, %v2263
      %v5307 = vmul.f32 %v5299, %v2267
      %v5308 = vadd.f32 %v5300, %v2283
      %v5309 = vadd.f32 %v5301, %v2287
      %v5310 = vadd.f32 %v5302, %v2283
      %v5311 = vadd.f32 %v5303, %v2287
      %v5312 = vadd.f32 %v5304, %v2283
      %v5313 = vadd.f32 %v5305, %v2287
      %v5314 = vadd.f32 %v5306, %v2283
      %v5315 = vadd.f32 %v5307, %v2287
      %v5316 = vmax.f32 %v5308, 0.0
      %v5317 = vmax.f32 %v5309, 0.0
      %v5318 = vmax.f32 %v5310, 0.0
      %v5319 = vmax.f32 %v5311, 0.0
      %v5320 = vmax.f32 %v5312, 0.0
      %v5321 = vmax.f32 %v5313, 0.0
      %v5322 = vmax.f32 %v5314, 0.0
      %v5323 = vmax.f32 %v5315, 0.0
      %v5324 = vpack.c.bf16 %v5318, %v5316
      %v5325 = vpack.c.bf16 %v5319, %v5317
      %v5326 = vpack.c.bf16 %v5322, %v5320
      %v5327 = vpack.c.bf16 %v5323, %v5321
      %5328 = vmatprep.subr.bf16.mxu0 %v2465
      %5329 = vmatpush1.bf16.msra.mxu0 %v2464
      %5330 = vmatprep.subr.bf16.mxu0 %v2463
      %5331 = vmatpush1.bf16.msra.mxu0 %v2462
      %5332 = vmatprep.subr.bf16.mxu0 %v2461
      %5333 = vmatpush1.bf16.msra.mxu0 %v2460
      %5334 = vmatprep.subr.bf16.mxu0 %v2459
      %5335 = vmatpush1.bf16.msra.mxu0 %v2458
      %5336 = vmatprep.subr.bf16.mxu0 %v2457
      %5337 = vmatpush1.bf16.msra.mxu0 %v2456
      %5338 = vmatprep.subr.bf16.mxu0 %v2455
      %5339 = vmatpush1.bf16.msra.mxu0 %v2454
      %5340 = vmatprep.subr.bf16.mxu0 %v2453
      %5341 = vmatpush1.bf16.msra.mxu0 %v2452
      %5342 = vmatprep.subr.bf16.mxu0 %v2451
      %5343 = vmatpush1.bf16.msra.mxu0 %v2450
      %5344 = vmatprep.subr.bf16.mxu0 %v2481
      %5345 = vmatpush2.bf16.msra.mxu0 %v2480
      %5346 = vmatprep.subr.bf16.mxu0 %v2479
      %5347 = vmatpush2.bf16.msra.mxu0 %v2478
      %5348 = vmatprep.subr.bf16.mxu0 %v2477
      %5349 = vmatpush2.bf16.msra.mxu0 %v2476
      %5350 = vmatprep.subr.bf16.mxu0 %v2475
      %5351 = vmatpush2.bf16.msra.mxu0 %v2474
      %5352 = vmatprep.subr.bf16.mxu0 %v2473
      %5353 = vmatpush2.bf16.msra.mxu0 %v2472
      %5354 = vmatprep.subr.bf16.mxu0 %v2471
      %5355 = vmatpush2.bf16.msra.mxu0 %v2470
      %5356 = vmatprep.subr.bf16.mxu0 %v2469
      %5357 = vmatpush2.bf16.msra.mxu0 %v2468
      %5358 = vmatprep.subr.bf16.mxu0 %v2467
      %5359 = vmatpush2.bf16.msra.mxu0 %v2466
      %5360 = vmatprep.mubr.bf16.mxu0 %v5325
      %5361 = vmatmul.mubr.bf16.gmra.mxu0 %v5324
      %v5362 = vpop.f32.mrf.mxu0
      %v5363 = vadd.f32 %v2347, %v5362
      %v5364 = vpop.f32.mrf.mxu0
      %v5365 = vadd.f32 %v2351, %v5364
      %v5366 = vpop.f32.mrf.mxu0
      %v5367 = vadd.f32 %v2347, %v5366
      %v5368 = vpop.f32.mrf.mxu0
      %v5369 = vadd.f32 %v2351, %v5368
      %5370 = vmatprep.mubr.bf16.mxu0 %v5327
      %5371 = vmatmul.mubr.bf16.gmra.mxu0 %v5326
      %v5372 = vpop.f32.mrf.mxu0
      %v5373 = vadd.f32 %v2347, %v5372
      %v5374 = vpop.f32.mrf.mxu0
      %v5375 = vadd.f32 %v2351, %v5374
      %v5376 = vpop.f32.mrf.mxu0
      %v5377 = vadd.f32 %v2347, %v5376
      %v5378 = vpop.f32.mrf.mxu0
      %v5379 = vadd.f32 %v2351, %v5378
      %5380 = vdwg.mxu0
      %v5381 = vadd.f32 %v5363, %v5365
      %5382 = vadd.xlane.f32.xlu0 %v5381
      %v5383 = vpop.xlane.xlu0 %5382
      %v5384 = vadd.f32 %v5367, %v5369
      %5385 = vadd.xlane.f32.xlu0 %v5384
      %v5386 = vpop.xlane.xlu0 %5385
      %v5387 = vadd.f32 %v5373, %v5375
      %5388 = vadd.xlane.f32.xlu0 %v5387
      %v5389 = vpop.xlane.xlu0 %5388
      %v5390 = vadd.f32 %v5377, %v5379
      %5391 = vadd.xlane.f32.xlu0 %v5390
      %v5392 = vpop.xlane.xlu0 %5391
      %v5393 = vmul.f32 %v5383, %v1445
      %v5394 = vmul.f32 %v5386, %v1445
      %v5395 = vmul.f32 %v5389, %v1445
      %v5396 = vmul.f32 %v5392, %v1445
      %v5397 = vsub.f32 %v5363, %v5393
      %v5398 = vsub.f32 %v5365, %v5393
      %v5399 = vsub.f32 %v5367, %v5394
      %v5400 = vsub.f32 %v5369, %v5394
      %v5401 = vsub.f32 %v5373, %v5395
      %v5402 = vsub.f32 %v5375, %v5395
      %v5403 = vsub.f32 %v5377, %v5396
      %v5404 = vsub.f32 %v5379, %v5396
      %v5405 = vmul.f32 %v5397, %v5397
      %v5406 = vmul.f32 %v5398, %v5398
      %v5407 = vmul.f32 %v5399, %v5399
      %v5408 = vmul.f32 %v5400, %v5400
      %v5409 = vmul.f32 %v5401, %v5401
      %v5410 = vmul.f32 %v5402, %v5402
      %v5411 = vmul.f32 %v5403, %v5403
      %v5412 = vmul.f32 %v5404, %v5404
      %v5413 = vadd.f32 %v5405, %v5406
      %5414 = vadd.xlane.f32.xlu0 %v5413
      %v5415 = vpop.xlane.xlu0 %5414
      %v5416 = vadd.f32 %v5407, %v5408
      %5417 = vadd.xlane.f32.xlu0 %v5416
      %v5418 = vpop.xlane.xlu0 %5417
      %v5419 = vadd.f32 %v5409, %v5410
      %5420 = vadd.xlane.f32.xlu0 %v5419
      %v5421 = vpop.xlane.xlu0 %5420
      %v5422 = vadd.f32 %v5411, %v5412
      %5423 = vadd.xlane.f32.xlu0 %v5422
      %v5424 = vpop.xlane.xlu0 %5423
      %v5425 = vmul.f32 %v5415, %v1445
      %v5426 = vmul.f32 %v5418, %v1445
      %v5427 = vmul.f32 %v5421, %v1445
      %v5428 = vmul.f32 %v5424, %v1445
      %v5429 = vadd.f32 %v5425, 1e-05
      %v5430 = vadd.f32 %v5426, 1e-05
      %v5431 = vadd.f32 %v5427, 1e-05
      %v5432 = vadd.f32 %v5428, 1e-05
      %v5433 = vrsqrt.pop %v5429
      %v5434 = vrsqrt.pop %v5430
      %v5435 = vrsqrt.pop %v5431
      %v5436 = vrsqrt.pop %v5432
      %v5437 = vmul.f32 %v5397, %v5433
      %v5438 = vmul.f32 %v5398, %v5433
      %v5439 = vmul.f32 %v5399, %v5434
      %v5440 = vmul.f32 %v5400, %v5434
      %v5441 = vmul.f32 %v5401, %v5435
      %v5442 = vmul.f32 %v5402, %v5435
      %v5443 = vmul.f32 %v5403, %v5436
      %v5444 = vmul.f32 %v5404, %v5436
      %v5445 = vmul.f32 %v5437, %v2636
      %v5446 = vmul.f32 %v5438, %v2640
      %v5447 = vmul.f32 %v5439, %v2636
      %v5448 = vmul.f32 %v5440, %v2640
      %v5449 = vmul.f32 %v5441, %v2636
      %v5450 = vmul.f32 %v5442, %v2640
      %v5451 = vmul.f32 %v5443, %v2636
      %v5452 = vmul.f32 %v5444, %v2640
      %v5453 = vadd.f32 %v5445, %v2656
      %v5454 = vadd.f32 %v5446, %v2660
      %v5455 = vadd.f32 %v5447, %v2656
      %v5456 = vadd.f32 %v5448, %v2660
      %v5457 = vadd.f32 %v5449, %v2656
      %v5458 = vadd.f32 %v5450, %v2660
      %v5459 = vadd.f32 %v5451, %v2656
      %v5460 = vadd.f32 %v5452, %v2660
      %v5461 = vmax.f32 %v5453, 0.0
      %v5462 = vmax.f32 %v5454, 0.0
      %v5463 = vmax.f32 %v5455, 0.0
      %v5464 = vmax.f32 %v5456, 0.0
      %v5465 = vmax.f32 %v5457, 0.0
      %v5466 = vmax.f32 %v5458, 0.0
      %v5467 = vmax.f32 %v5459, 0.0
      %v5468 = vmax.f32 %v5460, 0.0
      %v5469 = vpack.c.bf16 %v5463, %v5461
      %v5470 = vpack.c.bf16 %v5464, %v5462
      %v5471 = vpack.c.bf16 %v5467, %v5465
      %v5472 = vpack.c.bf16 %v5468, %v5466
      %5473 = vmatprep.subr.bf16.mxu0 0
      %5474 = vmatpush1.bf16.msra.mxu0 %v2793
      %5475 = vmatprep.subr.bf16.mxu0 0
      %5476 = vmatpush1.bf16.msra.mxu0 %v2792
      %5477 = vmatprep.subr.bf16.mxu0 0
      %5478 = vmatpush1.bf16.msra.mxu0 %v2791
      %5479 = vmatprep.subr.bf16.mxu0 0
      %5480 = vmatpush1.bf16.msra.mxu0 %v2790
      %5481 = vmatprep.subr.bf16.mxu0 0
      %5482 = vmatpush1.bf16.msra.mxu0 %v2789
      %5483 = vmatprep.subr.bf16.mxu0 0
      %5484 = vmatpush1.bf16.msra.mxu0 %v2788
      %5485 = vmatprep.subr.bf16.mxu0 0
      %5486 = vmatpush1.bf16.msra.mxu0 %v2787
      %5487 = vmatprep.subr.bf16.mxu0 0
      %5488 = vmatpush1.bf16.msra.mxu0 %v2786
      %5489 = vmatprep.subr.bf16.mxu0 0
      %5490 = vmatpush2.bf16.msra.mxu0 %v2801
      %5491 = vmatprep.subr.bf16.mxu0 0
      %5492 = vmatpush2.bf16.msra.mxu0 %v2800
      %5493 = vmatprep.subr.bf16.mxu0 0
      %5494 = vmatpush2.bf16.msra.mxu0 %v2799
      %5495 = vmatprep.subr.bf16.mxu0 0
      %5496 = vmatpush2.bf16.msra.mxu0 %v2798
      %5497 = vmatprep.subr.bf16.mxu0 0
      %5498 = vmatpush2.bf16.msra.mxu0 %v2797
      %5499 = vmatprep.subr.bf16.mxu0 0
      %5500 = vmatpush2.bf16.msra.mxu0 %v2796
      %5501 = vmatprep.subr.bf16.mxu0 0
      %5502 = vmatpush2.bf16.msra.mxu0 %v2795
      %5503 = vmatprep.subr.bf16.mxu0 0
      %5504 = vmatpush2.bf16.msra.mxu0 %v2794
      %5505 = vmatprep.mubr.bf16.mxu0 %v5470
      %5506 = vmatmul.mubr.bf16.gmra.mxu0 %v5469
      %v5507 = vpop.f32.mrf.mxu0
      %v5508 = vadd.f32 %v2720, %v5507
      %v5509 = vpop.f32.mrf.mxu0
      %v5510 = vpop.f32.mrf.mxu0
      %v5511 = vadd.f32 %v2720, %v5510
      %v5512 = vpop.f32.mrf.mxu0
      %5513 = vmatprep.mubr.bf16.mxu0 %v5472
      %5514 = vmatmul.mubr.bf16.gmra.mxu0 %v5471
      %v5515 = vpop.f32.mrf.mxu0
      %v5516 = vadd.f32 %v2720, %v5515
      %v5517 = vpop.f32.mrf.mxu0
      %v5518 = vpop.f32.mrf.mxu0
      %v5519 = vadd.f32 %v2720, %v5518
      %v5520 = vpop.f32.mrf.mxu0
      %5521 = vdwg.mxu0
      %v5522 = vtanh.pop %v5508
      %v5523 = vtanh.pop %v5511
      %v5524 = vtanh.pop %v5516
      %v5525 = vtanh.pop %v5519
      %v5526 = vpack.c.bf16 %v5523, %v5522
      %v5527 = vpack.c.bf16 %v5525, %v5524
      %5528 = vmatprep.subr.bf16.mxu0 0
      %5529 = vmatpush1.bf16.msra.mxu0 0
      %5530 = vmatprep.subr.bf16.mxu0 0
      %5531 = vmatpush1.bf16.msra.mxu0 0
      %5532 = vmatprep.subr.bf16.mxu0 0
      %5533 = vmatpush1.bf16.msra.mxu0 0
      %5534 = vmatprep.subr.bf16.mxu0 0
      %5535 = vmatpush1.bf16.msra.mxu0 0
      %5536 = vmatprep.subr.bf16.mxu0 0
      %5537 = vmatpush1.bf16.msra.mxu0 0
      %5538 = vmatprep.subr.bf16.mxu0 0
      %5539 = vmatpush1.bf16.msra.mxu0 0
      %5540 = vmatprep.subr.bf16.mxu0 0
      %5541 = vmatpush1.bf16.msra.mxu0 %v5527
      %5542 = vmatprep.subr.bf16.mxu0 0
      %5543 = vmatpush1.bf16.msra.mxu0 %v5526
      %5544 = vmatprep.subr.bf16.mxu0 0
      %5545 = vmatpush2.bf16.msra.mxu0 0
      %5546 = vmatprep.subr.bf16.mxu0 0
      %5547 = vmatpush2.bf16.msra.mxu0 0
      %5548 = vmatprep.subr.bf16.mxu0 0
      %5549 = vmatpush2.bf16.msra.mxu0 0
      %5550 = vmatprep.subr.bf16.mxu0 0
      %5551 = vmatpush2.bf16.msra.mxu0 0
      %5552 = vmatprep.subr.bf16.mxu0 0
      %5553 = vmatpush2.bf16.msra.mxu0 0
      %5554 = vmatprep.subr.bf16.mxu0 0
      %5555 = vmatpush2.bf16.msra.mxu0 0
      %5556 = vmatprep.subr.bf16.mxu0 0
      %5557 = vmatpush2.bf16.msra.mxu0 0
      %5558 = vmatprep.subr.bf16.mxu0 0
      %5559 = vmatpush2.bf16.msra.mxu0 0
      %5560 = vmatprep.mubr.bf16.mxu0 0
      %5561 = vmatmul.mubr.bf16.gmra.mxu0 %v2880
      %v5562 = vpop.f32.mrf.mxu0
      %v5563 = vadd.f32 0.0, %v5562
      %v5564 = vpop.f32.mrf.mxu0
      %v5565 = vpop.f32.mrf.mxu0
      %v5566 = vadd.f32 0.0, %v5565
      %v5567 = vpop.f32.mrf.mxu0
      %5568 = vdwg.mxu0
      %v5569 = vpack.c.bf16 %v5566, %v5563
      %v5571 = vsel %vm2134, %v5125, 0
      %5573 = vmatprep.subr.bf16.mxu0 0
      %5574 = vmatpush1.bf16.msra.mxu0 0
      %5575 = vmatprep.subr.bf16.mxu0 0
      %5576 = vmatpush1.bf16.msra.mxu0 0
      %5577 = vmatprep.subr.bf16.mxu0 0
      %5578 = vmatpush1.bf16.msra.mxu0 0
      %5579 = vmatprep.subr.bf16.mxu0 0
      %5580 = vmatpush1.bf16.msra.mxu0 0
      %5581 = vmatprep.subr.bf16.mxu0 %v2971
      %5582 = vmatpush1.bf16.msra.mxu0 %v2970
      %5583 = vmatprep.subr.bf16.mxu0 %v2969
      %5584 = vmatpush1.bf16.msra.mxu0 %v2968
      %5585 = vmatprep.subr.bf16.mxu0 %v2967
      %5586 = vmatpush1.bf16.msra.mxu0 %v2966
      %5587 = vmatprep.subr.bf16.mxu0 %v2965
      %5588 = vmatpush1.bf16.msra.mxu0 %v2964
      %5589 = vmatprep.subr.bf16.mxu0 0
      %5590 = vmatpush2.bf16.msra.mxu0 0
      %5591 = vmatprep.subr.bf16.mxu0 0
      %5592 = vmatpush2.bf16.msra.mxu0 0
      %5593 = vmatprep.subr.bf16.mxu0 0
      %5594 = vmatpush2.bf16.msra.mxu0 0
      %5595 = vmatprep.subr.bf16.mxu0 0
      %5596 = vmatpush2.bf16.msra.mxu0 0
      %5597 = vmatprep.subr.bf16.mxu0 0
      %5598 = vmatpush2.bf16.msra.mxu0 0
      %5599 = vmatprep.subr.bf16.mxu0 0
      %5600 = vmatpush2.bf16.msra.mxu0 0
      %5601 = vmatprep.subr.bf16.mxu0 0
      %5602 = vmatpush2.bf16.msra.mxu0 0
      %5603 = vmatprep.subr.bf16.mxu0 0
      %5604 = vmatpush2.bf16.msra.mxu0 0
      %5605 = vmatprep.mubr.bf16.mxu0 0
      %5606 = vmatmul.mubr.bf16.gmra.mxu0 %v5571
      %v5607 = vpop.f32.mrf.mxu0
      %v5608 = vadd.f32 0.0, %v5607
      %v5609 = vpop.f32.mrf.mxu0
      %v5610 = vadd.f32 0.0, %v5609
      %v5611 = vpop.f32.mrf.mxu0
      %v5612 = vadd.f32 0.0, %v5611
      %v5613 = vpop.f32.mrf.mxu0
      %v5614 = vadd.f32 0.0, %v5613
      %5615 = vdwg.mxu0
      %v5617 = vsel %vm2134, %v5569, 0
      %5619 = vmatprep.subr.bf16.mxu0 0
      %5620 = vmatpush1.bf16.msra.mxu0 0
      %5621 = vmatprep.subr.bf16.mxu0 0
      %5622 = vmatpush1.bf16.msra.mxu0 0
      %5623 = vmatprep.subr.bf16.mxu0 0
      %5624 = vmatpush1.bf16.msra.mxu0 0
      %5625 = vmatprep.subr.bf16.mxu0 0
      %5626 = vmatpush1.bf16.msra.mxu0 0
      %5627 = vmatprep.subr.bf16.mxu0 %v3057
      %5628 = vmatpush1.bf16.msra.mxu0 %v3056
      %5629 = vmatprep.subr.bf16.mxu0 %v3055
      %5630 = vmatpush1.bf16.msra.mxu0 %v3054
      %5631 = vmatprep.subr.bf16.mxu0 %v3053
      %5632 = vmatpush1.bf16.msra.mxu0 %v3052
      %5633 = vmatprep.subr.bf16.mxu0 %v3051
      %5634 = vmatpush1.bf16.msra.mxu0 %v3050
      %5635 = vmatprep.subr.bf16.mxu0 0
      %5636 = vmatpush2.bf16.msra.mxu0 0
      %5637 = vmatprep.subr.bf16.mxu0 0
      %5638 = vmatpush2.bf16.msra.mxu0 0
      %5639 = vmatprep.subr.bf16.mxu0 0
      %5640 = vmatpush2.bf16.msra.mxu0 0
      %5641 = vmatprep.subr.bf16.mxu0 0
      %5642 = vmatpush2.bf16.msra.mxu0 0
      %5643 = vmatprep.subr.bf16.mxu0 0
      %5644 = vmatpush2.bf16.msra.mxu0 0
      %5645 = vmatprep.subr.bf16.mxu0 0
      %5646 = vmatpush2.bf16.msra.mxu0 0
      %5647 = vmatprep.subr.bf16.mxu0 0
      %5648 = vmatpush2.bf16.msra.mxu0 0
      %5649 = vmatprep.subr.bf16.mxu0 0
      %5650 = vmatpush2.bf16.msra.mxu0 0
      %5651 = vmatprep.mubr.bf16.mxu0 0
      %5652 = vmatmul.mubr.bf16.gmra.mxu0 %v5617
      %v5653 = vpop.f32.mrf.mxu0
      %v5654 = vadd.f32 %v5608, %v5653
      %v5655 = vpop.f32.mrf.mxu0
      %v5656 = vadd.f32 %v5610, %v5655
      %v5657 = vpop.f32.mrf.mxu0
      %v5658 = vadd.f32 %v5612, %v5657
      %v5659 = vpop.f32.mrf.mxu0
      %v5660 = vadd.f32 %v5614, %v5659
      %5661 = vdwg.mxu0
      %v5662 = vadd.f32 %v5654, %v3117
      %v5663 = vadd.f32 %v5656, %v3121
      %v5664 = vadd.f32 %v5658, %v3117
      %v5665 = vadd.f32 %v5660, %v3121
      %v5666 = vadd.f32 %v5662, %v5663
      %5667 = vadd.xlane.f32.xlu0 %v5666
      %v5668 = vpop.xlane.xlu0 %5667
      %v5669 = vadd.f32 %v5664, %v5665
      %5670 = vadd.xlane.f32.xlu0 %v5669
      %v5671 = vpop.xlane.xlu0 %5670
      %v5672 = vmul.f32 %v5668, %v1445
      %v5673 = vmul.f32 %v5671, %v1445
      %v5674 = vsub.f32 %v5662, %v5672
      %v5675 = vsub.f32 %v5663, %v5672
      %v5676 = vsub.f32 %v5664, %v5673
      %v5677 = vsub.f32 %v5665, %v5673
      %v5678 = vmul.f32 %v5674, %v5674
      %v5679 = vmul.f32 %v5675, %v5675
      %v5680 = vmul.f32 %v5676, %v5676
      %v5681 = vmul.f32 %v5677, %v5677
      %v5682 = vadd.f32 %v5678, %v5679
      %5683 = vadd.xlane.f32.xlu0 %v5682
      %v5684 = vpop.xlane.xlu0 %5683
      %v5685 = vadd.f32 %v5680, %v5681
      %5686 = vadd.xlane.f32.xlu0 %v5685
      %v5687 = vpop.xlane.xlu0 %5686
      %v5688 = vmul.f32 %v5684, %v1445
      %v5689 = vmul.f32 %v5687, %v1445
      %v5690 = vadd.f32 %v5688, 1e-05
      %v5691 = vadd.f32 %v5689, 1e-05
      %v5692 = vrsqrt.pop %v5690
      %v5693 = vrsqrt.pop %v5691
      %v5694 = vmul.f32 %v5674, %v5692
      %v5695 = vmul.f32 %v5675, %v5692
      %v5696 = vmul.f32 %v5676, %v5693
      %v5697 = vmul.f32 %v5677, %v5693
      %v5698 = vmul.f32 %v5694, %v3165
      %v5699 = vmul.f32 %v5695, %v3169
      %v5700 = vmul.f32 %v5696, %v3165
      %v5701 = vmul.f32 %v5697, %v3169
      %v5702 = vadd.f32 %v5698, %v3181
      %v5703 = vadd.f32 %v5699, %v3185
      %v5704 = vadd.f32 %v5700, %v3181
      %v5705 = vadd.f32 %v5701, %v3185
      %v5706 = vmax.f32 %v5702, 0.0
      %v5707 = vmax.f32 %v5703, 0.0
      %v5708 = vmax.f32 %v5704, 0.0
      %v5709 = vmax.f32 %v5705, 0.0
      %v5710 = vpack.c.bf16 %v5708, %v5706
      %v5711 = vpack.c.bf16 %v5709, %v5707
      %5712 = vmatprep.subr.bf16.mxu0 %v3353
      %5713 = vmatpush1.bf16.msra.mxu0 %v3352
      %5714 = vmatprep.subr.bf16.mxu0 %v3351
      %5715 = vmatpush1.bf16.msra.mxu0 %v3350
      %5716 = vmatprep.subr.bf16.mxu0 %v3349
      %5717 = vmatpush1.bf16.msra.mxu0 %v3348
      %5718 = vmatprep.subr.bf16.mxu0 %v3347
      %5719 = vmatpush1.bf16.msra.mxu0 %v3346
      %5720 = vmatprep.subr.bf16.mxu0 %v3345
      %5721 = vmatpush1.bf16.msra.mxu0 %v3344
      %5722 = vmatprep.subr.bf16.mxu0 %v3343
      %5723 = vmatpush1.bf16.msra.mxu0 %v3342
      %5724 = vmatprep.subr.bf16.mxu0 %v3341
      %5725 = vmatpush1.bf16.msra.mxu0 %v3340
      %5726 = vmatprep.subr.bf16.mxu0 %v3339
      %5727 = vmatpush1.bf16.msra.mxu0 %v3338
      %5728 = vmatprep.subr.bf16.mxu0 %v3369
      %5729 = vmatpush2.bf16.msra.mxu0 %v3368
      %5730 = vmatprep.subr.bf16.mxu0 %v3367
      %5731 = vmatpush2.bf16.msra.mxu0 %v3366
      %5732 = vmatprep.subr.bf16.mxu0 %v3365
      %5733 = vmatpush2.bf16.msra.mxu0 %v3364
      %5734 = vmatprep.subr.bf16.mxu0 %v3363
      %5735 = vmatpush2.bf16.msra.mxu0 %v3362
      %5736 = vmatprep.subr.bf16.mxu0 %v3361
      %5737 = vmatpush2.bf16.msra.mxu0 %v3360
      %5738 = vmatprep.subr.bf16.mxu0 %v3359
      %5739 = vmatpush2.bf16.msra.mxu0 %v3358
      %5740 = vmatprep.subr.bf16.mxu0 %v3357
      %5741 = vmatpush2.bf16.msra.mxu0 %v3356
      %5742 = vmatprep.subr.bf16.mxu0 %v3355
      %5743 = vmatpush2.bf16.msra.mxu0 %v3354
      %5744 = vmatprep.mubr.bf16.mxu0 %v5711
      %5745 = vmatmul.mubr.bf16.gmra.mxu0 %v5710
      %v5746 = vpop.f32.mrf.mxu0
      %v5747 = vadd.f32 %v3235, %v5746
      %v5748 = vpop.f32.mrf.mxu0
      %v5749 = vadd.f32 %v3239, %v5748
      %v5750 = vpop.f32.mrf.mxu0
      %v5751 = vadd.f32 %v3235, %v5750
      %v5752 = vpop.f32.mrf.mxu0
      %v5753 = vadd.f32 %v3239, %v5752
      %5754 = vdwg.mxu0
      %v5755 = vadd.f32 %v5747, %v5749
      %5756 = vadd.xlane.f32.xlu0 %v5755
      %v5757 = vpop.xlane.xlu0 %5756
      %v5758 = vadd.f32 %v5751, %v5753
      %5759 = vadd.xlane.f32.xlu0 %v5758
      %v5760 = vpop.xlane.xlu0 %5759
      %v5761 = vmul.f32 %v5757, %v1445
      %v5762 = vmul.f32 %v5760, %v1445
      %v5763 = vsub.f32 %v5747, %v5761
      %v5764 = vsub.f32 %v5749, %v5761
      %v5765 = vsub.f32 %v5751, %v5762
      %v5766 = vsub.f32 %v5753, %v5762
      %v5767 = vmul.f32 %v5763, %v5763
      %v5768 = vmul.f32 %v5764, %v5764
      %v5769 = vmul.f32 %v5765, %v5765
      %v5770 = vmul.f32 %v5766, %v5766
      %v5771 = vadd.f32 %v5767, %v5768
      %5772 = vadd.xlane.f32.xlu0 %v5771
      %v5773 = vpop.xlane.xlu0 %5772
      %v5774 = vadd.f32 %v5769, %v5770
      %5775 = vadd.xlane.f32.xlu0 %v5774
      %v5776 = vpop.xlane.xlu0 %5775
      %v5777 = vmul.f32 %v5773, %v1445
      %v5778 = vmul.f32 %v5776, %v1445
      %v5779 = vadd.f32 %v5777, 1e-05
      %v5780 = vadd.f32 %v5778, 1e-05
      %v5781 = vrsqrt.pop %v5779
      %v5782 = vrsqrt.pop %v5780
      %v5783 = vmul.f32 %v5763, %v5781
      %v5784 = vmul.f32 %v5764, %v5781
      %v5785 = vmul.f32 %v5765, %v5782
      %v5786 = vmul.f32 %v5766, %v5782
      %v5787 = vmul.f32 %v5783, %v3482
      %v5788 = vmul.f32 %v5784, %v3486
      %v5789 = vmul.f32 %v5785, %v3482
      %v5790 = vmul.f32 %v5786, %v3486
      %v5791 = vadd.f32 %v5787, %v3498
      %v5792 = vadd.f32 %v5788, %v3502
      %v5793 = vadd.f32 %v5789, %v3498
      %v5794 = vadd.f32 %v5790, %v3502
      %v5795 = vmax.f32 %v5791, 0.0
      %v5796 = vmax.f32 %v5792, 0.0
      %v5797 = vmax.f32 %v5793, 0.0
      %v5798 = vmax.f32 %v5794, 0.0
      %v5799 = vpack.c.bf16 %v5797, %v5795
      %v5800 = vpack.c.bf16 %v5798, %v5796
      %5801 = vmatprep.subr.bf16.mxu0 0
      %5802 = vmatpush1.bf16.msra.mxu0 %v3625
      %5803 = vmatprep.subr.bf16.mxu0 0
      %5804 = vmatpush1.bf16.msra.mxu0 %v3624
      %5805 = vmatprep.subr.bf16.mxu0 0
      %5806 = vmatpush1.bf16.msra.mxu0 %v3623
      %5807 = vmatprep.subr.bf16.mxu0 0
      %5808 = vmatpush1.bf16.msra.mxu0 %v3622
      %5809 = vmatprep.subr.bf16.mxu0 0
      %5810 = vmatpush1.bf16.msra.mxu0 %v3621
      %5811 = vmatprep.subr.bf16.mxu0 0
      %5812 = vmatpush1.bf16.msra.mxu0 %v3620
      %5813 = vmatprep.subr.bf16.mxu0 0
      %5814 = vmatpush1.bf16.msra.mxu0 %v3619
      %5815 = vmatprep.subr.bf16.mxu0 0
      %5816 = vmatpush1.bf16.msra.mxu0 %v3618
      %5817 = vmatprep.subr.bf16.mxu0 0
      %5818 = vmatpush2.bf16.msra.mxu0 %v3633
      %5819 = vmatprep.subr.bf16.mxu0 0
      %5820 = vmatpush2.bf16.msra.mxu0 %v3632
      %5821 = vmatprep.subr.bf16.mxu0 0
      %5822 = vmatpush2.bf16.msra.mxu0 %v3631
      %5823 = vmatprep.subr.bf16.mxu0 0
      %5824 = vmatpush2.bf16.msra.mxu0 %v3630
      %5825 = vmatprep.subr.bf16.mxu0 0
      %5826 = vmatpush2.bf16.msra.mxu0 %v3629
      %5827 = vmatprep.subr.bf16.mxu0 0
      %5828 = vmatpush2.bf16.msra.mxu0 %v3628
      %5829 = vmatprep.subr.bf16.mxu0 0
      %5830 = vmatpush2.bf16.msra.mxu0 %v3627
      %5831 = vmatprep.subr.bf16.mxu0 0
      %5832 = vmatpush2.bf16.msra.mxu0 %v3626
      %5833 = vmatprep.mubr.bf16.mxu0 %v5800
      %5834 = vmatmul.mubr.bf16.gmra.mxu0 %v5799
      %v5835 = vpop.f32.mrf.mxu0
      %v5836 = vadd.f32 %v3552, %v5835
      %v5837 = vpop.f32.mrf.mxu0
      %v5838 = vpop.f32.mrf.mxu0
      %v5839 = vadd.f32 %v3552, %v5838
      %v5840 = vpop.f32.mrf.mxu0
      %5841 = vdwg.mxu0
      %v5842 = vpack.c.bf16 %v5839, %v5836
      %5843 = vmatprep.subr.bf16.mxu0 0
      %5844 = vmatpush1.bf16.msra.mxu0 0
      %5845 = vmatprep.subr.bf16.mxu0 0
      %5846 = vmatpush1.bf16.msra.mxu0 0
      %5847 = vmatprep.subr.bf16.mxu0 0
      %5848 = vmatpush1.bf16.msra.mxu0 0
      %5849 = vmatprep.subr.bf16.mxu0 0
      %5850 = vmatpush1.bf16.msra.mxu0 0
      %5851 = vmatprep.subr.bf16.mxu0 0
      %5852 = vmatpush1.bf16.msra.mxu0 0
      %5853 = vmatprep.subr.bf16.mxu0 0
      %5854 = vmatpush1.bf16.msra.mxu0 0
      %5855 = vmatprep.subr.bf16.mxu0 0
      %5856 = vmatpush1.bf16.msra.mxu0 0
      %5857 = vmatprep.subr.bf16.mxu0 0
      %5858 = vmatpush1.bf16.msra.mxu0 %v5842
      %5859 = vmatprep.subr.bf16.mxu0 0
      %5860 = vmatpush2.bf16.msra.mxu0 0
      %5861 = vmatprep.subr.bf16.mxu0 0
      %5862 = vmatpush2.bf16.msra.mxu0 0
      %5863 = vmatprep.subr.bf16.mxu0 0
      %5864 = vmatpush2.bf16.msra.mxu0 0
      %5865 = vmatprep.subr.bf16.mxu0 0
      %5866 = vmatpush2.bf16.msra.mxu0 0
      %5867 = vmatprep.subr.bf16.mxu0 0
      %5868 = vmatpush2.bf16.msra.mxu0 0
      %5869 = vmatprep.subr.bf16.mxu0 0
      %5870 = vmatpush2.bf16.msra.mxu0 0
      %5871 = vmatprep.subr.bf16.mxu0 0
      %5872 = vmatpush2.bf16.msra.mxu0 0
      %5873 = vmatprep.subr.bf16.mxu0 0
      %5874 = vmatpush2.bf16.msra.mxu0 0
      %5875 = vmatprep.mubr.bf16.mxu0 0
      %5876 = vmatmul.mubr.bf16.gmra.mxu0 %v2030
      %v5877 = vpop.f32.mrf.mxu0
      %v5878 = vadd.f32 0.0, %v5877
      %v5879 = vpop.f32.mrf.mxu0
      %v5880 = vpop.f32.mrf.mxu0
      %v5881 = vadd.f32 0.0, %v5880
      %v5882 = vpop.f32.mrf.mxu0
      %5883 = vmatprep.mubr.bf16.mxu0 0
      %5884 = vmatmul.mubr.bf16.gmra.mxu0 %v2033
      %v5885 = vpop.f32.mrf.mxu0
      %v5886 = vadd.f32 0.0, %v5885
      %v5887 = vpop.f32.mrf.mxu0
      %v5888 = vpop.f32.mrf.mxu0
      %v5889 = vadd.f32 0.0, %v5888
      %v5890 = vpop.f32.mrf.mxu0
      %5891 = vdwg.mxu0
      %v5892 = vpack.c.bf16 %v5881, %v5878
      %v5893 = vpack.c.bf16 %v5889, %v5886
      %v5895 = vsel %vm2134, %v5892, 0
      %v5898 = vsel %vm2134, %v5893, 0
      %5900 = vmatprep.subr.bf16.mxu0 0
      %5901 = vmatpush1.bf16.msra.mxu0 0
      %5902 = vmatprep.subr.bf16.mxu0 0
      %5903 = vmatpush1.bf16.msra.mxu0 0
      %5904 = vmatprep.subr.bf16.mxu0 0
      %5905 = vmatpush1.bf16.msra.mxu0 0
      %5906 = vmatprep.subr.bf16.mxu0 0
      %5907 = vmatpush1.bf16.msra.mxu0 0
      %5908 = vmatprep.subr.bf16.mxu0 %v2125
      %5909 = vmatpush1.bf16.msra.mxu0 %v2124
      %5910 = vmatprep.subr.bf16.mxu0 %v2123
      %5911 = vmatpush1.bf16.msra.mxu0 %v2122
      %5912 = vmatprep.subr.bf16.mxu0 %v2121
      %5913 = vmatpush1.bf16.msra.mxu0 %v2120
      %5914 = vmatprep.subr.bf16.mxu0 %v2119
      %5915 = vmatpush1.bf16.msra.mxu0 %v2118
      %5916 = vmatprep.subr.bf16.mxu0 0
      %5917 = vmatpush2.bf16.msra.mxu0 0
      %5918 = vmatprep.subr.bf16.mxu0 0
      %5919 = vmatpush2.bf16.msra.mxu0 0
      %5920 = vmatprep.subr.bf16.mxu0 0
      %5921 = vmatpush2.bf16.msra.mxu0 0
      %5922 = vmatprep.subr.bf16.mxu0 0
      %5923 = vmatpush2.bf16.msra.mxu0 0
      %5924 = vmatprep.subr.bf16.mxu0 0
      %5925 = vmatpush2.bf16.msra.mxu0 0
      %5926 = vmatprep.subr.bf16.mxu0 0
      %5927 = vmatpush2.bf16.msra.mxu0 0
      %5928 = vmatprep.subr.bf16.mxu0 0
      %5929 = vmatpush2.bf16.msra.mxu0 0
      %5930 = vmatprep.subr.bf16.mxu0 0
      %5931 = vmatpush2.bf16.msra.mxu0 0
      %5932 = vmatprep.mubr.bf16.mxu0 0
      %5933 = vmatmul.mubr.bf16.gmra.mxu0 %v5895
      %v5934 = vpop.f32.mrf.mxu0
      %v5935 = vadd.f32 %v2009, %v5934
      %v5936 = vpop.f32.mrf.mxu0
      %v5937 = vadd.f32 %v2010, %v5936
      %v5938 = vpop.f32.mrf.mxu0
      %v5939 = vadd.f32 %v2011, %v5938
      %v5940 = vpop.f32.mrf.mxu0
      %v5941 = vadd.f32 %v2012, %v5940
      %5942 = vmatprep.mubr.bf16.mxu0 0
      %5943 = vmatmul.mubr.bf16.gmra.mxu0 %v5898
      %v5944 = vpop.f32.mrf.mxu0
      %v5945 = vadd.f32 %v2013, %v5944
      %v5946 = vpop.f32.mrf.mxu0
      %v5947 = vadd.f32 %v2014, %v5946
      %v5948 = vpop.f32.mrf.mxu0
      %v5949 = vadd.f32 %v2015, %v5948
      %v5950 = vpop.f32.mrf.mxu0
      %v5951 = vadd.f32 %v2016, %v5950
      %5952 = vdwg.mxu0
      %v5953 = vadd.f32 %v5935, %v5937
      %5954 = vadd.xlane.f32.xlu0 %v5953
      %v5955 = vpop.xlane.xlu0 %5954
      %v5956 = vadd.f32 %v5939, %v5941
      %5957 = vadd.xlane.f32.xlu0 %v5956
      %v5958 = vpop.xlane.xlu0 %5957
      %v5959 = vadd.f32 %v5945, %v5947
      %5960 = vadd.xlane.f32.xlu0 %v5959
      %v5961 = vpop.xlane.xlu0 %5960
      %v5962 = vadd.f32 %v5949, %v5951
      %5963 = vadd.xlane.f32.xlu0 %v5962
      %v5964 = vpop.xlane.xlu0 %5963
      %v5965 = vmul.f32 %v5955, %v1445
      %v5966 = vmul.f32 %v5958, %v1445
      %v5967 = vmul.f32 %v5961, %v1445
      %v5968 = vmul.f32 %v5964, %v1445
      %v5969 = vsub.f32 %v5935, %v5965
      %v5970 = vsub.f32 %v5937, %v5965
      %v5971 = vsub.f32 %v5939, %v5966
      %v5972 = vsub.f32 %v5941, %v5966
      %v5973 = vsub.f32 %v5945, %v5967
      %v5974 = vsub.f32 %v5947, %v5967
      %v5975 = vsub.f32 %v5949, %v5968
      %v5976 = vsub.f32 %v5951, %v5968
      %v5977 = vmul.f32 %v5969, %v5969
      %v5978 = vmul.f32 %v5970, %v5970
      %v5979 = vmul.f32 %v5971, %v5971
      %v5980 = vmul.f32 %v5972, %v5972
      %v5981 = vmul.f32 %v5973, %v5973
      %v5982 = vmul.f32 %v5974, %v5974
      %v5983 = vmul.f32 %v5975, %v5975
      %v5984 = vmul.f32 %v5976, %v5976
      %v5985 = vadd.f32 %v5977, %v5978
      %5986 = vadd.xlane.f32.xlu0 %v5985
      %v5987 = vpop.xlane.xlu0 %5986
      %v5988 = vadd.f32 %v5979, %v5980
      %5989 = vadd.xlane.f32.xlu0 %v5988
      %v5990 = vpop.xlane.xlu0 %5989
      %v5991 = vadd.f32 %v5981, %v5982
      %5992 = vadd.xlane.f32.xlu0 %v5991
      %v5993 = vpop.xlane.xlu0 %5992
      %v5994 = vadd.f32 %v5983, %v5984
      %5995 = vadd.xlane.f32.xlu0 %v5994
      %v5996 = vpop.xlane.xlu0 %5995
      %v5997 = vmul.f32 %v5987, %v1445
      %v5998 = vmul.f32 %v5990, %v1445
      %v5999 = vmul.f32 %v5993, %v1445
      %v6000 = vmul.f32 %v5996, %v1445
      %v6001 = vadd.f32 %v5997, 1e-05
      %v6002 = vadd.f32 %v5998, 1e-05
      %v6003 = vadd.f32 %v5999, 1e-05
      %v6004 = vadd.f32 %v6000, 1e-05
      %v6005 = vrsqrt.pop %v6001
      %v6006 = vrsqrt.pop %v6002
      %v6007 = vrsqrt.pop %v6003
      %v6008 = vrsqrt.pop %v6004
      %v6009 = vmul.f32 %v5969, %v6005
      %v6010 = vmul.f32 %v5970, %v6005
      %v6011 = vmul.f32 %v5971, %v6006
      %v6012 = vmul.f32 %v5972, %v6006
      %v6013 = vmul.f32 %v5973, %v6007
      %v6014 = vmul.f32 %v5974, %v6007
      %v6015 = vmul.f32 %v5975, %v6008
      %v6016 = vmul.f32 %v5976, %v6008
      %v6017 = vmul.f32 %v6009, %v2263
      %v6018 = vmul.f32 %v6010, %v2267
      %v6019 = vmul.f32 %v6011, %v2263
      %v6020 = vmul.f32 %v6012, %v2267
      %v6021 = vmul.f32 %v6013, %v2263
      %v6022 = vmul.f32 %v6014, %v2267
      %v6023 = vmul.f32 %v6015, %v2263
      %v6024 = vmul.f32 %v6016, %v2267
      %v6025 = vadd.f32 %v6017, %v2283
      %v6026 = vadd.f32 %v6018, %v2287
      %v6027 = vadd.f32 %v6019, %v2283
      %v6028 = vadd.f32 %v6020, %v2287
      %v6029 = vadd.f32 %v6021, %v2283
      %v6030 = vadd.f32 %v6022, %v2287
      %v6031 = vadd.f32 %v6023, %v2283
      %v6032 = vadd.f32 %v6024, %v2287
      %v6033 = vmax.f32 %v6025, 0.0
      %v6034 = vmax.f32 %v6026, 0.0
      %v6035 = vmax.f32 %v6027, 0.0
      %v6036 = vmax.f32 %v6028, 0.0
      %v6037 = vmax.f32 %v6029, 0.0
      %v6038 = vmax.f32 %v6030, 0.0
      %v6039 = vmax.f32 %v6031, 0.0
      %v6040 = vmax.f32 %v6032, 0.0
      %v6041 = vpack.c.bf16 %v6035, %v6033
      %v6042 = vpack.c.bf16 %v6036, %v6034
      %v6043 = vpack.c.bf16 %v6039, %v6037
      %v6044 = vpack.c.bf16 %v6040, %v6038
      %6045 = vmatprep.subr.bf16.mxu0 %v2465
      %6046 = vmatpush1.bf16.msra.mxu0 %v2464
      %6047 = vmatprep.subr.bf16.mxu0 %v2463
      %6048 = vmatpush1.bf16.msra.mxu0 %v2462
      %6049 = vmatprep.subr.bf16.mxu0 %v2461
      %6050 = vmatpush1.bf16.msra.mxu0 %v2460
      %6051 = vmatprep.subr.bf16.mxu0 %v2459
      %6052 = vmatpush1.bf16.msra.mxu0 %v2458
      %6053 = vmatprep.subr.bf16.mxu0 %v2457
      %6054 = vmatpush1.bf16.msra.mxu0 %v2456
      %6055 = vmatprep.subr.bf16.mxu0 %v2455
      %6056 = vmatpush1.bf16.msra.mxu0 %v2454
      %6057 = vmatprep.subr.bf16.mxu0 %v2453
      %6058 = vmatpush1.bf16.msra.mxu0 %v2452
      %6059 = vmatprep.subr.bf16.mxu0 %v2451
      %6060 = vmatpush1.bf16.msra.mxu0 %v2450
      %6061 = vmatprep.subr.bf16.mxu0 %v2481
      %6062 = vmatpush2.bf16.msra.mxu0 %v2480
      %6063 = vmatprep.subr.bf16.mxu0 %v2479
      %6064 = vmatpush2.bf16.msra.mxu0 %v2478
      %6065 = vmatprep.subr.bf16.mxu0 %v2477
      %6066 = vmatpush2.bf16.msra.mxu0 %v2476
      %6067 = vmatprep.subr.bf16.mxu0 %v2475
      %6068 = vmatpush2.bf16.msra.mxu0 %v2474
      %6069 = vmatprep.subr.bf16.mxu0 %v2473
      %6070 = vmatpush2.bf16.msra.mxu0 %v2472
      %6071 = vmatprep.subr.bf16.mxu0 %v2471
      %6072 = vmatpush2.bf16.msra.mxu0 %v2470
      %6073 = vmatprep.subr.bf16.mxu0 %v2469
      %6074 = vmatpush2.bf16.msra.mxu0 %v2468
      %6075 = vmatprep.subr.bf16.mxu0 %v2467
      %6076 = vmatpush2.bf16.msra.mxu0 %v2466
      %6077 = vmatprep.mubr.bf16.mxu0 %v6042
      %6078 = vmatmul.mubr.bf16.gmra.mxu0 %v6041
      %v6079 = vpop.f32.mrf.mxu0
      %v6080 = vadd.f32 %v2347, %v6079
      %v6081 = vpop.f32.mrf.mxu0
      %v6082 = vadd.f32 %v2351, %v6081
      %v6083 = vpop.f32.mrf.mxu0
      %v6084 = vadd.f32 %v2347, %v6083
      %v6085 = vpop.f32.mrf.mxu0
      %v6086 = vadd.f32 %v2351, %v6085
      %6087 = vmatprep.mubr.bf16.mxu0 %v6044
      %6088 = vmatmul.mubr.bf16.gmra.mxu0 %v6043
      %v6089 = vpop.f32.mrf.mxu0
      %v6090 = vadd.f32 %v2347, %v6089
      %v6091 = vpop.f32.mrf.mxu0
      %v6092 = vadd.f32 %v2351, %v6091
      %v6093 = vpop.f32.mrf.mxu0
      %v6094 = vadd.f32 %v2347, %v6093
      %v6095 = vpop.f32.mrf.mxu0
      %v6096 = vadd.f32 %v2351, %v6095
      %6097 = vdwg.mxu0
      %v6098 = vadd.f32 %v6080, %v6082
      %6099 = vadd.xlane.f32.xlu0 %v6098
      %v6100 = vpop.xlane.xlu0 %6099
      %v6101 = vadd.f32 %v6084, %v6086
      %6102 = vadd.xlane.f32.xlu0 %v6101
      %v6103 = vpop.xlane.xlu0 %6102
      %v6104 = vadd.f32 %v6090, %v6092
      %6105 = vadd.xlane.f32.xlu0 %v6104
      %v6106 = vpop.xlane.xlu0 %6105
      %v6107 = vadd.f32 %v6094, %v6096
      %6108 = vadd.xlane.f32.xlu0 %v6107
      %v6109 = vpop.xlane.xlu0 %6108
      %v6110 = vmul.f32 %v6100, %v1445
      %v6111 = vmul.f32 %v6103, %v1445
      %v6112 = vmul.f32 %v6106, %v1445
      %v6113 = vmul.f32 %v6109, %v1445
      %v6114 = vsub.f32 %v6080, %v6110
      %v6115 = vsub.f32 %v6082, %v6110
      %v6116 = vsub.f32 %v6084, %v6111
      %v6117 = vsub.f32 %v6086, %v6111
      %v6118 = vsub.f32 %v6090, %v6112
      %v6119 = vsub.f32 %v6092, %v6112
      %v6120 = vsub.f32 %v6094, %v6113
      %v6121 = vsub.f32 %v6096, %v6113
      %v6122 = vmul.f32 %v6114, %v6114
      %v6123 = vmul.f32 %v6115, %v6115
      %v6124 = vmul.f32 %v6116, %v6116
      %v6125 = vmul.f32 %v6117, %v6117
      %v6126 = vmul.f32 %v6118, %v6118
      %v6127 = vmul.f32 %v6119, %v6119
      %v6128 = vmul.f32 %v6120, %v6120
      %v6129 = vmul.f32 %v6121, %v6121
      %v6130 = vadd.f32 %v6122, %v6123
      %6131 = vadd.xlane.f32.xlu0 %v6130
      %v6132 = vpop.xlane.xlu0 %6131
      %v6133 = vadd.f32 %v6124, %v6125
      %6134 = vadd.xlane.f32.xlu0 %v6133
      %v6135 = vpop.xlane.xlu0 %6134
      %v6136 = vadd.f32 %v6126, %v6127
      %6137 = vadd.xlane.f32.xlu0 %v6136
      %v6138 = vpop.xlane.xlu0 %6137
      %v6139 = vadd.f32 %v6128, %v6129
      %6140 = vadd.xlane.f32.xlu0 %v6139
      %v6141 = vpop.xlane.xlu0 %6140
      %v6142 = vmul.f32 %v6132, %v1445
      %v6143 = vmul.f32 %v6135, %v1445
      %v6144 = vmul.f32 %v6138, %v1445
      %v6145 = vmul.f32 %v6141, %v1445
      %v6146 = vadd.f32 %v6142, 1e-05
      %v6147 = vadd.f32 %v6143, 1e-05
      %v6148 = vadd.f32 %v6144, 1e-05
      %v6149 = vadd.f32 %v6145, 1e-05
      %v6150 = vrsqrt.pop %v6146
      %v6151 = vrsqrt.pop %v6147
      %v6152 = vrsqrt.pop %v6148
      %v6153 = vrsqrt.pop %v6149
      %v6154 = vmul.f32 %v6114, %v6150
      %v6155 = vmul.f32 %v6115, %v6150
      %v6156 = vmul.f32 %v6116, %v6151
      %v6157 = vmul.f32 %v6117, %v6151
      %v6158 = vmul.f32 %v6118, %v6152
      %v6159 = vmul.f32 %v6119, %v6152
      %v6160 = vmul.f32 %v6120, %v6153
      %v6161 = vmul.f32 %v6121, %v6153
      %v6162 = vmul.f32 %v6154, %v2636
      %v6163 = vmul.f32 %v6155, %v2640
      %v6164 = vmul.f32 %v6156, %v2636
      %v6165 = vmul.f32 %v6157, %v2640
      %v6166 = vmul.f32 %v6158, %v2636
      %v6167 = vmul.f32 %v6159, %v2640
      %v6168 = vmul.f32 %v6160, %v2636
      %v6169 = vmul.f32 %v6161, %v2640
      %v6170 = vadd.f32 %v6162, %v2656
      %v6171 = vadd.f32 %v6163, %v2660
      %v6172 = vadd.f32 %v6164, %v2656
      %v6173 = vadd.f32 %v6165, %v2660
      %v6174 = vadd.f32 %v6166, %v2656
      %v6175 = vadd.f32 %v6167, %v2660
      %v6176 = vadd.f32 %v6168, %v2656
      %v6177 = vadd.f32 %v6169, %v2660
      %v6178 = vmax.f32 %v6170, 0.0
      %v6179 = vmax.f32 %v6171, 0.0
      %v6180 = vmax.f32 %v6172, 0.0
      %v6181 = vmax.f32 %v6173, 0.0
      %v6182 = vmax.f32 %v6174, 0.0
      %v6183 = vmax.f32 %v6175, 0.0
      %v6184 = vmax.f32 %v6176, 0.0
      %v6185 = vmax.f32 %v6177, 0.0
      %v6186 = vpack.c.bf16 %v6180, %v6178
      %v6187 = vpack.c.bf16 %v6181, %v6179
      %v6188 = vpack.c.bf16 %v6184, %v6182
      %v6189 = vpack.c.bf16 %v6185, %v6183
      %6190 = vmatprep.subr.bf16.mxu0 0
      %6191 = vmatpush1.bf16.msra.mxu0 %v2793
      %6192 = vmatprep.subr.bf16.mxu0 0
      %6193 = vmatpush1.bf16.msra.mxu0 %v2792
      %6194 = vmatprep.subr.bf16.mxu0 0
      %6195 = vmatpush1.bf16.msra.mxu0 %v2791
      %6196 = vmatprep.subr.bf16.mxu0 0
      %6197 = vmatpush1.bf16.msra.mxu0 %v2790
      %6198 = vmatprep.subr.bf16.mxu0 0
      %6199 = vmatpush1.bf16.msra.mxu0 %v2789
      %6200 = vmatprep.subr.bf16.mxu0 0
      %6201 = vmatpush1.bf16.msra.mxu0 %v2788
      %6202 = vmatprep.subr.bf16.mxu0 0
      %6203 = vmatpush1.bf16.msra.mxu0 %v2787
      %6204 = vmatprep.subr.bf16.mxu0 0
      %6205 = vmatpush1.bf16.msra.mxu0 %v2786
      %6206 = vmatprep.subr.bf16.mxu0 0
      %6207 = vmatpush2.bf16.msra.mxu0 %v2801
      %6208 = vmatprep.subr.bf16.mxu0 0
      %6209 = vmatpush2.bf16.msra.mxu0 %v2800
      %6210 = vmatprep.subr.bf16.mxu0 0
      %6211 = vmatpush2.bf16.msra.mxu0 %v2799
      %6212 = vmatprep.subr.bf16.mxu0 0
      %6213 = vmatpush2.bf16.msra.mxu0 %v2798
      %6214 = vmatprep.subr.bf16.mxu0 0
      %6215 = vmatpush2.bf16.msra.mxu0 %v2797
      %6216 = vmatprep.subr.bf16.mxu0 0
      %6217 = vmatpush2.bf16.msra.mxu0 %v2796
      %6218 = vmatprep.subr.bf16.mxu0 0
      %6219 = vmatpush2.bf16.msra.mxu0 %v2795
      %6220 = vmatprep.subr.bf16.mxu0 0
      %6221 = vmatpush2.bf16.msra.mxu0 %v2794
      %6222 = vmatprep.mubr.bf16.mxu0 %v6187
      %6223 = vmatmul.mubr.bf16.gmra.mxu0 %v6186
      %v6224 = vpop.f32.mrf.mxu0
      %v6225 = vadd.f32 %v2720, %v6224
      %v6226 = vpop.f32.mrf.mxu0
      %v6227 = vpop.f32.mrf.mxu0
      %v6228 = vadd.f32 %v2720, %v6227
      %v6229 = vpop.f32.mrf.mxu0
      %6230 = vmatprep.mubr.bf16.mxu0 %v6189
      %6231 = vmatmul.mubr.bf16.gmra.mxu0 %v6188
      %v6232 = vpop.f32.mrf.mxu0
      %v6233 = vadd.f32 %v2720, %v6232
      %v6234 = vpop.f32.mrf.mxu0
      %v6235 = vpop.f32.mrf.mxu0
      %v6236 = vadd.f32 %v2720, %v6235
      %v6237 = vpop.f32.mrf.mxu0
      %6238 = vdwg.mxu0
      %v6239 = vtanh.pop %v6225
      %v6240 = vtanh.pop %v6228
      %v6241 = vtanh.pop %v6233
      %v6242 = vtanh.pop %v6236
      %v6243 = vpack.c.bf16 %v6240, %v6239
      %v6244 = vpack.c.bf16 %v6242, %v6241
      %6245 = vmatprep.subr.bf16.mxu0 0
      %6246 = vmatpush1.bf16.msra.mxu0 0
      %6247 = vmatprep.subr.bf16.mxu0 0
      %6248 = vmatpush1.bf16.msra.mxu0 0
      %6249 = vmatprep.subr.bf16.mxu0 0
      %6250 = vmatpush1.bf16.msra.mxu0 0
      %6251 = vmatprep.subr.bf16.mxu0 0
      %6252 = vmatpush1.bf16.msra.mxu0 0
      %6253 = vmatprep.subr.bf16.mxu0 0
      %6254 = vmatpush1.bf16.msra.mxu0 0
      %6255 = vmatprep.subr.bf16.mxu0 0
      %6256 = vmatpush1.bf16.msra.mxu0 0
      %6257 = vmatprep.subr.bf16.mxu0 0
      %6258 = vmatpush1.bf16.msra.mxu0 %v6244
      %6259 = vmatprep.subr.bf16.mxu0 0
      %6260 = vmatpush1.bf16.msra.mxu0 %v6243
      %6261 = vmatprep.subr.bf16.mxu0 0
      %6262 = vmatpush2.bf16.msra.mxu0 0
      %6263 = vmatprep.subr.bf16.mxu0 0
      %6264 = vmatpush2.bf16.msra.mxu0 0
      %6265 = vmatprep.subr.bf16.mxu0 0
      %6266 = vmatpush2.bf16.msra.mxu0 0
      %6267 = vmatprep.subr.bf16.mxu0 0
      %6268 = vmatpush2.bf16.msra.mxu0 0
      %6269 = vmatprep.subr.bf16.mxu0 0
      %6270 = vmatpush2.bf16.msra.mxu0 0
      %6271 = vmatprep.subr.bf16.mxu0 0
      %6272 = vmatpush2.bf16.msra.mxu0 0
      %6273 = vmatprep.subr.bf16.mxu0 0
      %6274 = vmatpush2.bf16.msra.mxu0 0
      %6275 = vmatprep.subr.bf16.mxu0 0
      %6276 = vmatpush2.bf16.msra.mxu0 0
      %6277 = vmatprep.mubr.bf16.mxu0 0
      %6278 = vmatmul.mubr.bf16.gmra.mxu0 %v2880
      %v6279 = vpop.f32.mrf.mxu0
      %v6280 = vadd.f32 0.0, %v6279
      %v6281 = vpop.f32.mrf.mxu0
      %v6282 = vpop.f32.mrf.mxu0
      %v6283 = vadd.f32 0.0, %v6282
      %v6284 = vpop.f32.mrf.mxu0
      %6285 = vdwg.mxu0
      %v6286 = vpack.c.bf16 %v6283, %v6280
      %v6288 = vsel %vm2134, %v5842, 0
      %6290 = vmatprep.subr.bf16.mxu0 0
      %6291 = vmatpush1.bf16.msra.mxu0 0
      %6292 = vmatprep.subr.bf16.mxu0 0
      %6293 = vmatpush1.bf16.msra.mxu0 0
      %6294 = vmatprep.subr.bf16.mxu0 0
      %6295 = vmatpush1.bf16.msra.mxu0 0
      %6296 = vmatprep.subr.bf16.mxu0 0
      %6297 = vmatpush1.bf16.msra.mxu0 0
      %6298 = vmatprep.subr.bf16.mxu0 %v2971
      %6299 = vmatpush1.bf16.msra.mxu0 %v2970
      %6300 = vmatprep.subr.bf16.mxu0 %v2969
      %6301 = vmatpush1.bf16.msra.mxu0 %v2968
      %6302 = vmatprep.subr.bf16.mxu0 %v2967
      %6303 = vmatpush1.bf16.msra.mxu0 %v2966
      %6304 = vmatprep.subr.bf16.mxu0 %v2965
      %6305 = vmatpush1.bf16.msra.mxu0 %v2964
      %6306 = vmatprep.subr.bf16.mxu0 0
      %6307 = vmatpush2.bf16.msra.mxu0 0
      %6308 = vmatprep.subr.bf16.mxu0 0
      %6309 = vmatpush2.bf16.msra.mxu0 0
      %6310 = vmatprep.subr.bf16.mxu0 0
      %6311 = vmatpush2.bf16.msra.mxu0 0
      %6312 = vmatprep.subr.bf16.mxu0 0
      %6313 = vmatpush2.bf16.msra.mxu0 0
      %6314 = vmatprep.subr.bf16.mxu0 0
      %6315 = vmatpush2.bf16.msra.mxu0 0
      %6316 = vmatprep.subr.bf16.mxu0 0
      %6317 = vmatpush2.bf16.msra.mxu0 0
      %6318 = vmatprep.subr.bf16.mxu0 0
      %6319 = vmatpush2.bf16.msra.mxu0 0
      %6320 = vmatprep.subr.bf16.mxu0 0
      %6321 = vmatpush2.bf16.msra.mxu0 0
      %6322 = vmatprep.mubr.bf16.mxu0 0
      %6323 = vmatmul.mubr.bf16.gmra.mxu0 %v6288
      %v6324 = vpop.f32.mrf.mxu0
      %v6325 = vadd.f32 0.0, %v6324
      %v6326 = vpop.f32.mrf.mxu0
      %v6327 = vadd.f32 0.0, %v6326
      %v6328 = vpop.f32.mrf.mxu0
      %v6329 = vadd.f32 0.0, %v6328
      %v6330 = vpop.f32.mrf.mxu0
      %v6331 = vadd.f32 0.0, %v6330
      %6332 = vdwg.mxu0
      %v6334 = vsel %vm2134, %v6286, 0
      %6336 = vmatprep.subr.bf16.mxu0 0
      %6337 = vmatpush1.bf16.msra.mxu0 0
      %6338 = vmatprep.subr.bf16.mxu0 0
      %6339 = vmatpush1.bf16.msra.mxu0 0
      %6340 = vmatprep.subr.bf16.mxu0 0
      %6341 = vmatpush1.bf16.msra.mxu0 0
      %6342 = vmatprep.subr.bf16.mxu0 0
      %6343 = vmatpush1.bf16.msra.mxu0 0
      %6344 = vmatprep.subr.bf16.mxu0 %v3057
      %6345 = vmatpush1.bf16.msra.mxu0 %v3056
      %6346 = vmatprep.subr.bf16.mxu0 %v3055
      %6347 = vmatpush1.bf16.msra.mxu0 %v3054
      %6348 = vmatprep.subr.bf16.mxu0 %v3053
      %6349 = vmatpush1.bf16.msra.mxu0 %v3052
      %6350 = vmatprep.subr.bf16.mxu0 %v3051
      %6351 = vmatpush1.bf16.msra.mxu0 %v3050
      %6352 = vmatprep.subr.bf16.mxu0 0
      %6353 = vmatpush2.bf16.msra.mxu0 0
      %6354 = vmatprep.subr.bf16.mxu0 0
      %6355 = vmatpush2.bf16.msra.mxu0 0
      %6356 = vmatprep.subr.bf16.mxu0 0
      %6357 = vmatpush2.bf16.msra.mxu0 0
      %6358 = vmatprep.subr.bf16.mxu0 0
      %6359 = vmatpush2.bf16.msra.mxu0 0
      %6360 = vmatprep.subr.bf16.mxu0 0
      %6361 = vmatpush2.bf16.msra.mxu0 0
      %6362 = vmatprep.subr.bf16.mxu0 0
      %6363 = vmatpush2.bf16.msra.mxu0 0
      %6364 = vmatprep.subr.bf16.mxu0 0
      %6365 = vmatpush2.bf16.msra.mxu0 0
      %6366 = vmatprep.subr.bf16.mxu0 0
      %6367 = vmatpush2.bf16.msra.mxu0 0
      %6368 = vmatprep.mubr.bf16.mxu0 0
      %6369 = vmatmul.mubr.bf16.gmra.mxu0 %v6334
      %v6370 = vpop.f32.mrf.mxu0
      %v6371 = vadd.f32 %v6325, %v6370
      %v6372 = vpop.f32.mrf.mxu0
      %v6373 = vadd.f32 %v6327, %v6372
      %v6374 = vpop.f32.mrf.mxu0
      %v6375 = vadd.f32 %v6329, %v6374
      %v6376 = vpop.f32.mrf.mxu0
      %v6377 = vadd.f32 %v6331, %v6376
      %6378 = vdwg.mxu0
      %v6379 = vadd.f32 %v6371, %v3117
      %v6380 = vadd.f32 %v6373, %v3121
      %v6381 = vadd.f32 %v6375, %v3117
      %v6382 = vadd.f32 %v6377, %v3121
      %v6383 = vadd.f32 %v6379, %v6380
      %6384 = vadd.xlane.f32.xlu0 %v6383
      %v6385 = vpop.xlane.xlu0 %6384
      %v6386 = vadd.f32 %v6381, %v6382
      %6387 = vadd.xlane.f32.xlu0 %v6386
      %v6388 = vpop.xlane.xlu0 %6387
      %v6389 = vmul.f32 %v6385, %v1445
      %v6390 = vmul.f32 %v6388, %v1445
      %v6391 = vsub.f32 %v6379, %v6389
      %v6392 = vsub.f32 %v6380, %v6389
      %v6393 = vsub.f32 %v6381, %v6390
      %v6394 = vsub.f32 %v6382, %v6390
      %v6395 = vmul.f32 %v6391, %v6391
      %v6396 = vmul.f32 %v6392, %v6392
      %v6397 = vmul.f32 %v6393, %v6393
      %v6398 = vmul.f32 %v6394, %v6394
      %v6399 = vadd.f32 %v6395, %v6396
      %6400 = vadd.xlane.f32.xlu0 %v6399
      %v6401 = vpop.xlane.xlu0 %6400
      %v6402 = vadd.f32 %v6397, %v6398
      %6403 = vadd.xlane.f32.xlu0 %v6402
      %v6404 = vpop.xlane.xlu0 %6403
      %v6405 = vmul.f32 %v6401, %v1445
      %v6406 = vmul.f32 %v6404, %v1445
      %v6407 = vadd.f32 %v6405, 1e-05
      %v6408 = vadd.f32 %v6406, 1e-05
      %v6409 = vrsqrt.pop %v6407
      %v6410 = vrsqrt.pop %v6408
      %v6411 = vmul.f32 %v6391, %v6409
      %v6412 = vmul.f32 %v6392, %v6409
      %v6413 = vmul.f32 %v6393, %v6410
      %v6414 = vmul.f32 %v6394, %v6410
      %v6415 = vmul.f32 %v6411, %v3165
      %v6416 = vmul.f32 %v6412, %v3169
      %v6417 = vmul.f32 %v6413, %v3165
      %v6418 = vmul.f32 %v6414, %v3169
      %v6419 = vadd.f32 %v6415, %v3181
      %v6420 = vadd.f32 %v6416, %v3185
      %v6421 = vadd.f32 %v6417, %v3181
      %v6422 = vadd.f32 %v6418, %v3185
      %v6423 = vmax.f32 %v6419, 0.0
      %v6424 = vmax.f32 %v6420, 0.0
      %v6425 = vmax.f32 %v6421, 0.0
      %v6426 = vmax.f32 %v6422, 0.0
      %v6427 = vpack.c.bf16 %v6425, %v6423
      %v6428 = vpack.c.bf16 %v6426, %v6424
      %6429 = vmatprep.subr.bf16.mxu0 %v3353
      %6430 = vmatpush1.bf16.msra.mxu0 %v3352
      %6431 = vmatprep.subr.bf16.mxu0 %v3351
      %6432 = vmatpush1.bf16.msra.mxu0 %v3350
      %6433 = vmatprep.subr.bf16.mxu0 %v3349
      %6434 = vmatpush1.bf16.msra.mxu0 %v3348
      %6435 = vmatprep.subr.bf16.mxu0 %v3347
      %6436 = vmatpush1.bf16.msra.mxu0 %v3346
      %6437 = vmatprep.subr.bf16.mxu0 %v3345
      %6438 = vmatpush1.bf16.msra.mxu0 %v3344
      %6439 = vmatprep.subr.bf16.mxu0 %v3343
      %6440 = vmatpush1.bf16.msra.mxu0 %v3342
      %6441 = vmatprep.subr.bf16.mxu0 %v3341
      %6442 = vmatpush1.bf16.msra.mxu0 %v3340
      %6443 = vmatprep.subr.bf16.mxu0 %v3339
      %6444 = vmatpush1.bf16.msra.mxu0 %v3338
      %6445 = vmatprep.subr.bf16.mxu0 %v3369
      %6446 = vmatpush2.bf16.msra.mxu0 %v3368
      %6447 = vmatprep.subr.bf16.mxu0 %v3367
      %6448 = vmatpush2.bf16.msra.mxu0 %v3366
      %6449 = vmatprep.subr.bf16.mxu0 %v3365
      %6450 = vmatpush2.bf16.msra.mxu0 %v3364
      %6451 = vmatprep.subr.bf16.mxu0 %v3363
      %6452 = vmatpush2.bf16.msra.mxu0 %v3362
      %6453 = vmatprep.subr.bf16.mxu0 %v3361
      %6454 = vmatpush2.bf16.msra.mxu0 %v3360
      %6455 = vmatprep.subr.bf16.mxu0 %v3359
      %6456 = vmatpush2.bf16.msra.mxu0 %v3358
      %6457 = vmatprep.subr.bf16.mxu0 %v3357
      %6458 = vmatpush2.bf16.msra.mxu0 %v3356
      %6459 = vmatprep.subr.bf16.mxu0 %v3355
      %6460 = vmatpush2.bf16.msra.mxu0 %v3354
      %6461 = vmatprep.mubr.bf16.mxu0 %v6428
      %6462 = vmatmul.mubr.bf16.gmra.mxu0 %v6427
      %v6463 = vpop.f32.mrf.mxu0
      %v6464 = vadd.f32 %v3235, %v6463
      %v6465 = vpop.f32.mrf.mxu0
      %v6466 = vadd.f32 %v3239, %v6465
      %v6467 = vpop.f32.mrf.mxu0
      %v6468 = vadd.f32 %v3235, %v6467
      %v6469 = vpop.f32.mrf.mxu0
      %v6470 = vadd.f32 %v3239, %v6469
      %6471 = vdwg.mxu0
      %v6472 = vadd.f32 %v6464, %v6466
      %6473 = vadd.xlane.f32.xlu0 %v6472
      %v6474 = vpop.xlane.xlu0 %6473
      %v6475 = vadd.f32 %v6468, %v6470
      %6476 = vadd.xlane.f32.xlu0 %v6475
      %v6477 = vpop.xlane.xlu0 %6476
      %v6478 = vmul.f32 %v6474, %v1445
      %v6479 = vmul.f32 %v6477, %v1445
      %v6480 = vsub.f32 %v6464, %v6478
      %v6481 = vsub.f32 %v6466, %v6478
      %v6482 = vsub.f32 %v6468, %v6479
      %v6483 = vsub.f32 %v6470, %v6479
      %v6484 = vmul.f32 %v6480, %v6480
      %v6485 = vmul.f32 %v6481, %v6481
      %v6486 = vmul.f32 %v6482, %v6482
      %v6487 = vmul.f32 %v6483, %v6483
      %v6488 = vadd.f32 %v6484, %v6485
      %6489 = vadd.xlane.f32.xlu0 %v6488
      %v6490 = vpop.xlane.xlu0 %6489
      %v6491 = vadd.f32 %v6486, %v6487
      %6492 = vadd.xlane.f32.xlu0 %v6491
      %v6493 = vpop.xlane.xlu0 %6492
      %v6494 = vmul.f32 %v6490, %v1445
      %v6495 = vmul.f32 %v6493, %v1445
      %v6496 = vadd.f32 %v6494, 1e-05
      %v6497 = vadd.f32 %v6495, 1e-05
      %v6498 = vrsqrt.pop %v6496
      %v6499 = vrsqrt.pop %v6497
      %v6500 = vmul.f32 %v6480, %v6498
      %v6501 = vmul.f32 %v6481, %v6498
      %v6502 = vmul.f32 %v6482, %v6499
      %v6503 = vmul.f32 %v6483, %v6499
      %v6504 = vmul.f32 %v6500, %v3482
      %v6505 = vmul.f32 %v6501, %v3486
      %v6506 = vmul.f32 %v6502, %v3482
      %v6507 = vmul.f32 %v6503, %v3486
      %v6508 = vadd.f32 %v6504, %v3498
      %v6509 = vadd.f32 %v6505, %v3502
      %v6510 = vadd.f32 %v6506, %v3498
      %v6511 = vadd.f32 %v6507, %v3502
      %v6512 = vmax.f32 %v6508, 0.0
      %v6513 = vmax.f32 %v6509, 0.0
      %v6514 = vmax.f32 %v6510, 0.0
      %v6515 = vmax.f32 %v6511, 0.0
      %v6516 = vpack.c.bf16 %v6514, %v6512
      %v6517 = vpack.c.bf16 %v6515, %v6513
      %6518 = vmatprep.subr.bf16.mxu0 0
      %6519 = vmatpush1.bf16.msra.mxu0 %v3625
      %6520 = vmatprep.subr.bf16.mxu0 0
      %6521 = vmatpush1.bf16.msra.mxu0 %v3624
      %6522 = vmatprep.subr.bf16.mxu0 0
      %6523 = vmatpush1.bf16.msra.mxu0 %v3623
      %6524 = vmatprep.subr.bf16.mxu0 0
      %6525 = vmatpush1.bf16.msra.mxu0 %v3622
      %6526 = vmatprep.subr.bf16.mxu0 0
      %6527 = vmatpush1.bf16.msra.mxu0 %v3621
      %6528 = vmatprep.subr.bf16.mxu0 0
      %6529 = vmatpush1.bf16.msra.mxu0 %v3620
      %6530 = vmatprep.subr.bf16.mxu0 0
      %6531 = vmatpush1.bf16.msra.mxu0 %v3619
      %6532 = vmatprep.subr.bf16.mxu0 0
      %6533 = vmatpush1.bf16.msra.mxu0 %v3618
      %6534 = vmatprep.subr.bf16.mxu0 0
      %6535 = vmatpush2.bf16.msra.mxu0 %v3633
      %6536 = vmatprep.subr.bf16.mxu0 0
      %6537 = vmatpush2.bf16.msra.mxu0 %v3632
      %6538 = vmatprep.subr.bf16.mxu0 0
      %6539 = vmatpush2.bf16.msra.mxu0 %v3631
      %6540 = vmatprep.subr.bf16.mxu0 0
      %6541 = vmatpush2.bf16.msra.mxu0 %v3630
      %6542 = vmatprep.subr.bf16.mxu0 0
      %6543 = vmatpush2.bf16.msra.mxu0 %v3629
      %6544 = vmatprep.subr.bf16.mxu0 0
      %6545 = vmatpush2.bf16.msra.mxu0 %v3628
      %6546 = vmatprep.subr.bf16.mxu0 0
      %6547 = vmatpush2.bf16.msra.mxu0 %v3627
      %6548 = vmatprep.subr.bf16.mxu0 0
      %6549 = vmatpush2.bf16.msra.mxu0 %v3626
      %6550 = vmatprep.mubr.bf16.mxu0 %v6517
      %6551 = vmatmul.mubr.bf16.gmra.mxu0 %v6516
      %v6552 = vpop.f32.mrf.mxu0
      %v6553 = vadd.f32 %v3552, %v6552
      %v6554 = vpop.f32.mrf.mxu0
      %v6555 = vpop.f32.mrf.mxu0
      %v6556 = vadd.f32 %v3552, %v6555
      %v6557 = vpop.f32.mrf.mxu0
      %6558 = vdwg.mxu0
      %v6559 = vpack.c.bf16 %v6556, %v6553
      %6560 = vmatprep.subr.bf16.mxu0 0
      %6561 = vmatpush1.bf16.msra.mxu0 0
      %6562 = vmatprep.subr.bf16.mxu0 0
      %6563 = vmatpush1.bf16.msra.mxu0 0
      %6564 = vmatprep.subr.bf16.mxu0 0
      %6565 = vmatpush1.bf16.msra.mxu0 0
      %6566 = vmatprep.subr.bf16.mxu0 0
      %6567 = vmatpush1.bf16.msra.mxu0 0
      %6568 = vmatprep.subr.bf16.mxu0 0
      %6569 = vmatpush1.bf16.msra.mxu0 0
      %6570 = vmatprep.subr.bf16.mxu0 0
      %6571 = vmatpush1.bf16.msra.mxu0 0
      %6572 = vmatprep.subr.bf16.mxu0 0
      %6573 = vmatpush1.bf16.msra.mxu0 0
      %6574 = vmatprep.subr.bf16.mxu0 0
      %6575 = vmatpush1.bf16.msra.mxu0 %v6559
      %6576 = vmatprep.subr.bf16.mxu0 0
      %6577 = vmatpush2.bf16.msra.mxu0 0
      %6578 = vmatprep.subr.bf16.mxu0 0
      %6579 = vmatpush2.bf16.msra.mxu0 0
      %6580 = vmatprep.subr.bf16.mxu0 0
      %6581 = vmatpush2.bf16.msra.mxu0 0
      %6582 = vmatprep.subr.bf16.mxu0 0
      %6583 = vmatpush2.bf16.msra.mxu0 0
      %6584 = vmatprep.subr.bf16.mxu0 0
      %6585 = vmatpush2.bf16.msra.mxu0 0
      %6586 = vmatprep.subr.bf16.mxu0 0
      %6587 = vmatpush2.bf16.msra.mxu0 0
      %6588 = vmatprep.subr.bf16.mxu0 0
      %6589 = vmatpush2.bf16.msra.mxu0 0
      %6590 = vmatprep.subr.bf16.mxu0 0
      %6591 = vmatpush2.bf16.msra.mxu0 0
      %6592 = vmatprep.mubr.bf16.mxu0 0
      %6593 = vmatmul.mubr.bf16.gmra.mxu0 %v2030
      %v6594 = vpop.f32.mrf.mxu0
      %v6595 = vadd.f32 0.0, %v6594
      %v6596 = vpop.f32.mrf.mxu0
      %v6597 = vpop.f32.mrf.mxu0
      %v6598 = vadd.f32 0.0, %v6597
      %v6599 = vpop.f32.mrf.mxu0
      %6600 = vmatprep.mubr.bf16.mxu0 0
      %6601 = vmatmul.mubr.bf16.gmra.mxu0 %v2033
      %v6602 = vpop.f32.mrf.mxu0
      %v6603 = vadd.f32 0.0, %v6602
      %v6604 = vpop.f32.mrf.mxu0
      %v6605 = vpop.f32.mrf.mxu0
      %v6606 = vadd.f32 0.0, %v6605
      %v6607 = vpop.f32.mrf.mxu0
      %6608 = vdwg.mxu0
      %v6609 = vpack.c.bf16 %v6598, %v6595
      %v6610 = vpack.c.bf16 %v6606, %v6603
      %v6612 = vsel %vm2134, %v6609, 0
      %v6615 = vsel %vm2134, %v6610, 0
      %6617 = vmatprep.subr.bf16.mxu0 0
      %6618 = vmatpush1.bf16.msra.mxu0 0
      %6619 = vmatprep.subr.bf16.mxu0 0
      %6620 = vmatpush1.bf16.msra.mxu0 0
      %6621 = vmatprep.subr.bf16.mxu0 0
      %6622 = vmatpush1.bf16.msra.mxu0 0
      %6623 = vmatprep.subr.bf16.mxu0 0
      %6624 = vmatpush1.bf16.msra.mxu0 0
      %6625 = vmatprep.subr.bf16.mxu0 %v2125
      %6626 = vmatpush1.bf16.msra.mxu0 %v2124
      %6627 = vmatprep.subr.bf16.mxu0 %v2123
      %6628 = vmatpush1.bf16.msra.mxu0 %v2122
      %6629 = vmatprep.subr.bf16.mxu0 %v2121
      %6630 = vmatpush1.bf16.msra.mxu0 %v2120
      %6631 = vmatprep.subr.bf16.mxu0 %v2119
      %6632 = vmatpush1.bf16.msra.mxu0 %v2118
      %6633 = vmatprep.subr.bf16.mxu0 0
      %6634 = vmatpush2.bf16.msra.mxu0 0
      %6635 = vmatprep.subr.bf16.mxu0 0
      %6636 = vmatpush2.bf16.msra.mxu0 0
      %6637 = vmatprep.subr.bf16.mxu0 0
      %6638 = vmatpush2.bf16.msra.mxu0 0
      %6639 = vmatprep.subr.bf16.mxu0 0
      %6640 = vmatpush2.bf16.msra.mxu0 0
      %6641 = vmatprep.subr.bf16.mxu0 0
      %6642 = vmatpush2.bf16.msra.mxu0 0
      %6643 = vmatprep.subr.bf16.mxu0 0
      %6644 = vmatpush2.bf16.msra.mxu0 0
      %6645 = vmatprep.subr.bf16.mxu0 0
      %6646 = vmatpush2.bf16.msra.mxu0 0
      %6647 = vmatprep.subr.bf16.mxu0 0
      %6648 = vmatpush2.bf16.msra.mxu0 0
      %6649 = vmatprep.mubr.bf16.mxu0 0
      %6650 = vmatmul.mubr.bf16.gmra.mxu0 %v6612
      %v6651 = vpop.f32.mrf.mxu0
      %v6652 = vadd.f32 %v2009, %v6651
      %v6653 = vpop.f32.mrf.mxu0
      %v6654 = vadd.f32 %v2010, %v6653
      %v6655 = vpop.f32.mrf.mxu0
      %v6656 = vadd.f32 %v2011, %v6655
      %v6657 = vpop.f32.mrf.mxu0
      %v6658 = vadd.f32 %v2012, %v6657
      %6659 = vmatprep.mubr.bf16.mxu0 0
      %6660 = vmatmul.mubr.bf16.gmra.mxu0 %v6615
      %v6661 = vpop.f32.mrf.mxu0
      %v6662 = vadd.f32 %v2013, %v6661
      %v6663 = vpop.f32.mrf.mxu0
      %v6664 = vadd.f32 %v2014, %v6663
      %v6665 = vpop.f32.mrf.mxu0
      %v6666 = vadd.f32 %v2015, %v6665
      %v6667 = vpop.f32.mrf.mxu0
      %v6668 = vadd.f32 %v2016, %v6667
      %6669 = vdwg.mxu0
      %v6670 = vadd.f32 %v6652, %v6654
      %6671 = vadd.xlane.f32.xlu0 %v6670
      %v6672 = vpop.xlane.xlu0 %6671
      %v6673 = vadd.f32 %v6656, %v6658
      %6674 = vadd.xlane.f32.xlu0 %v6673
      %v6675 = vpop.xlane.xlu0 %6674
      %v6676 = vadd.f32 %v6662, %v6664
      %6677 = vadd.xlane.f32.xlu0 %v6676
      %v6678 = vpop.xlane.xlu0 %6677
      %v6679 = vadd.f32 %v6666, %v6668
      %6680 = vadd.xlane.f32.xlu0 %v6679
      %v6681 = vpop.xlane.xlu0 %6680
      %v6682 = vmul.f32 %v6672, %v1445
      %v6683 = vmul.f32 %v6675, %v1445
      %v6684 = vmul.f32 %v6678, %v1445
      %v6685 = vmul.f32 %v6681, %v1445
      %v6686 = vsub.f32 %v6652, %v6682
      %v6687 = vsub.f32 %v6654, %v6682
      %v6688 = vsub.f32 %v6656, %v6683
      %v6689 = vsub.f32 %v6658, %v6683
      %v6690 = vsub.f32 %v6662, %v6684
      %v6691 = vsub.f32 %v6664, %v6684
      %v6692 = vsub.f32 %v6666, %v6685
      %v6693 = vsub.f32 %v6668, %v6685
      %v6694 = vmul.f32 %v6686, %v6686
      %v6695 = vmul.f32 %v6687, %v6687
      %v6696 = vmul.f32 %v6688, %v6688
      %v6697 = vmul.f32 %v6689, %v6689
      %v6698 = vmul.f32 %v6690, %v6690
      %v6699 = vmul.f32 %v6691, %v6691
      %v6700 = vmul.f32 %v6692, %v6692
      %v6701 = vmul.f32 %v6693, %v6693
      %v6702 = vadd.f32 %v6694, %v6695
      %6703 = vadd.xlane.f32.xlu0 %v6702
      %v6704 = vpop.xlane.xlu0 %6703
      %v6705 = vadd.f32 %v6696, %v6697
      %6706 = vadd.xlane.f32.xlu0 %v6705
      %v6707 = vpop.xlane.xlu0 %6706
      %v6708 = vadd.f32 %v6698, %v6699
      %6709 = vadd.xlane.f32.xlu0 %v6708
      %v6710 = vpop.xlane.xlu0 %6709
      %v6711 = vadd.f32 %v6700, %v6701
      %6712 = vadd.xlane.f32.xlu0 %v6711
      %v6713 = vpop.xlane.xlu0 %6712
      %v6714 = vmul.f32 %v6704, %v1445
      %v6715 = vmul.f32 %v6707, %v1445
      %v6716 = vmul.f32 %v6710, %v1445
      %v6717 = vmul.f32 %v6713, %v1445
      %v6718 = vadd.f32 %v6714, 1e-05
      %v6719 = vadd.f32 %v6715, 1e-05
      %v6720 = vadd.f32 %v6716, 1e-05
      %v6721 = vadd.f32 %v6717, 1e-05
      %v6722 = vrsqrt.pop %v6718
      %v6723 = vrsqrt.pop %v6719
      %v6724 = vrsqrt.pop %v6720
      %v6725 = vrsqrt.pop %v6721
      %v6726 = vmul.f32 %v6686, %v6722
      %v6727 = vmul.f32 %v6687, %v6722
      %v6728 = vmul.f32 %v6688, %v6723
      %v6729 = vmul.f32 %v6689, %v6723
      %v6730 = vmul.f32 %v6690, %v6724
      %v6731 = vmul.f32 %v6691, %v6724
      %v6732 = vmul.f32 %v6692, %v6725
      %v6733 = vmul.f32 %v6693, %v6725
      %v6734 = vmul.f32 %v6726, %v2263
      %v6735 = vmul.f32 %v6727, %v2267
      %v6736 = vmul.f32 %v6728, %v2263
      %v6737 = vmul.f32 %v6729, %v2267
      %v6738 = vmul.f32 %v6730, %v2263
      %v6739 = vmul.f32 %v6731, %v2267
      %v6740 = vmul.f32 %v6732, %v2263
      %v6741 = vmul.f32 %v6733, %v2267
      %v6742 = vadd.f32 %v6734, %v2283
      %v6743 = vadd.f32 %v6735, %v2287
      %v6744 = vadd.f32 %v6736, %v2283
      %v6745 = vadd.f32 %v6737, %v2287
      %v6746 = vadd.f32 %v6738, %v2283
      %v6747 = vadd.f32 %v6739, %v2287
      %v6748 = vadd.f32 %v6740, %v2283
      %v6749 = vadd.f32 %v6741, %v2287
      %v6750 = vmax.f32 %v6742, 0.0
      %v6751 = vmax.f32 %v6743, 0.0
      %v6752 = vmax.f32 %v6744, 0.0
      %v6753 = vmax.f32 %v6745, 0.0
      %v6754 = vmax.f32 %v6746, 0.0
      %v6755 = vmax.f32 %v6747, 0.0
      %v6756 = vmax.f32 %v6748, 0.0
      %v6757 = vmax.f32 %v6749, 0.0
      %v6758 = vpack.c.bf16 %v6752, %v6750
      %v6759 = vpack.c.bf16 %v6753, %v6751
      %v6760 = vpack.c.bf16 %v6756, %v6754
      %v6761 = vpack.c.bf16 %v6757, %v6755
      %6762 = vmatprep.subr.bf16.mxu0 %v2465
      %6763 = vmatpush1.bf16.msra.mxu0 %v2464
      %6764 = vmatprep.subr.bf16.mxu0 %v2463
      %6765 = vmatpush1.bf16.msra.mxu0 %v2462
      %6766 = vmatprep.subr.bf16.mxu0 %v2461
      %6767 = vmatpush1.bf16.msra.mxu0 %v2460
      %6768 = vmatprep.subr.bf16.mxu0 %v2459
      %6769 = vmatpush1.bf16.msra.mxu0 %v2458
      %6770 = vmatprep.subr.bf16.mxu0 %v2457
      %6771 = vmatpush1.bf16.msra.mxu0 %v2456
      %6772 = vmatprep.subr.bf16.mxu0 %v2455
      %6773 = vmatpush1.bf16.msra.mxu0 %v2454
      %6774 = vmatprep.subr.bf16.mxu0 %v2453
      %6775 = vmatpush1.bf16.msra.mxu0 %v2452
      %6776 = vmatprep.subr.bf16.mxu0 %v2451
      %6777 = vmatpush1.bf16.msra.mxu0 %v2450
      %6778 = vmatprep.subr.bf16.mxu0 %v2481
      %6779 = vmatpush2.bf16.msra.mxu0 %v2480
      %6780 = vmatprep.subr.bf16.mxu0 %v2479
      %6781 = vmatpush2.bf16.msra.mxu0 %v2478
      %6782 = vmatprep.subr.bf16.mxu0 %v2477
      %6783 = vmatpush2.bf16.msra.mxu0 %v2476
      %6784 = vmatprep.subr.bf16.mxu0 %v2475
      %6785 = vmatpush2.bf16.msra.mxu0 %v2474
      %6786 = vmatprep.subr.bf16.mxu0 %v2473
      %6787 = vmatpush2.bf16.msra.mxu0 %v2472
      %6788 = vmatprep.subr.bf16.mxu0 %v2471
      %6789 = vmatpush2.bf16.msra.mxu0 %v2470
      %6790 = vmatprep.subr.bf16.mxu0 %v2469
      %6791 = vmatpush2.bf16.msra.mxu0 %v2468
      %6792 = vmatprep.subr.bf16.mxu0 %v2467
      %6793 = vmatpush2.bf16.msra.mxu0 %v2466
      %6794 = vmatprep.mubr.bf16.mxu0 %v6759
      %6795 = vmatmul.mubr.bf16.gmra.mxu0 %v6758
      %v6796 = vpop.f32.mrf.mxu0
      %v6797 = vadd.f32 %v2347, %v6796
      %v6798 = vpop.f32.mrf.mxu0
      %v6799 = vadd.f32 %v2351, %v6798
      %v6800 = vpop.f32.mrf.mxu0
      %v6801 = vadd.f32 %v2347, %v6800
      %v6802 = vpop.f32.mrf.mxu0
      %v6803 = vadd.f32 %v2351, %v6802
      %6804 = vmatprep.mubr.bf16.mxu0 %v6761
      %6805 = vmatmul.mubr.bf16.gmra.mxu0 %v6760
      %v6806 = vpop.f32.mrf.mxu0
      %v6807 = vadd.f32 %v2347, %v6806
      %v6808 = vpop.f32.mrf.mxu0
      %v6809 = vadd.f32 %v2351, %v6808
      %v6810 = vpop.f32.mrf.mxu0
      %v6811 = vadd.f32 %v2347, %v6810
      %v6812 = vpop.f32.mrf.mxu0
      %v6813 = vadd.f32 %v2351, %v6812
      %6814 = vdwg.mxu0
      %v6815 = vadd.f32 %v6797, %v6799
      %6816 = vadd.xlane.f32.xlu0 %v6815
      %v6817 = vpop.xlane.xlu0 %6816
      %v6818 = vadd.f32 %v6801, %v6803
      %6819 = vadd.xlane.f32.xlu0 %v6818
      %v6820 = vpop.xlane.xlu0 %6819
      %v6821 = vadd.f32 %v6807, %v6809
      %6822 = vadd.xlane.f32.xlu0 %v6821
      %v6823 = vpop.xlane.xlu0 %6822
      %v6824 = vadd.f32 %v6811, %v6813
      %6825 = vadd.xlane.f32.xlu0 %v6824
      %v6826 = vpop.xlane.xlu0 %6825
      %v6827 = vmul.f32 %v6817, %v1445
      %v6828 = vmul.f32 %v6820, %v1445
      %v6829 = vmul.f32 %v6823, %v1445
      %v6830 = vmul.f32 %v6826, %v1445
      %v6831 = vsub.f32 %v6797, %v6827
      %v6832 = vsub.f32 %v6799, %v6827
      %v6833 = vsub.f32 %v6801, %v6828
      %v6834 = vsub.f32 %v6803, %v6828
      %v6835 = vsub.f32 %v6807, %v6829
      %v6836 = vsub.f32 %v6809, %v6829
      %v6837 = vsub.f32 %v6811, %v6830
      %v6838 = vsub.f32 %v6813, %v6830
      %v6839 = vmul.f32 %v6831, %v6831
      %v6840 = vmul.f32 %v6832, %v6832
      %v6841 = vmul.f32 %v6833, %v6833
      %v6842 = vmul.f32 %v6834, %v6834
      %v6843 = vmul.f32 %v6835, %v6835
      %v6844 = vmul.f32 %v6836, %v6836
      %v6845 = vmul.f32 %v6837, %v6837
      %v6846 = vmul.f32 %v6838, %v6838
      %v6847 = vadd.f32 %v6839, %v6840
      %6848 = vadd.xlane.f32.xlu0 %v6847
      %v6849 = vpop.xlane.xlu0 %6848
      %v6850 = vadd.f32 %v6841, %v6842
      %6851 = vadd.xlane.f32.xlu0 %v6850
      %v6852 = vpop.xlane.xlu0 %6851
      %v6853 = vadd.f32 %v6843, %v6844
      %6854 = vadd.xlane.f32.xlu0 %v6853
      %v6855 = vpop.xlane.xlu0 %6854
      %v6856 = vadd.f32 %v6845, %v6846
      %6857 = vadd.xlane.f32.xlu0 %v6856
      %v6858 = vpop.xlane.xlu0 %6857
      %v6859 = vmul.f32 %v6849, %v1445
      %v6860 = vmul.f32 %v6852, %v1445
      %v6861 = vmul.f32 %v6855, %v1445
      %v6862 = vmul.f32 %v6858, %v1445
      %v6863 = vadd.f32 %v6859, 1e-05
      %v6864 = vadd.f32 %v6860, 1e-05
      %v6865 = vadd.f32 %v6861, 1e-05
      %v6866 = vadd.f32 %v6862, 1e-05
      %v6867 = vrsqrt.pop %v6863
      %v6868 = vrsqrt.pop %v6864
      %v6869 = vrsqrt.pop %v6865
      %v6870 = vrsqrt.pop %v6866
      %v6871 = vmul.f32 %v6831, %v6867
      %v6872 = vmul.f32 %v6832, %v6867
      %v6873 = vmul.f32 %v6833, %v6868
      %v6874 = vmul.f32 %v6834, %v6868
      %v6875 = vmul.f32 %v6835, %v6869
      %v6876 = vmul.f32 %v6836, %v6869
      %v6877 = vmul.f32 %v6837, %v6870
      %v6878 = vmul.f32 %v6838, %v6870
      %v6879 = vmul.f32 %v6871, %v2636
      %v6880 = vmul.f32 %v6872, %v2640
      %v6881 = vmul.f32 %v6873, %v2636
      %v6882 = vmul.f32 %v6874, %v2640
      %v6883 = vmul.f32 %v6875, %v2636
      %v6884 = vmul.f32 %v6876, %v2640
      %v6885 = vmul.f32 %v6877, %v2636
      %v6886 = vmul.f32 %v6878, %v2640
      %v6887 = vadd.f32 %v6879, %v2656
      %v6888 = vadd.f32 %v6880, %v2660
      %v6889 = vadd.f32 %v6881, %v2656
      %v6890 = vadd.f32 %v6882, %v2660
      %v6891 = vadd.f32 %v6883, %v2656
      %v6892 = vadd.f32 %v6884, %v2660
      %v6893 = vadd.f32 %v6885, %v2656
      %v6894 = vadd.f32 %v6886, %v2660
      %v6895 = vmax.f32 %v6887, 0.0
      %v6896 = vmax.f32 %v6888, 0.0
      %v6897 = vmax.f32 %v6889, 0.0
      %v6898 = vmax.f32 %v6890, 0.0
      %v6899 = vmax.f32 %v6891, 0.0
      %v6900 = vmax.f32 %v6892, 0.0
      %v6901 = vmax.f32 %v6893, 0.0
      %v6902 = vmax.f32 %v6894, 0.0
      %v6903 = vpack.c.bf16 %v6897, %v6895
      %v6904 = vpack.c.bf16 %v6898, %v6896
      %v6905 = vpack.c.bf16 %v6901, %v6899
      %v6906 = vpack.c.bf16 %v6902, %v6900
      %6907 = vmatprep.subr.bf16.mxu0 0
      %6908 = vmatpush1.bf16.msra.mxu0 %v2793
      %6909 = vmatprep.subr.bf16.mxu0 0
      %6910 = vmatpush1.bf16.msra.mxu0 %v2792
      %6911 = vmatprep.subr.bf16.mxu0 0
      %6912 = vmatpush1.bf16.msra.mxu0 %v2791
      %6913 = vmatprep.subr.bf16.mxu0 0
      %6914 = vmatpush1.bf16.msra.mxu0 %v2790
      %6915 = vmatprep.subr.bf16.mxu0 0
      %6916 = vmatpush1.bf16.msra.mxu0 %v2789
      %6917 = vmatprep.subr.bf16.mxu0 0
      %6918 = vmatpush1.bf16.msra.mxu0 %v2788
      %6919 = vmatprep.subr.bf16.mxu0 0
      %6920 = vmatpush1.bf16.msra.mxu0 %v2787
      %6921 = vmatprep.subr.bf16.mxu0 0
      %6922 = vmatpush1.bf16.msra.mxu0 %v2786
      %6923 = vmatprep.subr.bf16.mxu0 0
      %6924 = vmatpush2.bf16.msra.mxu0 %v2801
      %6925 = vmatprep.subr.bf16.mxu0 0
      %6926 = vmatpush2.bf16.msra.mxu0 %v2800
      %6927 = vmatprep.subr.bf16.mxu0 0
      %6928 = vmatpush2.bf16.msra.mxu0 %v2799
      %6929 = vmatprep.subr.bf16.mxu0 0
      %6930 = vmatpush2.bf16.msra.mxu0 %v2798
      %6931 = vmatprep.subr.bf16.mxu0 0
      %6932 = vmatpush2.bf16.msra.mxu0 %v2797
      %6933 = vmatprep.subr.bf16.mxu0 0
      %6934 = vmatpush2.bf16.msra.mxu0 %v2796
      %6935 = vmatprep.subr.bf16.mxu0 0
      %6936 = vmatpush2.bf16.msra.mxu0 %v2795
      %6937 = vmatprep.subr.bf16.mxu0 0
      %6938 = vmatpush2.bf16.msra.mxu0 %v2794
      %6939 = vmatprep.mubr.bf16.mxu0 %v6904
      %6940 = vmatmul.mubr.bf16.gmra.mxu0 %v6903
      %v6941 = vpop.f32.mrf.mxu0
      %v6942 = vadd.f32 %v2720, %v6941
      %v6943 = vpop.f32.mrf.mxu0
      %v6944 = vpop.f32.mrf.mxu0
      %v6945 = vadd.f32 %v2720, %v6944
      %v6946 = vpop.f32.mrf.mxu0
      %6947 = vmatprep.mubr.bf16.mxu0 %v6906
      %6948 = vmatmul.mubr.bf16.gmra.mxu0 %v6905
      %v6949 = vpop.f32.mrf.mxu0
      %v6950 = vadd.f32 %v2720, %v6949
      %v6951 = vpop.f32.mrf.mxu0
      %v6952 = vpop.f32.mrf.mxu0
      %v6953 = vadd.f32 %v2720, %v6952
      %v6954 = vpop.f32.mrf.mxu0
      %6955 = vdwg.mxu0
      %v6956 = vtanh.pop %v6942
      %v6957 = vtanh.pop %v6945
      %v6958 = vtanh.pop %v6950
      %v6959 = vtanh.pop %v6953
      %v6960 = vpack.c.bf16 %v6957, %v6956
      %v6961 = vpack.c.bf16 %v6959, %v6958
      %6962 = vmatprep.subr.bf16.mxu0 0
      %6963 = vmatpush1.bf16.msra.mxu0 0
      %6964 = vmatprep.subr.bf16.mxu0 0
      %6965 = vmatpush1.bf16.msra.mxu0 0
      %6966 = vmatprep.subr.bf16.mxu0 0
      %6967 = vmatpush1.bf16.msra.mxu0 0
      %6968 = vmatprep.subr.bf16.mxu0 0
      %6969 = vmatpush1.bf16.msra.mxu0 0
      %6970 = vmatprep.subr.bf16.mxu0 0
      %6971 = vmatpush1.bf16.msra.mxu0 0
      %6972 = vmatprep.subr.bf16.mxu0 0
      %6973 = vmatpush1.bf16.msra.mxu0 0
      %6974 = vmatprep.subr.bf16.mxu0 0
      %6975 = vmatpush1.bf16.msra.mxu0 %v6961
      %6976 = vmatprep.subr.bf16.mxu0 0
      %6977 = vmatpush1.bf16.msra.mxu0 %v6960
      %6978 = vmatprep.subr.bf16.mxu0 0
      %6979 = vmatpush2.bf16.msra.mxu0 0
      %6980 = vmatprep.subr.bf16.mxu0 0
      %6981 = vmatpush2.bf16.msra.mxu0 0
      %6982 = vmatprep.subr.bf16.mxu0 0
      %6983 = vmatpush2.bf16.msra.mxu0 0
      %6984 = vmatprep.subr.bf16.mxu0 0
      %6985 = vmatpush2.bf16.msra.mxu0 0
      %6986 = vmatprep.subr.bf16.mxu0 0
      %6987 = vmatpush2.bf16.msra.mxu0 0
      %6988 = vmatprep.subr.bf16.mxu0 0
      %6989 = vmatpush2.bf16.msra.mxu0 0
      %6990 = vmatprep.subr.bf16.mxu0 0
      %6991 = vmatpush2.bf16.msra.mxu0 0
      %6992 = vmatprep.subr.bf16.mxu0 0
      %6993 = vmatpush2.bf16.msra.mxu0 0
      %6994 = vmatprep.mubr.bf16.mxu0 0
      %6995 = vmatmul.mubr.bf16.gmra.mxu0 %v2880
      %v6996 = vpop.f32.mrf.mxu0
      %v6997 = vadd.f32 0.0, %v6996
      %v6998 = vpop.f32.mrf.mxu0
      %v6999 = vpop.f32.mrf.mxu0
      %v7000 = vadd.f32 0.0, %v6999
      %v7001 = vpop.f32.mrf.mxu0
      %7002 = vdwg.mxu0
      %v7003 = vpack.c.bf16 %v7000, %v6997
      %v7005 = vsel %vm2134, %v6559, 0
      %7007 = vmatprep.subr.bf16.mxu0 0
      %7008 = vmatpush1.bf16.msra.mxu0 0
      %7009 = vmatprep.subr.bf16.mxu0 0
      %7010 = vmatpush1.bf16.msra.mxu0 0
      %7011 = vmatprep.subr.bf16.mxu0 0
      %7012 = vmatpush1.bf16.msra.mxu0 0
      %7013 = vmatprep.subr.bf16.mxu0 0
      %7014 = vmatpush1.bf16.msra.mxu0 0
      %7015 = vmatprep.subr.bf16.mxu0 %v2971
      %7016 = vmatpush1.bf16.msra.mxu0 %v2970
      %7017 = vmatprep.subr.bf16.mxu0 %v2969
      %7018 = vmatpush1.bf16.msra.mxu0 %v2968
      %7019 = vmatprep.subr.bf16.mxu0 %v2967
      %7020 = vmatpush1.bf16.msra.mxu0 %v2966
      %7021 = vmatprep.subr.bf16.mxu0 %v2965
      %7022 = vmatpush1.bf16.msra.mxu0 %v2964
      %7023 = vmatprep.subr.bf16.mxu0 0
      %7024 = vmatpush2.bf16.msra.mxu0 0
      %7025 = vmatprep.subr.bf16.mxu0 0
      %7026 = vmatpush2.bf16.msra.mxu0 0
      %7027 = vmatprep.subr.bf16.mxu0 0
      %7028 = vmatpush2.bf16.msra.mxu0 0
      %7029 = vmatprep.subr.bf16.mxu0 0
      %7030 = vmatpush2.bf16.msra.mxu0 0
      %7031 = vmatprep.subr.bf16.mxu0 0
      %7032 = vmatpush2.bf16.msra.mxu0 0
      %7033 = vmatprep.subr.bf16.mxu0 0
      %7034 = vmatpush2.bf16.msra.mxu0 0
      %7035 = vmatprep.subr.bf16.mxu0 0
      %7036 = vmatpush2.bf16.msra.mxu0 0
      %7037 = vmatprep.subr.bf16.mxu0 0
      %7038 = vmatpush2.bf16.msra.mxu0 0
      %7039 = vmatprep.mubr.bf16.mxu0 0
      %7040 = vmatmul.mubr.bf16.gmra.mxu0 %v7005
      %v7041 = vpop.f32.mrf.mxu0
      %v7042 = vadd.f32 0.0, %v7041
      %v7043 = vpop.f32.mrf.mxu0
      %v7044 = vadd.f32 0.0, %v7043
      %v7045 = vpop.f32.mrf.mxu0
      %v7046 = vadd.f32 0.0, %v7045
      %v7047 = vpop.f32.mrf.mxu0
      %v7048 = vadd.f32 0.0, %v7047
      %7049 = vdwg.mxu0
      %v7051 = vsel %vm2134, %v7003, 0
      %7053 = vmatprep.subr.bf16.mxu0 0
      %7054 = vmatpush1.bf16.msra.mxu0 0
      %7055 = vmatprep.subr.bf16.mxu0 0
      %7056 = vmatpush1.bf16.msra.mxu0 0
      %7057 = vmatprep.subr.bf16.mxu0 0
      %7058 = vmatpush1.bf16.msra.mxu0 0
      %7059 = vmatprep.subr.bf16.mxu0 0
      %7060 = vmatpush1.bf16.msra.mxu0 0
      %7061 = vmatprep.subr.bf16.mxu0 %v3057
      %7062 = vmatpush1.bf16.msra.mxu0 %v3056
      %7063 = vmatprep.subr.bf16.mxu0 %v3055
      %7064 = vmatpush1.bf16.msra.mxu0 %v3054
      %7065 = vmatprep.subr.bf16.mxu0 %v3053
      %7066 = vmatpush1.bf16.msra.mxu0 %v3052
      %7067 = vmatprep.subr.bf16.mxu0 %v3051
      %7068 = vmatpush1.bf16.msra.mxu0 %v3050
      %7069 = vmatprep.subr.bf16.mxu0 0
      %7070 = vmatpush2.bf16.msra.mxu0 0
      %7071 = vmatprep.subr.bf16.mxu0 0
      %7072 = vmatpush2.bf16.msra.mxu0 0
      %7073 = vmatprep.subr.bf16.mxu0 0
      %7074 = vmatpush2.bf16.msra.mxu0 0
      %7075 = vmatprep.subr.bf16.mxu0 0
      %7076 = vmatpush2.bf16.msra.mxu0 0
      %7077 = vmatprep.subr.bf16.mxu0 0
      %7078 = vmatpush2.bf16.msra.mxu0 0
      %7079 = vmatprep.subr.bf16.mxu0 0
      %7080 = vmatpush2.bf16.msra.mxu0 0
      %7081 = vmatprep.subr.bf16.mxu0 0
      %7082 = vmatpush2.bf16.msra.mxu0 0
      %7083 = vmatprep.subr.bf16.mxu0 0
      %7084 = vmatpush2.bf16.msra.mxu0 0
      %7085 = vmatprep.mubr.bf16.mxu0 0
      %7086 = vmatmul.mubr.bf16.gmra.mxu0 %v7051
      %v7087 = vpop.f32.mrf.mxu0
      %v7088 = vadd.f32 %v7042, %v7087
      %v7089 = vpop.f32.mrf.mxu0
      %v7090 = vadd.f32 %v7044, %v7089
      %v7091 = vpop.f32.mrf.mxu0
      %v7092 = vadd.f32 %v7046, %v7091
      %v7093 = vpop.f32.mrf.mxu0
      %v7094 = vadd.f32 %v7048, %v7093
      %7095 = vdwg.mxu0
      %v7096 = vadd.f32 %v7088, %v3117
      %v7097 = vadd.f32 %v7090, %v3121
      %v7098 = vadd.f32 %v7092, %v3117
      %v7099 = vadd.f32 %v7094, %v3121
      %v7100 = vadd.f32 %v7096, %v7097
      %7101 = vadd.xlane.f32.xlu0 %v7100
      %v7102 = vpop.xlane.xlu0 %7101
      %v7103 = vadd.f32 %v7098, %v7099
      %7104 = vadd.xlane.f32.xlu0 %v7103
      %v7105 = vpop.xlane.xlu0 %7104
      %v7106 = vmul.f32 %v7102, %v1445
      %v7107 = vmul.f32 %v7105, %v1445
      %v7108 = vsub.f32 %v7096, %v7106
      %v7109 = vsub.f32 %v7097, %v7106
      %v7110 = vsub.f32 %v7098, %v7107
      %v7111 = vsub.f32 %v7099, %v7107
      %v7112 = vmul.f32 %v7108, %v7108
      %v7113 = vmul.f32 %v7109, %v7109
      %v7114 = vmul.f32 %v7110, %v7110
      %v7115 = vmul.f32 %v7111, %v7111
      %v7116 = vadd.f32 %v7112, %v7113
      %7117 = vadd.xlane.f32.xlu0 %v7116
      %v7118 = vpop.xlane.xlu0 %7117
      %v7119 = vadd.f32 %v7114, %v7115
      %7120 = vadd.xlane.f32.xlu0 %v7119
      %v7121 = vpop.xlane.xlu0 %7120
      %v7122 = vmul.f32 %v7118, %v1445
      %v7123 = vmul.f32 %v7121, %v1445
      %v7124 = vadd.f32 %v7122, 1e-05
      %v7125 = vadd.f32 %v7123, 1e-05
      %v7126 = vrsqrt.pop %v7124
      %v7127 = vrsqrt.pop %v7125
      %v7128 = vmul.f32 %v7108, %v7126
      %v7129 = vmul.f32 %v7109, %v7126
      %v7130 = vmul.f32 %v7110, %v7127
      %v7131 = vmul.f32 %v7111, %v7127
      %v7132 = vmul.f32 %v7128, %v3165
      %v7133 = vmul.f32 %v7129, %v3169
      %v7134 = vmul.f32 %v7130, %v3165
      %v7135 = vmul.f32 %v7131, %v3169
      %v7136 = vadd.f32 %v7132, %v3181
      %v7137 = vadd.f32 %v7133, %v3185
      %v7138 = vadd.f32 %v7134, %v3181
      %v7139 = vadd.f32 %v7135, %v3185
      %v7140 = vmax.f32 %v7136, 0.0
      %v7141 = vmax.f32 %v7137, 0.0
      %v7142 = vmax.f32 %v7138, 0.0
      %v7143 = vmax.f32 %v7139, 0.0
      %v7144 = vpack.c.bf16 %v7142, %v7140
      %v7145 = vpack.c.bf16 %v7143, %v7141
      %7146 = vmatprep.subr.bf16.mxu0 %v3353
      %7147 = vmatpush1.bf16.msra.mxu0 %v3352
      %7148 = vmatprep.subr.bf16.mxu0 %v3351
      %7149 = vmatpush1.bf16.msra.mxu0 %v3350
      %7150 = vmatprep.subr.bf16.mxu0 %v3349
      %7151 = vmatpush1.bf16.msra.mxu0 %v3348
      %7152 = vmatprep.subr.bf16.mxu0 %v3347
      %7153 = vmatpush1.bf16.msra.mxu0 %v3346
      %7154 = vmatprep.subr.bf16.mxu0 %v3345
      %7155 = vmatpush1.bf16.msra.mxu0 %v3344
      %7156 = vmatprep.subr.bf16.mxu0 %v3343
      %7157 = vmatpush1.bf16.msra.mxu0 %v3342
      %7158 = vmatprep.subr.bf16.mxu0 %v3341
      %7159 = vmatpush1.bf16.msra.mxu0 %v3340
      %7160 = vmatprep.subr.bf16.mxu0 %v3339
      %7161 = vmatpush1.bf16.msra.mxu0 %v3338
      %7162 = vmatprep.subr.bf16.mxu0 %v3369
      %7163 = vmatpush2.bf16.msra.mxu0 %v3368
      %7164 = vmatprep.subr.bf16.mxu0 %v3367
      %7165 = vmatpush2.bf16.msra.mxu0 %v3366
      %7166 = vmatprep.subr.bf16.mxu0 %v3365
      %7167 = vmatpush2.bf16.msra.mxu0 %v3364
      %7168 = vmatprep.subr.bf16.mxu0 %v3363
      %7169 = vmatpush2.bf16.msra.mxu0 %v3362
      %7170 = vmatprep.subr.bf16.mxu0 %v3361
      %7171 = vmatpush2.bf16.msra.mxu0 %v3360
      %7172 = vmatprep.subr.bf16.mxu0 %v3359
      %7173 = vmatpush2.bf16.msra.mxu0 %v3358
      %7174 = vmatprep.subr.bf16.mxu0 %v3357
      %7175 = vmatpush2.bf16.msra.mxu0 %v3356
      %7176 = vmatprep.subr.bf16.mxu0 %v3355
      %7177 = vmatpush2.bf16.msra.mxu0 %v3354
      %7178 = vmatprep.mubr.bf16.mxu0 %v7145
      %7179 = vmatmul.mubr.bf16.gmra.mxu0 %v7144
      %v7180 = vpop.f32.mrf.mxu0
      %v7181 = vadd.f32 %v3235, %v7180
      %v7182 = vpop.f32.mrf.mxu0
      %v7183 = vadd.f32 %v3239, %v7182
      %v7184 = vpop.f32.mrf.mxu0
      %v7185 = vadd.f32 %v3235, %v7184
      %v7186 = vpop.f32.mrf.mxu0
      %v7187 = vadd.f32 %v3239, %v7186
      %7188 = vdwg.mxu0
      %v7189 = vadd.f32 %v7181, %v7183
      %7190 = vadd.xlane.f32.xlu0 %v7189
      %v7191 = vpop.xlane.xlu0 %7190
      %v7192 = vadd.f32 %v7185, %v7187
      %7193 = vadd.xlane.f32.xlu0 %v7192
      %v7194 = vpop.xlane.xlu0 %7193
      %v7195 = vmul.f32 %v7191, %v1445
      %v7196 = vmul.f32 %v7194, %v1445
      %v7197 = vsub.f32 %v7181, %v7195
      %v7198 = vsub.f32 %v7183, %v7195
      %v7199 = vsub.f32 %v7185, %v7196
      %v7200 = vsub.f32 %v7187, %v7196
      %v7201 = vmul.f32 %v7197, %v7197
      %v7202 = vmul.f32 %v7198, %v7198
      %v7203 = vmul.f32 %v7199, %v7199
      %v7204 = vmul.f32 %v7200, %v7200
      %v7205 = vadd.f32 %v7201, %v7202
      %7206 = vadd.xlane.f32.xlu0 %v7205
      %v7207 = vpop.xlane.xlu0 %7206
      %v7208 = vadd.f32 %v7203, %v7204
      %7209 = vadd.xlane.f32.xlu0 %v7208
      %v7210 = vpop.xlane.xlu0 %7209
      %v7211 = vmul.f32 %v7207, %v1445
      %v7212 = vmul.f32 %v7210, %v1445
      %v7213 = vadd.f32 %v7211, 1e-05
      %v7214 = vadd.f32 %v7212, 1e-05
      %v7215 = vrsqrt.pop %v7213
      %v7216 = vrsqrt.pop %v7214
      %v7217 = vmul.f32 %v7197, %v7215
      %v7218 = vmul.f32 %v7198, %v7215
      %v7219 = vmul.f32 %v7199, %v7216
      %v7220 = vmul.f32 %v7200, %v7216
      %v7221 = vmul.f32 %v7217, %v3482
      %v7222 = vmul.f32 %v7218, %v3486
      %v7223 = vmul.f32 %v7219, %v3482
      %v7224 = vmul.f32 %v7220, %v3486
      %v7225 = vadd.f32 %v7221, %v3498
      %v7226 = vadd.f32 %v7222, %v3502
      %v7227 = vadd.f32 %v7223, %v3498
      %v7228 = vadd.f32 %v7224, %v3502
      %v7229 = vmax.f32 %v7225, 0.0
      %v7230 = vmax.f32 %v7226, 0.0
      %v7231 = vmax.f32 %v7227, 0.0
      %v7232 = vmax.f32 %v7228, 0.0
      %v7233 = vpack.c.bf16 %v7231, %v7229
      %v7234 = vpack.c.bf16 %v7232, %v7230
      %7235 = vmatprep.subr.bf16.mxu0 0
      %7236 = vmatpush1.bf16.msra.mxu0 %v3625
      %7237 = vmatprep.subr.bf16.mxu0 0
      %7238 = vmatpush1.bf16.msra.mxu0 %v3624
      %7239 = vmatprep.subr.bf16.mxu0 0
      %7240 = vmatpush1.bf16.msra.mxu0 %v3623
      %7241 = vmatprep.subr.bf16.mxu0 0
      %7242 = vmatpush1.bf16.msra.mxu0 %v3622
      %7243 = vmatprep.subr.bf16.mxu0 0
      %7244 = vmatpush1.bf16.msra.mxu0 %v3621
      %7245 = vmatprep.subr.bf16.mxu0 0
      %7246 = vmatpush1.bf16.msra.mxu0 %v3620
      %7247 = vmatprep.subr.bf16.mxu0 0
      %7248 = vmatpush1.bf16.msra.mxu0 %v3619
      %7249 = vmatprep.subr.bf16.mxu0 0
      %7250 = vmatpush1.bf16.msra.mxu0 %v3618
      %7251 = vmatprep.subr.bf16.mxu0 0
      %7252 = vmatpush2.bf16.msra.mxu0 %v3633
      %7253 = vmatprep.subr.bf16.mxu0 0
      %7254 = vmatpush2.bf16.msra.mxu0 %v3632
      %7255 = vmatprep.subr.bf16.mxu0 0
      %7256 = vmatpush2.bf16.msra.mxu0 %v3631
      %7257 = vmatprep.subr.bf16.mxu0 0
      %7258 = vmatpush2.bf16.msra.mxu0 %v3630
      %7259 = vmatprep.subr.bf16.mxu0 0
      %7260 = vmatpush2.bf16.msra.mxu0 %v3629
      %7261 = vmatprep.subr.bf16.mxu0 0
      %7262 = vmatpush2.bf16.msra.mxu0 %v3628
      %7263 = vmatprep.subr.bf16.mxu0 0
      %7264 = vmatpush2.bf16.msra.mxu0 %v3627
      %7265 = vmatprep.subr.bf16.mxu0 0
      %7266 = vmatpush2.bf16.msra.mxu0 %v3626
      %7267 = vmatprep.mubr.bf16.mxu0 %v7234
      %7268 = vmatmul.mubr.bf16.gmra.mxu0 %v7233
      %v7269 = vpop.f32.mrf.mxu0
      %v7270 = vadd.f32 %v3552, %v7269
      %v7271 = vpop.f32.mrf.mxu0
      %v7272 = vpop.f32.mrf.mxu0
      %v7273 = vadd.f32 %v3552, %v7272
      %v7274 = vpop.f32.mrf.mxu0
      %7275 = vdwg.mxu0
      %v7276 = vpack.c.bf16 %v7273, %v7270
      %v7277 = vld [vmem:[%s69] sm:$0xff]
      %v7278 = vld [vmem:[%s69 + $0x8] sm:$0xff]
      %v7279 = vld [vmem:[%s69 + $0x10] sm:$0xff]
      %v7280 = vld [vmem:[%s69 + $0x18] sm:$0xff]
      %v7281 = vld [vmem:[%s69 + $0x20] sm:$0xff]
      %v7282 = vld [vmem:[%s69 + $0x28] sm:$0xff]
      %v7283 = vld [vmem:[%s69 + $0x30] sm:$0xff]
      %v7284 = vld [vmem:[%s69 + $0x38] sm:$0xff]
      %v7285 = vld [vmem:[%s71] sm:$0x3]
      %v7287 = vlaneseq
      %v7288 = vshrl.u32 %v7287, 7
      %v7289 = vsub.s32 0, %v7288
      %v7290 = vrot.slane %v7285, %v7289
      %v7291 = vlaneseq
      %v7292 = vshrl.u32 %v7291, 7
      %v7293 = vsub.s32 1, %v7292
      %v7294 = vrot.slane %v7285, %v7293
      %v7305 = vunpack.c.l.b16 %v7277
      %v7306 = vunpack.c.h.b16 %v7277
      %v7307 = vunpack.c.l.b16 %v7278
      %v7308 = vunpack.c.h.b16 %v7278
      %v7309 = vunpack.c.l.b16 %v7279
      %v7310 = vunpack.c.h.b16 %v7279
      %v7311 = vunpack.c.l.b16 %v7280
      %v7312 = vunpack.c.h.b16 %v7280
      %v7313 = vunpack.c.l.b16 %v7281
      %v7314 = vunpack.c.h.b16 %v7281
      %v7315 = vunpack.c.l.b16 %v7282
      %v7316 = vunpack.c.h.b16 %v7282
      %v7317 = vunpack.c.l.b16 %v7283
      %v7318 = vunpack.c.h.b16 %v7283
      %v7319 = vunpack.c.l.b16 %v7284
      %v7320 = vunpack.c.h.b16 %v7284
      %v7321 = vpack.c.b16 %v7307, %v7305
      %v7322 = vpack.c.b16 %v7308, %v7306
      %v7323 = vpack.c.b16 %v7311, %v7309
      %v7324 = vpack.c.b16 %v7312, %v7310
      %v7325 = vpack.c.b16 %v7315, %v7313
      %v7326 = vpack.c.b16 %v7316, %v7314
      %v7327 = vpack.c.b16 %v7319, %v7317
      %v7328 = vpack.c.b16 %v7320, %v7318
      %v7338 = vsel %vm2134, %v7276, 0
      %7340 = vmatprep.subr.bf16.mxu0 0
      %7341 = vmatpush1.bf16.msra.mxu0 0
      %7342 = vmatprep.subr.bf16.mxu0 0
      %7343 = vmatpush1.bf16.msra.mxu0 0
      %7344 = vmatprep.subr.bf16.mxu0 0
      %7345 = vmatpush1.bf16.msra.mxu0 0
      %7346 = vmatprep.subr.bf16.mxu0 0
      %7347 = vmatpush1.bf16.msra.mxu0 0
      %7348 = vmatprep.subr.bf16.mxu0 %v7328
      %7349 = vmatpush1.bf16.msra.mxu0 %v7327
      %7350 = vmatprep.subr.bf16.mxu0 %v7326
      %7351 = vmatpush1.bf16.msra.mxu0 %v7325
      %7352 = vmatprep.subr.bf16.mxu0 %v7324
      %7353 = vmatpush1.bf16.msra.mxu0 %v7323
      %7354 = vmatprep.subr.bf16.mxu0 %v7322
      %7355 = vmatpush1.bf16.msra.mxu0 %v7321
      %7356 = vmatprep.subr.bf16.mxu0 0
      %7357 = vmatpush2.bf16.msra.mxu0 0
      %7358 = vmatprep.subr.bf16.mxu0 0
      %7359 = vmatpush2.bf16.msra.mxu0 0
      %7360 = vmatprep.subr.bf16.mxu0 0
      %7361 = vmatpush2.bf16.msra.mxu0 0
      %7362 = vmatprep.subr.bf16.mxu0 0
      %7363 = vmatpush2.bf16.msra.mxu0 0
      %7364 = vmatprep.subr.bf16.mxu0 0
      %7365 = vmatpush2.bf16.msra.mxu0 0
      %7366 = vmatprep.subr.bf16.mxu0 0
      %7367 = vmatpush2.bf16.msra.mxu0 0
      %7368 = vmatprep.subr.bf16.mxu0 0
      %7369 = vmatpush2.bf16.msra.mxu0 0
      %7370 = vmatprep.subr.bf16.mxu0 0
      %7371 = vmatpush2.bf16.msra.mxu0 0
      %7372 = vmatprep.mubr.bf16.mxu0 0
      %7373 = vmatmul.mubr.bf16.gmra.mxu0 %v7338
      %v7374 = vpop.f32.mrf.mxu0
      %v7375 = vadd.f32 %v7290, %v7374
      %v7376 = vpop.f32.mrf.mxu0
      %v7377 = vadd.f32 %v7294, %v7376
      %v7378 = vpop.f32.mrf.mxu0
      %v7379 = vadd.f32 %v7290, %v7378
      %v7380 = vpop.f32.mrf.mxu0
      %v7381 = vadd.f32 %v7294, %v7380
      %7382 = vdwg.mxu0
      %v7383 = vadd.f32 %v7375, %v7377
      %7384 = vadd.xlane.f32.xlu0 %v7383
      %v7385 = vpop.xlane.xlu0 %7384
      %v7386 = vadd.f32 %v7379, %v7381
      %7387 = vadd.xlane.f32.xlu0 %v7386
      %v7388 = vpop.xlane.xlu0 %7387
      %v7389 = vmul.f32 %v7385, %v1445
      %v7390 = vmul.f32 %v7388, %v1445
      %v7391 = vsub.f32 %v7375, %v7389
      %v7392 = vsub.f32 %v7377, %v7389
      %v7393 = vsub.f32 %v7379, %v7390
      %v7394 = vsub.f32 %v7381, %v7390
      %v7395 = vmul.f32 %v7391, %v7391
      %v7396 = vmul.f32 %v7392, %v7392
      %v7397 = vmul.f32 %v7393, %v7393
      %v7398 = vmul.f32 %v7394, %v7394
      %v7399 = vadd.f32 %v7395, %v7396
      %7400 = vadd.xlane.f32.xlu0 %v7399
      %v7401 = vpop.xlane.xlu0 %7400
      %v7402 = vadd.f32 %v7397, %v7398
      %7403 = vadd.xlane.f32.xlu0 %v7402
      %v7404 = vpop.xlane.xlu0 %7403
      %v7405 = vmul.f32 %v7401, %v1445
      %v7406 = vmul.f32 %v7404, %v1445
      %v7407 = vadd.f32 %v7405, 1e-05
      %v7408 = vadd.f32 %v7406, 1e-05
      %v7409 = vrsqrt.pop %v7407
      %v7410 = vrsqrt.pop %v7408
      %v7411 = vmul.f32 %v7391, %v7409
      %v7412 = vmul.f32 %v7392, %v7409
      %v7413 = vmul.f32 %v7393, %v7410
      %v7414 = vmul.f32 %v7394, %v7410
      %v7415 = vld [vmem:[%s73] sm:$0x3]
      %v7417 = vlaneseq
      %v7418 = vshrl.u32 %v7417, 7
      %v7419 = vsub.s32 0, %v7418
      %v7420 = vrot.slane %v7415, %v7419
      %v7421 = vlaneseq
      %v7422 = vshrl.u32 %v7421, 7
      %v7423 = vsub.s32 1, %v7422
      %v7424 = vrot.slane %v7415, %v7423
      %v7427 = vmul.f32 %v7411, %v7420
      %v7428 = vmul.f32 %v7412, %v7424
      %v7429 = vmul.f32 %v7413, %v7420
      %v7430 = vmul.f32 %v7414, %v7424
      %v7431 = vld [vmem:[%s75] sm:$0x3]
      %v7433 = vlaneseq
      %v7434 = vshrl.u32 %v7433, 7
      %v7435 = vsub.s32 0, %v7434
      %v7436 = vrot.slane %v7431, %v7435
      %v7437 = vlaneseq
      %v7438 = vshrl.u32 %v7437, 7
      %v7439 = vsub.s32 1, %v7438
      %v7440 = vrot.slane %v7431, %v7439
      %v7443 = vadd.f32 %v7427, %v7436
      %v7444 = vadd.f32 %v7428, %v7440
      %v7445 = vadd.f32 %v7429, %v7436
      %v7446 = vadd.f32 %v7430, %v7440
      %v7447 = vmax.f32 %v7443, 0.0
      %v7448 = vmax.f32 %v7444, 0.0
      %v7449 = vmax.f32 %v7445, 0.0
      %v7450 = vmax.f32 %v7446, 0.0
      %v7451 = vpack.c.bf16 %v7449, %v7447
      %v7452 = vpack.c.bf16 %v7450, %v7448
      %v7453 = vld [vmem:[%s77] sm:$0xff]
      %v7454 = vld [vmem:[%s77 + $0x8] sm:$0xff]
      %v7455 = vld [vmem:[%s77 + $0x10] sm:$0xff]
      %v7456 = vld [vmem:[%s77 + $0x18] sm:$0xff]
      %v7457 = vld [vmem:[%s77 + $0x20] sm:$0xff]
      %v7458 = vld [vmem:[%s77 + $0x28] sm:$0xff]
      %v7459 = vld [vmem:[%s77 + $0x30] sm:$0xff]
      %v7460 = vld [vmem:[%s77 + $0x38] sm:$0xff]
      %v7461 = vld [vmem:[%s77 + $0x40] sm:$0xff]
      %v7462 = vld [vmem:[%s77 + $0x48] sm:$0xff]
      %v7463 = vld [vmem:[%s77 + $0x50] sm:$0xff]
      %v7464 = vld [vmem:[%s77 + $0x58] sm:$0xff]
      %v7465 = vld [vmem:[%s77 + $0x60] sm:$0xff]
      %v7466 = vld [vmem:[%s77 + $0x68] sm:$0xff]
      %v7467 = vld [vmem:[%s77 + $0x70] sm:$0xff]
      %v7468 = vld [vmem:[%s77 + $0x78] sm:$0xff]
      %v7469 = vld [vmem:[%s77 + $0x80] sm:$0xff]
      %v7470 = vld [vmem:[%s77 + $0x88] sm:$0xff]
      %v7471 = vld [vmem:[%s77 + $0x90] sm:$0xff]
      %v7472 = vld [vmem:[%s77 + $0x98] sm:$0xff]
      %v7473 = vld [vmem:[%s77 + $0xa0] sm:$0xff]
      %v7474 = vld [vmem:[%s77 + $0xa8] sm:$0xff]
      %v7475 = vld [vmem:[%s77 + $0xb0] sm:$0xff]
      %v7476 = vld [vmem:[%s77 + $0xb8] sm:$0xff]
      %v7477 = vld [vmem:[%s77 + $0xc0] sm:$0xff]
      %v7478 = vld [vmem:[%s77 + $0xc8] sm:$0xff]
      %v7479 = vld [vmem:[%s77 + $0xd0] sm:$0xff]
      %v7480 = vld [vmem:[%s77 + $0xd8] sm:$0xff]
      %v7481 = vld [vmem:[%s77 + $0xe0] sm:$0xff]
      %v7482 = vld [vmem:[%s77 + $0xe8] sm:$0xff]
      %v7483 = vld [vmem:[%s77 + $0xf0] sm:$0xff]
      %v7484 = vld [vmem:[%s77 + $0xf8] sm:$0xff]
      %v7485 = vld [vmem:[%s79] sm:$0x3]
      %v7487 = vlaneseq
      %v7488 = vshrl.u32 %v7487, 7
      %v7489 = vsub.s32 0, %v7488
      %v7490 = vrot.slane %v7485, %v7489
      %v7491 = vlaneseq
      %v7492 = vshrl.u32 %v7491, 7
      %v7493 = vsub.s32 1, %v7492
      %v7494 = vrot.slane %v7485, %v7493
      %v7529 = vunpack.c.l.b16 %v7453
      %v7530 = vunpack.c.h.b16 %v7453
      %v7531 = vunpack.c.l.b16 %v7454
      %v7532 = vunpack.c.h.b16 %v7454
      %v7533 = vunpack.c.l.b16 %v7455
      %v7534 = vunpack.c.h.b16 %v7455
      %v7535 = vunpack.c.l.b16 %v7456
      %v7536 = vunpack.c.h.b16 %v7456
      %v7537 = vunpack.c.l.b16 %v7457
      %v7538 = vunpack.c.h.b16 %v7457
      %v7539 = vunpack.c.l.b16 %v7458
      %v7540 = vunpack.c.h.b16 %v7458
      %v7541 = vunpack.c.l.b16 %v7459
      %v7542 = vunpack.c.h.b16 %v7459
      %v7543 = vunpack.c.l.b16 %v7460
      %v7544 = vunpack.c.h.b16 %v7460
      %v7545 = vunpack.c.l.b16 %v7461
      %v7546 = vunpack.c.h.b16 %v7461
      %v7547 = vunpack.c.l.b16 %v7462
      %v7548 = vunpack.c.h.b16 %v7462
      %v7549 = vunpack.c.l.b16 %v7463
      %v7550 = vunpack.c.h.b16 %v7463
      %v7551 = vunpack.c.l.b16 %v7464
      %v7552 = vunpack.c.h.b16 %v7464
      %v7553 = vunpack.c.l.b16 %v7465
      %v7554 = vunpack.c.h.b16 %v7465
      %v7555 = vunpack.c.l.b16 %v7466
      %v7556 = vunpack.c.h.b16 %v7466
      %v7557 = vunpack.c.l.b16 %v7467
      %v7558 = vunpack.c.h.b16 %v7467
      %v7559 = vunpack.c.l.b16 %v7468
      %v7560 = vunpack.c.h.b16 %v7468
      %v7561 = vunpack.c.l.b16 %v7469
      %v7562 = vunpack.c.h.b16 %v7469
      %v7563 = vunpack.c.l.b16 %v7470
      %v7564 = vunpack.c.h.b16 %v7470
      %v7565 = vunpack.c.l.b16 %v7471
      %v7566 = vunpack.c.h.b16 %v7471
      %v7567 = vunpack.c.l.b16 %v7472
      %v7568 = vunpack.c.h.b16 %v7472
      %v7569 = vunpack.c.l.b16 %v7473
      %v7570 = vunpack.c.h.b16 %v7473
      %v7571 = vunpack.c.l.b16 %v7474
      %v7572 = vunpack.c.h.b16 %v7474
      %v7573 = vunpack.c.l.b16 %v7475
      %v7574 = vunpack.c.h.b16 %v7475
      %v7575 = vunpack.c.l.b16 %v7476
      %v7576 = vunpack.c.h.b16 %v7476
      %v7577 = vunpack.c.l.b16 %v7477
      %v7578 = vunpack.c.h.b16 %v7477
      %v7579 = vunpack.c.l.b16 %v7478
      %v7580 = vunpack.c.h.b16 %v7478
      %v7581 = vunpack.c.l.b16 %v7479
      %v7582 = vunpack.c.h.b16 %v7479
      %v7583 = vunpack.c.l.b16 %v7480
      %v7584 = vunpack.c.h.b16 %v7480
      %v7585 = vunpack.c.l.b16 %v7481
      %v7586 = vunpack.c.h.b16 %v7481
      %v7587 = vunpack.c.l.b16 %v7482
      %v7588 = vunpack.c.h.b16 %v7482
      %v7589 = vunpack.c.l.b16 %v7483
      %v7590 = vunpack.c.h.b16 %v7483
      %v7591 = vunpack.c.l.b16 %v7484
      %v7592 = vunpack.c.h.b16 %v7484
      %v7593 = vpack.c.b16 %v7531, %v7529
      %v7594 = vpack.c.b16 %v7532, %v7530
      %v7595 = vpack.c.b16 %v7535, %v7533
      %v7596 = vpack.c.b16 %v7536, %v7534
      %v7597 = vpack.c.b16 %v7539, %v7537
      %v7598 = vpack.c.b16 %v7540, %v7538
      %v7599 = vpack.c.b16 %v7543, %v7541
      %v7600 = vpack.c.b16 %v7544, %v7542
      %v7601 = vpack.c.b16 %v7547, %v7545
      %v7602 = vpack.c.b16 %v7548, %v7546
      %v7603 = vpack.c.b16 %v7551, %v7549
      %v7604 = vpack.c.b16 %v7552, %v7550
      %v7605 = vpack.c.b16 %v7555, %v7553
      %v7606 = vpack.c.b16 %v7556, %v7554
      %v7607 = vpack.c.b16 %v7559, %v7557
      %v7608 = vpack.c.b16 %v7560, %v7558
      %v7609 = vpack.c.b16 %v7563, %v7561
      %v7610 = vpack.c.b16 %v7564, %v7562
      %v7611 = vpack.c.b16 %v7567, %v7565
      %v7612 = vpack.c.b16 %v7568, %v7566
      %v7613 = vpack.c.b16 %v7571, %v7569
      %v7614 = vpack.c.b16 %v7572, %v7570
      %v7615 = vpack.c.b16 %v7575, %v7573
      %v7616 = vpack.c.b16 %v7576, %v7574
      %v7617 = vpack.c.b16 %v7579, %v7577
      %v7618 = vpack.c.b16 %v7580, %v7578
      %v7619 = vpack.c.b16 %v7583, %v7581
      %v7620 = vpack.c.b16 %v7584, %v7582
      %v7621 = vpack.c.b16 %v7587, %v7585
      %v7622 = vpack.c.b16 %v7588, %v7586
      %v7623 = vpack.c.b16 %v7591, %v7589
      %v7624 = vpack.c.b16 %v7592, %v7590
      %7657 = vmatprep.subr.bf16.mxu0 %v7608
      %7658 = vmatpush1.bf16.msra.mxu0 %v7607
      %7659 = vmatprep.subr.bf16.mxu0 %v7606
      %7660 = vmatpush1.bf16.msra.mxu0 %v7605
      %7661 = vmatprep.subr.bf16.mxu0 %v7604
      %7662 = vmatpush1.bf16.msra.mxu0 %v7603
      %7663 = vmatprep.subr.bf16.mxu0 %v7602
      %7664 = vmatpush1.bf16.msra.mxu0 %v7601
      %7665 = vmatprep.subr.bf16.mxu0 %v7600
      %7666 = vmatpush1.bf16.msra.mxu0 %v7599
      %7667 = vmatprep.subr.bf16.mxu0 %v7598
      %7668 = vmatpush1.bf16.msra.mxu0 %v7597
      %7669 = vmatprep.subr.bf16.mxu0 %v7596
      %7670 = vmatpush1.bf16.msra.mxu0 %v7595
      %7671 = vmatprep.subr.bf16.mxu0 %v7594
      %7672 = vmatpush1.bf16.msra.mxu0 %v7593
      %7673 = vmatprep.subr.bf16.mxu0 %v7624
      %7674 = vmatpush2.bf16.msra.mxu0 %v7623
      %7675 = vmatprep.subr.bf16.mxu0 %v7622
      %7676 = vmatpush2.bf16.msra.mxu0 %v7621
      %7677 = vmatprep.subr.bf16.mxu0 %v7620
      %7678 = vmatpush2.bf16.msra.mxu0 %v7619
      %7679 = vmatprep.subr.bf16.mxu0 %v7618
      %7680 = vmatpush2.bf16.msra.mxu0 %v7617
      %7681 = vmatprep.subr.bf16.mxu0 %v7616
      %7682 = vmatpush2.bf16.msra.mxu0 %v7615
      %7683 = vmatprep.subr.bf16.mxu0 %v7614
      %7684 = vmatpush2.bf16.msra.mxu0 %v7613
      %7685 = vmatprep.subr.bf16.mxu0 %v7612
      %7686 = vmatpush2.bf16.msra.mxu0 %v7611
      %7687 = vmatprep.subr.bf16.mxu0 %v7610
      %7688 = vmatpush2.bf16.msra.mxu0 %v7609
      %7689 = vmatprep.mubr.bf16.mxu0 %v7452
      %7690 = vmatmul.mubr.bf16.gmra.mxu0 %v7451
      %v7691 = vpop.f32.mrf.mxu0
      %v7692 = vadd.f32 %v7490, %v7691
      %v7693 = vpop.f32.mrf.mxu0
      %v7694 = vadd.f32 %v7494, %v7693
      %v7695 = vpop.f32.mrf.mxu0
      %v7696 = vadd.f32 %v7490, %v7695
      %v7697 = vpop.f32.mrf.mxu0
      %v7698 = vadd.f32 %v7494, %v7697
      %7699 = vdwg.mxu0
      %v7700 = vadd.f32 %v7692, %v7694
      %7701 = vadd.xlane.f32.xlu0 %v7700
      %v7702 = vpop.xlane.xlu0 %7701
      %v7703 = vadd.f32 %v7696, %v7698
      %7704 = vadd.xlane.f32.xlu0 %v7703
      %v7705 = vpop.xlane.xlu0 %7704
      %v7706 = vmul.f32 %v7702, %v1445
      %v7707 = vmul.f32 %v7705, %v1445
      %v7708 = vsub.f32 %v7692, %v7706
      %v7709 = vsub.f32 %v7694, %v7706
      %v7710 = vsub.f32 %v7696, %v7707
      %v7711 = vsub.f32 %v7698, %v7707
      %v7712 = vmul.f32 %v7708, %v7708
      %v7713 = vmul.f32 %v7709, %v7709
      %v7714 = vmul.f32 %v7710, %v7710
      %v7715 = vmul.f32 %v7711, %v7711
      %v7716 = vadd.f32 %v7712, %v7713
      %7717 = vadd.xlane.f32.xlu0 %v7716
      %v7718 = vpop.xlane.xlu0 %7717
      %v7719 = vadd.f32 %v7714, %v7715
      %7720 = vadd.xlane.f32.xlu0 %v7719
      %v7721 = vpop.xlane.xlu0 %7720
      %v7722 = vmul.f32 %v7718, %v1445
      %v7723 = vmul.f32 %v7721, %v1445
      %v7724 = vadd.f32 %v7722, 1e-05
      %v7725 = vadd.f32 %v7723, 1e-05
      %v7726 = vrsqrt.pop %v7724
      %v7727 = vrsqrt.pop %v7725
      %v7728 = vmul.f32 %v7708, %v7726
      %v7729 = vmul.f32 %v7709, %v7726
      %v7730 = vmul.f32 %v7710, %v7727
      %v7731 = vmul.f32 %v7711, %v7727
      %v7732 = vld [vmem:[%s81] sm:$0x3]
      %v7734 = vlaneseq
      %v7735 = vshrl.u32 %v7734, 7
      %v7736 = vsub.s32 0, %v7735
      %v7737 = vrot.slane %v7732, %v7736
      %v7738 = vlaneseq
      %v7739 = vshrl.u32 %v7738, 7
      %v7740 = vsub.s32 1, %v7739
      %v7741 = vrot.slane %v7732, %v7740
      %v7744 = vmul.f32 %v7728, %v7737
      %v7745 = vmul.f32 %v7729, %v7741
      %v7746 = vmul.f32 %v7730, %v7737
      %v7747 = vmul.f32 %v7731, %v7741
      %v7748 = vld [vmem:[%s83] sm:$0x3]
      %v7750 = vlaneseq
      %v7751 = vshrl.u32 %v7750, 7
      %v7752 = vsub.s32 0, %v7751
      %v7753 = vrot.slane %v7748, %v7752
      %v7754 = vlaneseq
      %v7755 = vshrl.u32 %v7754, 7
      %v7756 = vsub.s32 1, %v7755
      %v7757 = vrot.slane %v7748, %v7756
      %v7760 = vadd.f32 %v7744, %v7753
      %v7761 = vadd.f32 %v7745, %v7757
      %v7762 = vadd.f32 %v7746, %v7753
      %v7763 = vadd.f32 %v7747, %v7757
      %v7764 = vmax.f32 %v7760, 0.0
      %v7765 = vmax.f32 %v7761, 0.0
      %v7766 = vmax.f32 %v7762, 0.0
      %v7767 = vmax.f32 %v7763, 0.0
      %v7768 = vpack.c.bf16 %v7766, %v7764
      %v7769 = vpack.c.bf16 %v7767, %v7765
      %v7770 = vld [vmem:[%s85] sm:$0xf]
      %v7771 = vld [vmem:[%s85 + $0x4] sm:$0xf]
      %v7772 = vld [vmem:[%s85 + $0x8] sm:$0xf]
      %v7773 = vld [vmem:[%s85 + $0xc] sm:$0xf]
      %v7774 = vld [vmem:[%s85 + $0x10] sm:$0xf]
      %v7775 = vld [vmem:[%s85 + $0x14] sm:$0xf]
      %v7776 = vld [vmem:[%s85 + $0x18] sm:$0xf]
      %v7777 = vld [vmem:[%s85 + $0x1c] sm:$0xf]
      %v7778 = vld [vmem:[%s85 + $0x20] sm:$0xf]
      %v7779 = vld [vmem:[%s85 + $0x24] sm:$0xf]
      %v7780 = vld [vmem:[%s85 + $0x28] sm:$0xf]
      %v7781 = vld [vmem:[%s85 + $0x2c] sm:$0xf]
      %v7782 = vld [vmem:[%s85 + $0x30] sm:$0xf]
      %v7783 = vld [vmem:[%s85 + $0x34] sm:$0xf]
      %v7784 = vld [vmem:[%s85 + $0x38] sm:$0xf]
      %v7785 = vld [vmem:[%s85 + $0x3c] sm:$0xf]
      %v7786 = vld [vmem:[%s85 + $0x40] sm:$0xf]
      %v7787 = vld [vmem:[%s85 + $0x44] sm:$0xf]
      %v7788 = vld [vmem:[%s85 + $0x48] sm:$0xf]
      %v7789 = vld [vmem:[%s85 + $0x4c] sm:$0xf]
      %v7790 = vld [vmem:[%s85 + $0x50] sm:$0xf]
      %v7791 = vld [vmem:[%s85 + $0x54] sm:$0xf]
      %v7792 = vld [vmem:[%s85 + $0x58] sm:$0xf]
      %v7793 = vld [vmem:[%s85 + $0x5c] sm:$0xf]
      %v7794 = vld [vmem:[%s85 + $0x60] sm:$0xf]
      %v7795 = vld [vmem:[%s85 + $0x64] sm:$0xf]
      %v7796 = vld [vmem:[%s85 + $0x68] sm:$0xf]
      %v7797 = vld [vmem:[%s85 + $0x6c] sm:$0xf]
      %v7798 = vld [vmem:[%s85 + $0x70] sm:$0xf]
      %v7799 = vld [vmem:[%s85 + $0x74] sm:$0xf]
      %v7800 = vld [vmem:[%s85 + $0x78] sm:$0xf]
      %v7801 = vld [vmem:[%s85 + $0x7c] sm:$0xf]
      %v7802 = vld [vmem:[%s87] sm:$0x1]
      %v7804 = vlaneseq
      %v7805 = vshrl.u32 %v7804, 7
      %v7806 = vsub.s32 0, %v7805
      %v7807 = vrot.slane %v7802, %v7806
      %v7841 = vunpack.c.l.b16 %v7770
      %v7842 = vunpack.c.l.b16 %v7771
      %v7843 = vunpack.c.l.b16 %v7772
      %v7844 = vunpack.c.l.b16 %v7773
      %v7845 = vunpack.c.l.b16 %v7774
      %v7846 = vunpack.c.l.b16 %v7775
      %v7847 = vunpack.c.l.b16 %v7776
      %v7848 = vunpack.c.l.b16 %v7777
      %v7849 = vunpack.c.l.b16 %v7778
      %v7850 = vunpack.c.l.b16 %v7779
      %v7851 = vunpack.c.l.b16 %v7780
      %v7852 = vunpack.c.l.b16 %v7781
      %v7853 = vunpack.c.l.b16 %v7782
      %v7854 = vunpack.c.l.b16 %v7783
      %v7855 = vunpack.c.l.b16 %v7784
      %v7856 = vunpack.c.l.b16 %v7785
      %v7857 = vunpack.c.l.b16 %v7786
      %v7858 = vunpack.c.l.b16 %v7787
      %v7859 = vunpack.c.l.b16 %v7788
      %v7860 = vunpack.c.l.b16 %v7789
      %v7861 = vunpack.c.l.b16 %v7790
      %v7862 = vunpack.c.l.b16 %v7791
      %v7863 = vunpack.c.l.b16 %v7792
      %v7864 = vunpack.c.l.b16 %v7793
      %v7865 = vunpack.c.l.b16 %v7794
      %v7866 = vunpack.c.l.b16 %v7795
      %v7867 = vunpack.c.l.b16 %v7796
      %v7868 = vunpack.c.l.b16 %v7797
      %v7869 = vunpack.c.l.b16 %v7798
      %v7870 = vunpack.c.l.b16 %v7799
      %v7871 = vunpack.c.l.b16 %v7800
      %v7872 = vunpack.c.l.b16 %v7801
      %v7873 = vpack.c.b16 %v7842, %v7841
      %v7874 = vpack.c.b16 %v7844, %v7843
      %v7875 = vpack.c.b16 %v7846, %v7845
      %v7876 = vpack.c.b16 %v7848, %v7847
      %v7877 = vpack.c.b16 %v7850, %v7849
      %v7878 = vpack.c.b16 %v7852, %v7851
      %v7879 = vpack.c.b16 %v7854, %v7853
      %v7880 = vpack.c.b16 %v7856, %v7855
      %v7881 = vpack.c.b16 %v7858, %v7857
      %v7882 = vpack.c.b16 %v7860, %v7859
      %v7883 = vpack.c.b16 %v7862, %v7861
      %v7884 = vpack.c.b16 %v7864, %v7863
      %v7885 = vpack.c.b16 %v7866, %v7865
      %v7886 = vpack.c.b16 %v7868, %v7867
      %v7887 = vpack.c.b16 %v7870, %v7869
      %v7888 = vpack.c.b16 %v7872, %v7871
      %7905 = vmatprep.subr.bf16.mxu0 0
      %7906 = vmatpush1.bf16.msra.mxu0 %v7880
      %7907 = vmatprep.subr.bf16.mxu0 0
      %7908 = vmatpush1.bf16.msra.mxu0 %v7879
      %7909 = vmatprep.subr.bf16.mxu0 0
      %7910 = vmatpush1.bf16.msra.mxu0 %v7878
      %7911 = vmatprep.subr.bf16.mxu0 0
      %7912 = vmatpush1.bf16.msra.mxu0 %v7877
      %7913 = vmatprep.subr.bf16.mxu0 0
      %7914 = vmatpush1.bf16.msra.mxu0 %v7876
      %7915 = vmatprep.subr.bf16.mxu0 0
      %7916 = vmatpush1.bf16.msra.mxu0 %v7875
      %7917 = vmatprep.subr.bf16.mxu0 0
      %7918 = vmatpush1.bf16.msra.mxu0 %v7874
      %7919 = vmatprep.subr.bf16.mxu0 0
      %7920 = vmatpush1.bf16.msra.mxu0 %v7873
      %7921 = vmatprep.subr.bf16.mxu0 0
      %7922 = vmatpush2.bf16.msra.mxu0 %v7888
      %7923 = vmatprep.subr.bf16.mxu0 0
      %7924 = vmatpush2.bf16.msra.mxu0 %v7887
      %7925 = vmatprep.subr.bf16.mxu0 0
      %7926 = vmatpush2.bf16.msra.mxu0 %v7886
      %7927 = vmatprep.subr.bf16.mxu0 0
      %7928 = vmatpush2.bf16.msra.mxu0 %v7885
      %7929 = vmatprep.subr.bf16.mxu0 0
      %7930 = vmatpush2.bf16.msra.mxu0 %v7884
      %7931 = vmatprep.subr.bf16.mxu0 0
      %7932 = vmatpush2.bf16.msra.mxu0 %v7883
      %7933 = vmatprep.subr.bf16.mxu0 0
      %7934 = vmatpush2.bf16.msra.mxu0 %v7882
      %7935 = vmatprep.subr.bf16.mxu0 0
      %7936 = vmatpush2.bf16.msra.mxu0 %v7881
      %7937 = vmatprep.mubr.bf16.mxu0 %v7769
      %7938 = vmatmul.mubr.bf16.gmra.mxu0 %v7768
      %v7939 = vpop.f32.mrf.mxu0
      %v7940 = vadd.f32 %v7807, %v7939
      %v7941 = vpop.f32.mrf.mxu0
      %v7942 = vpop.f32.mrf.mxu0
      %v7943 = vadd.f32 %v7807, %v7942
      %v7944 = vpop.f32.mrf.mxu0
      %7945 = vdwg.mxu0
      %v7946 = vtanh.pop %v7940
      %v7947 = vtanh.pop %v7943
      %v7948 = vxor.u32 %v7940, 2147483648
      %v7949 = vxor.u32 %v7943, 2147483648
      %v7950 = vmul.f32 %v7948, 1.442695
      %v7951 = vpow.pop %v7950
      %v7952 = vmul.f32 %v7949, 1.442695
      %v7953 = vpow.pop %v7952
      %v7954 = vadd.f32 %v7951, 1.0
      %v7955 = vadd.f32 %v7953, 1.0
      %v7956 = vrcp.pop %v7954
      %v7957 = vmul.f32 1.0, %v7956
      %v7958 = vrcp.pop %v7955
      %v7959 = vmul.f32 1.0, %v7958
      %v7960 = vlaneseq
      %v7961 = vand.u32 %v7960, 127
      %vm7962 = vcmp.eq.s32.totalorder %v7961, 0
      %vm7963 = vcmp.eq.s32.totalorder %v7961, 1
      %7965 = vset.pattern.permute.xlu0 1
      %7966 = vperm.xlu0 %7965, %v7957
      %v7967 = vpop.permute.xlu0 %7966
      %7970 = vset.pattern.permute.xlu0 1
      %7971 = vperm.xlu0 %7970, %v7959
      %v7972 = vpop.permute.xlu0 %7971
      %v7974 = vsel %vm7963, %v7967, 0.0
      %v7975 = vsel %vm7963, %v7972, 0.0
      %7977 = vset.pattern.permute.xlu0 0
      %7978 = vperm.xlu0 %7977, %v7946
      %v7979 = vpop.permute.xlu0 %7978
      %7982 = vset.pattern.permute.xlu0 0
      %7983 = vperm.xlu0 %7982, %v7947
      %v7984 = vpop.permute.xlu0 %7983
      %v7986 = vsel %vm7962, %v7979, %v7974
      %v7987 = vsel %vm7962, %v7984, %v7975
      %7988 = vst [vmem:[%s1349] sm:$0xff] %v7986
      %7989 = vst [vmem:[%s1349 + $0x8] sm:$0xff] %v7987
      %s7990 = smul.u32 2, %s100
      %p7991 = scmp.lt.s32.totalorder %s7990, 3
      %s7992 = scalar_select %p7991, %s7990, 3
      %s7993 = smul.addr %s7992, 8
      %s7994 = scalar_lea.vmem %s89, %s7993
      // Predicated region
      $region197: #{gnn_forward.1} parent=195 // pred_check
        %p7995 = pneg %p1052
      $region198: #{gnn_forward.1} parent=195 // pred_check_branch
        %7997 = sbr.rel (%p7995) target = $region200
      $region199: #{gnn_forward.1} parent=195 // pred_region
        %s7998 = smul.u32 2, %s100
      $region200: #{gnn_forward.1} parent=195 // pred_fallthru
        _
    $region196: #{gnn_forward.1} parent=5 // pred_fallthru
      _
    %p7999 = scmp.le.s32.totalorder 2, %s95
    // Predicated region
    $region201: #{gnn_forward.1} parent=5 // pred_check
      %p8000 = pneg %p7999
    $region202: #{gnn_forward.1} parent=5 // pred_check_branch
      %8002 = sbr.rel (%p8000) target = $region204
    $region203: #{gnn_forward.1} parent=5 // pred_region
      %s8003 = ssub.s32 %s95, 2
      // Predicated region
      $region205: #{gnn_forward.1} parent=203 // pred_check
        %p8004 = pneg %p1058
      $region206: #{gnn_forward.1} parent=203 // pred_check_branch
        %8006 = sbr.rel (%p8004) target = $region208
      $region207: #{gnn_forward.1} parent=203 // pred_region
        %s8007 = smul.u32 2, %s101
        %p8008 = scmp.lt.s32.totalorder %s8007, 3
        %s8009 = scalar_select %p8008, %s8007, 3
        %s8010 = smul.addr %s8009, 8
        %s8011 = scalar_lea.vmem %s89, %s8010
      $region208: #{gnn_forward.1} parent=203 // pred_fallthru
        _
    $region204: #{gnn_forward.1} parent=5 // pred_fallthru
      _
  $region6: #{gnn_forward.1} parent=0 // loop_footer
    %s99 = sadd.s32 1, %s95
  $region7: #{gnn_forward.1} parent=0 // loop_footer_branch
    %94 = sbr.rel target = $region3
  $region8: #{gnn_forward.1} parent=0 // loop_exit
    _

</llo_original>
